<compile_context>
chip_gen: v6e
topology: v6e:2x2x1
jax: 0.10.0
libtpu: 0.0.40
codegen_flags: <defaults>
</compile_context>

<pallas_src>
import numpy as np
import jax
import jax.numpy as jnp
from jax import lax
from jax.experimental import pallas as pl
from jax.experimental.pallas import tpu as pltpu


# ----------------------------- host-side constant helpers -----------------------------

def gaussian_kernel_2d(size, sigma):
    """Identical to the PyTorch module's gaussian_kernel()."""
    x, y = np.mgrid[-size:size + 1, -size:size + 1]
    kernel = np.exp(-0.5 * (x * x + y * y) / (sigma * sigma))
    kernel /= kernel.sum()
    return kernel


def gaussian_kernel_1d(size, sigma):
    """1-D factor of the separable 2-D Gaussian: outer(g, g) == gaussian_kernel_2d."""
    k = np.arange(-size, size + 1, dtype=np.float64)
    g = np.exp(-0.5 * k * k / (sigma * sigma))
    return g / g.sum()


def blur_matrix(n, g1d, size):
    """Banded Toeplitz A (n, n): A @ p == 'same' zero-padded 1-D conv of p's columns with g1d
    (and p @ A does the rows). g1d is symmetric, so A is symmetric."""
    A = np.zeros((n, n), dtype=np.float64)
    for i in range(n):
        for j in range(max(0, i - size), min(n, i + size + 1)):
            A[i, j] = g1d[j - i + size]
    return A.astype(np.float32)


# ----------------------------- Pallas kernel -----------------------------

def ssim_plane_kernel(x_ref, y_ref, ah_ref, aw_ref, out_ref):
    # x_ref, y_ref : VMEM (H, W) f32   -- one (batch, channel) plane
    # ah_ref       : VMEM (H, H) f32   -- vertical blur (Toeplitz) matrix
    # aw_ref       : VMEM (W, W) f32   -- horizontal blur (Toeplitz) matrix
    # out_ref      : VMEM (1, 1) f32   -- per-plane sum of the SSIM map
    x = x_ref[...]
    y = y_ref[...]
    ah = ah_ref[...]
    aw = aw_ref[...]

    def blur(p):
        # separable depthwise Gaussian blur as two MXU matmuls: A_H @ P @ A_W
        t = jnp.dot(p, aw, preferred_element_type=jnp.float32,
                    precision=lax.Precision.HIGHEST)
        return jnp.dot(ah, t, preferred_element_type=jnp.float32,
                       precision=lax.Precision.HIGHEST)

    mu1 = blur(x)
    mu2 = blur(y)
    mu1_sq = mu1 * mu1
    mu2_sq = mu2 * mu2
    mu12 = mu1 * mu2
    sigma1_sq = blur(x * x) - mu1_sq
    sigma2_sq = blur(y * y) - mu2_sq
    sigma12 = blur(x * y) - mu12

    c1 = 0.01 ** 2
    c2 = 0.03 ** 2
    num = (2.0 * mu12 + c1) * (2.0 * sigma12 + c2)
    den = (mu1_sq + mu2_sq + c1) * (sigma1_sq + sigma2_sq + c2)
    ssim = num / den

    # Scalar reduce, broadcast-stored into the (1, 1) output block.
    out_ref[...] = jnp.zeros_like(out_ref) + jnp.sum(ssim)


# ----------------------------- wrapper -----------------------------

def ssim_loss(inp, target, mask=None, size=11, sigma=1.5, size_average=True):
    """Pallas implementation of SSIM_Loss.forward(input, target, mask)."""
    del mask  # unused in the PyTorch module's forward as well
    N, C, H, W = inp.shape
    assert target.shape == inp.shape

    g1 = gaussian_kernel_1d(size, sigma)
    a_h = jnp.asarray(blur_matrix(H, g1, size))   # (H, H) f32
    a_w = jnp.asarray(blur_matrix(W, g1, size))   # (W, W) f32

    x = inp.astype(jnp.float32)
    y = target.astype(jnp.float32)

    sums = pl.pallas_call(
        ssim_plane_kernel,
        out_shape=jax.ShapeDtypeStruct((N, C, 1, 1), jnp.float32),
        grid=(N, C),
        in_specs=[
            pl.BlockSpec((None, None, H, W), lambda n, c: (n, c, 0, 0)),  # x plane
            pl.BlockSpec((None, None, H, W), lambda n, c: (n, c, 0, 0)),  # y plane
            pl.BlockSpec((H, H), lambda n, c: (0, 0)),                    # A_H (resident)
            pl.BlockSpec((W, W), lambda n, c: (0, 0)),                    # A_W (resident)
        ],
        out_specs=pl.BlockSpec((None, None, 1, 1), lambda n, c: (n, c, 0, 0)),
        compiler_params=pltpu.CompilerParams(
            dimension_semantics=("parallel", "parallel")),
    )(x, y, a_h, a_w)

    sums = sums.reshape(N, C)
    if size_average:
        return 1.0 - jnp.sum(sums) / (N * C * H * W)
    return 1.0 - jnp.sum(sums, axis=1) / (C * H * W)


# ----------------------------- pure-JAX reference (mirrors PyTorch) -----------------------------

def ssim_loss_ref(inp, target, size=11, sigma=1.5, size_average=True):
    N, C, H, W = inp.shape
    k2d = gaussian_kernel_2d(size, sigma)
    weight = jnp.asarray(np.tile(k2d, (C, 1, 1, 1)).astype(np.float32))  # (C, 1, k, k)

    def conv(p):
        return lax.conv_general_dilated(
            p, weight, window_strides=(1, 1),
            padding=[(size, size), (size, size)],
            dimension_numbers=("NCHW", "OIHW", "NCHW"),
            feature_group_count=C,
            precision=lax.Precision.HIGHEST)

    x = inp.astype(jnp.float32)
    y = target.astype(jnp.float32)
    mu1 = conv(x)
    mu2 = conv(y)
    mu1_sq = mu1 * mu1
    mu2_sq = mu2 * mu2
    mu12 = mu1 * mu2
    sigma1_sq = conv(x * x) - mu1_sq
    sigma2_sq = conv(y * y) - mu2_sq
    sigma12 = conv(x * y) - mu12
    c1 = 0.01 ** 2
    c2 = 0.03 ** 2
    ssim = (2 * mu12 + c1) * (2 * sigma12 + c2) / ((mu1_sq + mu2_sq + c1) * (sigma1_sq + sigma2_sq + c2))
    if size_average:
        return 1.0 - jnp.mean(ssim)
    return 1.0 - jnp.mean(ssim.reshape(N, -1), axis=1)


if __name__ == "__main__":
    key = jax.random.PRNGKey(0)
    k1, k2 = jax.random.split(key)

    N, C, H, W = 2, 3, 32, 32          # small shapes consistent with the module
    size, sigma = 11, 1.5              # module defaults -> 23x23 Gaussian, padding 11

    x = jax.random.uniform(k1, (N, C, H, W), dtype=jnp.float32)
    noise = jax.random.uniform(k2, (N, C, H, W), dtype=jnp.float32)
    y = jnp.clip(0.8 * x + 0.2 * noise, 0.0, 1.0)   # correlated "distorted" image

    loss = jax.block_until_ready(ssim_loss(x, y, size=size, sigma=sigma))
    ref = jax.block_until_ready(ssim_loss_ref(x, y, size=size, sigma=sigma))

    assert jnp.allclose(loss, ref, rtol=1e-3, atol=1e-3), (loss, ref)
    print("KERNEL_OK")
</pallas_src>

<mosaic_0001>
module attributes {stable_mosaic.version = 11 : i64} {
  func.func @ssim_plane_kernel(%arg0: i32, %arg1: i32, %arg2: memref<1x1x32x32xf32, #tpu.memory_space<vmem>>, %arg3: memref<1x1x32x32xf32, #tpu.memory_space<vmem>>, %arg4: memref<32x32xf32, #tpu.memory_space<vmem>>, %arg5: memref<32x32xf32, #tpu.memory_space<vmem>>, %arg6: memref<1x1x1x1xf32, #tpu.memory_space<vmem>>) attributes {dimension_semantics = [#tpu.dimension_semantics<parallel>, #tpu.dimension_semantics<parallel>], iteration_bounds = array<i64: 2, 3>, scalar_prefetch = 0 : i64, scratch_operands = 0 : i64, tpu.core_type = #tpu.core_type<tc>, window_params = [{transform_indices = @transform_0, window_bounds = array<i64: 1, 1, 32, 32>}, {transform_indices = @transform_1, window_bounds = array<i64: 1, 1, 32, 32>}, {pipeline_mode = #tpu.pipeline_mode<synchronous>, transform_indices = @transform_2, window_bounds = array<i64: 32, 32>}, {pipeline_mode = #tpu.pipeline_mode<synchronous>, transform_indices = @transform_3, window_bounds = array<i64: 32, 32>}, {transform_indices = @transform_4, window_bounds = array<i64: 1, 1, 1, 1>}]} {
    %c0 = arith.constant 0 : index
    %c0_0 = arith.constant 0 : index
    %c0_1 = arith.constant 0 : index
    %c0_2 = arith.constant 0 : index
    %0 = vector.load %arg2[%c0, %c0_0, %c0_1, %c0_2] : memref<1x1x32x32xf32, #tpu.memory_space<vmem>>, vector<1x1x32x32xf32>
    %1 = vector.shape_cast %0 : vector<1x1x32x32xf32> to vector<32x32xf32>
    %c0_3 = arith.constant 0 : index
    %c0_4 = arith.constant 0 : index
    %c0_5 = arith.constant 0 : index
    %c0_6 = arith.constant 0 : index
    %2 = vector.load %arg3[%c0_3, %c0_4, %c0_5, %c0_6] : memref<1x1x32x32xf32, #tpu.memory_space<vmem>>, vector<1x1x32x32xf32>
    %3 = vector.shape_cast %2 : vector<1x1x32x32xf32> to vector<32x32xf32>
    %c0_7 = arith.constant 0 : index
    %c0_8 = arith.constant 0 : index
    %4 = vector.load %arg4[%c0_7, %c0_8] : memref<32x32xf32, #tpu.memory_space<vmem>>, vector<32x32xf32>
    %c0_9 = arith.constant 0 : index
    %c0_10 = arith.constant 0 : index
    %5 = vector.load %arg5[%c0_9, %c0_10] : memref<32x32xf32, #tpu.memory_space<vmem>>, vector<32x32xf32>
    %cst = arith.constant dense<0.000000e+00> : vector<32x32xf32>
    %6 = tpu.matmul %1, %5, %cst {dimension_numbers = #tpu.dot_dimension_numbers<[1], [0], [0], [1], [0, 0, 1, 1], [], []>, precision = #tpu.contract_precision<fp32>} : vector<32x32xf32>, vector<32x32xf32>, vector<32x32xf32> -> vector<32x32xf32>
    %cst_11 = arith.constant dense<0.000000e+00> : vector<32x32xf32>
    %7 = tpu.matmul %4, %6, %cst_11 {dimension_numbers = #tpu.dot_dimension_numbers<[1], [0], [0], [1], [0, 0, 1, 1], [], []>, precision = #tpu.contract_precision<fp32>} : vector<32x32xf32>, vector<32x32xf32>, vector<32x32xf32> -> vector<32x32xf32>
    %cst_12 = arith.constant dense<0.000000e+00> : vector<32x32xf32>
    %8 = tpu.matmul %3, %5, %cst_12 {dimension_numbers = #tpu.dot_dimension_numbers<[1], [0], [0], [1], [0, 0, 1, 1], [], []>, precision = #tpu.contract_precision<fp32>} : vector<32x32xf32>, vector<32x32xf32>, vector<32x32xf32> -> vector<32x32xf32>
    %cst_13 = arith.constant dense<0.000000e+00> : vector<32x32xf32>
    %9 = tpu.matmul %4, %8, %cst_13 {dimension_numbers = #tpu.dot_dimension_numbers<[1], [0], [0], [1], [0, 0, 1, 1], [], []>, precision = #tpu.contract_precision<fp32>} : vector<32x32xf32>, vector<32x32xf32>, vector<32x32xf32> -> vector<32x32xf32>
    %10 = arith.mulf %7, %7 : vector<32x32xf32>
    %11 = arith.mulf %9, %9 : vector<32x32xf32>
    %12 = arith.mulf %7, %9 : vector<32x32xf32>
    %13 = arith.mulf %1, %1 : vector<32x32xf32>
    %cst_14 = arith.constant dense<0.000000e+00> : vector<32x32xf32>
    %14 = tpu.matmul %13, %5, %cst_14 {dimension_numbers = #tpu.dot_dimension_numbers<[1], [0], [0], [1], [0, 0, 1, 1], [], []>, precision = #tpu.contract_precision<fp32>} : vector<32x32xf32>, vector<32x32xf32>, vector<32x32xf32> -> vector<32x32xf32>
    %cst_15 = arith.constant dense<0.000000e+00> : vector<32x32xf32>
    %15 = tpu.matmul %4, %14, %cst_15 {dimension_numbers = #tpu.dot_dimension_numbers<[1], [0], [0], [1], [0, 0, 1, 1], [], []>, precision = #tpu.contract_precision<fp32>} : vector<32x32xf32>, vector<32x32xf32>, vector<32x32xf32> -> vector<32x32xf32>
    %16 = arith.subf %15, %10 : vector<32x32xf32>
    %17 = arith.mulf %3, %3 : vector<32x32xf32>
    %cst_16 = arith.constant dense<0.000000e+00> : vector<32x32xf32>
    %18 = tpu.matmul %17, %5, %cst_16 {dimension_numbers = #tpu.dot_dimension_numbers<[1], [0], [0], [1], [0, 0, 1, 1], [], []>, precision = #tpu.contract_precision<fp32>} : vector<32x32xf32>, vector<32x32xf32>, vector<32x32xf32> -> vector<32x32xf32>
    %cst_17 = arith.constant dense<0.000000e+00> : vector<32x32xf32>
    %19 = tpu.matmul %4, %18, %cst_17 {dimension_numbers = #tpu.dot_dimension_numbers<[1], [0], [0], [1], [0, 0, 1, 1], [], []>, precision = #tpu.contract_precision<fp32>} : vector<32x32xf32>, vector<32x32xf32>, vector<32x32xf32> -> vector<32x32xf32>
    %20 = arith.subf %19, %11 : vector<32x32xf32>
    %21 = arith.mulf %1, %3 : vector<32x32xf32>
    %cst_18 = arith.constant dense<0.000000e+00> : vector<32x32xf32>
    %22 = tpu.matmul %21, %5, %cst_18 {dimension_numbers = #tpu.dot_dimension_numbers<[1], [0], [0], [1], [0, 0, 1, 1], [], []>, precision = #tpu.contract_precision<fp32>} : vector<32x32xf32>, vector<32x32xf32>, vector<32x32xf32> -> vector<32x32xf32>
    %cst_19 = arith.constant dense<0.000000e+00> : vector<32x32xf32>
    %23 = tpu.matmul %4, %22, %cst_19 {dimension_numbers = #tpu.dot_dimension_numbers<[1], [0], [0], [1], [0, 0, 1, 1], [], []>, precision = #tpu.contract_precision<fp32>} : vector<32x32xf32>, vector<32x32xf32>, vector<32x32xf32> -> vector<32x32xf32>
    %24 = arith.subf %23, %12 : vector<32x32xf32>
    %cst_20 = arith.constant 2.000000e+00 : f32
    %25 = vector.broadcast %cst_20 : f32 to vector<32x32xf32>
    %26 = arith.mulf %25, %12 : vector<32x32xf32>
    %cst_21 = arith.constant 9.99999974E-5 : f32
    %27 = vector.broadcast %cst_21 : f32 to vector<32x32xf32>
    %28 = arith.addf %26, %27 : vector<32x32xf32>
    %cst_22 = arith.constant 2.000000e+00 : f32
    %29 = vector.broadcast %cst_22 : f32 to vector<32x32xf32>
    %30 = arith.mulf %29, %24 : vector<32x32xf32>
    %cst_23 = arith.constant 8.99999984E-4 : f32
    %31 = vector.broadcast %cst_23 : f32 to vector<32x32xf32>
    %32 = arith.addf %30, %31 : vector<32x32xf32>
    %33 = arith.mulf %28, %32 : vector<32x32xf32>
    %34 = arith.addf %10, %11 : vector<32x32xf32>
    %cst_24 = arith.constant 9.99999974E-5 : f32
    %35 = vector.broadcast %cst_24 : f32 to vector<32x32xf32>
    %36 = arith.addf %34, %35 : vector<32x32xf32>
    %37 = arith.addf %16, %20 : vector<32x32xf32>
    %cst_25 = arith.constant 8.99999984E-4 : f32
    %38 = vector.broadcast %cst_25 : f32 to vector<32x32xf32>
    %39 = arith.addf %37, %38 : vector<32x32xf32>
    %40 = arith.mulf %36, %39 : vector<32x32xf32>
    %41 = arith.divf %33, %40 : vector<32x32xf32>
    %cst_26 = arith.constant 0.000000e+00 : f32
    %42 = vector.broadcast %cst_26 : f32 to vector<1x1xf32>
    %43 = vector.shape_cast %41 : vector<32x32xf32> to vector<1x32x32xf32>
    %cst_27 = arith.constant dense<0.000000e+00> : vector<1xf32>
    %44 = vector.multi_reduction <add>, %43, %cst_27 [1, 2] : vector<1x32x32xf32> to vector<1xf32>
    %45 = vector.shape_cast %44 : vector<1xf32> to vector<1x1x1xf32>
    %46 = vector.extract %45[0, 0, 0] : f32 from vector<1x1x1xf32>
    %47 = vector.broadcast %46 : f32 to vector<1x1xf32>
    %48 = arith.addf %42, %47 : vector<1x1xf32>
    %c0_28 = arith.constant 0 : index
    %c0_29 = arith.constant 0 : index
    %c0_30 = arith.constant 0 : index
    %c0_31 = arith.constant 0 : index
    %49 = vector.load %arg6[%c0_28, %c0_29, %c0_30, %c0_31] : memref<1x1x1x1xf32, #tpu.memory_space<vmem>>, vector<1x1x1x1xf32>
    %50 = vector.shape_cast %49 : vector<1x1x1x1xf32> to vector<1x1xf32>
    %51 = vector.shape_cast %48 : vector<1x1xf32> to vector<1x1x1x1xf32>
    tpu.vector_store %arg6[%c0_28, %c0_29, %c0_30, %c0_31], %51 {strides = array<i32>} : memref<1x1x1x1xf32, #tpu.memory_space<vmem>>, vector<1x1x1x1xf32>,
    return
  }
  func.func @transform_0(%arg0: i32, %arg1: i32) -> (i32, i32, i32, i32) {
    %c0_i32 = arith.constant 0 : i32
    %c0_i32_0 = arith.constant 0 : i32
    %c0_i32_1 = arith.constant 0 : i32
    return %arg0, %arg1, %c0_i32, %c0_i32_0 : i32, i32, i32, i32
  }
  func.func @transform_1(%arg0: i32, %arg1: i32) -> (i32, i32, i32, i32) {
    %c0_i32 = arith.constant 0 : i32
    %c0_i32_0 = arith.constant 0 : i32
    %c0_i32_1 = arith.constant 0 : i32
    return %arg0, %arg1, %c0_i32, %c0_i32_0 : i32, i32, i32, i32
  }
  func.func @transform_2(%arg0: i32, %arg1: i32) -> (i32, i32) {
    %c0_i32 = arith.constant 0 : i32
    %c0_i32_0 = arith.constant 0 : i32
    %c0_i32_1 = arith.constant 0 : i32
    return %c0_i32, %c0_i32_0 : i32, i32
  }
  func.func @transform_3(%arg0: i32, %arg1: i32) -> (i32, i32) {
    %c0_i32 = arith.constant 0 : i32
    %c0_i32_0 = arith.constant 0 : i32
    %c0_i32_1 = arith.constant 0 : i32
    return %c0_i32, %c0_i32_0 : i32, i32
  }
  func.func @transform_4(%arg0: i32, %arg1: i32) -> (i32, i32, i32, i32) {
    %c0_i32 = arith.constant 0 : i32
    %c0_i32_0 = arith.constant 0 : i32
    %c0_i32_1 = arith.constant 0 : i32
    return %arg0, %arg1, %c0_i32, %c0_i32_0 : i32, i32, i32, i32
  }
}

</mosaic_0001>

<llo_original>
// kernel: tpu_custom_call.1
$region0: #{tpu_custom_call.1}
  #allocation0 [shape = 'u32[]', space=smem, size = 0x4, offset = 0x4, fixed_abs, tag = 'smem constant byte address 0x4 - core index']
  #allocation1 [shape = 'u32[144,128]{1,0:T(1,128)}', space=vmem, size = 0x12000, scoped, tag = 'internal scratch']
  %s0 = inlined_call_operand.hbm [shape: f32[2,3,32,32], index: 0, kind: input, shape index: {}]
  %s1 = inlined_call_operand.hbm [shape: f32[2,3,32,32], index: 1, kind: input, shape index: {}]
  %s2 = inlined_call_operand.hbm [shape: f32[32,32], index: 2, kind: input, shape index: {}]
  %s3 = inlined_call_operand.hbm [shape: f32[32,32], index: 3, kind: input, shape index: {}]
  %s4 = inlined_call_operand.vmem [shape: f32[2,3,1,1], index: 4, kind: output, shape index: {}]
  %s5 = sld [smem:[#allocation0]]
  $region65: #{tpu_custom_call.1} parent=0
    _
  %s7 = ssub.s32 1, %s5
  %s8 = scalar_select 0, %s7, %s5
  $region1: #{tpu_custom_call.1} parent=0
    #allocation2 [shape = 'u8[32768]{0}', space=vmem, size = 0x8000, scoped, tag = 'input window, operand 0']
    #allocation3 [shape = 's32[2]{0}', space=sflag, size = 0x8, scoped, tag = 'scoped memory for tpu_custom_call.1']
    #allocation4 [shape = 'u8[32768]{0}', space=vmem, size = 0x8000, scoped, tag = 'input window, operand 1']
    #allocation5 [shape = 's32[2]{0}', space=sflag, size = 0x8, scoped, tag = 'scoped memory for tpu_custom_call.1']
    #allocation6 [shape = 'u8[16384]{0}', space=vmem, size = 0x4000, scoped, tag = 'input window, operand 2, single buffered']
    #allocation7 [shape = 'u8[16384]{0}', space=vmem, size = 0x4000, scoped, tag = 'input window, operand 3, single buffered']
    #allocation8 [shape = 's32[1]{0}', space=sflag, size = 0x4, scoped, tag = 'scoped memory for tpu_custom_call.1']
    %9 = vsyncpa [#allocation3], 0
    %s10 = scalar_lea.sflag [#allocation3], 1
    %11 = vsyncpa %s10, 0
    %12 = vsyncpa [#allocation5], 0
    %s13 = scalar_lea.sflag [#allocation5], 1
    %14 = vsyncpa %s13, 0
    %15 = vsyncpa [#allocation8], 0
    loop: start=0, step=1, limit=8
    $region2: #{tpu_custom_call.1} parent=1 // loop_pre_header
      _
    $region3: #{tpu_custom_call.1} parent=1 // loop_header
      %s17 = sphi 0, %s21
      %p18 = scmp.ge.s32.totalorder %s17, 8
      %s24 = sphi 0, %s36
      %s25 = sphi 0, %s32
      %s26 = sphi 0, %s24
      %s27 = sphi 0, %s25
      %s28 = sphi 0, %s26
      %s29 = sphi 0, %s27
      %s41 = sphi 0, %s43
      %s44 = sphi 0, %s41
      %s45 = sphi 0, %s44
      %s61 = sphi 0, %s45
      %s69 = sphi 0, %s71
      %s72 = sphi 0, %s69
      %s73 = sphi 0, %s72
      %s89 = sphi 0, %s73
      %s93 = sphi 0, %s93
      %s95 = sphi 0, %s93
      %s96 = sphi 0, %s95
      %s110 = sphi 0, %s96
      %s114 = sphi 0, %s114
      %s116 = sphi 0, %s114
      %s117 = sphi 0, %s116
      %s131 = sphi 0, %s117
      %s139 = sphi 0, %s141
      %s142 = sphi 0, %s139
      %s143 = sphi 0, %s142
      %s159 = sphi 0, %s143
    $region4: #{tpu_custom_call.1} parent=1 // loop_header_branch
      %20 = sbr.rel (%p18) target = $region8
    $region5: #{tpu_custom_call.1} parent=1 // loop_body
      %s22 = ssub.s32 %s17, 1
      %s23 = ssub.s32 %s17, 2
      %s30 = sadd.s32 1, %s25
      %p31 = scmp.ge.s32.totalorder %s30, 3
      %s32 = scalar_select %p31, 0, %s30
      %s33 = sadd.s32 1, %s24
      %s34 = scalar_select %p31, %s33, %s24
      %p35 = scmp.ge.s32.totalorder %s34, 2
      %s36 = scalar_select %p35, 0, %s34
      %s37 = ssub.s32 %s24, %s36
      %s38 = ssub.s32 %s25, %s32
      %s39 = sor.u32 %s37, %s38
      %p40 = scmp.eq.s32.totalorder %s39, 0
      %s42 = sadd.s32 %s41, 1
      %s43 = scalar_select %p40, %s41, %s42
      %p46 = pneg %p40
      %p47 = scmp.eq.s32.totalorder %s17, 5
      %p48 = por %p46, %p47
      %p49 = scmp.ne.s32.totalorder %s41, %s44
      %p50 = scmp.eq.s32.totalorder %s17, 0
      %p51 = por %p49, %p50
      %p52 = scmp.ne.s32.totalorder %s41, %s44
      %p53 = scmp.eq.s32.totalorder %s22, 5
      %p54 = por %p52, %p53
      %p55 = scmp.ne.s32.totalorder %s44, %s45
      %p56 = scmp.eq.s32.totalorder %s22, 0
      %p57 = por %p55, %p56
      %p58 = scmp.ne.s32.totalorder %s44, %s45
      %p59 = scmp.eq.s32.totalorder %s23, 5
      %p60 = por %p58, %p59
      %p62 = scmp.ne.s32.totalorder %s45, %s61
      %p63 = scmp.eq.s32.totalorder %s23, 0
      %p64 = por %p62, %p63
      %s65 = ssub.s32 %s24, %s36
      %s66 = ssub.s32 %s25, %s32
      %s67 = sor.u32 %s65, %s66
      %p68 = scmp.eq.s32.totalorder %s67, 0
      %s70 = sadd.s32 %s69, 1
      %s71 = scalar_select %p68, %s69, %s70
      %p74 = pneg %p68
      %p75 = scmp.eq.s32.totalorder %s17, 5
      %p76 = por %p74, %p75
      %p77 = scmp.ne.s32.totalorder %s69, %s72
      %p78 = scmp.eq.s32.totalorder %s17, 0
      %p79 = por %p77, %p78
      %p80 = scmp.ne.s32.totalorder %s69, %s72
      %p81 = scmp.eq.s32.totalorder %s22, 5
      %p82 = por %p80, %p81
      %p83 = scmp.ne.s32.totalorder %s72, %s73
      %p84 = scmp.eq.s32.totalorder %s22, 0
      %p85 = por %p83, %p84
      %p86 = scmp.ne.s32.totalorder %s72, %s73
      %p87 = scmp.eq.s32.totalorder %s23, 5
      %p88 = por %p86, %p87
      %p90 = scmp.ne.s32.totalorder %s73, %s89
      %p91 = scmp.eq.s32.totalorder %s23, 0
      %p92 = por %p90, %p91
      %s94 = sadd.s32 %s93, 1
      %p97 = scmp.eq.s32.totalorder %s17, 5
      %p98 = scmp.ne.s32.totalorder %s93, %s95
      %p99 = scmp.eq.s32.totalorder %s17, 0
      %p100 = por %p98, %p99
      %p101 = scmp.ne.s32.totalorder %s93, %s95
      %p102 = scmp.eq.s32.totalorder %s22, 5
      %p103 = por %p101, %p102
      %p104 = scmp.ne.s32.totalorder %s95, %s96
      %p105 = scmp.eq.s32.totalorder %s22, 0
      %p106 = por %p104, %p105
      %p107 = scmp.ne.s32.totalorder %s95, %s96
      %p108 = scmp.eq.s32.totalorder %s23, 5
      %p109 = por %p107, %p108
      %p111 = scmp.ne.s32.totalorder %s96, %s110
      %p112 = scmp.eq.s32.totalorder %s23, 0
      %p113 = por %p111, %p112
      %s115 = sadd.s32 %s114, 1
      %p118 = scmp.eq.s32.totalorder %s17, 5
      %p119 = scmp.ne.s32.totalorder %s114, %s116
      %p120 = scmp.eq.s32.totalorder %s17, 0
      %p121 = por %p119, %p120
      %p122 = scmp.ne.s32.totalorder %s114, %s116
      %p123 = scmp.eq.s32.totalorder %s22, 5
      %p124 = por %p122, %p123
      %p125 = scmp.ne.s32.totalorder %s116, %s117
      %p126 = scmp.eq.s32.totalorder %s22, 0
      %p127 = por %p125, %p126
      %p128 = scmp.ne.s32.totalorder %s116, %s117
      %p129 = scmp.eq.s32.totalorder %s23, 5
      %p130 = por %p128, %p129
      %p132 = scmp.ne.s32.totalorder %s117, %s131
      %p133 = scmp.eq.s32.totalorder %s23, 0
      %p134 = por %p132, %p133
      %s135 = ssub.s32 %s24, %s36
      %s136 = ssub.s32 %s25, %s32
      %s137 = sor.u32 %s135, %s136
      %p138 = scmp.eq.s32.totalorder %s137, 0
      %s140 = sadd.s32 %s139, 1
      %s141 = scalar_select %p138, %s139, %s140
      %p144 = pneg %p138
      %p145 = scmp.eq.s32.totalorder %s17, 5
      %p146 = por %p144, %p145
      %p147 = scmp.ne.s32.totalorder %s139, %s142
      %p148 = scmp.eq.s32.totalorder %s17, 0
      %p149 = por %p147, %p148
      %p150 = scmp.ne.s32.totalorder %s139, %s142
      %p151 = scmp.eq.s32.totalorder %s22, 5
      %p152 = por %p150, %p151
      %p153 = scmp.ne.s32.totalorder %s142, %s143
      %p154 = scmp.eq.s32.totalorder %s22, 0
      %p155 = por %p153, %p154
      %p156 = scmp.ne.s32.totalorder %s142, %s143
      %p157 = scmp.eq.s32.totalorder %s23, 5
      %p158 = por %p156, %p157
      %p160 = scmp.ne.s32.totalorder %s143, %s159
      %p161 = scmp.eq.s32.totalorder %s23, 0
      %p162 = por %p160, %p161
      %p163 = scmp.le.s32.totalorder 1, %s17
      %p164 = scmp.lt.s32.totalorder %s17, 7
      %p165 = pnand %p163, %p164
      %p166 = pneg %p165
      // Predicated region
      $region9: #{tpu_custom_call.1} parent=5 // pred_check
        _
      $region10: #{tpu_custom_call.1} parent=5 // pred_check_branch
        %168 = sbr.rel (%p165) target = $region12
      $region11: #{tpu_custom_call.1} parent=5 // pred_region
        %s169 = ssub.s32 %s17, 1
        // Predicated region
        $region13: #{tpu_custom_call.1} parent=11 // pred_check
          %p170 = pneg %p106
        $region14: #{tpu_custom_call.1} parent=11 // pred_check_branch
          %172 = sbr.rel (%p170) target = $region16
        $region15: #{tpu_custom_call.1} parent=11 // pred_region
          %s174 = ssub.s32 512, 512
          %175 = vsyncadd [#allocation5], %s174
          %s176 = sshll.u32 [#allocation6], 4
          %s177 = int_to_ptr.vmem [resolvable:$true] %s176
          %182 = dma.hbm_to_vmem [thread:$0]  %s2, 512, %s177, [#allocation5], 128, 128, 8
        $region16: #{tpu_custom_call.1} parent=11 // pred_fallthru
          _
        // Predicated region
        $region17: #{tpu_custom_call.1} parent=11 // pred_check
          %p183 = pneg %p127
        $region18: #{tpu_custom_call.1} parent=11 // pred_check_branch
          %185 = sbr.rel (%p183) target = $region20
        $region19: #{tpu_custom_call.1} parent=11 // pred_region
          %s187 = ssub.s32 512, 512
          %188 = vsyncadd [#allocation8], %s187
          %s189 = sshll.u32 [#allocation7], 4
          %s190 = int_to_ptr.vmem [resolvable:$true] %s189
          %195 = dma.hbm_to_vmem [thread:$0]  %s3, 512, %s190, [#allocation8], 128, 128, 8
        $region20: #{tpu_custom_call.1} parent=11 // pred_fallthru
          _
      $region12: #{tpu_custom_call.1} parent=5 // pred_fallthru
        _
      %p196 = scmp.lt.s32.totalorder %s17, 6
      // Predicated region
      $region21: #{tpu_custom_call.1} parent=5 // pred_check
        %p197 = pneg %p196
      $region22: #{tpu_custom_call.1} parent=5 // pred_check_branch
        %199 = sbr.rel (%p197) target = $region24
      $region23: #{tpu_custom_call.1} parent=5 // pred_region
        // Predicated region
        $region25: #{tpu_custom_call.1} parent=23 // pred_check
          %p200 = pneg %p51
        $region26: #{tpu_custom_call.1} parent=23 // pred_check_branch
          %202 = sbr.rel (%p200) target = $region28
        $region27: #{tpu_custom_call.1} parent=23 // pred_region
          %s203 = sand.u32 %s41, 1
          %s204 = scalar_lea.sflag [#allocation3], %s203
          %s205 = sand.u32 %s41, 1
          %s206 = smul.addr %s205, 32
          %s207 = scalar_lea.vmem [#allocation2], %s206
          %s209 = ssub.s32 512, 512
          %210 = vsyncadd %s204, %s209
          %s211 = smul.addr %s25, 4
          %s212 = smul.addr %s24, 12
          %s213 = sadd.s32 %s211, %s212
          %s214 = smul.addr %s213, 128
          %s215 = scalar_lea.hbm %s0, %s214
          %s216 = sshll.u32 %s207, 4
          %s217 = int_to_ptr.vmem [resolvable:$true] %s216
          %222 = dma.hbm_to_vmem [thread:$0]  %s215, 512, %s217, %s204, 128, 128, 8
        $region28: #{tpu_custom_call.1} parent=23 // pred_fallthru
          _
        // Predicated region
        $region29: #{tpu_custom_call.1} parent=23 // pred_check
          %p223 = pneg %p79
        $region30: #{tpu_custom_call.1} parent=23 // pred_check_branch
          %225 = sbr.rel (%p223) target = $region32
        $region31: #{tpu_custom_call.1} parent=23 // pred_region
          %s226 = sand.u32 %s17, 1
          %s227 = scalar_lea.sflag [#allocation5], %s226
          %s228 = sand.u32 %s69, 1
          %s229 = smul.addr %s228, 32
          %s230 = scalar_lea.vmem [#allocation4], %s229
          %s232 = ssub.s32 512, 512
          %233 = vsyncadd %s227, %s232
          %s234 = smul.addr %s25, 4
          %s235 = smul.addr %s24, 12
          %s236 = sadd.s32 %s234, %s235
          %s237 = smul.addr %s236, 128
          %s238 = scalar_lea.hbm %s1, %s237
          %s239 = sshll.u32 %s230, 4
          %s240 = int_to_ptr.vmem [resolvable:$true] %s239
          %245 = dma.hbm_to_vmem [thread:$0]  %s238, 512, %s240, %s227, 128, 128, 8
        $region32: #{tpu_custom_call.1} parent=23 // pred_fallthru
          _
      $region24: #{tpu_custom_call.1} parent=5 // pred_fallthru
        _
      %p246 = scmp.le.s32.totalorder 1, %s17
      %p247 = scmp.lt.s32.totalorder %s17, 7
      %p248 = pnand %p246, %p247
      %p249 = pneg %p248
      // Predicated region
      $region33: #{tpu_custom_call.1} parent=5 // pred_check
        _
      $region34: #{tpu_custom_call.1} parent=5 // pred_check_branch
        %251 = sbr.rel (%p248) target = $region36
      $region35: #{tpu_custom_call.1} parent=5 // pred_region
        %s252 = ssub.s32 %s17, 1
        %s253 = sand.u32 %s44, 1
        %s254 = scalar_lea.sflag [#allocation3], %s253
        %s255 = sand.u32 %s44, 1
        %s256 = smul.addr %s255, 32
        %s257 = scalar_lea.vmem [#allocation2], %s256
        // Predicated region
        $region37: #{tpu_custom_call.1} parent=35 // pred_check
          %p258 = pneg %p57
        $region38: #{tpu_custom_call.1} parent=35 // pred_check_branch
          %260 = sbr.rel (%p258) target = $region40
        $region39: #{tpu_custom_call.1} parent=35 // pred_region
          %261 = dma.done %s254, 512
        $region40: #{tpu_custom_call.1} parent=35 // pred_fallthru
          _
        %s262 = sand.u32 %s22, 1
        %s263 = scalar_lea.sflag [#allocation5], %s262
        %s264 = sand.u32 %s72, 1
        %s265 = smul.addr %s264, 32
        %s266 = scalar_lea.vmem [#allocation4], %s265
        // Predicated region
        $region41: #{tpu_custom_call.1} parent=35 // pred_check
          %p267 = pneg %p85
        $region42: #{tpu_custom_call.1} parent=35 // pred_check_branch
          %269 = sbr.rel (%p267) target = $region44
        $region43: #{tpu_custom_call.1} parent=35 // pred_region
          %270 = dma.done %s263, 512
        $region44: #{tpu_custom_call.1} parent=35 // pred_fallthru
          _
        // Predicated region
        $region45: #{tpu_custom_call.1} parent=35 // pred_check
          %p271 = pneg %p106
        $region46: #{tpu_custom_call.1} parent=35 // pred_check_branch
          %273 = sbr.rel (%p271) target = $region48
        $region47: #{tpu_custom_call.1} parent=35 // pred_region
          %274 = dma.done [#allocation5], 512
        $region48: #{tpu_custom_call.1} parent=35 // pred_fallthru
          _
        // Predicated region
        $region49: #{tpu_custom_call.1} parent=35 // pred_check
          %p275 = pneg %p127
        $region50: #{tpu_custom_call.1} parent=35 // pred_check_branch
          %277 = sbr.rel (%p275) target = $region52
        $region51: #{tpu_custom_call.1} parent=35 // pred_region
          %278 = dma.done [#allocation8], 512
        $region52: #{tpu_custom_call.1} parent=35 // pred_fallthru
          _
        %s279 = sand.u32 %s44, 1
        %s280 = scalar_lea.sflag [#allocation3], %s279
        %s281 = sand.u32 %s44, 1
        %s282 = smul.addr %s281, 32
        %s283 = scalar_lea.vmem [#allocation2], %s282
        %p284 = pneg %p57
        %p285 = pneg %p54
        %s286 = sand.u32 %s22, 1
        %s287 = scalar_lea.sflag [#allocation5], %s286
        %s288 = sand.u32 %s72, 1
        %s289 = smul.addr %s288, 32
        %s290 = scalar_lea.vmem [#allocation4], %s289
        %p291 = pneg %p85
        %p292 = pneg %p82
        %p293 = pneg %p106
        %p294 = pneg %p103
        %p295 = pneg %p127
        %p296 = pneg %p124
        %p297 = pneg %p155
        %p298 = pneg %p152
        %p299 = scmp.lt.s32.totalorder %s26, 1
        %s300 = scalar_select %p299, %s26, 1
        %p301 = scmp.lt.s32.totalorder %s27, 2
        %s302 = scalar_select %p301, %s27, 2
        %s303 = smul.addr %s300, 3
        %s304 = sadd.s32 %s302, %s303
        %s305 = scalar_lea.vmem %s4, %s304
        %p306 = scmp.lt.s32.totalorder %s26, 1
        %s307 = scalar_select %p306, %s26, 1
        %p308 = scmp.lt.s32.totalorder %s27, 2
        %s309 = scalar_select %p308, %s27, 2
        %s310 = smul.addr %s307, 3
        %s311 = sadd.s32 %s309, %s310
        %s312 = scalar_lea.vmem %s4, %s311
        %v313 = vld [vmem:[%s257] sm:$0xff]
        %v314 = vld [vmem:[%s257 + $0x8] sm:$0xff]
        %v315 = vld [vmem:[%s257 + $0x10] sm:$0xff]
        %v316 = vld [vmem:[%s257 + $0x18] sm:$0xff]
        %v317 = vld [vmem:[%s266] sm:$0xff]
        %v318 = vld [vmem:[%s266 + $0x8] sm:$0xff]
        %v319 = vld [vmem:[%s266 + $0x10] sm:$0xff]
        %v320 = vld [vmem:[%s266 + $0x18] sm:$0xff]
        %v321 = vld [vmem:[#allocation6] sm:$0xff]
        %v322 = vld [vmem:[#allocation6 + $0x8] sm:$0xff]
        %v323 = vld [vmem:[#allocation6 + $0x10] sm:$0xff]
        %v324 = vld [vmem:[#allocation6 + $0x18] sm:$0xff]
        %v325 = vld [vmem:[#allocation7] sm:$0xff]
        %v326 = vld [vmem:[#allocation7 + $0x8] sm:$0xff]
        %v327 = vld [vmem:[#allocation7 + $0x10] sm:$0xff]
        %v328 = vld [vmem:[#allocation7 + $0x18] sm:$0xff]
        %vm329 = vcmask 261120
        %v331 = vsel %vm329, %v313, 0
        %v334 = vsel %vm329, %v314, 0
        %v337 = vsel %vm329, %v315, 0
        %v340 = vsel %vm329, %v316, 0
        %342 = vmatprep.subr.mxu0 0.0
        %343 = vmatpush1.msra.mxu0 0.0
        %344 = vmatprep.subr.mxu0 0.0
        %345 = vmatpush1.msra.mxu0 0.0
        %346 = vmatprep.subr.mxu0 0.0
        %347 = vmatpush1.msra.mxu0 0.0
        %348 = vmatprep.subr.mxu0 0.0
        %349 = vmatpush1.msra.mxu0 0.0
        %350 = vmatprep.subr.mxu0 0.0
        %351 = vmatpush1.msra.mxu0 0.0
        %352 = vmatprep.subr.mxu0 0.0
        %353 = vmatpush1.msra.mxu0 0.0
        %354 = vmatprep.subr.mxu0 0.0
        %355 = vmatpush1.msra.mxu0 0.0
        %356 = vmatprep.subr.mxu0 0.0
        %357 = vmatpush1.msra.mxu0 0.0
        %358 = vmatprep.subr.mxu0 0.0
        %359 = vmatpush1.msra.mxu0 0.0
        %360 = vmatprep.subr.mxu0 0.0
        %361 = vmatpush1.msra.mxu0 0.0
        %362 = vmatprep.subr.mxu0 0.0
        %363 = vmatpush1.msra.mxu0 0.0
        %364 = vmatprep.subr.mxu0 0.0
        %365 = vmatpush1.msra.mxu0 0.0
        %366 = vmatprep.subr.mxu0 0.0
        %v367 = vand.u32 %v328, 4294901760
        %368 = vmatpush1.msra.mxu0 %v367
        %369 = vmatprep.subr.mxu0 0.0
        %v370 = vand.u32 %v327, 4294901760
        %371 = vmatpush1.msra.mxu0 %v370
        %372 = vmatprep.subr.mxu0 0.0
        %v373 = vand.u32 %v326, 4294901760
        %374 = vmatpush1.msra.mxu0 %v373
        %375 = vmatprep.subr.mxu0 0.0
        %v376 = vand.u32 %v325, 4294901760
        %377 = vmatpush1.msra.mxu0 %v376
        %378 = vmatprep.subr.mxu0 0.0
        %379 = vmatpush2.msra.mxu0 0.0
        %380 = vmatprep.subr.mxu0 0.0
        %381 = vmatpush2.msra.mxu0 0.0
        %382 = vmatprep.subr.mxu0 0.0
        %383 = vmatpush2.msra.mxu0 0.0
        %384 = vmatprep.subr.mxu0 0.0
        %385 = vmatpush2.msra.mxu0 0.0
        %386 = vmatprep.subr.mxu0 0.0
        %387 = vmatpush2.msra.mxu0 0.0
        %388 = vmatprep.subr.mxu0 0.0
        %389 = vmatpush2.msra.mxu0 0.0
        %390 = vmatprep.subr.mxu0 0.0
        %391 = vmatpush2.msra.mxu0 0.0
        %392 = vmatprep.subr.mxu0 0.0
        %393 = vmatpush2.msra.mxu0 0.0
        %394 = vmatprep.subr.mxu0 0.0
        %395 = vmatpush2.msra.mxu0 0.0
        %396 = vmatprep.subr.mxu0 0.0
        %397 = vmatpush2.msra.mxu0 0.0
        %398 = vmatprep.subr.mxu0 0.0
        %399 = vmatpush2.msra.mxu0 0.0
        %400 = vmatprep.subr.mxu0 0.0
        %401 = vmatpush2.msra.mxu0 0.0
        %402 = vmatprep.subr.mxu0 0.0
        %403 = vmatpush2.msra.mxu0 0.0
        %404 = vmatprep.subr.mxu0 0.0
        %405 = vmatpush2.msra.mxu0 0.0
        %406 = vmatprep.subr.mxu0 0.0
        %407 = vmatpush2.msra.mxu0 0.0
        %408 = vmatprep.subr.mxu0 0.0
        %409 = vmatpush2.msra.mxu0 0.0
        %410 = vmatprep.mubr.f32.mxu0 0.0
        %v411 = vand.u32 %v331, 4294901760
        %v412 = vsub.f32 %v331, %v411
        %v413 = vand.u32 %v412, 4294901760
        %v414 = vsub.f32 %v412, %v413
        %v415 = vand.u32 %v414, 4294901760
        %416 = vmatmul.mubr.f32.gmra.mxu0 %v415
        %v417 = vpop.f32.mrf.mxu0
        %v418 = vadd.f32 0.0, %v417
        %v419 = vpop.f32.mrf.mxu0
        %420 = vmatprep.mubr.f32.mxu0 0.0
        %v421 = vand.u32 %v334, 4294901760
        %v422 = vsub.f32 %v334, %v421
        %v423 = vand.u32 %v422, 4294901760
        %v424 = vsub.f32 %v422, %v423
        %v425 = vand.u32 %v424, 4294901760
        %426 = vmatmul.mubr.f32.gmra.mxu0 %v425
        %v427 = vpop.f32.mrf.mxu0
        %v428 = vadd.f32 0.0, %v427
        %v429 = vpop.f32.mrf.mxu0
        %430 = vmatprep.mubr.f32.mxu0 0.0
        %v431 = vand.u32 %v337, 4294901760
        %v432 = vsub.f32 %v337, %v431
        %v433 = vand.u32 %v432, 4294901760
        %v434 = vsub.f32 %v432, %v433
        %v435 = vand.u32 %v434, 4294901760
        %436 = vmatmul.mubr.f32.gmra.mxu0 %v435
        %v437 = vpop.f32.mrf.mxu0
        %v438 = vadd.f32 0.0, %v437
        %v439 = vpop.f32.mrf.mxu0
        %440 = vmatprep.mubr.f32.mxu0 0.0
        %v441 = vand.u32 %v340, 4294901760
        %v442 = vsub.f32 %v340, %v441
        %v443 = vand.u32 %v442, 4294901760
        %v444 = vsub.f32 %v442, %v443
        %v445 = vand.u32 %v444, 4294901760
        %446 = vmatmul.mubr.f32.gmra.mxu0 %v445
        %v447 = vpop.f32.mrf.mxu0
        %v448 = vadd.f32 0.0, %v447
        %v449 = vpop.f32.mrf.mxu0
        %450 = vdwg.mxu0
        %451 = vmatprep.subr.mxu0 0.0
        %452 = vmatpush1.msra.mxu0 0.0
        %453 = vmatprep.subr.mxu0 0.0
        %454 = vmatpush1.msra.mxu0 0.0
        %455 = vmatprep.subr.mxu0 0.0
        %456 = vmatpush1.msra.mxu0 0.0
        %457 = vmatprep.subr.mxu0 0.0
        %458 = vmatpush1.msra.mxu0 0.0
        %459 = vmatprep.subr.mxu0 0.0
        %460 = vmatpush1.msra.mxu0 0.0
        %461 = vmatprep.subr.mxu0 0.0
        %462 = vmatpush1.msra.mxu0 0.0
        %463 = vmatprep.subr.mxu0 0.0
        %464 = vmatpush1.msra.mxu0 0.0
        %465 = vmatprep.subr.mxu0 0.0
        %466 = vmatpush1.msra.mxu0 0.0
        %467 = vmatprep.subr.mxu0 0.0
        %468 = vmatpush1.msra.mxu0 0.0
        %469 = vmatprep.subr.mxu0 0.0
        %470 = vmatpush1.msra.mxu0 0.0
        %471 = vmatprep.subr.mxu0 0.0
        %472 = vmatpush1.msra.mxu0 0.0
        %473 = vmatprep.subr.mxu0 0.0
        %474 = vmatpush1.msra.mxu0 0.0
        %475 = vmatprep.subr.mxu0 0.0
        %v476 = vand.u32 %v328, 4294901760
        %v477 = vsub.f32 %v328, %v476
        %v478 = vand.u32 %v477, 4294901760
        %v479 = vsub.f32 %v477, %v478
        %v480 = vand.u32 %v479, 4294901760
        %481 = vmatpush1.msra.mxu0 %v480
        %482 = vmatprep.subr.mxu0 0.0
        %v483 = vand.u32 %v327, 4294901760
        %v484 = vsub.f32 %v327, %v483
        %v485 = vand.u32 %v484, 4294901760
        %v486 = vsub.f32 %v484, %v485
        %v487 = vand.u32 %v486, 4294901760
        %488 = vmatpush1.msra.mxu0 %v487
        %489 = vmatprep.subr.mxu0 0.0
        %v490 = vand.u32 %v326, 4294901760
        %v491 = vsub.f32 %v326, %v490
        %v492 = vand.u32 %v491, 4294901760
        %v493 = vsub.f32 %v491, %v492
        %v494 = vand.u32 %v493, 4294901760
        %495 = vmatpush1.msra.mxu0 %v494
        %496 = vmatprep.subr.mxu0 0.0
        %v497 = vand.u32 %v325, 4294901760
        %v498 = vsub.f32 %v325, %v497
        %v499 = vand.u32 %v498, 4294901760
        %v500 = vsub.f32 %v498, %v499
        %v501 = vand.u32 %v500, 4294901760
        %502 = vmatpush1.msra.mxu0 %v501
        %503 = vmatprep.subr.mxu0 0.0
        %504 = vmatpush2.msra.mxu0 0.0
        %505 = vmatprep.subr.mxu0 0.0
        %506 = vmatpush2.msra.mxu0 0.0
        %507 = vmatprep.subr.mxu0 0.0
        %508 = vmatpush2.msra.mxu0 0.0
        %509 = vmatprep.subr.mxu0 0.0
        %510 = vmatpush2.msra.mxu0 0.0
        %511 = vmatprep.subr.mxu0 0.0
        %512 = vmatpush2.msra.mxu0 0.0
        %513 = vmatprep.subr.mxu0 0.0
        %514 = vmatpush2.msra.mxu0 0.0
        %515 = vmatprep.subr.mxu0 0.0
        %516 = vmatpush2.msra.mxu0 0.0
        %517 = vmatprep.subr.mxu0 0.0
        %518 = vmatpush2.msra.mxu0 0.0
        %519 = vmatprep.subr.mxu0 0.0
        %520 = vmatpush2.msra.mxu0 0.0
        %521 = vmatprep.subr.mxu0 0.0
        %522 = vmatpush2.msra.mxu0 0.0
        %523 = vmatprep.subr.mxu0 0.0
        %524 = vmatpush2.msra.mxu0 0.0
        %525 = vmatprep.subr.mxu0 0.0
        %526 = vmatpush2.msra.mxu0 0.0
        %527 = vmatprep.subr.mxu0 0.0
        %528 = vmatpush2.msra.mxu0 0.0
        %529 = vmatprep.subr.mxu0 0.0
        %530 = vmatpush2.msra.mxu0 0.0
        %531 = vmatprep.subr.mxu0 0.0
        %532 = vmatpush2.msra.mxu0 0.0
        %533 = vmatprep.subr.mxu0 0.0
        %534 = vmatpush2.msra.mxu0 0.0
        %535 = vmatprep.mubr.f32.mxu0 0.0
        %v536 = vand.u32 %v331, 4294901760
        %537 = vmatmul.mubr.f32.gmra.mxu0 %v536
        %v538 = vpop.f32.mrf.mxu0
        %v539 = vadd.f32 %v418, %v538
        %v540 = vpop.f32.mrf.mxu0
        %541 = vmatprep.mubr.f32.mxu0 0.0
        %v542 = vand.u32 %v334, 4294901760
        %543 = vmatmul.mubr.f32.gmra.mxu0 %v542
        %v544 = vpop.f32.mrf.mxu0
        %v545 = vadd.f32 %v428, %v544
        %v546 = vpop.f32.mrf.mxu0
        %547 = vmatprep.mubr.f32.mxu0 0.0
        %v548 = vand.u32 %v337, 4294901760
        %549 = vmatmul.mubr.f32.gmra.mxu0 %v548
        %v550 = vpop.f32.mrf.mxu0
        %v551 = vadd.f32 %v438, %v550
        %v552 = vpop.f32.mrf.mxu0
        %553 = vmatprep.mubr.f32.mxu0 0.0
        %v554 = vand.u32 %v340, 4294901760
        %555 = vmatmul.mubr.f32.gmra.mxu0 %v554
        %v556 = vpop.f32.mrf.mxu0
        %v557 = vadd.f32 %v448, %v556
        %v558 = vpop.f32.mrf.mxu0
        %559 = vdwg.mxu0
        %560 = vmatprep.subr.mxu0 0.0
        %561 = vmatpush1.msra.mxu0 0.0
        %562 = vmatprep.subr.mxu0 0.0
        %563 = vmatpush1.msra.mxu0 0.0
        %564 = vmatprep.subr.mxu0 0.0
        %565 = vmatpush1.msra.mxu0 0.0
        %566 = vmatprep.subr.mxu0 0.0
        %567 = vmatpush1.msra.mxu0 0.0
        %568 = vmatprep.subr.mxu0 0.0
        %569 = vmatpush1.msra.mxu0 0.0
        %570 = vmatprep.subr.mxu0 0.0
        %571 = vmatpush1.msra.mxu0 0.0
        %572 = vmatprep.subr.mxu0 0.0
        %573 = vmatpush1.msra.mxu0 0.0
        %574 = vmatprep.subr.mxu0 0.0
        %575 = vmatpush1.msra.mxu0 0.0
        %576 = vmatprep.subr.mxu0 0.0
        %577 = vmatpush1.msra.mxu0 0.0
        %578 = vmatprep.subr.mxu0 0.0
        %579 = vmatpush1.msra.mxu0 0.0
        %580 = vmatprep.subr.mxu0 0.0
        %581 = vmatpush1.msra.mxu0 0.0
        %582 = vmatprep.subr.mxu0 0.0
        %583 = vmatpush1.msra.mxu0 0.0
        %584 = vmatprep.subr.mxu0 0.0
        %v585 = vand.u32 %v328, 4294901760
        %v586 = vsub.f32 %v328, %v585
        %587 = vmatpush1.msra.mxu0 %v586
        %588 = vmatprep.subr.mxu0 0.0
        %v589 = vand.u32 %v327, 4294901760
        %v590 = vsub.f32 %v327, %v589
        %591 = vmatpush1.msra.mxu0 %v590
        %592 = vmatprep.subr.mxu0 0.0
        %v593 = vand.u32 %v326, 4294901760
        %v594 = vsub.f32 %v326, %v593
        %595 = vmatpush1.msra.mxu0 %v594
        %596 = vmatprep.subr.mxu0 0.0
        %v597 = vand.u32 %v325, 4294901760
        %v598 = vsub.f32 %v325, %v597
        %599 = vmatpush1.msra.mxu0 %v598
        %600 = vmatprep.subr.mxu0 0.0
        %601 = vmatpush2.msra.mxu0 0.0
        %602 = vmatprep.subr.mxu0 0.0
        %603 = vmatpush2.msra.mxu0 0.0
        %604 = vmatprep.subr.mxu0 0.0
        %605 = vmatpush2.msra.mxu0 0.0
        %606 = vmatprep.subr.mxu0 0.0
        %607 = vmatpush2.msra.mxu0 0.0
        %608 = vmatprep.subr.mxu0 0.0
        %609 = vmatpush2.msra.mxu0 0.0
        %610 = vmatprep.subr.mxu0 0.0
        %611 = vmatpush2.msra.mxu0 0.0
        %612 = vmatprep.subr.mxu0 0.0
        %613 = vmatpush2.msra.mxu0 0.0
        %614 = vmatprep.subr.mxu0 0.0
        %615 = vmatpush2.msra.mxu0 0.0
        %616 = vmatprep.subr.mxu0 0.0
        %617 = vmatpush2.msra.mxu0 0.0
        %618 = vmatprep.subr.mxu0 0.0
        %619 = vmatpush2.msra.mxu0 0.0
        %620 = vmatprep.subr.mxu0 0.0
        %621 = vmatpush2.msra.mxu0 0.0
        %622 = vmatprep.subr.mxu0 0.0
        %623 = vmatpush2.msra.mxu0 0.0
        %624 = vmatprep.subr.mxu0 0.0
        %625 = vmatpush2.msra.mxu0 0.0
        %626 = vmatprep.subr.mxu0 0.0
        %627 = vmatpush2.msra.mxu0 0.0
        %628 = vmatprep.subr.mxu0 0.0
        %629 = vmatpush2.msra.mxu0 0.0
        %630 = vmatprep.subr.mxu0 0.0
        %631 = vmatpush2.msra.mxu0 0.0
        %632 = vmatprep.mubr.f32.mxu0 0.0
        %v633 = vand.u32 %v331, 4294901760
        %v634 = vsub.f32 %v331, %v633
        %635 = vmatmul.mubr.f32.gmra.mxu0 %v634
        %v636 = vpop.f32.mrf.mxu0
        %v637 = vadd.f32 %v539, %v636
        %v638 = vpop.f32.mrf.mxu0
        %639 = vmatprep.mubr.f32.mxu0 0.0
        %v640 = vand.u32 %v334, 4294901760
        %v641 = vsub.f32 %v334, %v640
        %642 = vmatmul.mubr.f32.gmra.mxu0 %v641
        %v643 = vpop.f32.mrf.mxu0
        %v644 = vadd.f32 %v545, %v643
        %v645 = vpop.f32.mrf.mxu0
        %646 = vmatprep.mubr.f32.mxu0 0.0
        %v647 = vand.u32 %v337, 4294901760
        %v648 = vsub.f32 %v337, %v647
        %649 = vmatmul.mubr.f32.gmra.mxu0 %v648
        %v650 = vpop.f32.mrf.mxu0
        %v651 = vadd.f32 %v551, %v650
        %v652 = vpop.f32.mrf.mxu0
        %653 = vmatprep.mubr.f32.mxu0 0.0
        %v654 = vand.u32 %v340, 4294901760
        %v655 = vsub.f32 %v340, %v654
        %656 = vmatmul.mubr.f32.gmra.mxu0 %v655
        %v657 = vpop.f32.mrf.mxu0
        %v658 = vadd.f32 %v557, %v657
        %v659 = vpop.f32.mrf.mxu0
        %660 = vdwg.mxu0
        %661 = vmatprep.subr.mxu0 0.0
        %662 = vmatpush1.msra.mxu0 0.0
        %663 = vmatprep.subr.mxu0 0.0
        %664 = vmatpush1.msra.mxu0 0.0
        %665 = vmatprep.subr.mxu0 0.0
        %666 = vmatpush1.msra.mxu0 0.0
        %667 = vmatprep.subr.mxu0 0.0
        %668 = vmatpush1.msra.mxu0 0.0
        %669 = vmatprep.subr.mxu0 0.0
        %670 = vmatpush1.msra.mxu0 0.0
        %671 = vmatprep.subr.mxu0 0.0
        %672 = vmatpush1.msra.mxu0 0.0
        %673 = vmatprep.subr.mxu0 0.0
        %674 = vmatpush1.msra.mxu0 0.0
        %675 = vmatprep.subr.mxu0 0.0
        %676 = vmatpush1.msra.mxu0 0.0
        %677 = vmatprep.subr.mxu0 0.0
        %678 = vmatpush1.msra.mxu0 0.0
        %679 = vmatprep.subr.mxu0 0.0
        %680 = vmatpush1.msra.mxu0 0.0
        %681 = vmatprep.subr.mxu0 0.0
        %682 = vmatpush1.msra.mxu0 0.0
        %683 = vmatprep.subr.mxu0 0.0
        %684 = vmatpush1.msra.mxu0 0.0
        %685 = vmatprep.subr.mxu0 0.0
        %v686 = vand.u32 %v328, 4294901760
        %687 = vmatpush1.msra.mxu0 %v686
        %688 = vmatprep.subr.mxu0 0.0
        %v689 = vand.u32 %v327, 4294901760
        %690 = vmatpush1.msra.mxu0 %v689
        %691 = vmatprep.subr.mxu0 0.0
        %v692 = vand.u32 %v326, 4294901760
        %693 = vmatpush1.msra.mxu0 %v692
        %694 = vmatprep.subr.mxu0 0.0
        %v695 = vand.u32 %v325, 4294901760
        %696 = vmatpush1.msra.mxu0 %v695
        %697 = vmatprep.subr.mxu0 0.0
        %698 = vmatpush2.msra.mxu0 0.0
        %699 = vmatprep.subr.mxu0 0.0
        %700 = vmatpush2.msra.mxu0 0.0
        %701 = vmatprep.subr.mxu0 0.0
        %702 = vmatpush2.msra.mxu0 0.0
        %703 = vmatprep.subr.mxu0 0.0
        %704 = vmatpush2.msra.mxu0 0.0
        %705 = vmatprep.subr.mxu0 0.0
        %706 = vmatpush2.msra.mxu0 0.0
        %707 = vmatprep.subr.mxu0 0.0
        %708 = vmatpush2.msra.mxu0 0.0
        %709 = vmatprep.subr.mxu0 0.0
        %710 = vmatpush2.msra.mxu0 0.0
        %711 = vmatprep.subr.mxu0 0.0
        %712 = vmatpush2.msra.mxu0 0.0
        %713 = vmatprep.subr.mxu0 0.0
        %714 = vmatpush2.msra.mxu0 0.0
        %715 = vmatprep.subr.mxu0 0.0
        %716 = vmatpush2.msra.mxu0 0.0
        %717 = vmatprep.subr.mxu0 0.0
        %718 = vmatpush2.msra.mxu0 0.0
        %719 = vmatprep.subr.mxu0 0.0
        %720 = vmatpush2.msra.mxu0 0.0
        %721 = vmatprep.subr.mxu0 0.0
        %722 = vmatpush2.msra.mxu0 0.0
        %723 = vmatprep.subr.mxu0 0.0
        %724 = vmatpush2.msra.mxu0 0.0
        %725 = vmatprep.subr.mxu0 0.0
        %726 = vmatpush2.msra.mxu0 0.0
        %727 = vmatprep.subr.mxu0 0.0
        %728 = vmatpush2.msra.mxu0 0.0
        %729 = vmatprep.mubr.f32.mxu0 0.0
        %v730 = vand.u32 %v331, 4294901760
        %v731 = vsub.f32 %v331, %v730
        %v732 = vand.u32 %v731, 4294901760
        %733 = vmatmul.mubr.f32.gmra.mxu0 %v732
        %v734 = vpop.f32.mrf.mxu0
        %v735 = vadd.f32 %v637, %v734
        %v736 = vpop.f32.mrf.mxu0
        %737 = vmatprep.mubr.f32.mxu0 0.0
        %v738 = vand.u32 %v334, 4294901760
        %v739 = vsub.f32 %v334, %v738
        %v740 = vand.u32 %v739, 4294901760
        %741 = vmatmul.mubr.f32.gmra.mxu0 %v740
        %v742 = vpop.f32.mrf.mxu0
        %v743 = vadd.f32 %v644, %v742
        %v744 = vpop.f32.mrf.mxu0
        %745 = vmatprep.mubr.f32.mxu0 0.0
        %v746 = vand.u32 %v337, 4294901760
        %v747 = vsub.f32 %v337, %v746
        %v748 = vand.u32 %v747, 4294901760
        %749 = vmatmul.mubr.f32.gmra.mxu0 %v748
        %v750 = vpop.f32.mrf.mxu0
        %v751 = vadd.f32 %v651, %v750
        %v752 = vpop.f32.mrf.mxu0
        %753 = vmatprep.mubr.f32.mxu0 0.0
        %v754 = vand.u32 %v340, 4294901760
        %v755 = vsub.f32 %v340, %v754
        %v756 = vand.u32 %v755, 4294901760
        %757 = vmatmul.mubr.f32.gmra.mxu0 %v756
        %v758 = vpop.f32.mrf.mxu0
        %v759 = vadd.f32 %v658, %v758
        %v760 = vpop.f32.mrf.mxu0
        %761 = vdwg.mxu0
        %762 = vmatprep.subr.mxu0 0.0
        %763 = vmatpush1.msra.mxu0 0.0
        %764 = vmatprep.subr.mxu0 0.0
        %765 = vmatpush1.msra.mxu0 0.0
        %766 = vmatprep.subr.mxu0 0.0
        %767 = vmatpush1.msra.mxu0 0.0
        %768 = vmatprep.subr.mxu0 0.0
        %769 = vmatpush1.msra.mxu0 0.0
        %770 = vmatprep.subr.mxu0 0.0
        %771 = vmatpush1.msra.mxu0 0.0
        %772 = vmatprep.subr.mxu0 0.0
        %773 = vmatpush1.msra.mxu0 0.0
        %774 = vmatprep.subr.mxu0 0.0
        %775 = vmatpush1.msra.mxu0 0.0
        %776 = vmatprep.subr.mxu0 0.0
        %777 = vmatpush1.msra.mxu0 0.0
        %778 = vmatprep.subr.mxu0 0.0
        %779 = vmatpush1.msra.mxu0 0.0
        %780 = vmatprep.subr.mxu0 0.0
        %781 = vmatpush1.msra.mxu0 0.0
        %782 = vmatprep.subr.mxu0 0.0
        %783 = vmatpush1.msra.mxu0 0.0
        %784 = vmatprep.subr.mxu0 0.0
        %785 = vmatpush1.msra.mxu0 0.0
        %786 = vmatprep.subr.mxu0 0.0
        %v787 = vand.u32 %v328, 4294901760
        %v788 = vsub.f32 %v328, %v787
        %v789 = vand.u32 %v788, 4294901760
        %790 = vmatpush1.msra.mxu0 %v789
        %791 = vmatprep.subr.mxu0 0.0
        %v792 = vand.u32 %v327, 4294901760
        %v793 = vsub.f32 %v327, %v792
        %v794 = vand.u32 %v793, 4294901760
        %795 = vmatpush1.msra.mxu0 %v794
        %796 = vmatprep.subr.mxu0 0.0
        %v797 = vand.u32 %v326, 4294901760
        %v798 = vsub.f32 %v326, %v797
        %v799 = vand.u32 %v798, 4294901760
        %800 = vmatpush1.msra.mxu0 %v799
        %801 = vmatprep.subr.mxu0 0.0
        %v802 = vand.u32 %v325, 4294901760
        %v803 = vsub.f32 %v325, %v802
        %v804 = vand.u32 %v803, 4294901760
        %805 = vmatpush1.msra.mxu0 %v804
        %806 = vmatprep.subr.mxu0 0.0
        %807 = vmatpush2.msra.mxu0 0.0
        %808 = vmatprep.subr.mxu0 0.0
        %809 = vmatpush2.msra.mxu0 0.0
        %810 = vmatprep.subr.mxu0 0.0
        %811 = vmatpush2.msra.mxu0 0.0
        %812 = vmatprep.subr.mxu0 0.0
        %813 = vmatpush2.msra.mxu0 0.0
        %814 = vmatprep.subr.mxu0 0.0
        %815 = vmatpush2.msra.mxu0 0.0
        %816 = vmatprep.subr.mxu0 0.0
        %817 = vmatpush2.msra.mxu0 0.0
        %818 = vmatprep.subr.mxu0 0.0
        %819 = vmatpush2.msra.mxu0 0.0
        %820 = vmatprep.subr.mxu0 0.0
        %821 = vmatpush2.msra.mxu0 0.0
        %822 = vmatprep.subr.mxu0 0.0
        %823 = vmatpush2.msra.mxu0 0.0
        %824 = vmatprep.subr.mxu0 0.0
        %825 = vmatpush2.msra.mxu0 0.0
        %826 = vmatprep.subr.mxu0 0.0
        %827 = vmatpush2.msra.mxu0 0.0
        %828 = vmatprep.subr.mxu0 0.0
        %829 = vmatpush2.msra.mxu0 0.0
        %830 = vmatprep.subr.mxu0 0.0
        %831 = vmatpush2.msra.mxu0 0.0
        %832 = vmatprep.subr.mxu0 0.0
        %833 = vmatpush2.msra.mxu0 0.0
        %834 = vmatprep.subr.mxu0 0.0
        %835 = vmatpush2.msra.mxu0 0.0
        %836 = vmatprep.subr.mxu0 0.0
        %837 = vmatpush2.msra.mxu0 0.0
        %838 = vmatprep.mubr.f32.mxu0 0.0
        %v839 = vand.u32 %v331, 4294901760
        %840 = vmatmul.mubr.f32.gmra.mxu0 %v839
        %v841 = vpop.f32.mrf.mxu0
        %v842 = vadd.f32 %v735, %v841
        %v843 = vpop.f32.mrf.mxu0
        %844 = vmatprep.mubr.f32.mxu0 0.0
        %v845 = vand.u32 %v334, 4294901760
        %846 = vmatmul.mubr.f32.gmra.mxu0 %v845
        %v847 = vpop.f32.mrf.mxu0
        %v848 = vadd.f32 %v743, %v847
        %v849 = vpop.f32.mrf.mxu0
        %850 = vmatprep.mubr.f32.mxu0 0.0
        %v851 = vand.u32 %v337, 4294901760
        %852 = vmatmul.mubr.f32.gmra.mxu0 %v851
        %v853 = vpop.f32.mrf.mxu0
        %v854 = vadd.f32 %v751, %v853
        %v855 = vpop.f32.mrf.mxu0
        %856 = vmatprep.mubr.f32.mxu0 0.0
        %v857 = vand.u32 %v340, 4294901760
        %858 = vmatmul.mubr.f32.gmra.mxu0 %v857
        %v859 = vpop.f32.mrf.mxu0
        %v860 = vadd.f32 %v759, %v859
        %v861 = vpop.f32.mrf.mxu0
        %862 = vdwg.mxu0
        %863 = vmatprep.subr.mxu0 0.0
        %864 = vmatpush1.msra.mxu0 0.0
        %865 = vmatprep.subr.mxu0 0.0
        %866 = vmatpush1.msra.mxu0 0.0
        %867 = vmatprep.subr.mxu0 0.0
        %868 = vmatpush1.msra.mxu0 0.0
        %869 = vmatprep.subr.mxu0 0.0
        %870 = vmatpush1.msra.mxu0 0.0
        %871 = vmatprep.subr.mxu0 0.0
        %872 = vmatpush1.msra.mxu0 0.0
        %873 = vmatprep.subr.mxu0 0.0
        %874 = vmatpush1.msra.mxu0 0.0
        %875 = vmatprep.subr.mxu0 0.0
        %876 = vmatpush1.msra.mxu0 0.0
        %877 = vmatprep.subr.mxu0 0.0
        %878 = vmatpush1.msra.mxu0 0.0
        %879 = vmatprep.subr.mxu0 0.0
        %880 = vmatpush1.msra.mxu0 0.0
        %881 = vmatprep.subr.mxu0 0.0
        %882 = vmatpush1.msra.mxu0 0.0
        %883 = vmatprep.subr.mxu0 0.0
        %884 = vmatpush1.msra.mxu0 0.0
        %885 = vmatprep.subr.mxu0 0.0
        %886 = vmatpush1.msra.mxu0 0.0
        %887 = vmatprep.subr.mxu0 0.0
        %v888 = vand.u32 %v328, 4294901760
        %889 = vmatpush1.msra.mxu0 %v888
        %890 = vmatprep.subr.mxu0 0.0
        %v891 = vand.u32 %v327, 4294901760
        %892 = vmatpush1.msra.mxu0 %v891
        %893 = vmatprep.subr.mxu0 0.0
        %v894 = vand.u32 %v326, 4294901760
        %895 = vmatpush1.msra.mxu0 %v894
        %896 = vmatprep.subr.mxu0 0.0
        %v897 = vand.u32 %v325, 4294901760
        %898 = vmatpush1.msra.mxu0 %v897
        %899 = vmatprep.subr.mxu0 0.0
        %900 = vmatpush2.msra.mxu0 0.0
        %901 = vmatprep.subr.mxu0 0.0
        %902 = vmatpush2.msra.mxu0 0.0
        %903 = vmatprep.subr.mxu0 0.0
        %904 = vmatpush2.msra.mxu0 0.0
        %905 = vmatprep.subr.mxu0 0.0
        %906 = vmatpush2.msra.mxu0 0.0
        %907 = vmatprep.subr.mxu0 0.0
        %908 = vmatpush2.msra.mxu0 0.0
        %909 = vmatprep.subr.mxu0 0.0
        %910 = vmatpush2.msra.mxu0 0.0
        %911 = vmatprep.subr.mxu0 0.0
        %912 = vmatpush2.msra.mxu0 0.0
        %913 = vmatprep.subr.mxu0 0.0
        %914 = vmatpush2.msra.mxu0 0.0
        %915 = vmatprep.subr.mxu0 0.0
        %916 = vmatpush2.msra.mxu0 0.0
        %917 = vmatprep.subr.mxu0 0.0
        %918 = vmatpush2.msra.mxu0 0.0
        %919 = vmatprep.subr.mxu0 0.0
        %920 = vmatpush2.msra.mxu0 0.0
        %921 = vmatprep.subr.mxu0 0.0
        %922 = vmatpush2.msra.mxu0 0.0
        %923 = vmatprep.subr.mxu0 0.0
        %924 = vmatpush2.msra.mxu0 0.0
        %925 = vmatprep.subr.mxu0 0.0
        %926 = vmatpush2.msra.mxu0 0.0
        %927 = vmatprep.subr.mxu0 0.0
        %928 = vmatpush2.msra.mxu0 0.0
        %929 = vmatprep.subr.mxu0 0.0
        %930 = vmatpush2.msra.mxu0 0.0
        %931 = vmatprep.mubr.f32.mxu0 0.0
        %v932 = vand.u32 %v331, 4294901760
        %933 = vmatmul.mubr.f32.gmra.mxu0 %v932
        %v934 = vpop.f32.mrf.mxu0
        %v935 = vadd.f32 %v842, %v934
        %v936 = vpop.f32.mrf.mxu0
        %937 = vmatprep.mubr.f32.mxu0 0.0
        %v938 = vand.u32 %v334, 4294901760
        %939 = vmatmul.mubr.f32.gmra.mxu0 %v938
        %v940 = vpop.f32.mrf.mxu0
        %v941 = vadd.f32 %v848, %v940
        %v942 = vpop.f32.mrf.mxu0
        %943 = vmatprep.mubr.f32.mxu0 0.0
        %v944 = vand.u32 %v337, 4294901760
        %945 = vmatmul.mubr.f32.gmra.mxu0 %v944
        %v946 = vpop.f32.mrf.mxu0
        %v947 = vadd.f32 %v854, %v946
        %v948 = vpop.f32.mrf.mxu0
        %949 = vmatprep.mubr.f32.mxu0 0.0
        %v950 = vand.u32 %v340, 4294901760
        %951 = vmatmul.mubr.f32.gmra.mxu0 %v950
        %v952 = vpop.f32.mrf.mxu0
        %v953 = vadd.f32 %v860, %v952
        %v954 = vpop.f32.mrf.mxu0
        %955 = vdwg.mxu0
        %v957 = vsel %vm329, %v321, 0
        %v960 = vsel %vm329, %v322, 0
        %v963 = vsel %vm329, %v323, 0
        %v966 = vsel %vm329, %v324, 0
        %968 = vmatprep.subr.mxu0 0.0
        %969 = vmatpush1.msra.mxu0 0.0
        %970 = vmatprep.subr.mxu0 0.0
        %971 = vmatpush1.msra.mxu0 0.0
        %972 = vmatprep.subr.mxu0 0.0
        %973 = vmatpush1.msra.mxu0 0.0
        %974 = vmatprep.subr.mxu0 0.0
        %975 = vmatpush1.msra.mxu0 0.0
        %976 = vmatprep.subr.mxu0 0.0
        %977 = vmatpush1.msra.mxu0 0.0
        %978 = vmatprep.subr.mxu0 0.0
        %979 = vmatpush1.msra.mxu0 0.0
        %980 = vmatprep.subr.mxu0 0.0
        %981 = vmatpush1.msra.mxu0 0.0
        %982 = vmatprep.subr.mxu0 0.0
        %983 = vmatpush1.msra.mxu0 0.0
        %984 = vmatprep.subr.mxu0 0.0
        %985 = vmatpush1.msra.mxu0 0.0
        %986 = vmatprep.subr.mxu0 0.0
        %987 = vmatpush1.msra.mxu0 0.0
        %988 = vmatprep.subr.mxu0 0.0
        %989 = vmatpush1.msra.mxu0 0.0
        %990 = vmatprep.subr.mxu0 0.0
        %991 = vmatpush1.msra.mxu0 0.0
        %992 = vmatprep.subr.mxu0 0.0
        %v993 = vand.u32 %v953, 4294901760
        %994 = vmatpush1.msra.mxu0 %v993
        %995 = vmatprep.subr.mxu0 0.0
        %v996 = vand.u32 %v947, 4294901760
        %997 = vmatpush1.msra.mxu0 %v996
        %998 = vmatprep.subr.mxu0 0.0
        %v999 = vand.u32 %v941, 4294901760
        %1000 = vmatpush1.msra.mxu0 %v999
        %1001 = vmatprep.subr.mxu0 0.0
        %v1002 = vand.u32 %v935, 4294901760
        %1003 = vmatpush1.msra.mxu0 %v1002
        %1004 = vmatprep.subr.mxu0 0.0
        %1005 = vmatpush2.msra.mxu0 0.0
        %1006 = vmatprep.subr.mxu0 0.0
        %1007 = vmatpush2.msra.mxu0 0.0
        %1008 = vmatprep.subr.mxu0 0.0
        %1009 = vmatpush2.msra.mxu0 0.0
        %1010 = vmatprep.subr.mxu0 0.0
        %1011 = vmatpush2.msra.mxu0 0.0
        %1012 = vmatprep.subr.mxu0 0.0
        %1013 = vmatpush2.msra.mxu0 0.0
        %1014 = vmatprep.subr.mxu0 0.0
        %1015 = vmatpush2.msra.mxu0 0.0
        %1016 = vmatprep.subr.mxu0 0.0
        %1017 = vmatpush2.msra.mxu0 0.0
        %1018 = vmatprep.subr.mxu0 0.0
        %1019 = vmatpush2.msra.mxu0 0.0
        %1020 = vmatprep.subr.mxu0 0.0
        %1021 = vmatpush2.msra.mxu0 0.0
        %1022 = vmatprep.subr.mxu0 0.0
        %1023 = vmatpush2.msra.mxu0 0.0
        %1024 = vmatprep.subr.mxu0 0.0
        %1025 = vmatpush2.msra.mxu0 0.0
        %1026 = vmatprep.subr.mxu0 0.0
        %1027 = vmatpush2.msra.mxu0 0.0
        %1028 = vmatprep.subr.mxu0 0.0
        %1029 = vmatpush2.msra.mxu0 0.0
        %1030 = vmatprep.subr.mxu0 0.0
        %1031 = vmatpush2.msra.mxu0 0.0
        %1032 = vmatprep.subr.mxu0 0.0
        %1033 = vmatpush2.msra.mxu0 0.0
        %1034 = vmatprep.subr.mxu0 0.0
        %1035 = vmatpush2.msra.mxu0 0.0
        %1036 = vmatprep.mubr.f32.mxu0 0.0
        %v1037 = vand.u32 %v957, 4294901760
        %v1038 = vsub.f32 %v957, %v1037
        %v1039 = vand.u32 %v1038, 4294901760
        %v1040 = vsub.f32 %v1038, %v1039
        %v1041 = vand.u32 %v1040, 4294901760
        %1042 = vmatmul.mubr.f32.gmra.mxu0 %v1041
        %v1043 = vpop.f32.mrf.mxu0
        %v1044 = vadd.f32 0.0, %v1043
        %v1045 = vpop.f32.mrf.mxu0
        %1046 = vmatprep.mubr.f32.mxu0 0.0
        %v1047 = vand.u32 %v960, 4294901760
        %v1048 = vsub.f32 %v960, %v1047
        %v1049 = vand.u32 %v1048, 4294901760
        %v1050 = vsub.f32 %v1048, %v1049
        %v1051 = vand.u32 %v1050, 4294901760
        %1052 = vmatmul.mubr.f32.gmra.mxu0 %v1051
        %v1053 = vpop.f32.mrf.mxu0
        %v1054 = vadd.f32 0.0, %v1053
        %v1055 = vpop.f32.mrf.mxu0
        %1056 = vmatprep.mubr.f32.mxu0 0.0
        %v1057 = vand.u32 %v963, 4294901760
        %v1058 = vsub.f32 %v963, %v1057
        %v1059 = vand.u32 %v1058, 4294901760
        %v1060 = vsub.f32 %v1058, %v1059
        %v1061 = vand.u32 %v1060, 4294901760
        %1062 = vmatmul.mubr.f32.gmra.mxu0 %v1061
        %v1063 = vpop.f32.mrf.mxu0
        %v1064 = vadd.f32 0.0, %v1063
        %v1065 = vpop.f32.mrf.mxu0
        %1066 = vmatprep.mubr.f32.mxu0 0.0
        %v1067 = vand.u32 %v966, 4294901760
        %v1068 = vsub.f32 %v966, %v1067
        %v1069 = vand.u32 %v1068, 4294901760
        %v1070 = vsub.f32 %v1068, %v1069
        %v1071 = vand.u32 %v1070, 4294901760
        %1072 = vmatmul.mubr.f32.gmra.mxu0 %v1071
        %v1073 = vpop.f32.mrf.mxu0
        %v1074 = vadd.f32 0.0, %v1073
        %v1075 = vpop.f32.mrf.mxu0
        %1076 = vdwg.mxu0
        %1077 = vmatprep.subr.mxu0 0.0
        %1078 = vmatpush1.msra.mxu0 0.0
        %1079 = vmatprep.subr.mxu0 0.0
        %1080 = vmatpush1.msra.mxu0 0.0
        %1081 = vmatprep.subr.mxu0 0.0
        %1082 = vmatpush1.msra.mxu0 0.0
        %1083 = vmatprep.subr.mxu0 0.0
        %1084 = vmatpush1.msra.mxu0 0.0
        %1085 = vmatprep.subr.mxu0 0.0
        %1086 = vmatpush1.msra.mxu0 0.0
        %1087 = vmatprep.subr.mxu0 0.0
        %1088 = vmatpush1.msra.mxu0 0.0
        %1089 = vmatprep.subr.mxu0 0.0
        %1090 = vmatpush1.msra.mxu0 0.0
        %1091 = vmatprep.subr.mxu0 0.0
        %1092 = vmatpush1.msra.mxu0 0.0
        %1093 = vmatprep.subr.mxu0 0.0
        %1094 = vmatpush1.msra.mxu0 0.0
        %1095 = vmatprep.subr.mxu0 0.0
        %1096 = vmatpush1.msra.mxu0 0.0
        %1097 = vmatprep.subr.mxu0 0.0
        %1098 = vmatpush1.msra.mxu0 0.0
        %1099 = vmatprep.subr.mxu0 0.0
        %1100 = vmatpush1.msra.mxu0 0.0
        %1101 = vmatprep.subr.mxu0 0.0
        %v1102 = vand.u32 %v953, 4294901760
        %v1103 = vsub.f32 %v953, %v1102
        %v1104 = vand.u32 %v1103, 4294901760
        %v1105 = vsub.f32 %v1103, %v1104
        %v1106 = vand.u32 %v1105, 4294901760
        %1107 = vmatpush1.msra.mxu0 %v1106
        %1108 = vmatprep.subr.mxu0 0.0
        %v1109 = vand.u32 %v947, 4294901760
        %v1110 = vsub.f32 %v947, %v1109
        %v1111 = vand.u32 %v1110, 4294901760
        %v1112 = vsub.f32 %v1110, %v1111
        %v1113 = vand.u32 %v1112, 4294901760
        %1114 = vmatpush1.msra.mxu0 %v1113
        %1115 = vmatprep.subr.mxu0 0.0
        %v1116 = vand.u32 %v941, 4294901760
        %v1117 = vsub.f32 %v941, %v1116
        %v1118 = vand.u32 %v1117, 4294901760
        %v1119 = vsub.f32 %v1117, %v1118
        %v1120 = vand.u32 %v1119, 4294901760
        %1121 = vmatpush1.msra.mxu0 %v1120
        %1122 = vmatprep.subr.mxu0 0.0
        %v1123 = vand.u32 %v935, 4294901760
        %v1124 = vsub.f32 %v935, %v1123
        %v1125 = vand.u32 %v1124, 4294901760
        %v1126 = vsub.f32 %v1124, %v1125
        %v1127 = vand.u32 %v1126, 4294901760
        %1128 = vmatpush1.msra.mxu0 %v1127
        %1129 = vmatprep.subr.mxu0 0.0
        %1130 = vmatpush2.msra.mxu0 0.0
        %1131 = vmatprep.subr.mxu0 0.0
        %1132 = vmatpush2.msra.mxu0 0.0
        %1133 = vmatprep.subr.mxu0 0.0
        %1134 = vmatpush2.msra.mxu0 0.0
        %1135 = vmatprep.subr.mxu0 0.0
        %1136 = vmatpush2.msra.mxu0 0.0
        %1137 = vmatprep.subr.mxu0 0.0
        %1138 = vmatpush2.msra.mxu0 0.0
        %1139 = vmatprep.subr.mxu0 0.0
        %1140 = vmatpush2.msra.mxu0 0.0
        %1141 = vmatprep.subr.mxu0 0.0
        %1142 = vmatpush2.msra.mxu0 0.0
        %1143 = vmatprep.subr.mxu0 0.0
        %1144 = vmatpush2.msra.mxu0 0.0
        %1145 = vmatprep.subr.mxu0 0.0
        %1146 = vmatpush2.msra.mxu0 0.0
        %1147 = vmatprep.subr.mxu0 0.0
        %1148 = vmatpush2.msra.mxu0 0.0
        %1149 = vmatprep.subr.mxu0 0.0
        %1150 = vmatpush2.msra.mxu0 0.0
        %1151 = vmatprep.subr.mxu0 0.0
        %1152 = vmatpush2.msra.mxu0 0.0
        %1153 = vmatprep.subr.mxu0 0.0
        %1154 = vmatpush2.msra.mxu0 0.0
        %1155 = vmatprep.subr.mxu0 0.0
        %1156 = vmatpush2.msra.mxu0 0.0
        %1157 = vmatprep.subr.mxu0 0.0
        %1158 = vmatpush2.msra.mxu0 0.0
        %1159 = vmatprep.subr.mxu0 0.0
        %1160 = vmatpush2.msra.mxu0 0.0
        %1161 = vmatprep.mubr.f32.mxu0 0.0
        %v1162 = vand.u32 %v957, 4294901760
        %1163 = vmatmul.mubr.f32.gmra.mxu0 %v1162
        %v1164 = vpop.f32.mrf.mxu0
        %v1165 = vadd.f32 %v1044, %v1164
        %v1166 = vpop.f32.mrf.mxu0
        %1167 = vmatprep.mubr.f32.mxu0 0.0
        %v1168 = vand.u32 %v960, 4294901760
        %1169 = vmatmul.mubr.f32.gmra.mxu0 %v1168
        %v1170 = vpop.f32.mrf.mxu0
        %v1171 = vadd.f32 %v1054, %v1170
        %v1172 = vpop.f32.mrf.mxu0
        %1173 = vmatprep.mubr.f32.mxu0 0.0
        %v1174 = vand.u32 %v963, 4294901760
        %1175 = vmatmul.mubr.f32.gmra.mxu0 %v1174
        %v1176 = vpop.f32.mrf.mxu0
        %v1177 = vadd.f32 %v1064, %v1176
        %v1178 = vpop.f32.mrf.mxu0
        %1179 = vmatprep.mubr.f32.mxu0 0.0
        %v1180 = vand.u32 %v966, 4294901760
        %1181 = vmatmul.mubr.f32.gmra.mxu0 %v1180
        %v1182 = vpop.f32.mrf.mxu0
        %v1183 = vadd.f32 %v1074, %v1182
        %v1184 = vpop.f32.mrf.mxu0
        %1185 = vdwg.mxu0
        %1186 = vmatprep.subr.mxu0 0.0
        %1187 = vmatpush1.msra.mxu0 0.0
        %1188 = vmatprep.subr.mxu0 0.0
        %1189 = vmatpush1.msra.mxu0 0.0
        %1190 = vmatprep.subr.mxu0 0.0
        %1191 = vmatpush1.msra.mxu0 0.0
        %1192 = vmatprep.subr.mxu0 0.0
        %1193 = vmatpush1.msra.mxu0 0.0
        %1194 = vmatprep.subr.mxu0 0.0
        %1195 = vmatpush1.msra.mxu0 0.0
        %1196 = vmatprep.subr.mxu0 0.0
        %1197 = vmatpush1.msra.mxu0 0.0
        %1198 = vmatprep.subr.mxu0 0.0
        %1199 = vmatpush1.msra.mxu0 0.0
        %1200 = vmatprep.subr.mxu0 0.0
        %1201 = vmatpush1.msra.mxu0 0.0
        %1202 = vmatprep.subr.mxu0 0.0
        %1203 = vmatpush1.msra.mxu0 0.0
        %1204 = vmatprep.subr.mxu0 0.0
        %1205 = vmatpush1.msra.mxu0 0.0
        %1206 = vmatprep.subr.mxu0 0.0
        %1207 = vmatpush1.msra.mxu0 0.0
        %1208 = vmatprep.subr.mxu0 0.0
        %1209 = vmatpush1.msra.mxu0 0.0
        %1210 = vmatprep.subr.mxu0 0.0
        %v1211 = vand.u32 %v953, 4294901760
        %v1212 = vsub.f32 %v953, %v1211
        %1213 = vmatpush1.msra.mxu0 %v1212
        %1214 = vmatprep.subr.mxu0 0.0
        %v1215 = vand.u32 %v947, 4294901760
        %v1216 = vsub.f32 %v947, %v1215
        %1217 = vmatpush1.msra.mxu0 %v1216
        %1218 = vmatprep.subr.mxu0 0.0
        %v1219 = vand.u32 %v941, 4294901760
        %v1220 = vsub.f32 %v941, %v1219
        %1221 = vmatpush1.msra.mxu0 %v1220
        %1222 = vmatprep.subr.mxu0 0.0
        %v1223 = vand.u32 %v935, 4294901760
        %v1224 = vsub.f32 %v935, %v1223
        %1225 = vmatpush1.msra.mxu0 %v1224
        %1226 = vmatprep.subr.mxu0 0.0
        %1227 = vmatpush2.msra.mxu0 0.0
        %1228 = vmatprep.subr.mxu0 0.0
        %1229 = vmatpush2.msra.mxu0 0.0
        %1230 = vmatprep.subr.mxu0 0.0
        %1231 = vmatpush2.msra.mxu0 0.0
        %1232 = vmatprep.subr.mxu0 0.0
        %1233 = vmatpush2.msra.mxu0 0.0
        %1234 = vmatprep.subr.mxu0 0.0
        %1235 = vmatpush2.msra.mxu0 0.0
        %1236 = vmatprep.subr.mxu0 0.0
        %1237 = vmatpush2.msra.mxu0 0.0
        %1238 = vmatprep.subr.mxu0 0.0
        %1239 = vmatpush2.msra.mxu0 0.0
        %1240 = vmatprep.subr.mxu0 0.0
        %1241 = vmatpush2.msra.mxu0 0.0
        %1242 = vmatprep.subr.mxu0 0.0
        %1243 = vmatpush2.msra.mxu0 0.0
        %1244 = vmatprep.subr.mxu0 0.0
        %1245 = vmatpush2.msra.mxu0 0.0
        %1246 = vmatprep.subr.mxu0 0.0
        %1247 = vmatpush2.msra.mxu0 0.0
        %1248 = vmatprep.subr.mxu0 0.0
        %1249 = vmatpush2.msra.mxu0 0.0
        %1250 = vmatprep.subr.mxu0 0.0
        %1251 = vmatpush2.msra.mxu0 0.0
        %1252 = vmatprep.subr.mxu0 0.0
        %1253 = vmatpush2.msra.mxu0 0.0
        %1254 = vmatprep.subr.mxu0 0.0
        %1255 = vmatpush2.msra.mxu0 0.0
        %1256 = vmatprep.subr.mxu0 0.0
        %1257 = vmatpush2.msra.mxu0 0.0
        %1258 = vmatprep.mubr.f32.mxu0 0.0
        %v1259 = vand.u32 %v957, 4294901760
        %v1260 = vsub.f32 %v957, %v1259
        %1261 = vmatmul.mubr.f32.gmra.mxu0 %v1260
        %v1262 = vpop.f32.mrf.mxu0
        %v1263 = vadd.f32 %v1165, %v1262
        %v1264 = vpop.f32.mrf.mxu0
        %1265 = vmatprep.mubr.f32.mxu0 0.0
        %v1266 = vand.u32 %v960, 4294901760
        %v1267 = vsub.f32 %v960, %v1266
        %1268 = vmatmul.mubr.f32.gmra.mxu0 %v1267
        %v1269 = vpop.f32.mrf.mxu0
        %v1270 = vadd.f32 %v1171, %v1269
        %v1271 = vpop.f32.mrf.mxu0
        %1272 = vmatprep.mubr.f32.mxu0 0.0
        %v1273 = vand.u32 %v963, 4294901760
        %v1274 = vsub.f32 %v963, %v1273
        %1275 = vmatmul.mubr.f32.gmra.mxu0 %v1274
        %v1276 = vpop.f32.mrf.mxu0
        %v1277 = vadd.f32 %v1177, %v1276
        %v1278 = vpop.f32.mrf.mxu0
        %1279 = vmatprep.mubr.f32.mxu0 0.0
        %v1280 = vand.u32 %v966, 4294901760
        %v1281 = vsub.f32 %v966, %v1280
        %1282 = vmatmul.mubr.f32.gmra.mxu0 %v1281
        %v1283 = vpop.f32.mrf.mxu0
        %v1284 = vadd.f32 %v1183, %v1283
        %v1285 = vpop.f32.mrf.mxu0
        %1286 = vdwg.mxu0
        %1287 = vmatprep.subr.mxu0 0.0
        %1288 = vmatpush1.msra.mxu0 0.0
        %1289 = vmatprep.subr.mxu0 0.0
        %1290 = vmatpush1.msra.mxu0 0.0
        %1291 = vmatprep.subr.mxu0 0.0
        %1292 = vmatpush1.msra.mxu0 0.0
        %1293 = vmatprep.subr.mxu0 0.0
        %1294 = vmatpush1.msra.mxu0 0.0
        %1295 = vmatprep.subr.mxu0 0.0
        %1296 = vmatpush1.msra.mxu0 0.0
        %1297 = vmatprep.subr.mxu0 0.0
        %1298 = vmatpush1.msra.mxu0 0.0
        %1299 = vmatprep.subr.mxu0 0.0
        %1300 = vmatpush1.msra.mxu0 0.0
        %1301 = vmatprep.subr.mxu0 0.0
        %1302 = vmatpush1.msra.mxu0 0.0
        %1303 = vmatprep.subr.mxu0 0.0
        %1304 = vmatpush1.msra.mxu0 0.0
        %1305 = vmatprep.subr.mxu0 0.0
        %1306 = vmatpush1.msra.mxu0 0.0
        %1307 = vmatprep.subr.mxu0 0.0
        %1308 = vmatpush1.msra.mxu0 0.0
        %1309 = vmatprep.subr.mxu0 0.0
        %1310 = vmatpush1.msra.mxu0 0.0
        %1311 = vmatprep.subr.mxu0 0.0
        %v1312 = vand.u32 %v953, 4294901760
        %1313 = vmatpush1.msra.mxu0 %v1312
        %1314 = vmatprep.subr.mxu0 0.0
        %v1315 = vand.u32 %v947, 4294901760
        %1316 = vmatpush1.msra.mxu0 %v1315
        %1317 = vmatprep.subr.mxu0 0.0
        %v1318 = vand.u32 %v941, 4294901760
        %1319 = vmatpush1.msra.mxu0 %v1318
        %1320 = vmatprep.subr.mxu0 0.0
        %v1321 = vand.u32 %v935, 4294901760
        %1322 = vmatpush1.msra.mxu0 %v1321
        %1323 = vmatprep.subr.mxu0 0.0
        %1324 = vmatpush2.msra.mxu0 0.0
        %1325 = vmatprep.subr.mxu0 0.0
        %1326 = vmatpush2.msra.mxu0 0.0
        %1327 = vmatprep.subr.mxu0 0.0
        %1328 = vmatpush2.msra.mxu0 0.0
        %1329 = vmatprep.subr.mxu0 0.0
        %1330 = vmatpush2.msra.mxu0 0.0
        %1331 = vmatprep.subr.mxu0 0.0
        %1332 = vmatpush2.msra.mxu0 0.0
        %1333 = vmatprep.subr.mxu0 0.0
        %1334 = vmatpush2.msra.mxu0 0.0
        %1335 = vmatprep.subr.mxu0 0.0
        %1336 = vmatpush2.msra.mxu0 0.0
        %1337 = vmatprep.subr.mxu0 0.0
        %1338 = vmatpush2.msra.mxu0 0.0
        %1339 = vmatprep.subr.mxu0 0.0
        %1340 = vmatpush2.msra.mxu0 0.0
        %1341 = vmatprep.subr.mxu0 0.0
        %1342 = vmatpush2.msra.mxu0 0.0
        %1343 = vmatprep.subr.mxu0 0.0
        %1344 = vmatpush2.msra.mxu0 0.0
        %1345 = vmatprep.subr.mxu0 0.0
        %1346 = vmatpush2.msra.mxu0 0.0
        %1347 = vmatprep.subr.mxu0 0.0
        %1348 = vmatpush2.msra.mxu0 0.0
        %1349 = vmatprep.subr.mxu0 0.0
        %1350 = vmatpush2.msra.mxu0 0.0
        %1351 = vmatprep.subr.mxu0 0.0
        %1352 = vmatpush2.msra.mxu0 0.0
        %1353 = vmatprep.subr.mxu0 0.0
        %1354 = vmatpush2.msra.mxu0 0.0
        %1355 = vmatprep.mubr.f32.mxu0 0.0
        %v1356 = vand.u32 %v957, 4294901760
        %v1357 = vsub.f32 %v957, %v1356
        %v1358 = vand.u32 %v1357, 4294901760
        %1359 = vmatmul.mubr.f32.gmra.mxu0 %v1358
        %v1360 = vpop.f32.mrf.mxu0
        %v1361 = vadd.f32 %v1263, %v1360
        %v1362 = vpop.f32.mrf.mxu0
        %1363 = vmatprep.mubr.f32.mxu0 0.0
        %v1364 = vand.u32 %v960, 4294901760
        %v1365 = vsub.f32 %v960, %v1364
        %v1366 = vand.u32 %v1365, 4294901760
        %1367 = vmatmul.mubr.f32.gmra.mxu0 %v1366
        %v1368 = vpop.f32.mrf.mxu0
        %v1369 = vadd.f32 %v1270, %v1368
        %v1370 = vpop.f32.mrf.mxu0
        %1371 = vmatprep.mubr.f32.mxu0 0.0
        %v1372 = vand.u32 %v963, 4294901760
        %v1373 = vsub.f32 %v963, %v1372
        %v1374 = vand.u32 %v1373, 4294901760
        %1375 = vmatmul.mubr.f32.gmra.mxu0 %v1374
        %v1376 = vpop.f32.mrf.mxu0
        %v1377 = vadd.f32 %v1277, %v1376
        %v1378 = vpop.f32.mrf.mxu0
        %1379 = vmatprep.mubr.f32.mxu0 0.0
        %v1380 = vand.u32 %v966, 4294901760
        %v1381 = vsub.f32 %v966, %v1380
        %v1382 = vand.u32 %v1381, 4294901760
        %1383 = vmatmul.mubr.f32.gmra.mxu0 %v1382
        %v1384 = vpop.f32.mrf.mxu0
        %v1385 = vadd.f32 %v1284, %v1384
        %v1386 = vpop.f32.mrf.mxu0
        %1387 = vdwg.mxu0
        %1388 = vmatprep.subr.mxu0 0.0
        %1389 = vmatpush1.msra.mxu0 0.0
        %1390 = vmatprep.subr.mxu0 0.0
        %1391 = vmatpush1.msra.mxu0 0.0
        %1392 = vmatprep.subr.mxu0 0.0
        %1393 = vmatpush1.msra.mxu0 0.0
        %1394 = vmatprep.subr.mxu0 0.0
        %1395 = vmatpush1.msra.mxu0 0.0
        %1396 = vmatprep.subr.mxu0 0.0
        %1397 = vmatpush1.msra.mxu0 0.0
        %1398 = vmatprep.subr.mxu0 0.0
        %1399 = vmatpush1.msra.mxu0 0.0
        %1400 = vmatprep.subr.mxu0 0.0
        %1401 = vmatpush1.msra.mxu0 0.0
        %1402 = vmatprep.subr.mxu0 0.0
        %1403 = vmatpush1.msra.mxu0 0.0
        %1404 = vmatprep.subr.mxu0 0.0
        %1405 = vmatpush1.msra.mxu0 0.0
        %1406 = vmatprep.subr.mxu0 0.0
        %1407 = vmatpush1.msra.mxu0 0.0
        %1408 = vmatprep.subr.mxu0 0.0
        %1409 = vmatpush1.msra.mxu0 0.0
        %1410 = vmatprep.subr.mxu0 0.0
        %1411 = vmatpush1.msra.mxu0 0.0
        %1412 = vmatprep.subr.mxu0 0.0
        %v1413 = vand.u32 %v953, 4294901760
        %v1414 = vsub.f32 %v953, %v1413
        %v1415 = vand.u32 %v1414, 4294901760
        %1416 = vmatpush1.msra.mxu0 %v1415
        %1417 = vmatprep.subr.mxu0 0.0
        %v1418 = vand.u32 %v947, 4294901760
        %v1419 = vsub.f32 %v947, %v1418
        %v1420 = vand.u32 %v1419, 4294901760
        %1421 = vmatpush1.msra.mxu0 %v1420
        %1422 = vmatprep.subr.mxu0 0.0
        %v1423 = vand.u32 %v941, 4294901760
        %v1424 = vsub.f32 %v941, %v1423
        %v1425 = vand.u32 %v1424, 4294901760
        %1426 = vmatpush1.msra.mxu0 %v1425
        %1427 = vmatprep.subr.mxu0 0.0
        %v1428 = vand.u32 %v935, 4294901760
        %v1429 = vsub.f32 %v935, %v1428
        %v1430 = vand.u32 %v1429, 4294901760
        %1431 = vmatpush1.msra.mxu0 %v1430
        %1432 = vmatprep.subr.mxu0 0.0
        %1433 = vmatpush2.msra.mxu0 0.0
        %1434 = vmatprep.subr.mxu0 0.0
        %1435 = vmatpush2.msra.mxu0 0.0
        %1436 = vmatprep.subr.mxu0 0.0
        %1437 = vmatpush2.msra.mxu0 0.0
        %1438 = vmatprep.subr.mxu0 0.0
        %1439 = vmatpush2.msra.mxu0 0.0
        %1440 = vmatprep.subr.mxu0 0.0
        %1441 = vmatpush2.msra.mxu0 0.0
        %1442 = vmatprep.subr.mxu0 0.0
        %1443 = vmatpush2.msra.mxu0 0.0
        %1444 = vmatprep.subr.mxu0 0.0
        %1445 = vmatpush2.msra.mxu0 0.0
        %1446 = vmatprep.subr.mxu0 0.0
        %1447 = vmatpush2.msra.mxu0 0.0
        %1448 = vmatprep.subr.mxu0 0.0
        %1449 = vmatpush2.msra.mxu0 0.0
        %1450 = vmatprep.subr.mxu0 0.0
        %1451 = vmatpush2.msra.mxu0 0.0
        %1452 = vmatprep.subr.mxu0 0.0
        %1453 = vmatpush2.msra.mxu0 0.0
        %1454 = vmatprep.subr.mxu0 0.0
        %1455 = vmatpush2.msra.mxu0 0.0
        %1456 = vmatprep.subr.mxu0 0.0
        %1457 = vmatpush2.msra.mxu0 0.0
        %1458 = vmatprep.subr.mxu0 0.0
        %1459 = vmatpush2.msra.mxu0 0.0
        %1460 = vmatprep.subr.mxu0 0.0
        %1461 = vmatpush2.msra.mxu0 0.0
        %1462 = vmatprep.subr.mxu0 0.0
        %1463 = vmatpush2.msra.mxu0 0.0
        %1464 = vmatprep.mubr.f32.mxu0 0.0
        %v1465 = vand.u32 %v957, 4294901760
        %1466 = vmatmul.mubr.f32.gmra.mxu0 %v1465
        %v1467 = vpop.f32.mrf.mxu0
        %v1468 = vadd.f32 %v1361, %v1467
        %v1469 = vpop.f32.mrf.mxu0
        %1470 = vmatprep.mubr.f32.mxu0 0.0
        %v1471 = vand.u32 %v960, 4294901760
        %1472 = vmatmul.mubr.f32.gmra.mxu0 %v1471
        %v1473 = vpop.f32.mrf.mxu0
        %v1474 = vadd.f32 %v1369, %v1473
        %v1475 = vpop.f32.mrf.mxu0
        %1476 = vmatprep.mubr.f32.mxu0 0.0
        %v1477 = vand.u32 %v963, 4294901760
        %1478 = vmatmul.mubr.f32.gmra.mxu0 %v1477
        %v1479 = vpop.f32.mrf.mxu0
        %v1480 = vadd.f32 %v1377, %v1479
        %v1481 = vpop.f32.mrf.mxu0
        %1482 = vmatprep.mubr.f32.mxu0 0.0
        %v1483 = vand.u32 %v966, 4294901760
        %1484 = vmatmul.mubr.f32.gmra.mxu0 %v1483
        %v1485 = vpop.f32.mrf.mxu0
        %v1486 = vadd.f32 %v1385, %v1485
        %v1487 = vpop.f32.mrf.mxu0
        %1488 = vdwg.mxu0
        %1489 = vmatprep.subr.mxu0 0.0
        %1490 = vmatpush1.msra.mxu0 0.0
        %1491 = vmatprep.subr.mxu0 0.0
        %1492 = vmatpush1.msra.mxu0 0.0
        %1493 = vmatprep.subr.mxu0 0.0
        %1494 = vmatpush1.msra.mxu0 0.0
        %1495 = vmatprep.subr.mxu0 0.0
        %1496 = vmatpush1.msra.mxu0 0.0
        %1497 = vmatprep.subr.mxu0 0.0
        %1498 = vmatpush1.msra.mxu0 0.0
        %1499 = vmatprep.subr.mxu0 0.0
        %1500 = vmatpush1.msra.mxu0 0.0
        %1501 = vmatprep.subr.mxu0 0.0
        %1502 = vmatpush1.msra.mxu0 0.0
        %1503 = vmatprep.subr.mxu0 0.0
        %1504 = vmatpush1.msra.mxu0 0.0
        %1505 = vmatprep.subr.mxu0 0.0
        %1506 = vmatpush1.msra.mxu0 0.0
        %1507 = vmatprep.subr.mxu0 0.0
        %1508 = vmatpush1.msra.mxu0 0.0
        %1509 = vmatprep.subr.mxu0 0.0
        %1510 = vmatpush1.msra.mxu0 0.0
        %1511 = vmatprep.subr.mxu0 0.0
        %1512 = vmatpush1.msra.mxu0 0.0
        %1513 = vmatprep.subr.mxu0 0.0
        %v1514 = vand.u32 %v953, 4294901760
        %1515 = vmatpush1.msra.mxu0 %v1514
        %1516 = vmatprep.subr.mxu0 0.0
        %v1517 = vand.u32 %v947, 4294901760
        %1518 = vmatpush1.msra.mxu0 %v1517
        %1519 = vmatprep.subr.mxu0 0.0
        %v1520 = vand.u32 %v941, 4294901760
        %1521 = vmatpush1.msra.mxu0 %v1520
        %1522 = vmatprep.subr.mxu0 0.0
        %v1523 = vand.u32 %v935, 4294901760
        %1524 = vmatpush1.msra.mxu0 %v1523
        %1525 = vmatprep.subr.mxu0 0.0
        %1526 = vmatpush2.msra.mxu0 0.0
        %1527 = vmatprep.subr.mxu0 0.0
        %1528 = vmatpush2.msra.mxu0 0.0
        %1529 = vmatprep.subr.mxu0 0.0
        %1530 = vmatpush2.msra.mxu0 0.0
        %1531 = vmatprep.subr.mxu0 0.0
        %1532 = vmatpush2.msra.mxu0 0.0
        %1533 = vmatprep.subr.mxu0 0.0
        %1534 = vmatpush2.msra.mxu0 0.0
        %1535 = vmatprep.subr.mxu0 0.0
        %1536 = vmatpush2.msra.mxu0 0.0
        %1537 = vmatprep.subr.mxu0 0.0
        %1538 = vmatpush2.msra.mxu0 0.0
        %1539 = vmatprep.subr.mxu0 0.0
        %1540 = vmatpush2.msra.mxu0 0.0
        %1541 = vmatprep.subr.mxu0 0.0
        %1542 = vmatpush2.msra.mxu0 0.0
        %1543 = vmatprep.subr.mxu0 0.0
        %1544 = vmatpush2.msra.mxu0 0.0
        %1545 = vmatprep.subr.mxu0 0.0
        %1546 = vmatpush2.msra.mxu0 0.0
        %1547 = vmatprep.subr.mxu0 0.0
        %1548 = vmatpush2.msra.mxu0 0.0
        %1549 = vmatprep.subr.mxu0 0.0
        %1550 = vmatpush2.msra.mxu0 0.0
        %1551 = vmatprep.subr.mxu0 0.0
        %1552 = vmatpush2.msra.mxu0 0.0
        %1553 = vmatprep.subr.mxu0 0.0
        %1554 = vmatpush2.msra.mxu0 0.0
        %1555 = vmatprep.subr.mxu0 0.0
        %1556 = vmatpush2.msra.mxu0 0.0
        %1557 = vmatprep.mubr.f32.mxu0 0.0
        %v1558 = vand.u32 %v957, 4294901760
        %1559 = vmatmul.mubr.f32.gmra.mxu0 %v1558
        %v1560 = vpop.f32.mrf.mxu0
        %v1561 = vadd.f32 %v1468, %v1560
        %v1562 = vpop.f32.mrf.mxu0
        %1563 = vmatprep.mubr.f32.mxu0 0.0
        %v1564 = vand.u32 %v960, 4294901760
        %1565 = vmatmul.mubr.f32.gmra.mxu0 %v1564
        %v1566 = vpop.f32.mrf.mxu0
        %v1567 = vadd.f32 %v1474, %v1566
        %v1568 = vpop.f32.mrf.mxu0
        %1569 = vmatprep.mubr.f32.mxu0 0.0
        %v1570 = vand.u32 %v963, 4294901760
        %1571 = vmatmul.mubr.f32.gmra.mxu0 %v1570
        %v1572 = vpop.f32.mrf.mxu0
        %v1573 = vadd.f32 %v1480, %v1572
        %v1574 = vpop.f32.mrf.mxu0
        %1575 = vmatprep.mubr.f32.mxu0 0.0
        %v1576 = vand.u32 %v966, 4294901760
        %1577 = vmatmul.mubr.f32.gmra.mxu0 %v1576
        %v1578 = vpop.f32.mrf.mxu0
        %v1579 = vadd.f32 %v1486, %v1578
        %v1580 = vpop.f32.mrf.mxu0
        %1581 = vdwg.mxu0
        %v1583 = vsel %vm329, %v317, 0
        %v1586 = vsel %vm329, %v318, 0
        %v1589 = vsel %vm329, %v319, 0
        %v1592 = vsel %vm329, %v320, 0
        %1594 = vmatprep.subr.mxu0 0.0
        %1595 = vmatpush1.msra.mxu0 0.0
        %1596 = vmatprep.subr.mxu0 0.0
        %1597 = vmatpush1.msra.mxu0 0.0
        %1598 = vmatprep.subr.mxu0 0.0
        %1599 = vmatpush1.msra.mxu0 0.0
        %1600 = vmatprep.subr.mxu0 0.0
        %1601 = vmatpush1.msra.mxu0 0.0
        %1602 = vmatprep.subr.mxu0 0.0
        %1603 = vmatpush1.msra.mxu0 0.0
        %1604 = vmatprep.subr.mxu0 0.0
        %1605 = vmatpush1.msra.mxu0 0.0
        %1606 = vmatprep.subr.mxu0 0.0
        %1607 = vmatpush1.msra.mxu0 0.0
        %1608 = vmatprep.subr.mxu0 0.0
        %1609 = vmatpush1.msra.mxu0 0.0
        %1610 = vmatprep.subr.mxu0 0.0
        %1611 = vmatpush1.msra.mxu0 0.0
        %1612 = vmatprep.subr.mxu0 0.0
        %1613 = vmatpush1.msra.mxu0 0.0
        %1614 = vmatprep.subr.mxu0 0.0
        %1615 = vmatpush1.msra.mxu0 0.0
        %1616 = vmatprep.subr.mxu0 0.0
        %1617 = vmatpush1.msra.mxu0 0.0
        %1618 = vmatprep.subr.mxu0 0.0
        %v1619 = vand.u32 %v328, 4294901760
        %1620 = vmatpush1.msra.mxu0 %v1619
        %1621 = vmatprep.subr.mxu0 0.0
        %v1622 = vand.u32 %v327, 4294901760
        %1623 = vmatpush1.msra.mxu0 %v1622
        %1624 = vmatprep.subr.mxu0 0.0
        %v1625 = vand.u32 %v326, 4294901760
        %1626 = vmatpush1.msra.mxu0 %v1625
        %1627 = vmatprep.subr.mxu0 0.0
        %v1628 = vand.u32 %v325, 4294901760
        %1629 = vmatpush1.msra.mxu0 %v1628
        %1630 = vmatprep.subr.mxu0 0.0
        %1631 = vmatpush2.msra.mxu0 0.0
        %1632 = vmatprep.subr.mxu0 0.0
        %1633 = vmatpush2.msra.mxu0 0.0
        %1634 = vmatprep.subr.mxu0 0.0
        %1635 = vmatpush2.msra.mxu0 0.0
        %1636 = vmatprep.subr.mxu0 0.0
        %1637 = vmatpush2.msra.mxu0 0.0
        %1638 = vmatprep.subr.mxu0 0.0
        %1639 = vmatpush2.msra.mxu0 0.0
        %1640 = vmatprep.subr.mxu0 0.0
        %1641 = vmatpush2.msra.mxu0 0.0
        %1642 = vmatprep.subr.mxu0 0.0
        %1643 = vmatpush2.msra.mxu0 0.0
        %1644 = vmatprep.subr.mxu0 0.0
        %1645 = vmatpush2.msra.mxu0 0.0
        %1646 = vmatprep.subr.mxu0 0.0
        %1647 = vmatpush2.msra.mxu0 0.0
        %1648 = vmatprep.subr.mxu0 0.0
        %1649 = vmatpush2.msra.mxu0 0.0
        %1650 = vmatprep.subr.mxu0 0.0
        %1651 = vmatpush2.msra.mxu0 0.0
        %1652 = vmatprep.subr.mxu0 0.0
        %1653 = vmatpush2.msra.mxu0 0.0
        %1654 = vmatprep.subr.mxu0 0.0
        %1655 = vmatpush2.msra.mxu0 0.0
        %1656 = vmatprep.subr.mxu0 0.0
        %1657 = vmatpush2.msra.mxu0 0.0
        %1658 = vmatprep.subr.mxu0 0.0
        %1659 = vmatpush2.msra.mxu0 0.0
        %1660 = vmatprep.subr.mxu0 0.0
        %1661 = vmatpush2.msra.mxu0 0.0
        %1662 = vmatprep.mubr.f32.mxu0 0.0
        %v1663 = vand.u32 %v1583, 4294901760
        %v1664 = vsub.f32 %v1583, %v1663
        %v1665 = vand.u32 %v1664, 4294901760
        %v1666 = vsub.f32 %v1664, %v1665
        %v1667 = vand.u32 %v1666, 4294901760
        %1668 = vmatmul.mubr.f32.gmra.mxu0 %v1667
        %v1669 = vpop.f32.mrf.mxu0
        %v1670 = vadd.f32 0.0, %v1669
        %v1671 = vpop.f32.mrf.mxu0
        %1672 = vmatprep.mubr.f32.mxu0 0.0
        %v1673 = vand.u32 %v1586, 4294901760
        %v1674 = vsub.f32 %v1586, %v1673
        %v1675 = vand.u32 %v1674, 4294901760
        %v1676 = vsub.f32 %v1674, %v1675
        %v1677 = vand.u32 %v1676, 4294901760
        %1678 = vmatmul.mubr.f32.gmra.mxu0 %v1677
        %v1679 = vpop.f32.mrf.mxu0
        %v1680 = vadd.f32 0.0, %v1679
        %v1681 = vpop.f32.mrf.mxu0
        %1682 = vmatprep.mubr.f32.mxu0 0.0
        %v1683 = vand.u32 %v1589, 4294901760
        %v1684 = vsub.f32 %v1589, %v1683
        %v1685 = vand.u32 %v1684, 4294901760
        %v1686 = vsub.f32 %v1684, %v1685
        %v1687 = vand.u32 %v1686, 4294901760
        %1688 = vmatmul.mubr.f32.gmra.mxu0 %v1687
        %v1689 = vpop.f32.mrf.mxu0
        %v1690 = vadd.f32 0.0, %v1689
        %v1691 = vpop.f32.mrf.mxu0
        %1692 = vmatprep.mubr.f32.mxu0 0.0
        %v1693 = vand.u32 %v1592, 4294901760
        %v1694 = vsub.f32 %v1592, %v1693
        %v1695 = vand.u32 %v1694, 4294901760
        %v1696 = vsub.f32 %v1694, %v1695
        %v1697 = vand.u32 %v1696, 4294901760
        %1698 = vmatmul.mubr.f32.gmra.mxu0 %v1697
        %v1699 = vpop.f32.mrf.mxu0
        %v1700 = vadd.f32 0.0, %v1699
        %v1701 = vpop.f32.mrf.mxu0
        %1702 = vdwg.mxu0
        %1703 = vmatprep.subr.mxu0 0.0
        %1704 = vmatpush1.msra.mxu0 0.0
        %1705 = vmatprep.subr.mxu0 0.0
        %1706 = vmatpush1.msra.mxu0 0.0
        %1707 = vmatprep.subr.mxu0 0.0
        %1708 = vmatpush1.msra.mxu0 0.0
        %1709 = vmatprep.subr.mxu0 0.0
        %1710 = vmatpush1.msra.mxu0 0.0
        %1711 = vmatprep.subr.mxu0 0.0
        %1712 = vmatpush1.msra.mxu0 0.0
        %1713 = vmatprep.subr.mxu0 0.0
        %1714 = vmatpush1.msra.mxu0 0.0
        %1715 = vmatprep.subr.mxu0 0.0
        %1716 = vmatpush1.msra.mxu0 0.0
        %1717 = vmatprep.subr.mxu0 0.0
        %1718 = vmatpush1.msra.mxu0 0.0
        %1719 = vmatprep.subr.mxu0 0.0
        %1720 = vmatpush1.msra.mxu0 0.0
        %1721 = vmatprep.subr.mxu0 0.0
        %1722 = vmatpush1.msra.mxu0 0.0
        %1723 = vmatprep.subr.mxu0 0.0
        %1724 = vmatpush1.msra.mxu0 0.0
        %1725 = vmatprep.subr.mxu0 0.0
        %1726 = vmatpush1.msra.mxu0 0.0
        %1727 = vmatprep.subr.mxu0 0.0
        %v1728 = vand.u32 %v328, 4294901760
        %v1729 = vsub.f32 %v328, %v1728
        %v1730 = vand.u32 %v1729, 4294901760
        %v1731 = vsub.f32 %v1729, %v1730
        %v1732 = vand.u32 %v1731, 4294901760
        %1733 = vmatpush1.msra.mxu0 %v1732
        %1734 = vmatprep.subr.mxu0 0.0
        %v1735 = vand.u32 %v327, 4294901760
        %v1736 = vsub.f32 %v327, %v1735
        %v1737 = vand.u32 %v1736, 4294901760
        %v1738 = vsub.f32 %v1736, %v1737
        %v1739 = vand.u32 %v1738, 4294901760
        %1740 = vmatpush1.msra.mxu0 %v1739
        %1741 = vmatprep.subr.mxu0 0.0
        %v1742 = vand.u32 %v326, 4294901760
        %v1743 = vsub.f32 %v326, %v1742
        %v1744 = vand.u32 %v1743, 4294901760
        %v1745 = vsub.f32 %v1743, %v1744
        %v1746 = vand.u32 %v1745, 4294901760
        %1747 = vmatpush1.msra.mxu0 %v1746
        %1748 = vmatprep.subr.mxu0 0.0
        %v1749 = vand.u32 %v325, 4294901760
        %v1750 = vsub.f32 %v325, %v1749
        %v1751 = vand.u32 %v1750, 4294901760
        %v1752 = vsub.f32 %v1750, %v1751
        %v1753 = vand.u32 %v1752, 4294901760
        %1754 = vmatpush1.msra.mxu0 %v1753
        %1755 = vmatprep.subr.mxu0 0.0
        %1756 = vmatpush2.msra.mxu0 0.0
        %1757 = vmatprep.subr.mxu0 0.0
        %1758 = vmatpush2.msra.mxu0 0.0
        %1759 = vmatprep.subr.mxu0 0.0
        %1760 = vmatpush2.msra.mxu0 0.0
        %1761 = vmatprep.subr.mxu0 0.0
        %1762 = vmatpush2.msra.mxu0 0.0
        %1763 = vmatprep.subr.mxu0 0.0
        %1764 = vmatpush2.msra.mxu0 0.0
        %1765 = vmatprep.subr.mxu0 0.0
        %1766 = vmatpush2.msra.mxu0 0.0
        %1767 = vmatprep.subr.mxu0 0.0
        %1768 = vmatpush2.msra.mxu0 0.0
        %1769 = vmatprep.subr.mxu0 0.0
        %1770 = vmatpush2.msra.mxu0 0.0
        %1771 = vmatprep.subr.mxu0 0.0
        %1772 = vmatpush2.msra.mxu0 0.0
        %1773 = vmatprep.subr.mxu0 0.0
        %1774 = vmatpush2.msra.mxu0 0.0
        %1775 = vmatprep.subr.mxu0 0.0
        %1776 = vmatpush2.msra.mxu0 0.0
        %1777 = vmatprep.subr.mxu0 0.0
        %1778 = vmatpush2.msra.mxu0 0.0
        %1779 = vmatprep.subr.mxu0 0.0
        %1780 = vmatpush2.msra.mxu0 0.0
        %1781 = vmatprep.subr.mxu0 0.0
        %1782 = vmatpush2.msra.mxu0 0.0
        %1783 = vmatprep.subr.mxu0 0.0
        %1784 = vmatpush2.msra.mxu0 0.0
        %1785 = vmatprep.subr.mxu0 0.0
        %1786 = vmatpush2.msra.mxu0 0.0
        %1787 = vmatprep.mubr.f32.mxu0 0.0
        %v1788 = vand.u32 %v1583, 4294901760
        %1789 = vmatmul.mubr.f32.gmra.mxu0 %v1788
        %v1790 = vpop.f32.mrf.mxu0
        %v1791 = vadd.f32 %v1670, %v1790
        %v1792 = vpop.f32.mrf.mxu0
        %1793 = vmatprep.mubr.f32.mxu0 0.0
        %v1794 = vand.u32 %v1586, 4294901760
        %1795 = vmatmul.mubr.f32.gmra.mxu0 %v1794
        %v1796 = vpop.f32.mrf.mxu0
        %v1797 = vadd.f32 %v1680, %v1796
        %v1798 = vpop.f32.mrf.mxu0
        %1799 = vmatprep.mubr.f32.mxu0 0.0
        %v1800 = vand.u32 %v1589, 4294901760
        %1801 = vmatmul.mubr.f32.gmra.mxu0 %v1800
        %v1802 = vpop.f32.mrf.mxu0
        %v1803 = vadd.f32 %v1690, %v1802
        %v1804 = vpop.f32.mrf.mxu0
        %1805 = vmatprep.mubr.f32.mxu0 0.0
        %v1806 = vand.u32 %v1592, 4294901760
        %1807 = vmatmul.mubr.f32.gmra.mxu0 %v1806
        %v1808 = vpop.f32.mrf.mxu0
        %v1809 = vadd.f32 %v1700, %v1808
        %v1810 = vpop.f32.mrf.mxu0
        %1811 = vdwg.mxu0
        %1812 = vmatprep.subr.mxu0 0.0
        %1813 = vmatpush1.msra.mxu0 0.0
        %1814 = vmatprep.subr.mxu0 0.0
        %1815 = vmatpush1.msra.mxu0 0.0
        %1816 = vmatprep.subr.mxu0 0.0
        %1817 = vmatpush1.msra.mxu0 0.0
        %1818 = vmatprep.subr.mxu0 0.0
        %1819 = vmatpush1.msra.mxu0 0.0
        %1820 = vmatprep.subr.mxu0 0.0
        %1821 = vmatpush1.msra.mxu0 0.0
        %1822 = vmatprep.subr.mxu0 0.0
        %1823 = vmatpush1.msra.mxu0 0.0
        %1824 = vmatprep.subr.mxu0 0.0
        %1825 = vmatpush1.msra.mxu0 0.0
        %1826 = vmatprep.subr.mxu0 0.0
        %1827 = vmatpush1.msra.mxu0 0.0
        %1828 = vmatprep.subr.mxu0 0.0
        %1829 = vmatpush1.msra.mxu0 0.0
        %1830 = vmatprep.subr.mxu0 0.0
        %1831 = vmatpush1.msra.mxu0 0.0
        %1832 = vmatprep.subr.mxu0 0.0
        %1833 = vmatpush1.msra.mxu0 0.0
        %1834 = vmatprep.subr.mxu0 0.0
        %1835 = vmatpush1.msra.mxu0 0.0
        %1836 = vmatprep.subr.mxu0 0.0
        %v1837 = vand.u32 %v328, 4294901760
        %v1838 = vsub.f32 %v328, %v1837
        %1839 = vmatpush1.msra.mxu0 %v1838
        %1840 = vmatprep.subr.mxu0 0.0
        %v1841 = vand.u32 %v327, 4294901760
        %v1842 = vsub.f32 %v327, %v1841
        %1843 = vmatpush1.msra.mxu0 %v1842
        %1844 = vmatprep.subr.mxu0 0.0
        %v1845 = vand.u32 %v326, 4294901760
        %v1846 = vsub.f32 %v326, %v1845
        %1847 = vmatpush1.msra.mxu0 %v1846
        %1848 = vmatprep.subr.mxu0 0.0
        %v1849 = vand.u32 %v325, 4294901760
        %v1850 = vsub.f32 %v325, %v1849
        %1851 = vmatpush1.msra.mxu0 %v1850
        %1852 = vmatprep.subr.mxu0 0.0
        %1853 = vmatpush2.msra.mxu0 0.0
        %1854 = vmatprep.subr.mxu0 0.0
        %1855 = vmatpush2.msra.mxu0 0.0
        %1856 = vmatprep.subr.mxu0 0.0
        %1857 = vmatpush2.msra.mxu0 0.0
        %1858 = vmatprep.subr.mxu0 0.0
        %1859 = vmatpush2.msra.mxu0 0.0
        %1860 = vmatprep.subr.mxu0 0.0
        %1861 = vmatpush2.msra.mxu0 0.0
        %1862 = vmatprep.subr.mxu0 0.0
        %1863 = vmatpush2.msra.mxu0 0.0
        %1864 = vmatprep.subr.mxu0 0.0
        %1865 = vmatpush2.msra.mxu0 0.0
        %1866 = vmatprep.subr.mxu0 0.0
        %1867 = vmatpush2.msra.mxu0 0.0
        %1868 = vmatprep.subr.mxu0 0.0
        %1869 = vmatpush2.msra.mxu0 0.0
        %1870 = vmatprep.subr.mxu0 0.0
        %1871 = vmatpush2.msra.mxu0 0.0
        %1872 = vmatprep.subr.mxu0 0.0
        %1873 = vmatpush2.msra.mxu0 0.0
        %1874 = vmatprep.subr.mxu0 0.0
        %1875 = vmatpush2.msra.mxu0 0.0
        %1876 = vmatprep.subr.mxu0 0.0
        %1877 = vmatpush2.msra.mxu0 0.0
        %1878 = vmatprep.subr.mxu0 0.0
        %1879 = vmatpush2.msra.mxu0 0.0
        %1880 = vmatprep.subr.mxu0 0.0
        %1881 = vmatpush2.msra.mxu0 0.0
        %1882 = vmatprep.subr.mxu0 0.0
        %1883 = vmatpush2.msra.mxu0 0.0
        %1884 = vmatprep.mubr.f32.mxu0 0.0
        %v1885 = vand.u32 %v1583, 4294901760
        %v1886 = vsub.f32 %v1583, %v1885
        %1887 = vmatmul.mubr.f32.gmra.mxu0 %v1886
        %v1888 = vpop.f32.mrf.mxu0
        %v1889 = vadd.f32 %v1791, %v1888
        %v1890 = vpop.f32.mrf.mxu0
        %1891 = vmatprep.mubr.f32.mxu0 0.0
        %v1892 = vand.u32 %v1586, 4294901760
        %v1893 = vsub.f32 %v1586, %v1892
        %1894 = vmatmul.mubr.f32.gmra.mxu0 %v1893
        %v1895 = vpop.f32.mrf.mxu0
        %v1896 = vadd.f32 %v1797, %v1895
        %v1897 = vpop.f32.mrf.mxu0
        %1898 = vmatprep.mubr.f32.mxu0 0.0
        %v1899 = vand.u32 %v1589, 4294901760
        %v1900 = vsub.f32 %v1589, %v1899
        %1901 = vmatmul.mubr.f32.gmra.mxu0 %v1900
        %v1902 = vpop.f32.mrf.mxu0
        %v1903 = vadd.f32 %v1803, %v1902
        %v1904 = vpop.f32.mrf.mxu0
        %1905 = vmatprep.mubr.f32.mxu0 0.0
        %v1906 = vand.u32 %v1592, 4294901760
        %v1907 = vsub.f32 %v1592, %v1906
        %1908 = vmatmul.mubr.f32.gmra.mxu0 %v1907
        %v1909 = vpop.f32.mrf.mxu0
        %v1910 = vadd.f32 %v1809, %v1909
        %v1911 = vpop.f32.mrf.mxu0
        %1912 = vdwg.mxu0
        %1913 = vmatprep.subr.mxu0 0.0
        %1914 = vmatpush1.msra.mxu0 0.0
        %1915 = vmatprep.subr.mxu0 0.0
        %1916 = vmatpush1.msra.mxu0 0.0
        %1917 = vmatprep.subr.mxu0 0.0
        %1918 = vmatpush1.msra.mxu0 0.0
        %1919 = vmatprep.subr.mxu0 0.0
        %1920 = vmatpush1.msra.mxu0 0.0
        %1921 = vmatprep.subr.mxu0 0.0
        %1922 = vmatpush1.msra.mxu0 0.0
        %1923 = vmatprep.subr.mxu0 0.0
        %1924 = vmatpush1.msra.mxu0 0.0
        %1925 = vmatprep.subr.mxu0 0.0
        %1926 = vmatpush1.msra.mxu0 0.0
        %1927 = vmatprep.subr.mxu0 0.0
        %1928 = vmatpush1.msra.mxu0 0.0
        %1929 = vmatprep.subr.mxu0 0.0
        %1930 = vmatpush1.msra.mxu0 0.0
        %1931 = vmatprep.subr.mxu0 0.0
        %1932 = vmatpush1.msra.mxu0 0.0
        %1933 = vmatprep.subr.mxu0 0.0
        %1934 = vmatpush1.msra.mxu0 0.0
        %1935 = vmatprep.subr.mxu0 0.0
        %1936 = vmatpush1.msra.mxu0 0.0
        %1937 = vmatprep.subr.mxu0 0.0
        %v1938 = vand.u32 %v328, 4294901760
        %1939 = vmatpush1.msra.mxu0 %v1938
        %1940 = vmatprep.subr.mxu0 0.0
        %v1941 = vand.u32 %v327, 4294901760
        %1942 = vmatpush1.msra.mxu0 %v1941
        %1943 = vmatprep.subr.mxu0 0.0
        %v1944 = vand.u32 %v326, 4294901760
        %1945 = vmatpush1.msra.mxu0 %v1944
        %1946 = vmatprep.subr.mxu0 0.0
        %v1947 = vand.u32 %v325, 4294901760
        %1948 = vmatpush1.msra.mxu0 %v1947
        %1949 = vmatprep.subr.mxu0 0.0
        %1950 = vmatpush2.msra.mxu0 0.0
        %1951 = vmatprep.subr.mxu0 0.0
        %1952 = vmatpush2.msra.mxu0 0.0
        %1953 = vmatprep.subr.mxu0 0.0
        %1954 = vmatpush2.msra.mxu0 0.0
        %1955 = vmatprep.subr.mxu0 0.0
        %1956 = vmatpush2.msra.mxu0 0.0
        %1957 = vmatprep.subr.mxu0 0.0
        %1958 = vmatpush2.msra.mxu0 0.0
        %1959 = vmatprep.subr.mxu0 0.0
        %1960 = vmatpush2.msra.mxu0 0.0
        %1961 = vmatprep.subr.mxu0 0.0
        %1962 = vmatpush2.msra.mxu0 0.0
        %1963 = vmatprep.subr.mxu0 0.0
        %1964 = vmatpush2.msra.mxu0 0.0
        %1965 = vmatprep.subr.mxu0 0.0
        %1966 = vmatpush2.msra.mxu0 0.0
        %1967 = vmatprep.subr.mxu0 0.0
        %1968 = vmatpush2.msra.mxu0 0.0
        %1969 = vmatprep.subr.mxu0 0.0
        %1970 = vmatpush2.msra.mxu0 0.0
        %1971 = vmatprep.subr.mxu0 0.0
        %1972 = vmatpush2.msra.mxu0 0.0
        %1973 = vmatprep.subr.mxu0 0.0
        %1974 = vmatpush2.msra.mxu0 0.0
        %1975 = vmatprep.subr.mxu0 0.0
        %1976 = vmatpush2.msra.mxu0 0.0
        %1977 = vmatprep.subr.mxu0 0.0
        %1978 = vmatpush2.msra.mxu0 0.0
        %1979 = vmatprep.subr.mxu0 0.0
        %1980 = vmatpush2.msra.mxu0 0.0
        %1981 = vmatprep.mubr.f32.mxu0 0.0
        %v1982 = vand.u32 %v1583, 4294901760
        %v1983 = vsub.f32 %v1583, %v1982
        %v1984 = vand.u32 %v1983, 4294901760
        %1985 = vmatmul.mubr.f32.gmra.mxu0 %v1984
        %v1986 = vpop.f32.mrf.mxu0
        %v1987 = vadd.f32 %v1889, %v1986
        %v1988 = vpop.f32.mrf.mxu0
        %1989 = vmatprep.mubr.f32.mxu0 0.0
        %v1990 = vand.u32 %v1586, 4294901760
        %v1991 = vsub.f32 %v1586, %v1990
        %v1992 = vand.u32 %v1991, 4294901760
        %1993 = vmatmul.mubr.f32.gmra.mxu0 %v1992
        %v1994 = vpop.f32.mrf.mxu0
        %v1995 = vadd.f32 %v1896, %v1994
        %v1996 = vpop.f32.mrf.mxu0
        %1997 = vmatprep.mubr.f32.mxu0 0.0
        %v1998 = vand.u32 %v1589, 4294901760
        %v1999 = vsub.f32 %v1589, %v1998
        %v2000 = vand.u32 %v1999, 4294901760
        %2001 = vmatmul.mubr.f32.gmra.mxu0 %v2000
        %v2002 = vpop.f32.mrf.mxu0
        %v2003 = vadd.f32 %v1903, %v2002
        %v2004 = vpop.f32.mrf.mxu0
        %2005 = vmatprep.mubr.f32.mxu0 0.0
        %v2006 = vand.u32 %v1592, 4294901760
        %v2007 = vsub.f32 %v1592, %v2006
        %v2008 = vand.u32 %v2007, 4294901760
        %2009 = vmatmul.mubr.f32.gmra.mxu0 %v2008
        %v2010 = vpop.f32.mrf.mxu0
        %v2011 = vadd.f32 %v1910, %v2010
        %v2012 = vpop.f32.mrf.mxu0
        %2013 = vdwg.mxu0
        %2014 = vmatprep.subr.mxu0 0.0
        %2015 = vmatpush1.msra.mxu0 0.0
        %2016 = vmatprep.subr.mxu0 0.0
        %2017 = vmatpush1.msra.mxu0 0.0
        %2018 = vmatprep.subr.mxu0 0.0
        %2019 = vmatpush1.msra.mxu0 0.0
        %2020 = vmatprep.subr.mxu0 0.0
        %2021 = vmatpush1.msra.mxu0 0.0
        %2022 = vmatprep.subr.mxu0 0.0
        %2023 = vmatpush1.msra.mxu0 0.0
        %2024 = vmatprep.subr.mxu0 0.0
        %2025 = vmatpush1.msra.mxu0 0.0
        %2026 = vmatprep.subr.mxu0 0.0
        %2027 = vmatpush1.msra.mxu0 0.0
        %2028 = vmatprep.subr.mxu0 0.0
        %2029 = vmatpush1.msra.mxu0 0.0
        %2030 = vmatprep.subr.mxu0 0.0
        %2031 = vmatpush1.msra.mxu0 0.0
        %2032 = vmatprep.subr.mxu0 0.0
        %2033 = vmatpush1.msra.mxu0 0.0
        %2034 = vmatprep.subr.mxu0 0.0
        %2035 = vmatpush1.msra.mxu0 0.0
        %2036 = vmatprep.subr.mxu0 0.0
        %2037 = vmatpush1.msra.mxu0 0.0
        %2038 = vmatprep.subr.mxu0 0.0
        %v2039 = vand.u32 %v328, 4294901760
        %v2040 = vsub.f32 %v328, %v2039
        %v2041 = vand.u32 %v2040, 4294901760
        %2042 = vmatpush1.msra.mxu0 %v2041
        %2043 = vmatprep.subr.mxu0 0.0
        %v2044 = vand.u32 %v327, 4294901760
        %v2045 = vsub.f32 %v327, %v2044
        %v2046 = vand.u32 %v2045, 4294901760
        %2047 = vmatpush1.msra.mxu0 %v2046
        %2048 = vmatprep.subr.mxu0 0.0
        %v2049 = vand.u32 %v326, 4294901760
        %v2050 = vsub.f32 %v326, %v2049
        %v2051 = vand.u32 %v2050, 4294901760
        %2052 = vmatpush1.msra.mxu0 %v2051
        %2053 = vmatprep.subr.mxu0 0.0
        %v2054 = vand.u32 %v325, 4294901760
        %v2055 = vsub.f32 %v325, %v2054
        %v2056 = vand.u32 %v2055, 4294901760
        %2057 = vmatpush1.msra.mxu0 %v2056
        %2058 = vmatprep.subr.mxu0 0.0
        %2059 = vmatpush2.msra.mxu0 0.0
        %2060 = vmatprep.subr.mxu0 0.0
        %2061 = vmatpush2.msra.mxu0 0.0
        %2062 = vmatprep.subr.mxu0 0.0
        %2063 = vmatpush2.msra.mxu0 0.0
        %2064 = vmatprep.subr.mxu0 0.0
        %2065 = vmatpush2.msra.mxu0 0.0
        %2066 = vmatprep.subr.mxu0 0.0
        %2067 = vmatpush2.msra.mxu0 0.0
        %2068 = vmatprep.subr.mxu0 0.0
        %2069 = vmatpush2.msra.mxu0 0.0
        %2070 = vmatprep.subr.mxu0 0.0
        %2071 = vmatpush2.msra.mxu0 0.0
        %2072 = vmatprep.subr.mxu0 0.0
        %2073 = vmatpush2.msra.mxu0 0.0
        %2074 = vmatprep.subr.mxu0 0.0
        %2075 = vmatpush2.msra.mxu0 0.0
        %2076 = vmatprep.subr.mxu0 0.0
        %2077 = vmatpush2.msra.mxu0 0.0
        %2078 = vmatprep.subr.mxu0 0.0
        %2079 = vmatpush2.msra.mxu0 0.0
        %2080 = vmatprep.subr.mxu0 0.0
        %2081 = vmatpush2.msra.mxu0 0.0
        %2082 = vmatprep.subr.mxu0 0.0
        %2083 = vmatpush2.msra.mxu0 0.0
        %2084 = vmatprep.subr.mxu0 0.0
        %2085 = vmatpush2.msra.mxu0 0.0
        %2086 = vmatprep.subr.mxu0 0.0
        %2087 = vmatpush2.msra.mxu0 0.0
        %2088 = vmatprep.subr.mxu0 0.0
        %2089 = vmatpush2.msra.mxu0 0.0
        %2090 = vmatprep.mubr.f32.mxu0 0.0
        %v2091 = vand.u32 %v1583, 4294901760
        %2092 = vmatmul.mubr.f32.gmra.mxu0 %v2091
        %v2093 = vpop.f32.mrf.mxu0
        %v2094 = vadd.f32 %v1987, %v2093
        %v2095 = vpop.f32.mrf.mxu0
        %2096 = vmatprep.mubr.f32.mxu0 0.0
        %v2097 = vand.u32 %v1586, 4294901760
        %2098 = vmatmul.mubr.f32.gmra.mxu0 %v2097
        %v2099 = vpop.f32.mrf.mxu0
        %v2100 = vadd.f32 %v1995, %v2099
        %v2101 = vpop.f32.mrf.mxu0
        %2102 = vmatprep.mubr.f32.mxu0 0.0
        %v2103 = vand.u32 %v1589, 4294901760
        %2104 = vmatmul.mubr.f32.gmra.mxu0 %v2103
        %v2105 = vpop.f32.mrf.mxu0
        %v2106 = vadd.f32 %v2003, %v2105
        %v2107 = vpop.f32.mrf.mxu0
        %2108 = vmatprep.mubr.f32.mxu0 0.0
        %v2109 = vand.u32 %v1592, 4294901760
        %2110 = vmatmul.mubr.f32.gmra.mxu0 %v2109
        %v2111 = vpop.f32.mrf.mxu0
        %v2112 = vadd.f32 %v2011, %v2111
        %v2113 = vpop.f32.mrf.mxu0
        %2114 = vdwg.mxu0
        %2115 = vmatprep.subr.mxu0 0.0
        %2116 = vmatpush1.msra.mxu0 0.0
        %2117 = vmatprep.subr.mxu0 0.0
        %2118 = vmatpush1.msra.mxu0 0.0
        %2119 = vmatprep.subr.mxu0 0.0
        %2120 = vmatpush1.msra.mxu0 0.0
        %2121 = vmatprep.subr.mxu0 0.0
        %2122 = vmatpush1.msra.mxu0 0.0
        %2123 = vmatprep.subr.mxu0 0.0
        %2124 = vmatpush1.msra.mxu0 0.0
        %2125 = vmatprep.subr.mxu0 0.0
        %2126 = vmatpush1.msra.mxu0 0.0
        %2127 = vmatprep.subr.mxu0 0.0
        %2128 = vmatpush1.msra.mxu0 0.0
        %2129 = vmatprep.subr.mxu0 0.0
        %2130 = vmatpush1.msra.mxu0 0.0
        %2131 = vmatprep.subr.mxu0 0.0
        %2132 = vmatpush1.msra.mxu0 0.0
        %2133 = vmatprep.subr.mxu0 0.0
        %2134 = vmatpush1.msra.mxu0 0.0
        %2135 = vmatprep.subr.mxu0 0.0
        %2136 = vmatpush1.msra.mxu0 0.0
        %2137 = vmatprep.subr.mxu0 0.0
        %2138 = vmatpush1.msra.mxu0 0.0
        %2139 = vmatprep.subr.mxu0 0.0
        %v2140 = vand.u32 %v328, 4294901760
        %2141 = vmatpush1.msra.mxu0 %v2140
        %2142 = vmatprep.subr.mxu0 0.0
        %v2143 = vand.u32 %v327, 4294901760
        %2144 = vmatpush1.msra.mxu0 %v2143
        %2145 = vmatprep.subr.mxu0 0.0
        %v2146 = vand.u32 %v326, 4294901760
        %2147 = vmatpush1.msra.mxu0 %v2146
        %2148 = vmatprep.subr.mxu0 0.0
        %v2149 = vand.u32 %v325, 4294901760
        %2150 = vmatpush1.msra.mxu0 %v2149
        %2151 = vmatprep.subr.mxu0 0.0
        %2152 = vmatpush2.msra.mxu0 0.0
        %2153 = vmatprep.subr.mxu0 0.0
        %2154 = vmatpush2.msra.mxu0 0.0
        %2155 = vmatprep.subr.mxu0 0.0
        %2156 = vmatpush2.msra.mxu0 0.0
        %2157 = vmatprep.subr.mxu0 0.0
        %2158 = vmatpush2.msra.mxu0 0.0
        %2159 = vmatprep.subr.mxu0 0.0
        %2160 = vmatpush2.msra.mxu0 0.0
        %2161 = vmatprep.subr.mxu0 0.0
        %2162 = vmatpush2.msra.mxu0 0.0
        %2163 = vmatprep.subr.mxu0 0.0
        %2164 = vmatpush2.msra.mxu0 0.0
        %2165 = vmatprep.subr.mxu0 0.0
        %2166 = vmatpush2.msra.mxu0 0.0
        %2167 = vmatprep.subr.mxu0 0.0
        %2168 = vmatpush2.msra.mxu0 0.0
        %2169 = vmatprep.subr.mxu0 0.0
        %2170 = vmatpush2.msra.mxu0 0.0
        %2171 = vmatprep.subr.mxu0 0.0
        %2172 = vmatpush2.msra.mxu0 0.0
        %2173 = vmatprep.subr.mxu0 0.0
        %2174 = vmatpush2.msra.mxu0 0.0
        %2175 = vmatprep.subr.mxu0 0.0
        %2176 = vmatpush2.msra.mxu0 0.0
        %2177 = vmatprep.subr.mxu0 0.0
        %2178 = vmatpush2.msra.mxu0 0.0
        %2179 = vmatprep.subr.mxu0 0.0
        %2180 = vmatpush2.msra.mxu0 0.0
        %2181 = vmatprep.subr.mxu0 0.0
        %2182 = vmatpush2.msra.mxu0 0.0
        %2183 = vmatprep.mubr.f32.mxu0 0.0
        %v2184 = vand.u32 %v1583, 4294901760
        %2185 = vmatmul.mubr.f32.gmra.mxu0 %v2184
        %v2186 = vpop.f32.mrf.mxu0
        %v2187 = vadd.f32 %v2094, %v2186
        %v2188 = vpop.f32.mrf.mxu0
        %2189 = vmatprep.mubr.f32.mxu0 0.0
        %v2190 = vand.u32 %v1586, 4294901760
        %2191 = vmatmul.mubr.f32.gmra.mxu0 %v2190
        %v2192 = vpop.f32.mrf.mxu0
        %v2193 = vadd.f32 %v2100, %v2192
        %v2194 = vpop.f32.mrf.mxu0
        %2195 = vmatprep.mubr.f32.mxu0 0.0
        %v2196 = vand.u32 %v1589, 4294901760
        %2197 = vmatmul.mubr.f32.gmra.mxu0 %v2196
        %v2198 = vpop.f32.mrf.mxu0
        %v2199 = vadd.f32 %v2106, %v2198
        %v2200 = vpop.f32.mrf.mxu0
        %2201 = vmatprep.mubr.f32.mxu0 0.0
        %v2202 = vand.u32 %v1592, 4294901760
        %2203 = vmatmul.mubr.f32.gmra.mxu0 %v2202
        %v2204 = vpop.f32.mrf.mxu0
        %v2205 = vadd.f32 %v2112, %v2204
        %v2206 = vpop.f32.mrf.mxu0
        %2207 = vdwg.mxu0
        %2208 = vmatprep.subr.mxu0 0.0
        %2209 = vmatpush1.msra.mxu0 0.0
        %2210 = vmatprep.subr.mxu0 0.0
        %2211 = vmatpush1.msra.mxu0 0.0
        %2212 = vmatprep.subr.mxu0 0.0
        %2213 = vmatpush1.msra.mxu0 0.0
        %2214 = vmatprep.subr.mxu0 0.0
        %2215 = vmatpush1.msra.mxu0 0.0
        %2216 = vmatprep.subr.mxu0 0.0
        %2217 = vmatpush1.msra.mxu0 0.0
        %2218 = vmatprep.subr.mxu0 0.0
        %2219 = vmatpush1.msra.mxu0 0.0
        %2220 = vmatprep.subr.mxu0 0.0
        %2221 = vmatpush1.msra.mxu0 0.0
        %2222 = vmatprep.subr.mxu0 0.0
        %2223 = vmatpush1.msra.mxu0 0.0
        %2224 = vmatprep.subr.mxu0 0.0
        %2225 = vmatpush1.msra.mxu0 0.0
        %2226 = vmatprep.subr.mxu0 0.0
        %2227 = vmatpush1.msra.mxu0 0.0
        %2228 = vmatprep.subr.mxu0 0.0
        %2229 = vmatpush1.msra.mxu0 0.0
        %2230 = vmatprep.subr.mxu0 0.0
        %2231 = vmatpush1.msra.mxu0 0.0
        %2232 = vmatprep.subr.mxu0 0.0
        %v2233 = vand.u32 %v2205, 4294901760
        %2234 = vmatpush1.msra.mxu0 %v2233
        %2235 = vmatprep.subr.mxu0 0.0
        %v2236 = vand.u32 %v2199, 4294901760
        %2237 = vmatpush1.msra.mxu0 %v2236
        %2238 = vmatprep.subr.mxu0 0.0
        %v2239 = vand.u32 %v2193, 4294901760
        %2240 = vmatpush1.msra.mxu0 %v2239
        %2241 = vmatprep.subr.mxu0 0.0
        %v2242 = vand.u32 %v2187, 4294901760
        %2243 = vmatpush1.msra.mxu0 %v2242
        %2244 = vmatprep.subr.mxu0 0.0
        %2245 = vmatpush2.msra.mxu0 0.0
        %2246 = vmatprep.subr.mxu0 0.0
        %2247 = vmatpush2.msra.mxu0 0.0
        %2248 = vmatprep.subr.mxu0 0.0
        %2249 = vmatpush2.msra.mxu0 0.0
        %2250 = vmatprep.subr.mxu0 0.0
        %2251 = vmatpush2.msra.mxu0 0.0
        %2252 = vmatprep.subr.mxu0 0.0
        %2253 = vmatpush2.msra.mxu0 0.0
        %2254 = vmatprep.subr.mxu0 0.0
        %2255 = vmatpush2.msra.mxu0 0.0
        %2256 = vmatprep.subr.mxu0 0.0
        %2257 = vmatpush2.msra.mxu0 0.0
        %2258 = vmatprep.subr.mxu0 0.0
        %2259 = vmatpush2.msra.mxu0 0.0
        %2260 = vmatprep.subr.mxu0 0.0
        %2261 = vmatpush2.msra.mxu0 0.0
        %2262 = vmatprep.subr.mxu0 0.0
        %2263 = vmatpush2.msra.mxu0 0.0
        %2264 = vmatprep.subr.mxu0 0.0
        %2265 = vmatpush2.msra.mxu0 0.0
        %2266 = vmatprep.subr.mxu0 0.0
        %2267 = vmatpush2.msra.mxu0 0.0
        %2268 = vmatprep.subr.mxu0 0.0
        %2269 = vmatpush2.msra.mxu0 0.0
        %2270 = vmatprep.subr.mxu0 0.0
        %2271 = vmatpush2.msra.mxu0 0.0
        %2272 = vmatprep.subr.mxu0 0.0
        %2273 = vmatpush2.msra.mxu0 0.0
        %2274 = vmatprep.subr.mxu0 0.0
        %2275 = vmatpush2.msra.mxu0 0.0
        %2276 = vmatprep.mubr.f32.mxu0 0.0
        %v2277 = vand.u32 %v957, 4294901760
        %v2278 = vsub.f32 %v957, %v2277
        %v2279 = vand.u32 %v2278, 4294901760
        %v2280 = vsub.f32 %v2278, %v2279
        %v2281 = vand.u32 %v2280, 4294901760
        %2282 = vmatmul.mubr.f32.gmra.mxu0 %v2281
        %v2283 = vpop.f32.mrf.mxu0
        %v2284 = vadd.f32 0.0, %v2283
        %v2285 = vpop.f32.mrf.mxu0
        %2286 = vmatprep.mubr.f32.mxu0 0.0
        %v2287 = vand.u32 %v960, 4294901760
        %v2288 = vsub.f32 %v960, %v2287
        %v2289 = vand.u32 %v2288, 4294901760
        %v2290 = vsub.f32 %v2288, %v2289
        %v2291 = vand.u32 %v2290, 4294901760
        %2292 = vmatmul.mubr.f32.gmra.mxu0 %v2291
        %v2293 = vpop.f32.mrf.mxu0
        %v2294 = vadd.f32 0.0, %v2293
        %v2295 = vpop.f32.mrf.mxu0
        %2296 = vmatprep.mubr.f32.mxu0 0.0
        %v2297 = vand.u32 %v963, 4294901760
        %v2298 = vsub.f32 %v963, %v2297
        %v2299 = vand.u32 %v2298, 4294901760
        %v2300 = vsub.f32 %v2298, %v2299
        %v2301 = vand.u32 %v2300, 4294901760
        %2302 = vmatmul.mubr.f32.gmra.mxu0 %v2301
        %v2303 = vpop.f32.mrf.mxu0
        %v2304 = vadd.f32 0.0, %v2303
        %v2305 = vpop.f32.mrf.mxu0
        %2306 = vmatprep.mubr.f32.mxu0 0.0
        %v2307 = vand.u32 %v966, 4294901760
        %v2308 = vsub.f32 %v966, %v2307
        %v2309 = vand.u32 %v2308, 4294901760
        %v2310 = vsub.f32 %v2308, %v2309
        %v2311 = vand.u32 %v2310, 4294901760
        %2312 = vmatmul.mubr.f32.gmra.mxu0 %v2311
        %v2313 = vpop.f32.mrf.mxu0
        %v2314 = vadd.f32 0.0, %v2313
        %v2315 = vpop.f32.mrf.mxu0
        %2316 = vdwg.mxu0
        %2317 = vmatprep.subr.mxu0 0.0
        %2318 = vmatpush1.msra.mxu0 0.0
        %2319 = vmatprep.subr.mxu0 0.0
        %2320 = vmatpush1.msra.mxu0 0.0
        %2321 = vmatprep.subr.mxu0 0.0
        %2322 = vmatpush1.msra.mxu0 0.0
        %2323 = vmatprep.subr.mxu0 0.0
        %2324 = vmatpush1.msra.mxu0 0.0
        %2325 = vmatprep.subr.mxu0 0.0
        %2326 = vmatpush1.msra.mxu0 0.0
        %2327 = vmatprep.subr.mxu0 0.0
        %2328 = vmatpush1.msra.mxu0 0.0
        %2329 = vmatprep.subr.mxu0 0.0
        %2330 = vmatpush1.msra.mxu0 0.0
        %2331 = vmatprep.subr.mxu0 0.0
        %2332 = vmatpush1.msra.mxu0 0.0
        %2333 = vmatprep.subr.mxu0 0.0
        %2334 = vmatpush1.msra.mxu0 0.0
        %2335 = vmatprep.subr.mxu0 0.0
        %2336 = vmatpush1.msra.mxu0 0.0
        %2337 = vmatprep.subr.mxu0 0.0
        %2338 = vmatpush1.msra.mxu0 0.0
        %2339 = vmatprep.subr.mxu0 0.0
        %2340 = vmatpush1.msra.mxu0 0.0
        %2341 = vmatprep.subr.mxu0 0.0
        %v2342 = vand.u32 %v2205, 4294901760
        %v2343 = vsub.f32 %v2205, %v2342
        %v2344 = vand.u32 %v2343, 4294901760
        %v2345 = vsub.f32 %v2343, %v2344
        %v2346 = vand.u32 %v2345, 4294901760
        %2347 = vmatpush1.msra.mxu0 %v2346
        %2348 = vmatprep.subr.mxu0 0.0
        %v2349 = vand.u32 %v2199, 4294901760
        %v2350 = vsub.f32 %v2199, %v2349
        %v2351 = vand.u32 %v2350, 4294901760
        %v2352 = vsub.f32 %v2350, %v2351
        %v2353 = vand.u32 %v2352, 4294901760
        %2354 = vmatpush1.msra.mxu0 %v2353
        %2355 = vmatprep.subr.mxu0 0.0
        %v2356 = vand.u32 %v2193, 4294901760
        %v2357 = vsub.f32 %v2193, %v2356
        %v2358 = vand.u32 %v2357, 4294901760
        %v2359 = vsub.f32 %v2357, %v2358
        %v2360 = vand.u32 %v2359, 4294901760
        %2361 = vmatpush1.msra.mxu0 %v2360
        %2362 = vmatprep.subr.mxu0 0.0
        %v2363 = vand.u32 %v2187, 4294901760
        %v2364 = vsub.f32 %v2187, %v2363
        %v2365 = vand.u32 %v2364, 4294901760
        %v2366 = vsub.f32 %v2364, %v2365
        %v2367 = vand.u32 %v2366, 4294901760
        %2368 = vmatpush1.msra.mxu0 %v2367
        %2369 = vmatprep.subr.mxu0 0.0
        %2370 = vmatpush2.msra.mxu0 0.0
        %2371 = vmatprep.subr.mxu0 0.0
        %2372 = vmatpush2.msra.mxu0 0.0
        %2373 = vmatprep.subr.mxu0 0.0
        %2374 = vmatpush2.msra.mxu0 0.0
        %2375 = vmatprep.subr.mxu0 0.0
        %2376 = vmatpush2.msra.mxu0 0.0
        %2377 = vmatprep.subr.mxu0 0.0
        %2378 = vmatpush2.msra.mxu0 0.0
        %2379 = vmatprep.subr.mxu0 0.0
        %2380 = vmatpush2.msra.mxu0 0.0
        %2381 = vmatprep.subr.mxu0 0.0
        %2382 = vmatpush2.msra.mxu0 0.0
        %2383 = vmatprep.subr.mxu0 0.0
        %2384 = vmatpush2.msra.mxu0 0.0
        %2385 = vmatprep.subr.mxu0 0.0
        %2386 = vmatpush2.msra.mxu0 0.0
        %2387 = vmatprep.subr.mxu0 0.0
        %2388 = vmatpush2.msra.mxu0 0.0
        %2389 = vmatprep.subr.mxu0 0.0
        %2390 = vmatpush2.msra.mxu0 0.0
        %2391 = vmatprep.subr.mxu0 0.0
        %2392 = vmatpush2.msra.mxu0 0.0
        %2393 = vmatprep.subr.mxu0 0.0
        %2394 = vmatpush2.msra.mxu0 0.0
        %2395 = vmatprep.subr.mxu0 0.0
        %2396 = vmatpush2.msra.mxu0 0.0
        %2397 = vmatprep.subr.mxu0 0.0
        %2398 = vmatpush2.msra.mxu0 0.0
        %2399 = vmatprep.subr.mxu0 0.0
        %2400 = vmatpush2.msra.mxu0 0.0
        %2401 = vmatprep.mubr.f32.mxu0 0.0
        %v2402 = vand.u32 %v957, 4294901760
        %2403 = vmatmul.mubr.f32.gmra.mxu0 %v2402
        %v2404 = vpop.f32.mrf.mxu0
        %v2405 = vadd.f32 %v2284, %v2404
        %v2406 = vpop.f32.mrf.mxu0
        %2407 = vmatprep.mubr.f32.mxu0 0.0
        %v2408 = vand.u32 %v960, 4294901760
        %2409 = vmatmul.mubr.f32.gmra.mxu0 %v2408
        %v2410 = vpop.f32.mrf.mxu0
        %v2411 = vadd.f32 %v2294, %v2410
        %v2412 = vpop.f32.mrf.mxu0
        %2413 = vmatprep.mubr.f32.mxu0 0.0
        %v2414 = vand.u32 %v963, 4294901760
        %2415 = vmatmul.mubr.f32.gmra.mxu0 %v2414
        %v2416 = vpop.f32.mrf.mxu0
        %v2417 = vadd.f32 %v2304, %v2416
        %v2418 = vpop.f32.mrf.mxu0
        %2419 = vmatprep.mubr.f32.mxu0 0.0
        %v2420 = vand.u32 %v966, 4294901760
        %2421 = vmatmul.mubr.f32.gmra.mxu0 %v2420
        %v2422 = vpop.f32.mrf.mxu0
        %v2423 = vadd.f32 %v2314, %v2422
        %v2424 = vpop.f32.mrf.mxu0
        %2425 = vdwg.mxu0
        %2426 = vmatprep.subr.mxu0 0.0
        %2427 = vmatpush1.msra.mxu0 0.0
        %2428 = vmatprep.subr.mxu0 0.0
        %2429 = vmatpush1.msra.mxu0 0.0
        %2430 = vmatprep.subr.mxu0 0.0
        %2431 = vmatpush1.msra.mxu0 0.0
        %2432 = vmatprep.subr.mxu0 0.0
        %2433 = vmatpush1.msra.mxu0 0.0
        %2434 = vmatprep.subr.mxu0 0.0
        %2435 = vmatpush1.msra.mxu0 0.0
        %2436 = vmatprep.subr.mxu0 0.0
        %2437 = vmatpush1.msra.mxu0 0.0
        %2438 = vmatprep.subr.mxu0 0.0
        %2439 = vmatpush1.msra.mxu0 0.0
        %2440 = vmatprep.subr.mxu0 0.0
        %2441 = vmatpush1.msra.mxu0 0.0
        %2442 = vmatprep.subr.mxu0 0.0
        %2443 = vmatpush1.msra.mxu0 0.0
        %2444 = vmatprep.subr.mxu0 0.0
        %2445 = vmatpush1.msra.mxu0 0.0
        %2446 = vmatprep.subr.mxu0 0.0
        %2447 = vmatpush1.msra.mxu0 0.0
        %2448 = vmatprep.subr.mxu0 0.0
        %2449 = vmatpush1.msra.mxu0 0.0
        %2450 = vmatprep.subr.mxu0 0.0
        %v2451 = vand.u32 %v2205, 4294901760
        %v2452 = vsub.f32 %v2205, %v2451
        %2453 = vmatpush1.msra.mxu0 %v2452
        %2454 = vmatprep.subr.mxu0 0.0
        %v2455 = vand.u32 %v2199, 4294901760
        %v2456 = vsub.f32 %v2199, %v2455
        %2457 = vmatpush1.msra.mxu0 %v2456
        %2458 = vmatprep.subr.mxu0 0.0
        %v2459 = vand.u32 %v2193, 4294901760
        %v2460 = vsub.f32 %v2193, %v2459
        %2461 = vmatpush1.msra.mxu0 %v2460
        %2462 = vmatprep.subr.mxu0 0.0
        %v2463 = vand.u32 %v2187, 4294901760
        %v2464 = vsub.f32 %v2187, %v2463
        %2465 = vmatpush1.msra.mxu0 %v2464
        %2466 = vmatprep.subr.mxu0 0.0
        %2467 = vmatpush2.msra.mxu0 0.0
        %2468 = vmatprep.subr.mxu0 0.0
        %2469 = vmatpush2.msra.mxu0 0.0
        %2470 = vmatprep.subr.mxu0 0.0
        %2471 = vmatpush2.msra.mxu0 0.0
        %2472 = vmatprep.subr.mxu0 0.0
        %2473 = vmatpush2.msra.mxu0 0.0
        %2474 = vmatprep.subr.mxu0 0.0
        %2475 = vmatpush2.msra.mxu0 0.0
        %2476 = vmatprep.subr.mxu0 0.0
        %2477 = vmatpush2.msra.mxu0 0.0
        %2478 = vmatprep.subr.mxu0 0.0
        %2479 = vmatpush2.msra.mxu0 0.0
        %2480 = vmatprep.subr.mxu0 0.0
        %2481 = vmatpush2.msra.mxu0 0.0
        %2482 = vmatprep.subr.mxu0 0.0
        %2483 = vmatpush2.msra.mxu0 0.0
        %2484 = vmatprep.subr.mxu0 0.0
        %2485 = vmatpush2.msra.mxu0 0.0
        %2486 = vmatprep.subr.mxu0 0.0
        %2487 = vmatpush2.msra.mxu0 0.0
        %2488 = vmatprep.subr.mxu0 0.0
        %2489 = vmatpush2.msra.mxu0 0.0
        %2490 = vmatprep.subr.mxu0 0.0
        %2491 = vmatpush2.msra.mxu0 0.0
        %2492 = vmatprep.subr.mxu0 0.0
        %2493 = vmatpush2.msra.mxu0 0.0
        %2494 = vmatprep.subr.mxu0 0.0
        %2495 = vmatpush2.msra.mxu0 0.0
        %2496 = vmatprep.subr.mxu0 0.0
        %2497 = vmatpush2.msra.mxu0 0.0
        %2498 = vmatprep.mubr.f32.mxu0 0.0
        %v2499 = vand.u32 %v957, 4294901760
        %v2500 = vsub.f32 %v957, %v2499
        %2501 = vmatmul.mubr.f32.gmra.mxu0 %v2500
        %v2502 = vpop.f32.mrf.mxu0
        %v2503 = vadd.f32 %v2405, %v2502
        %v2504 = vpop.f32.mrf.mxu0
        %2505 = vmatprep.mubr.f32.mxu0 0.0
        %v2506 = vand.u32 %v960, 4294901760
        %v2507 = vsub.f32 %v960, %v2506
        %2508 = vmatmul.mubr.f32.gmra.mxu0 %v2507
        %v2509 = vpop.f32.mrf.mxu0
        %v2510 = vadd.f32 %v2411, %v2509
        %v2511 = vpop.f32.mrf.mxu0
        %2512 = vmatprep.mubr.f32.mxu0 0.0
        %v2513 = vand.u32 %v963, 4294901760
        %v2514 = vsub.f32 %v963, %v2513
        %2515 = vmatmul.mubr.f32.gmra.mxu0 %v2514
        %v2516 = vpop.f32.mrf.mxu0
        %v2517 = vadd.f32 %v2417, %v2516
        %v2518 = vpop.f32.mrf.mxu0
        %2519 = vmatprep.mubr.f32.mxu0 0.0
        %v2520 = vand.u32 %v966, 4294901760
        %v2521 = vsub.f32 %v966, %v2520
        %2522 = vmatmul.mubr.f32.gmra.mxu0 %v2521
        %v2523 = vpop.f32.mrf.mxu0
        %v2524 = vadd.f32 %v2423, %v2523
        %v2525 = vpop.f32.mrf.mxu0
        %2526 = vdwg.mxu0
        %2527 = vmatprep.subr.mxu0 0.0
        %2528 = vmatpush1.msra.mxu0 0.0
        %2529 = vmatprep.subr.mxu0 0.0
        %2530 = vmatpush1.msra.mxu0 0.0
        %2531 = vmatprep.subr.mxu0 0.0
        %2532 = vmatpush1.msra.mxu0 0.0
        %2533 = vmatprep.subr.mxu0 0.0
        %2534 = vmatpush1.msra.mxu0 0.0
        %2535 = vmatprep.subr.mxu0 0.0
        %2536 = vmatpush1.msra.mxu0 0.0
        %2537 = vmatprep.subr.mxu0 0.0
        %2538 = vmatpush1.msra.mxu0 0.0
        %2539 = vmatprep.subr.mxu0 0.0
        %2540 = vmatpush1.msra.mxu0 0.0
        %2541 = vmatprep.subr.mxu0 0.0
        %2542 = vmatpush1.msra.mxu0 0.0
        %2543 = vmatprep.subr.mxu0 0.0
        %2544 = vmatpush1.msra.mxu0 0.0
        %2545 = vmatprep.subr.mxu0 0.0
        %2546 = vmatpush1.msra.mxu0 0.0
        %2547 = vmatprep.subr.mxu0 0.0
        %2548 = vmatpush1.msra.mxu0 0.0
        %2549 = vmatprep.subr.mxu0 0.0
        %2550 = vmatpush1.msra.mxu0 0.0
        %2551 = vmatprep.subr.mxu0 0.0
        %v2552 = vand.u32 %v2205, 4294901760
        %2553 = vmatpush1.msra.mxu0 %v2552
        %2554 = vmatprep.subr.mxu0 0.0
        %v2555 = vand.u32 %v2199, 4294901760
        %2556 = vmatpush1.msra.mxu0 %v2555
        %2557 = vmatprep.subr.mxu0 0.0
        %v2558 = vand.u32 %v2193, 4294901760
        %2559 = vmatpush1.msra.mxu0 %v2558
        %2560 = vmatprep.subr.mxu0 0.0
        %v2561 = vand.u32 %v2187, 4294901760
        %2562 = vmatpush1.msra.mxu0 %v2561
        %2563 = vmatprep.subr.mxu0 0.0
        %2564 = vmatpush2.msra.mxu0 0.0
        %2565 = vmatprep.subr.mxu0 0.0
        %2566 = vmatpush2.msra.mxu0 0.0
        %2567 = vmatprep.subr.mxu0 0.0
        %2568 = vmatpush2.msra.mxu0 0.0
        %2569 = vmatprep.subr.mxu0 0.0
        %2570 = vmatpush2.msra.mxu0 0.0
        %2571 = vmatprep.subr.mxu0 0.0
        %2572 = vmatpush2.msra.mxu0 0.0
        %2573 = vmatprep.subr.mxu0 0.0
        %2574 = vmatpush2.msra.mxu0 0.0
        %2575 = vmatprep.subr.mxu0 0.0
        %2576 = vmatpush2.msra.mxu0 0.0
        %2577 = vmatprep.subr.mxu0 0.0
        %2578 = vmatpush2.msra.mxu0 0.0
        %2579 = vmatprep.subr.mxu0 0.0
        %2580 = vmatpush2.msra.mxu0 0.0
        %2581 = vmatprep.subr.mxu0 0.0
        %2582 = vmatpush2.msra.mxu0 0.0
        %2583 = vmatprep.subr.mxu0 0.0
        %2584 = vmatpush2.msra.mxu0 0.0
        %2585 = vmatprep.subr.mxu0 0.0
        %2586 = vmatpush2.msra.mxu0 0.0
        %2587 = vmatprep.subr.mxu0 0.0
        %2588 = vmatpush2.msra.mxu0 0.0
        %2589 = vmatprep.subr.mxu0 0.0
        %2590 = vmatpush2.msra.mxu0 0.0
        %2591 = vmatprep.subr.mxu0 0.0
        %2592 = vmatpush2.msra.mxu0 0.0
        %2593 = vmatprep.subr.mxu0 0.0
        %2594 = vmatpush2.msra.mxu0 0.0
        %2595 = vmatprep.mubr.f32.mxu0 0.0
        %v2596 = vand.u32 %v957, 4294901760
        %v2597 = vsub.f32 %v957, %v2596
        %v2598 = vand.u32 %v2597, 4294901760
        %2599 = vmatmul.mubr.f32.gmra.mxu0 %v2598
        %v2600 = vpop.f32.mrf.mxu0
        %v2601 = vadd.f32 %v2503, %v2600
        %v2602 = vpop.f32.mrf.mxu0
        %2603 = vmatprep.mubr.f32.mxu0 0.0
        %v2604 = vand.u32 %v960, 4294901760
        %v2605 = vsub.f32 %v960, %v2604
        %v2606 = vand.u32 %v2605, 4294901760
        %2607 = vmatmul.mubr.f32.gmra.mxu0 %v2606
        %v2608 = vpop.f32.mrf.mxu0
        %v2609 = vadd.f32 %v2510, %v2608
        %v2610 = vpop.f32.mrf.mxu0
        %2611 = vmatprep.mubr.f32.mxu0 0.0
        %v2612 = vand.u32 %v963, 4294901760
        %v2613 = vsub.f32 %v963, %v2612
        %v2614 = vand.u32 %v2613, 4294901760
        %2615 = vmatmul.mubr.f32.gmra.mxu0 %v2614
        %v2616 = vpop.f32.mrf.mxu0
        %v2617 = vadd.f32 %v2517, %v2616
        %v2618 = vpop.f32.mrf.mxu0
        %2619 = vmatprep.mubr.f32.mxu0 0.0
        %v2620 = vand.u32 %v966, 4294901760
        %v2621 = vsub.f32 %v966, %v2620
        %v2622 = vand.u32 %v2621, 4294901760
        %2623 = vmatmul.mubr.f32.gmra.mxu0 %v2622
        %v2624 = vpop.f32.mrf.mxu0
        %v2625 = vadd.f32 %v2524, %v2624
        %v2626 = vpop.f32.mrf.mxu0
        %2627 = vdwg.mxu0
        %2628 = vmatprep.subr.mxu0 0.0
        %2629 = vmatpush1.msra.mxu0 0.0
        %2630 = vmatprep.subr.mxu0 0.0
        %2631 = vmatpush1.msra.mxu0 0.0
        %2632 = vmatprep.subr.mxu0 0.0
        %2633 = vmatpush1.msra.mxu0 0.0
        %2634 = vmatprep.subr.mxu0 0.0
        %2635 = vmatpush1.msra.mxu0 0.0
        %2636 = vmatprep.subr.mxu0 0.0
        %2637 = vmatpush1.msra.mxu0 0.0
        %2638 = vmatprep.subr.mxu0 0.0
        %2639 = vmatpush1.msra.mxu0 0.0
        %2640 = vmatprep.subr.mxu0 0.0
        %2641 = vmatpush1.msra.mxu0 0.0
        %2642 = vmatprep.subr.mxu0 0.0
        %2643 = vmatpush1.msra.mxu0 0.0
        %2644 = vmatprep.subr.mxu0 0.0
        %2645 = vmatpush1.msra.mxu0 0.0
        %2646 = vmatprep.subr.mxu0 0.0
        %2647 = vmatpush1.msra.mxu0 0.0
        %2648 = vmatprep.subr.mxu0 0.0
        %2649 = vmatpush1.msra.mxu0 0.0
        %2650 = vmatprep.subr.mxu0 0.0
        %2651 = vmatpush1.msra.mxu0 0.0
        %2652 = vmatprep.subr.mxu0 0.0
        %v2653 = vand.u32 %v2205, 4294901760
        %v2654 = vsub.f32 %v2205, %v2653
        %v2655 = vand.u32 %v2654, 4294901760
        %2656 = vmatpush1.msra.mxu0 %v2655
        %2657 = vmatprep.subr.mxu0 0.0
        %v2658 = vand.u32 %v2199, 4294901760
        %v2659 = vsub.f32 %v2199, %v2658
        %v2660 = vand.u32 %v2659, 4294901760
        %2661 = vmatpush1.msra.mxu0 %v2660
        %2662 = vmatprep.subr.mxu0 0.0
        %v2663 = vand.u32 %v2193, 4294901760
        %v2664 = vsub.f32 %v2193, %v2663
        %v2665 = vand.u32 %v2664, 4294901760
        %2666 = vmatpush1.msra.mxu0 %v2665
        %2667 = vmatprep.subr.mxu0 0.0
        %v2668 = vand.u32 %v2187, 4294901760
        %v2669 = vsub.f32 %v2187, %v2668
        %v2670 = vand.u32 %v2669, 4294901760
        %2671 = vmatpush1.msra.mxu0 %v2670
        %2672 = vmatprep.subr.mxu0 0.0
        %2673 = vmatpush2.msra.mxu0 0.0
        %2674 = vmatprep.subr.mxu0 0.0
        %2675 = vmatpush2.msra.mxu0 0.0
        %2676 = vmatprep.subr.mxu0 0.0
        %2677 = vmatpush2.msra.mxu0 0.0
        %2678 = vmatprep.subr.mxu0 0.0
        %2679 = vmatpush2.msra.mxu0 0.0
        %2680 = vmatprep.subr.mxu0 0.0
        %2681 = vmatpush2.msra.mxu0 0.0
        %2682 = vmatprep.subr.mxu0 0.0
        %2683 = vmatpush2.msra.mxu0 0.0
        %2684 = vmatprep.subr.mxu0 0.0
        %2685 = vmatpush2.msra.mxu0 0.0
        %2686 = vmatprep.subr.mxu0 0.0
        %2687 = vmatpush2.msra.mxu0 0.0
        %2688 = vmatprep.subr.mxu0 0.0
        %2689 = vmatpush2.msra.mxu0 0.0
        %2690 = vmatprep.subr.mxu0 0.0
        %2691 = vmatpush2.msra.mxu0 0.0
        %2692 = vmatprep.subr.mxu0 0.0
        %2693 = vmatpush2.msra.mxu0 0.0
        %2694 = vmatprep.subr.mxu0 0.0
        %2695 = vmatpush2.msra.mxu0 0.0
        %2696 = vmatprep.subr.mxu0 0.0
        %2697 = vmatpush2.msra.mxu0 0.0
        %2698 = vmatprep.subr.mxu0 0.0
        %2699 = vmatpush2.msra.mxu0 0.0
        %2700 = vmatprep.subr.mxu0 0.0
        %2701 = vmatpush2.msra.mxu0 0.0
        %2702 = vmatprep.subr.mxu0 0.0
        %2703 = vmatpush2.msra.mxu0 0.0
        %2704 = vmatprep.mubr.f32.mxu0 0.0
        %v2705 = vand.u32 %v957, 4294901760
        %2706 = vmatmul.mubr.f32.gmra.mxu0 %v2705
        %v2707 = vpop.f32.mrf.mxu0
        %v2708 = vadd.f32 %v2601, %v2707
        %v2709 = vpop.f32.mrf.mxu0
        %2710 = vmatprep.mubr.f32.mxu0 0.0
        %v2711 = vand.u32 %v960, 4294901760
        %2712 = vmatmul.mubr.f32.gmra.mxu0 %v2711
        %v2713 = vpop.f32.mrf.mxu0
        %v2714 = vadd.f32 %v2609, %v2713
        %v2715 = vpop.f32.mrf.mxu0
        %2716 = vmatprep.mubr.f32.mxu0 0.0
        %v2717 = vand.u32 %v963, 4294901760
        %2718 = vmatmul.mubr.f32.gmra.mxu0 %v2717
        %v2719 = vpop.f32.mrf.mxu0
        %v2720 = vadd.f32 %v2617, %v2719
        %v2721 = vpop.f32.mrf.mxu0
        %2722 = vmatprep.mubr.f32.mxu0 0.0
        %v2723 = vand.u32 %v966, 4294901760
        %2724 = vmatmul.mubr.f32.gmra.mxu0 %v2723
        %v2725 = vpop.f32.mrf.mxu0
        %v2726 = vadd.f32 %v2625, %v2725
        %v2727 = vpop.f32.mrf.mxu0
        %2728 = vdwg.mxu0
        %2729 = vmatprep.subr.mxu0 0.0
        %2730 = vmatpush1.msra.mxu0 0.0
        %2731 = vmatprep.subr.mxu0 0.0
        %2732 = vmatpush1.msra.mxu0 0.0
        %2733 = vmatprep.subr.mxu0 0.0
        %2734 = vmatpush1.msra.mxu0 0.0
        %2735 = vmatprep.subr.mxu0 0.0
        %2736 = vmatpush1.msra.mxu0 0.0
        %2737 = vmatprep.subr.mxu0 0.0
        %2738 = vmatpush1.msra.mxu0 0.0
        %2739 = vmatprep.subr.mxu0 0.0
        %2740 = vmatpush1.msra.mxu0 0.0
        %2741 = vmatprep.subr.mxu0 0.0
        %2742 = vmatpush1.msra.mxu0 0.0
        %2743 = vmatprep.subr.mxu0 0.0
        %2744 = vmatpush1.msra.mxu0 0.0
        %2745 = vmatprep.subr.mxu0 0.0
        %2746 = vmatpush1.msra.mxu0 0.0
        %2747 = vmatprep.subr.mxu0 0.0
        %2748 = vmatpush1.msra.mxu0 0.0
        %2749 = vmatprep.subr.mxu0 0.0
        %2750 = vmatpush1.msra.mxu0 0.0
        %2751 = vmatprep.subr.mxu0 0.0
        %2752 = vmatpush1.msra.mxu0 0.0
        %2753 = vmatprep.subr.mxu0 0.0
        %v2754 = vand.u32 %v2205, 4294901760
        %2755 = vmatpush1.msra.mxu0 %v2754
        %2756 = vmatprep.subr.mxu0 0.0
        %v2757 = vand.u32 %v2199, 4294901760
        %2758 = vmatpush1.msra.mxu0 %v2757
        %2759 = vmatprep.subr.mxu0 0.0
        %v2760 = vand.u32 %v2193, 4294901760
        %2761 = vmatpush1.msra.mxu0 %v2760
        %2762 = vmatprep.subr.mxu0 0.0
        %v2763 = vand.u32 %v2187, 4294901760
        %2764 = vmatpush1.msra.mxu0 %v2763
        %2765 = vmatprep.subr.mxu0 0.0
        %2766 = vmatpush2.msra.mxu0 0.0
        %2767 = vmatprep.subr.mxu0 0.0
        %2768 = vmatpush2.msra.mxu0 0.0
        %2769 = vmatprep.subr.mxu0 0.0
        %2770 = vmatpush2.msra.mxu0 0.0
        %2771 = vmatprep.subr.mxu0 0.0
        %2772 = vmatpush2.msra.mxu0 0.0
        %2773 = vmatprep.subr.mxu0 0.0
        %2774 = vmatpush2.msra.mxu0 0.0
        %2775 = vmatprep.subr.mxu0 0.0
        %2776 = vmatpush2.msra.mxu0 0.0
        %2777 = vmatprep.subr.mxu0 0.0
        %2778 = vmatpush2.msra.mxu0 0.0
        %2779 = vmatprep.subr.mxu0 0.0
        %2780 = vmatpush2.msra.mxu0 0.0
        %2781 = vmatprep.subr.mxu0 0.0
        %2782 = vmatpush2.msra.mxu0 0.0
        %2783 = vmatprep.subr.mxu0 0.0
        %2784 = vmatpush2.msra.mxu0 0.0
        %2785 = vmatprep.subr.mxu0 0.0
        %2786 = vmatpush2.msra.mxu0 0.0
        %2787 = vmatprep.subr.mxu0 0.0
        %2788 = vmatpush2.msra.mxu0 0.0
        %2789 = vmatprep.subr.mxu0 0.0
        %2790 = vmatpush2.msra.mxu0 0.0
        %2791 = vmatprep.subr.mxu0 0.0
        %2792 = vmatpush2.msra.mxu0 0.0
        %2793 = vmatprep.subr.mxu0 0.0
        %2794 = vmatpush2.msra.mxu0 0.0
        %2795 = vmatprep.subr.mxu0 0.0
        %2796 = vmatpush2.msra.mxu0 0.0
        %2797 = vmatprep.mubr.f32.mxu0 0.0
        %v2798 = vand.u32 %v957, 4294901760
        %2799 = vmatmul.mubr.f32.gmra.mxu0 %v2798
        %v2800 = vpop.f32.mrf.mxu0
        %v2801 = vadd.f32 %v2708, %v2800
        %v2802 = vpop.f32.mrf.mxu0
        %2803 = vmatprep.mubr.f32.mxu0 0.0
        %v2804 = vand.u32 %v960, 4294901760
        %2805 = vmatmul.mubr.f32.gmra.mxu0 %v2804
        %v2806 = vpop.f32.mrf.mxu0
        %v2807 = vadd.f32 %v2714, %v2806
        %v2808 = vpop.f32.mrf.mxu0
        %2809 = vmatprep.mubr.f32.mxu0 0.0
        %v2810 = vand.u32 %v963, 4294901760
        %2811 = vmatmul.mubr.f32.gmra.mxu0 %v2810
        %v2812 = vpop.f32.mrf.mxu0
        %v2813 = vadd.f32 %v2720, %v2812
        %v2814 = vpop.f32.mrf.mxu0
        %2815 = vmatprep.mubr.f32.mxu0 0.0
        %v2816 = vand.u32 %v966, 4294901760
        %2817 = vmatmul.mubr.f32.gmra.mxu0 %v2816
        %v2818 = vpop.f32.mrf.mxu0
        %v2819 = vadd.f32 %v2726, %v2818
        %v2820 = vpop.f32.mrf.mxu0
        %2821 = vdwg.mxu0
        %v2822 = vmul.f32 %v1561, %v1561
        %v2823 = vmul.f32 %v1567, %v1567
        %v2824 = vmul.f32 %v1573, %v1573
        %v2825 = vmul.f32 %v1579, %v1579
        %v2826 = vmul.f32 %v2801, %v2801
        %v2827 = vmul.f32 %v2807, %v2807
        %v2828 = vmul.f32 %v2813, %v2813
        %v2829 = vmul.f32 %v2819, %v2819
        %v2830 = vmul.f32 %v1561, %v2801
        %v2831 = vmul.f32 %v1567, %v2807
        %v2832 = vmul.f32 %v1573, %v2813
        %v2833 = vmul.f32 %v1579, %v2819
        %v2834 = vmul.f32 %v313, %v313
        %v2835 = vmul.f32 %v314, %v314
        %v2836 = vmul.f32 %v315, %v315
        %v2837 = vmul.f32 %v316, %v316
        %v2839 = vsel %vm329, %v2834, 0
        %v2842 = vsel %vm329, %v2835, 0
        %v2845 = vsel %vm329, %v2836, 0
        %v2848 = vsel %vm329, %v2837, 0
        %2850 = vmatprep.subr.mxu0 0.0
        %2851 = vmatpush1.msra.mxu0 0.0
        %2852 = vmatprep.subr.mxu0 0.0
        %2853 = vmatpush1.msra.mxu0 0.0
        %2854 = vmatprep.subr.mxu0 0.0
        %2855 = vmatpush1.msra.mxu0 0.0
        %2856 = vmatprep.subr.mxu0 0.0
        %2857 = vmatpush1.msra.mxu0 0.0
        %2858 = vmatprep.subr.mxu0 0.0
        %2859 = vmatpush1.msra.mxu0 0.0
        %2860 = vmatprep.subr.mxu0 0.0
        %2861 = vmatpush1.msra.mxu0 0.0
        %2862 = vmatprep.subr.mxu0 0.0
        %2863 = vmatpush1.msra.mxu0 0.0
        %2864 = vmatprep.subr.mxu0 0.0
        %2865 = vmatpush1.msra.mxu0 0.0
        %2866 = vmatprep.subr.mxu0 0.0
        %2867 = vmatpush1.msra.mxu0 0.0
        %2868 = vmatprep.subr.mxu0 0.0
        %2869 = vmatpush1.msra.mxu0 0.0
        %2870 = vmatprep.subr.mxu0 0.0
        %2871 = vmatpush1.msra.mxu0 0.0
        %2872 = vmatprep.subr.mxu0 0.0
        %2873 = vmatpush1.msra.mxu0 0.0
        %2874 = vmatprep.subr.mxu0 0.0
        %v2875 = vand.u32 %v328, 4294901760
        %2876 = vmatpush1.msra.mxu0 %v2875
        %2877 = vmatprep.subr.mxu0 0.0
        %v2878 = vand.u32 %v327, 4294901760
        %2879 = vmatpush1.msra.mxu0 %v2878
        %2880 = vmatprep.subr.mxu0 0.0
        %v2881 = vand.u32 %v326, 4294901760
        %2882 = vmatpush1.msra.mxu0 %v2881
        %2883 = vmatprep.subr.mxu0 0.0
        %v2884 = vand.u32 %v325, 4294901760
        %2885 = vmatpush1.msra.mxu0 %v2884
        %2886 = vmatprep.subr.mxu0 0.0
        %2887 = vmatpush2.msra.mxu0 0.0
        %2888 = vmatprep.subr.mxu0 0.0
        %2889 = vmatpush2.msra.mxu0 0.0
        %2890 = vmatprep.subr.mxu0 0.0
        %2891 = vmatpush2.msra.mxu0 0.0
        %2892 = vmatprep.subr.mxu0 0.0
        %2893 = vmatpush2.msra.mxu0 0.0
        %2894 = vmatprep.subr.mxu0 0.0
        %2895 = vmatpush2.msra.mxu0 0.0
        %2896 = vmatprep.subr.mxu0 0.0
        %2897 = vmatpush2.msra.mxu0 0.0
        %2898 = vmatprep.subr.mxu0 0.0
        %2899 = vmatpush2.msra.mxu0 0.0
        %2900 = vmatprep.subr.mxu0 0.0
        %2901 = vmatpush2.msra.mxu0 0.0
        %2902 = vmatprep.subr.mxu0 0.0
        %2903 = vmatpush2.msra.mxu0 0.0
        %2904 = vmatprep.subr.mxu0 0.0
        %2905 = vmatpush2.msra.mxu0 0.0
        %2906 = vmatprep.subr.mxu0 0.0
        %2907 = vmatpush2.msra.mxu0 0.0
        %2908 = vmatprep.subr.mxu0 0.0
        %2909 = vmatpush2.msra.mxu0 0.0
        %2910 = vmatprep.subr.mxu0 0.0
        %2911 = vmatpush2.msra.mxu0 0.0
        %2912 = vmatprep.subr.mxu0 0.0
        %2913 = vmatpush2.msra.mxu0 0.0
        %2914 = vmatprep.subr.mxu0 0.0
        %2915 = vmatpush2.msra.mxu0 0.0
        %2916 = vmatprep.subr.mxu0 0.0
        %2917 = vmatpush2.msra.mxu0 0.0
        %2918 = vmatprep.mubr.f32.mxu0 0.0
        %v2919 = vand.u32 %v2839, 4294901760
        %v2920 = vsub.f32 %v2839, %v2919
        %v2921 = vand.u32 %v2920, 4294901760
        %v2922 = vsub.f32 %v2920, %v2921
        %v2923 = vand.u32 %v2922, 4294901760
        %2924 = vmatmul.mubr.f32.gmra.mxu0 %v2923
        %v2925 = vpop.f32.mrf.mxu0
        %v2926 = vadd.f32 0.0, %v2925
        %v2927 = vpop.f32.mrf.mxu0
        %2928 = vmatprep.mubr.f32.mxu0 0.0
        %v2929 = vand.u32 %v2842, 4294901760
        %v2930 = vsub.f32 %v2842, %v2929
        %v2931 = vand.u32 %v2930, 4294901760
        %v2932 = vsub.f32 %v2930, %v2931
        %v2933 = vand.u32 %v2932, 4294901760
        %2934 = vmatmul.mubr.f32.gmra.mxu0 %v2933
        %v2935 = vpop.f32.mrf.mxu0
        %v2936 = vadd.f32 0.0, %v2935
        %v2937 = vpop.f32.mrf.mxu0
        %2938 = vmatprep.mubr.f32.mxu0 0.0
        %v2939 = vand.u32 %v2845, 4294901760
        %v2940 = vsub.f32 %v2845, %v2939
        %v2941 = vand.u32 %v2940, 4294901760
        %v2942 = vsub.f32 %v2940, %v2941
        %v2943 = vand.u32 %v2942, 4294901760
        %2944 = vmatmul.mubr.f32.gmra.mxu0 %v2943
        %v2945 = vpop.f32.mrf.mxu0
        %v2946 = vadd.f32 0.0, %v2945
        %v2947 = vpop.f32.mrf.mxu0
        %2948 = vmatprep.mubr.f32.mxu0 0.0
        %v2949 = vand.u32 %v2848, 4294901760
        %v2950 = vsub.f32 %v2848, %v2949
        %v2951 = vand.u32 %v2950, 4294901760
        %v2952 = vsub.f32 %v2950, %v2951
        %v2953 = vand.u32 %v2952, 4294901760
        %2954 = vmatmul.mubr.f32.gmra.mxu0 %v2953
        %v2955 = vpop.f32.mrf.mxu0
        %v2956 = vadd.f32 0.0, %v2955
        %v2957 = vpop.f32.mrf.mxu0
        %2958 = vdwg.mxu0
        %2959 = vmatprep.subr.mxu0 0.0
        %2960 = vmatpush1.msra.mxu0 0.0
        %2961 = vmatprep.subr.mxu0 0.0
        %2962 = vmatpush1.msra.mxu0 0.0
        %2963 = vmatprep.subr.mxu0 0.0
        %2964 = vmatpush1.msra.mxu0 0.0
        %2965 = vmatprep.subr.mxu0 0.0
        %2966 = vmatpush1.msra.mxu0 0.0
        %2967 = vmatprep.subr.mxu0 0.0
        %2968 = vmatpush1.msra.mxu0 0.0
        %2969 = vmatprep.subr.mxu0 0.0
        %2970 = vmatpush1.msra.mxu0 0.0
        %2971 = vmatprep.subr.mxu0 0.0
        %2972 = vmatpush1.msra.mxu0 0.0
        %2973 = vmatprep.subr.mxu0 0.0
        %2974 = vmatpush1.msra.mxu0 0.0
        %2975 = vmatprep.subr.mxu0 0.0
        %2976 = vmatpush1.msra.mxu0 0.0
        %2977 = vmatprep.subr.mxu0 0.0
        %2978 = vmatpush1.msra.mxu0 0.0
        %2979 = vmatprep.subr.mxu0 0.0
        %2980 = vmatpush1.msra.mxu0 0.0
        %2981 = vmatprep.subr.mxu0 0.0
        %2982 = vmatpush1.msra.mxu0 0.0
        %2983 = vmatprep.subr.mxu0 0.0
        %v2984 = vand.u32 %v328, 4294901760
        %v2985 = vsub.f32 %v328, %v2984
        %v2986 = vand.u32 %v2985, 4294901760
        %v2987 = vsub.f32 %v2985, %v2986
        %v2988 = vand.u32 %v2987, 4294901760
        %2989 = vmatpush1.msra.mxu0 %v2988
        %2990 = vmatprep.subr.mxu0 0.0
        %v2991 = vand.u32 %v327, 4294901760
        %v2992 = vsub.f32 %v327, %v2991
        %v2993 = vand.u32 %v2992, 4294901760
        %v2994 = vsub.f32 %v2992, %v2993
        %v2995 = vand.u32 %v2994, 4294901760
        %2996 = vmatpush1.msra.mxu0 %v2995
        %2997 = vmatprep.subr.mxu0 0.0
        %v2998 = vand.u32 %v326, 4294901760
        %v2999 = vsub.f32 %v326, %v2998
        %v3000 = vand.u32 %v2999, 4294901760
        %v3001 = vsub.f32 %v2999, %v3000
        %v3002 = vand.u32 %v3001, 4294901760
        %3003 = vmatpush1.msra.mxu0 %v3002
        %3004 = vmatprep.subr.mxu0 0.0
        %v3005 = vand.u32 %v325, 4294901760
        %v3006 = vsub.f32 %v325, %v3005
        %v3007 = vand.u32 %v3006, 4294901760
        %v3008 = vsub.f32 %v3006, %v3007
        %v3009 = vand.u32 %v3008, 4294901760
        %3010 = vmatpush1.msra.mxu0 %v3009
        %3011 = vmatprep.subr.mxu0 0.0
        %3012 = vmatpush2.msra.mxu0 0.0
        %3013 = vmatprep.subr.mxu0 0.0
        %3014 = vmatpush2.msra.mxu0 0.0
        %3015 = vmatprep.subr.mxu0 0.0
        %3016 = vmatpush2.msra.mxu0 0.0
        %3017 = vmatprep.subr.mxu0 0.0
        %3018 = vmatpush2.msra.mxu0 0.0
        %3019 = vmatprep.subr.mxu0 0.0
        %3020 = vmatpush2.msra.mxu0 0.0
        %3021 = vmatprep.subr.mxu0 0.0
        %3022 = vmatpush2.msra.mxu0 0.0
        %3023 = vmatprep.subr.mxu0 0.0
        %3024 = vmatpush2.msra.mxu0 0.0
        %3025 = vmatprep.subr.mxu0 0.0
        %3026 = vmatpush2.msra.mxu0 0.0
        %3027 = vmatprep.subr.mxu0 0.0
        %3028 = vmatpush2.msra.mxu0 0.0
        %3029 = vmatprep.subr.mxu0 0.0
        %3030 = vmatpush2.msra.mxu0 0.0
        %3031 = vmatprep.subr.mxu0 0.0
        %3032 = vmatpush2.msra.mxu0 0.0
        %3033 = vmatprep.subr.mxu0 0.0
        %3034 = vmatpush2.msra.mxu0 0.0
        %3035 = vmatprep.subr.mxu0 0.0
        %3036 = vmatpush2.msra.mxu0 0.0
        %3037 = vmatprep.subr.mxu0 0.0
        %3038 = vmatpush2.msra.mxu0 0.0
        %3039 = vmatprep.subr.mxu0 0.0
        %3040 = vmatpush2.msra.mxu0 0.0
        %3041 = vmatprep.subr.mxu0 0.0
        %3042 = vmatpush2.msra.mxu0 0.0
        %3043 = vmatprep.mubr.f32.mxu0 0.0
        %v3044 = vand.u32 %v2839, 4294901760
        %3045 = vmatmul.mubr.f32.gmra.mxu0 %v3044
        %v3046 = vpop.f32.mrf.mxu0
        %v3047 = vadd.f32 %v2926, %v3046
        %v3048 = vpop.f32.mrf.mxu0
        %3049 = vmatprep.mubr.f32.mxu0 0.0
        %v3050 = vand.u32 %v2842, 4294901760
        %3051 = vmatmul.mubr.f32.gmra.mxu0 %v3050
        %v3052 = vpop.f32.mrf.mxu0
        %v3053 = vadd.f32 %v2936, %v3052
        %v3054 = vpop.f32.mrf.mxu0
        %3055 = vmatprep.mubr.f32.mxu0 0.0
        %v3056 = vand.u32 %v2845, 4294901760
        %3057 = vmatmul.mubr.f32.gmra.mxu0 %v3056
        %v3058 = vpop.f32.mrf.mxu0
        %v3059 = vadd.f32 %v2946, %v3058
        %v3060 = vpop.f32.mrf.mxu0
        %3061 = vmatprep.mubr.f32.mxu0 0.0
        %v3062 = vand.u32 %v2848, 4294901760
        %3063 = vmatmul.mubr.f32.gmra.mxu0 %v3062
        %v3064 = vpop.f32.mrf.mxu0
        %v3065 = vadd.f32 %v2956, %v3064
        %v3066 = vpop.f32.mrf.mxu0
        %3067 = vdwg.mxu0
        %3068 = vmatprep.subr.mxu0 0.0
        %3069 = vmatpush1.msra.mxu0 0.0
        %3070 = vmatprep.subr.mxu0 0.0
        %3071 = vmatpush1.msra.mxu0 0.0
        %3072 = vmatprep.subr.mxu0 0.0
        %3073 = vmatpush1.msra.mxu0 0.0
        %3074 = vmatprep.subr.mxu0 0.0
        %3075 = vmatpush1.msra.mxu0 0.0
        %3076 = vmatprep.subr.mxu0 0.0
        %3077 = vmatpush1.msra.mxu0 0.0
        %3078 = vmatprep.subr.mxu0 0.0
        %3079 = vmatpush1.msra.mxu0 0.0
        %3080 = vmatprep.subr.mxu0 0.0
        %3081 = vmatpush1.msra.mxu0 0.0
        %3082 = vmatprep.subr.mxu0 0.0
        %3083 = vmatpush1.msra.mxu0 0.0
        %3084 = vmatprep.subr.mxu0 0.0
        %3085 = vmatpush1.msra.mxu0 0.0
        %3086 = vmatprep.subr.mxu0 0.0
        %3087 = vmatpush1.msra.mxu0 0.0
        %3088 = vmatprep.subr.mxu0 0.0
        %3089 = vmatpush1.msra.mxu0 0.0
        %3090 = vmatprep.subr.mxu0 0.0
        %3091 = vmatpush1.msra.mxu0 0.0
        %3092 = vmatprep.subr.mxu0 0.0
        %v3093 = vand.u32 %v328, 4294901760
        %v3094 = vsub.f32 %v328, %v3093
        %3095 = vmatpush1.msra.mxu0 %v3094
        %3096 = vmatprep.subr.mxu0 0.0
        %v3097 = vand.u32 %v327, 4294901760
        %v3098 = vsub.f32 %v327, %v3097
        %3099 = vmatpush1.msra.mxu0 %v3098
        %3100 = vmatprep.subr.mxu0 0.0
        %v3101 = vand.u32 %v326, 4294901760
        %v3102 = vsub.f32 %v326, %v3101
        %3103 = vmatpush1.msra.mxu0 %v3102
        %3104 = vmatprep.subr.mxu0 0.0
        %v3105 = vand.u32 %v325, 4294901760
        %v3106 = vsub.f32 %v325, %v3105
        %3107 = vmatpush1.msra.mxu0 %v3106
        %3108 = vmatprep.subr.mxu0 0.0
        %3109 = vmatpush2.msra.mxu0 0.0
        %3110 = vmatprep.subr.mxu0 0.0
        %3111 = vmatpush2.msra.mxu0 0.0
        %3112 = vmatprep.subr.mxu0 0.0
        %3113 = vmatpush2.msra.mxu0 0.0
        %3114 = vmatprep.subr.mxu0 0.0
        %3115 = vmatpush2.msra.mxu0 0.0
        %3116 = vmatprep.subr.mxu0 0.0
        %3117 = vmatpush2.msra.mxu0 0.0
        %3118 = vmatprep.subr.mxu0 0.0
        %3119 = vmatpush2.msra.mxu0 0.0
        %3120 = vmatprep.subr.mxu0 0.0
        %3121 = vmatpush2.msra.mxu0 0.0
        %3122 = vmatprep.subr.mxu0 0.0
        %3123 = vmatpush2.msra.mxu0 0.0
        %3124 = vmatprep.subr.mxu0 0.0
        %3125 = vmatpush2.msra.mxu0 0.0
        %3126 = vmatprep.subr.mxu0 0.0
        %3127 = vmatpush2.msra.mxu0 0.0
        %3128 = vmatprep.subr.mxu0 0.0
        %3129 = vmatpush2.msra.mxu0 0.0
        %3130 = vmatprep.subr.mxu0 0.0
        %3131 = vmatpush2.msra.mxu0 0.0
        %3132 = vmatprep.subr.mxu0 0.0
        %3133 = vmatpush2.msra.mxu0 0.0
        %3134 = vmatprep.subr.mxu0 0.0
        %3135 = vmatpush2.msra.mxu0 0.0
        %3136 = vmatprep.subr.mxu0 0.0
        %3137 = vmatpush2.msra.mxu0 0.0
        %3138 = vmatprep.subr.mxu0 0.0
        %3139 = vmatpush2.msra.mxu0 0.0
        %3140 = vmatprep.mubr.f32.mxu0 0.0
        %v3141 = vand.u32 %v2839, 4294901760
        %v3142 = vsub.f32 %v2839, %v3141
        %3143 = vmatmul.mubr.f32.gmra.mxu0 %v3142
        %v3144 = vpop.f32.mrf.mxu0
        %v3145 = vadd.f32 %v3047, %v3144
        %v3146 = vpop.f32.mrf.mxu0
        %3147 = vmatprep.mubr.f32.mxu0 0.0
        %v3148 = vand.u32 %v2842, 4294901760
        %v3149 = vsub.f32 %v2842, %v3148
        %3150 = vmatmul.mubr.f32.gmra.mxu0 %v3149
        %v3151 = vpop.f32.mrf.mxu0
        %v3152 = vadd.f32 %v3053, %v3151
        %v3153 = vpop.f32.mrf.mxu0
        %3154 = vmatprep.mubr.f32.mxu0 0.0
        %v3155 = vand.u32 %v2845, 4294901760
        %v3156 = vsub.f32 %v2845, %v3155
        %3157 = vmatmul.mubr.f32.gmra.mxu0 %v3156
        %v3158 = vpop.f32.mrf.mxu0
        %v3159 = vadd.f32 %v3059, %v3158
        %v3160 = vpop.f32.mrf.mxu0
        %3161 = vmatprep.mubr.f32.mxu0 0.0
        %v3162 = vand.u32 %v2848, 4294901760
        %v3163 = vsub.f32 %v2848, %v3162
        %3164 = vmatmul.mubr.f32.gmra.mxu0 %v3163
        %v3165 = vpop.f32.mrf.mxu0
        %v3166 = vadd.f32 %v3065, %v3165
        %v3167 = vpop.f32.mrf.mxu0
        %3168 = vdwg.mxu0
        %3169 = vmatprep.subr.mxu0 0.0
        %3170 = vmatpush1.msra.mxu0 0.0
        %3171 = vmatprep.subr.mxu0 0.0
        %3172 = vmatpush1.msra.mxu0 0.0
        %3173 = vmatprep.subr.mxu0 0.0
        %3174 = vmatpush1.msra.mxu0 0.0
        %3175 = vmatprep.subr.mxu0 0.0
        %3176 = vmatpush1.msra.mxu0 0.0
        %3177 = vmatprep.subr.mxu0 0.0
        %3178 = vmatpush1.msra.mxu0 0.0
        %3179 = vmatprep.subr.mxu0 0.0
        %3180 = vmatpush1.msra.mxu0 0.0
        %3181 = vmatprep.subr.mxu0 0.0
        %3182 = vmatpush1.msra.mxu0 0.0
        %3183 = vmatprep.subr.mxu0 0.0
        %3184 = vmatpush1.msra.mxu0 0.0
        %3185 = vmatprep.subr.mxu0 0.0
        %3186 = vmatpush1.msra.mxu0 0.0
        %3187 = vmatprep.subr.mxu0 0.0
        %3188 = vmatpush1.msra.mxu0 0.0
        %3189 = vmatprep.subr.mxu0 0.0
        %3190 = vmatpush1.msra.mxu0 0.0
        %3191 = vmatprep.subr.mxu0 0.0
        %3192 = vmatpush1.msra.mxu0 0.0
        %3193 = vmatprep.subr.mxu0 0.0
        %v3194 = vand.u32 %v328, 4294901760
        %3195 = vmatpush1.msra.mxu0 %v3194
        %3196 = vmatprep.subr.mxu0 0.0
        %v3197 = vand.u32 %v327, 4294901760
        %3198 = vmatpush1.msra.mxu0 %v3197
        %3199 = vmatprep.subr.mxu0 0.0
        %v3200 = vand.u32 %v326, 4294901760
        %3201 = vmatpush1.msra.mxu0 %v3200
        %3202 = vmatprep.subr.mxu0 0.0
        %v3203 = vand.u32 %v325, 4294901760
        %3204 = vmatpush1.msra.mxu0 %v3203
        %3205 = vmatprep.subr.mxu0 0.0
        %3206 = vmatpush2.msra.mxu0 0.0
        %3207 = vmatprep.subr.mxu0 0.0
        %3208 = vmatpush2.msra.mxu0 0.0
        %3209 = vmatprep.subr.mxu0 0.0
        %3210 = vmatpush2.msra.mxu0 0.0
        %3211 = vmatprep.subr.mxu0 0.0
        %3212 = vmatpush2.msra.mxu0 0.0
        %3213 = vmatprep.subr.mxu0 0.0
        %3214 = vmatpush2.msra.mxu0 0.0
        %3215 = vmatprep.subr.mxu0 0.0
        %3216 = vmatpush2.msra.mxu0 0.0
        %3217 = vmatprep.subr.mxu0 0.0
        %3218 = vmatpush2.msra.mxu0 0.0
        %3219 = vmatprep.subr.mxu0 0.0
        %3220 = vmatpush2.msra.mxu0 0.0
        %3221 = vmatprep.subr.mxu0 0.0
        %3222 = vmatpush2.msra.mxu0 0.0
        %3223 = vmatprep.subr.mxu0 0.0
        %3224 = vmatpush2.msra.mxu0 0.0
        %3225 = vmatprep.subr.mxu0 0.0
        %3226 = vmatpush2.msra.mxu0 0.0
        %3227 = vmatprep.subr.mxu0 0.0
        %3228 = vmatpush2.msra.mxu0 0.0
        %3229 = vmatprep.subr.mxu0 0.0
        %3230 = vmatpush2.msra.mxu0 0.0
        %3231 = vmatprep.subr.mxu0 0.0
        %3232 = vmatpush2.msra.mxu0 0.0
        %3233 = vmatprep.subr.mxu0 0.0
        %3234 = vmatpush2.msra.mxu0 0.0
        %3235 = vmatprep.subr.mxu0 0.0
        %3236 = vmatpush2.msra.mxu0 0.0
        %3237 = vmatprep.mubr.f32.mxu0 0.0
        %v3238 = vand.u32 %v2839, 4294901760
        %v3239 = vsub.f32 %v2839, %v3238
        %v3240 = vand.u32 %v3239, 4294901760
        %3241 = vmatmul.mubr.f32.gmra.mxu0 %v3240
        %v3242 = vpop.f32.mrf.mxu0
        %v3243 = vadd.f32 %v3145, %v3242
        %v3244 = vpop.f32.mrf.mxu0
        %3245 = vmatprep.mubr.f32.mxu0 0.0
        %v3246 = vand.u32 %v2842, 4294901760
        %v3247 = vsub.f32 %v2842, %v3246
        %v3248 = vand.u32 %v3247, 4294901760
        %3249 = vmatmul.mubr.f32.gmra.mxu0 %v3248
        %v3250 = vpop.f32.mrf.mxu0
        %v3251 = vadd.f32 %v3152, %v3250
        %v3252 = vpop.f32.mrf.mxu0
        %3253 = vmatprep.mubr.f32.mxu0 0.0
        %v3254 = vand.u32 %v2845, 4294901760
        %v3255 = vsub.f32 %v2845, %v3254
        %v3256 = vand.u32 %v3255, 4294901760
        %3257 = vmatmul.mubr.f32.gmra.mxu0 %v3256
        %v3258 = vpop.f32.mrf.mxu0
        %v3259 = vadd.f32 %v3159, %v3258
        %v3260 = vpop.f32.mrf.mxu0
        %3261 = vmatprep.mubr.f32.mxu0 0.0
        %v3262 = vand.u32 %v2848, 4294901760
        %v3263 = vsub.f32 %v2848, %v3262
        %v3264 = vand.u32 %v3263, 4294901760
        %3265 = vmatmul.mubr.f32.gmra.mxu0 %v3264
        %v3266 = vpop.f32.mrf.mxu0
        %v3267 = vadd.f32 %v3166, %v3266
        %v3268 = vpop.f32.mrf.mxu0
        %3269 = vdwg.mxu0
        %3270 = vmatprep.subr.mxu0 0.0
        %3271 = vmatpush1.msra.mxu0 0.0
        %3272 = vmatprep.subr.mxu0 0.0
        %3273 = vmatpush1.msra.mxu0 0.0
        %3274 = vmatprep.subr.mxu0 0.0
        %3275 = vmatpush1.msra.mxu0 0.0
        %3276 = vmatprep.subr.mxu0 0.0
        %3277 = vmatpush1.msra.mxu0 0.0
        %3278 = vmatprep.subr.mxu0 0.0
        %3279 = vmatpush1.msra.mxu0 0.0
        %3280 = vmatprep.subr.mxu0 0.0
        %3281 = vmatpush1.msra.mxu0 0.0
        %3282 = vmatprep.subr.mxu0 0.0
        %3283 = vmatpush1.msra.mxu0 0.0
        %3284 = vmatprep.subr.mxu0 0.0
        %3285 = vmatpush1.msra.mxu0 0.0
        %3286 = vmatprep.subr.mxu0 0.0
        %3287 = vmatpush1.msra.mxu0 0.0
        %3288 = vmatprep.subr.mxu0 0.0
        %3289 = vmatpush1.msra.mxu0 0.0
        %3290 = vmatprep.subr.mxu0 0.0
        %3291 = vmatpush1.msra.mxu0 0.0
        %3292 = vmatprep.subr.mxu0 0.0
        %3293 = vmatpush1.msra.mxu0 0.0
        %3294 = vmatprep.subr.mxu0 0.0
        %v3295 = vand.u32 %v328, 4294901760
        %v3296 = vsub.f32 %v328, %v3295
        %v3297 = vand.u32 %v3296, 4294901760
        %3298 = vmatpush1.msra.mxu0 %v3297
        %3299 = vmatprep.subr.mxu0 0.0
        %v3300 = vand.u32 %v327, 4294901760
        %v3301 = vsub.f32 %v327, %v3300
        %v3302 = vand.u32 %v3301, 4294901760
        %3303 = vmatpush1.msra.mxu0 %v3302
        %3304 = vmatprep.subr.mxu0 0.0
        %v3305 = vand.u32 %v326, 4294901760
        %v3306 = vsub.f32 %v326, %v3305
        %v3307 = vand.u32 %v3306, 4294901760
        %3308 = vmatpush1.msra.mxu0 %v3307
        %3309 = vmatprep.subr.mxu0 0.0
        %v3310 = vand.u32 %v325, 4294901760
        %v3311 = vsub.f32 %v325, %v3310
        %v3312 = vand.u32 %v3311, 4294901760
        %3313 = vmatpush1.msra.mxu0 %v3312
        %3314 = vmatprep.subr.mxu0 0.0
        %3315 = vmatpush2.msra.mxu0 0.0
        %3316 = vmatprep.subr.mxu0 0.0
        %3317 = vmatpush2.msra.mxu0 0.0
        %3318 = vmatprep.subr.mxu0 0.0
        %3319 = vmatpush2.msra.mxu0 0.0
        %3320 = vmatprep.subr.mxu0 0.0
        %3321 = vmatpush2.msra.mxu0 0.0
        %3322 = vmatprep.subr.mxu0 0.0
        %3323 = vmatpush2.msra.mxu0 0.0
        %3324 = vmatprep.subr.mxu0 0.0
        %3325 = vmatpush2.msra.mxu0 0.0
        %3326 = vmatprep.subr.mxu0 0.0
        %3327 = vmatpush2.msra.mxu0 0.0
        %3328 = vmatprep.subr.mxu0 0.0
        %3329 = vmatpush2.msra.mxu0 0.0
        %3330 = vmatprep.subr.mxu0 0.0
        %3331 = vmatpush2.msra.mxu0 0.0
        %3332 = vmatprep.subr.mxu0 0.0
        %3333 = vmatpush2.msra.mxu0 0.0
        %3334 = vmatprep.subr.mxu0 0.0
        %3335 = vmatpush2.msra.mxu0 0.0
        %3336 = vmatprep.subr.mxu0 0.0
        %3337 = vmatpush2.msra.mxu0 0.0
        %3338 = vmatprep.subr.mxu0 0.0
        %3339 = vmatpush2.msra.mxu0 0.0
        %3340 = vmatprep.subr.mxu0 0.0
        %3341 = vmatpush2.msra.mxu0 0.0
        %3342 = vmatprep.subr.mxu0 0.0
        %3343 = vmatpush2.msra.mxu0 0.0
        %3344 = vmatprep.subr.mxu0 0.0
        %3345 = vmatpush2.msra.mxu0 0.0
        %3346 = vmatprep.mubr.f32.mxu0 0.0
        %v3347 = vand.u32 %v2839, 4294901760
        %3348 = vmatmul.mubr.f32.gmra.mxu0 %v3347
        %v3349 = vpop.f32.mrf.mxu0
        %v3350 = vadd.f32 %v3243, %v3349
        %v3351 = vpop.f32.mrf.mxu0
        %3352 = vmatprep.mubr.f32.mxu0 0.0
        %v3353 = vand.u32 %v2842, 4294901760
        %3354 = vmatmul.mubr.f32.gmra.mxu0 %v3353
        %v3355 = vpop.f32.mrf.mxu0
        %v3356 = vadd.f32 %v3251, %v3355
        %v3357 = vpop.f32.mrf.mxu0
        %3358 = vmatprep.mubr.f32.mxu0 0.0
        %v3359 = vand.u32 %v2845, 4294901760
        %3360 = vmatmul.mubr.f32.gmra.mxu0 %v3359
        %v3361 = vpop.f32.mrf.mxu0
        %v3362 = vadd.f32 %v3259, %v3361
        %v3363 = vpop.f32.mrf.mxu0
        %3364 = vmatprep.mubr.f32.mxu0 0.0
        %v3365 = vand.u32 %v2848, 4294901760
        %3366 = vmatmul.mubr.f32.gmra.mxu0 %v3365
        %v3367 = vpop.f32.mrf.mxu0
        %v3368 = vadd.f32 %v3267, %v3367
        %v3369 = vpop.f32.mrf.mxu0
        %3370 = vdwg.mxu0
        %3371 = vmatprep.subr.mxu0 0.0
        %3372 = vmatpush1.msra.mxu0 0.0
        %3373 = vmatprep.subr.mxu0 0.0
        %3374 = vmatpush1.msra.mxu0 0.0
        %3375 = vmatprep.subr.mxu0 0.0
        %3376 = vmatpush1.msra.mxu0 0.0
        %3377 = vmatprep.subr.mxu0 0.0
        %3378 = vmatpush1.msra.mxu0 0.0
        %3379 = vmatprep.subr.mxu0 0.0
        %3380 = vmatpush1.msra.mxu0 0.0
        %3381 = vmatprep.subr.mxu0 0.0
        %3382 = vmatpush1.msra.mxu0 0.0
        %3383 = vmatprep.subr.mxu0 0.0
        %3384 = vmatpush1.msra.mxu0 0.0
        %3385 = vmatprep.subr.mxu0 0.0
        %3386 = vmatpush1.msra.mxu0 0.0
        %3387 = vmatprep.subr.mxu0 0.0
        %3388 = vmatpush1.msra.mxu0 0.0
        %3389 = vmatprep.subr.mxu0 0.0
        %3390 = vmatpush1.msra.mxu0 0.0
        %3391 = vmatprep.subr.mxu0 0.0
        %3392 = vmatpush1.msra.mxu0 0.0
        %3393 = vmatprep.subr.mxu0 0.0
        %3394 = vmatpush1.msra.mxu0 0.0
        %3395 = vmatprep.subr.mxu0 0.0
        %v3396 = vand.u32 %v328, 4294901760
        %3397 = vmatpush1.msra.mxu0 %v3396
        %3398 = vmatprep.subr.mxu0 0.0
        %v3399 = vand.u32 %v327, 4294901760
        %3400 = vmatpush1.msra.mxu0 %v3399
        %3401 = vmatprep.subr.mxu0 0.0
        %v3402 = vand.u32 %v326, 4294901760
        %3403 = vmatpush1.msra.mxu0 %v3402
        %3404 = vmatprep.subr.mxu0 0.0
        %v3405 = vand.u32 %v325, 4294901760
        %3406 = vmatpush1.msra.mxu0 %v3405
        %3407 = vmatprep.subr.mxu0 0.0
        %3408 = vmatpush2.msra.mxu0 0.0
        %3409 = vmatprep.subr.mxu0 0.0
        %3410 = vmatpush2.msra.mxu0 0.0
        %3411 = vmatprep.subr.mxu0 0.0
        %3412 = vmatpush2.msra.mxu0 0.0
        %3413 = vmatprep.subr.mxu0 0.0
        %3414 = vmatpush2.msra.mxu0 0.0
        %3415 = vmatprep.subr.mxu0 0.0
        %3416 = vmatpush2.msra.mxu0 0.0
        %3417 = vmatprep.subr.mxu0 0.0
        %3418 = vmatpush2.msra.mxu0 0.0
        %3419 = vmatprep.subr.mxu0 0.0
        %3420 = vmatpush2.msra.mxu0 0.0
        %3421 = vmatprep.subr.mxu0 0.0
        %3422 = vmatpush2.msra.mxu0 0.0
        %3423 = vmatprep.subr.mxu0 0.0
        %3424 = vmatpush2.msra.mxu0 0.0
        %3425 = vmatprep.subr.mxu0 0.0
        %3426 = vmatpush2.msra.mxu0 0.0
        %3427 = vmatprep.subr.mxu0 0.0
        %3428 = vmatpush2.msra.mxu0 0.0
        %3429 = vmatprep.subr.mxu0 0.0
        %3430 = vmatpush2.msra.mxu0 0.0
        %3431 = vmatprep.subr.mxu0 0.0
        %3432 = vmatpush2.msra.mxu0 0.0
        %3433 = vmatprep.subr.mxu0 0.0
        %3434 = vmatpush2.msra.mxu0 0.0
        %3435 = vmatprep.subr.mxu0 0.0
        %3436 = vmatpush2.msra.mxu0 0.0
        %3437 = vmatprep.subr.mxu0 0.0
        %3438 = vmatpush2.msra.mxu0 0.0
        %3439 = vmatprep.mubr.f32.mxu0 0.0
        %v3440 = vand.u32 %v2839, 4294901760
        %3441 = vmatmul.mubr.f32.gmra.mxu0 %v3440
        %v3442 = vpop.f32.mrf.mxu0
        %v3443 = vadd.f32 %v3350, %v3442
        %v3444 = vpop.f32.mrf.mxu0
        %3445 = vmatprep.mubr.f32.mxu0 0.0
        %v3446 = vand.u32 %v2842, 4294901760
        %3447 = vmatmul.mubr.f32.gmra.mxu0 %v3446
        %v3448 = vpop.f32.mrf.mxu0
        %v3449 = vadd.f32 %v3356, %v3448
        %v3450 = vpop.f32.mrf.mxu0
        %3451 = vmatprep.mubr.f32.mxu0 0.0
        %v3452 = vand.u32 %v2845, 4294901760
        %3453 = vmatmul.mubr.f32.gmra.mxu0 %v3452
        %v3454 = vpop.f32.mrf.mxu0
        %v3455 = vadd.f32 %v3362, %v3454
        %v3456 = vpop.f32.mrf.mxu0
        %3457 = vmatprep.mubr.f32.mxu0 0.0
        %v3458 = vand.u32 %v2848, 4294901760
        %3459 = vmatmul.mubr.f32.gmra.mxu0 %v3458
        %v3460 = vpop.f32.mrf.mxu0
        %v3461 = vadd.f32 %v3368, %v3460
        %v3462 = vpop.f32.mrf.mxu0
        %3463 = vdwg.mxu0
        %3464 = vmatprep.subr.mxu0 0.0
        %3465 = vmatpush1.msra.mxu0 0.0
        %3466 = vmatprep.subr.mxu0 0.0
        %3467 = vmatpush1.msra.mxu0 0.0
        %3468 = vmatprep.subr.mxu0 0.0
        %3469 = vmatpush1.msra.mxu0 0.0
        %3470 = vmatprep.subr.mxu0 0.0
        %3471 = vmatpush1.msra.mxu0 0.0
        %3472 = vmatprep.subr.mxu0 0.0
        %3473 = vmatpush1.msra.mxu0 0.0
        %3474 = vmatprep.subr.mxu0 0.0
        %3475 = vmatpush1.msra.mxu0 0.0
        %3476 = vmatprep.subr.mxu0 0.0
        %3477 = vmatpush1.msra.mxu0 0.0
        %3478 = vmatprep.subr.mxu0 0.0
        %3479 = vmatpush1.msra.mxu0 0.0
        %3480 = vmatprep.subr.mxu0 0.0
        %3481 = vmatpush1.msra.mxu0 0.0
        %3482 = vmatprep.subr.mxu0 0.0
        %3483 = vmatpush1.msra.mxu0 0.0
        %3484 = vmatprep.subr.mxu0 0.0
        %3485 = vmatpush1.msra.mxu0 0.0
        %3486 = vmatprep.subr.mxu0 0.0
        %3487 = vmatpush1.msra.mxu0 0.0
        %3488 = vmatprep.subr.mxu0 0.0
        %v3489 = vand.u32 %v3461, 4294901760
        %3490 = vmatpush1.msra.mxu0 %v3489
        %3491 = vmatprep.subr.mxu0 0.0
        %v3492 = vand.u32 %v3455, 4294901760
        %3493 = vmatpush1.msra.mxu0 %v3492
        %3494 = vmatprep.subr.mxu0 0.0
        %v3495 = vand.u32 %v3449, 4294901760
        %3496 = vmatpush1.msra.mxu0 %v3495
        %3497 = vmatprep.subr.mxu0 0.0
        %v3498 = vand.u32 %v3443, 4294901760
        %3499 = vmatpush1.msra.mxu0 %v3498
        %3500 = vmatprep.subr.mxu0 0.0
        %3501 = vmatpush2.msra.mxu0 0.0
        %3502 = vmatprep.subr.mxu0 0.0
        %3503 = vmatpush2.msra.mxu0 0.0
        %3504 = vmatprep.subr.mxu0 0.0
        %3505 = vmatpush2.msra.mxu0 0.0
        %3506 = vmatprep.subr.mxu0 0.0
        %3507 = vmatpush2.msra.mxu0 0.0
        %3508 = vmatprep.subr.mxu0 0.0
        %3509 = vmatpush2.msra.mxu0 0.0
        %3510 = vmatprep.subr.mxu0 0.0
        %3511 = vmatpush2.msra.mxu0 0.0
        %3512 = vmatprep.subr.mxu0 0.0
        %3513 = vmatpush2.msra.mxu0 0.0
        %3514 = vmatprep.subr.mxu0 0.0
        %3515 = vmatpush2.msra.mxu0 0.0
        %3516 = vmatprep.subr.mxu0 0.0
        %3517 = vmatpush2.msra.mxu0 0.0
        %3518 = vmatprep.subr.mxu0 0.0
        %3519 = vmatpush2.msra.mxu0 0.0
        %3520 = vmatprep.subr.mxu0 0.0
        %3521 = vmatpush2.msra.mxu0 0.0
        %3522 = vmatprep.subr.mxu0 0.0
        %3523 = vmatpush2.msra.mxu0 0.0
        %3524 = vmatprep.subr.mxu0 0.0
        %3525 = vmatpush2.msra.mxu0 0.0
        %3526 = vmatprep.subr.mxu0 0.0
        %3527 = vmatpush2.msra.mxu0 0.0
        %3528 = vmatprep.subr.mxu0 0.0
        %3529 = vmatpush2.msra.mxu0 0.0
        %3530 = vmatprep.subr.mxu0 0.0
        %3531 = vmatpush2.msra.mxu0 0.0
        %3532 = vmatprep.mubr.f32.mxu0 0.0
        %v3533 = vand.u32 %v957, 4294901760
        %v3534 = vsub.f32 %v957, %v3533
        %v3535 = vand.u32 %v3534, 4294901760
        %v3536 = vsub.f32 %v3534, %v3535
        %v3537 = vand.u32 %v3536, 4294901760
        %3538 = vmatmul.mubr.f32.gmra.mxu0 %v3537
        %v3539 = vpop.f32.mrf.mxu0
        %v3540 = vadd.f32 0.0, %v3539
        %v3541 = vpop.f32.mrf.mxu0
        %3542 = vmatprep.mubr.f32.mxu0 0.0
        %v3543 = vand.u32 %v960, 4294901760
        %v3544 = vsub.f32 %v960, %v3543
        %v3545 = vand.u32 %v3544, 4294901760
        %v3546 = vsub.f32 %v3544, %v3545
        %v3547 = vand.u32 %v3546, 4294901760
        %3548 = vmatmul.mubr.f32.gmra.mxu0 %v3547
        %v3549 = vpop.f32.mrf.mxu0
        %v3550 = vadd.f32 0.0, %v3549
        %v3551 = vpop.f32.mrf.mxu0
        %3552 = vmatprep.mubr.f32.mxu0 0.0
        %v3553 = vand.u32 %v963, 4294901760
        %v3554 = vsub.f32 %v963, %v3553
        %v3555 = vand.u32 %v3554, 4294901760
        %v3556 = vsub.f32 %v3554, %v3555
        %v3557 = vand.u32 %v3556, 4294901760
        %3558 = vmatmul.mubr.f32.gmra.mxu0 %v3557
        %v3559 = vpop.f32.mrf.mxu0
        %v3560 = vadd.f32 0.0, %v3559
        %v3561 = vpop.f32.mrf.mxu0
        %3562 = vmatprep.mubr.f32.mxu0 0.0
        %v3563 = vand.u32 %v966, 4294901760
        %v3564 = vsub.f32 %v966, %v3563
        %v3565 = vand.u32 %v3564, 4294901760
        %v3566 = vsub.f32 %v3564, %v3565
        %v3567 = vand.u32 %v3566, 4294901760
        %3568 = vmatmul.mubr.f32.gmra.mxu0 %v3567
        %v3569 = vpop.f32.mrf.mxu0
        %v3570 = vadd.f32 0.0, %v3569
        %v3571 = vpop.f32.mrf.mxu0
        %3572 = vdwg.mxu0
        %3573 = vmatprep.subr.mxu0 0.0
        %3574 = vmatpush1.msra.mxu0 0.0
        %3575 = vmatprep.subr.mxu0 0.0
        %3576 = vmatpush1.msra.mxu0 0.0
        %3577 = vmatprep.subr.mxu0 0.0
        %3578 = vmatpush1.msra.mxu0 0.0
        %3579 = vmatprep.subr.mxu0 0.0
        %3580 = vmatpush1.msra.mxu0 0.0
        %3581 = vmatprep.subr.mxu0 0.0
        %3582 = vmatpush1.msra.mxu0 0.0
        %3583 = vmatprep.subr.mxu0 0.0
        %3584 = vmatpush1.msra.mxu0 0.0
        %3585 = vmatprep.subr.mxu0 0.0
        %3586 = vmatpush1.msra.mxu0 0.0
        %3587 = vmatprep.subr.mxu0 0.0
        %3588 = vmatpush1.msra.mxu0 0.0
        %3589 = vmatprep.subr.mxu0 0.0
        %3590 = vmatpush1.msra.mxu0 0.0
        %3591 = vmatprep.subr.mxu0 0.0
        %3592 = vmatpush1.msra.mxu0 0.0
        %3593 = vmatprep.subr.mxu0 0.0
        %3594 = vmatpush1.msra.mxu0 0.0
        %3595 = vmatprep.subr.mxu0 0.0
        %3596 = vmatpush1.msra.mxu0 0.0
        %3597 = vmatprep.subr.mxu0 0.0
        %v3598 = vand.u32 %v3461, 4294901760
        %v3599 = vsub.f32 %v3461, %v3598
        %v3600 = vand.u32 %v3599, 4294901760
        %v3601 = vsub.f32 %v3599, %v3600
        %v3602 = vand.u32 %v3601, 4294901760
        %3603 = vmatpush1.msra.mxu0 %v3602
        %3604 = vmatprep.subr.mxu0 0.0
        %v3605 = vand.u32 %v3455, 4294901760
        %v3606 = vsub.f32 %v3455, %v3605
        %v3607 = vand.u32 %v3606, 4294901760
        %v3608 = vsub.f32 %v3606, %v3607
        %v3609 = vand.u32 %v3608, 4294901760
        %3610 = vmatpush1.msra.mxu0 %v3609
        %3611 = vmatprep.subr.mxu0 0.0
        %v3612 = vand.u32 %v3449, 4294901760
        %v3613 = vsub.f32 %v3449, %v3612
        %v3614 = vand.u32 %v3613, 4294901760
        %v3615 = vsub.f32 %v3613, %v3614
        %v3616 = vand.u32 %v3615, 4294901760
        %3617 = vmatpush1.msra.mxu0 %v3616
        %3618 = vmatprep.subr.mxu0 0.0
        %v3619 = vand.u32 %v3443, 4294901760
        %v3620 = vsub.f32 %v3443, %v3619
        %v3621 = vand.u32 %v3620, 4294901760
        %v3622 = vsub.f32 %v3620, %v3621
        %v3623 = vand.u32 %v3622, 4294901760
        %3624 = vmatpush1.msra.mxu0 %v3623
        %3625 = vmatprep.subr.mxu0 0.0
        %3626 = vmatpush2.msra.mxu0 0.0
        %3627 = vmatprep.subr.mxu0 0.0
        %3628 = vmatpush2.msra.mxu0 0.0
        %3629 = vmatprep.subr.mxu0 0.0
        %3630 = vmatpush2.msra.mxu0 0.0
        %3631 = vmatprep.subr.mxu0 0.0
        %3632 = vmatpush2.msra.mxu0 0.0
        %3633 = vmatprep.subr.mxu0 0.0
        %3634 = vmatpush2.msra.mxu0 0.0
        %3635 = vmatprep.subr.mxu0 0.0
        %3636 = vmatpush2.msra.mxu0 0.0
        %3637 = vmatprep.subr.mxu0 0.0
        %3638 = vmatpush2.msra.mxu0 0.0
        %3639 = vmatprep.subr.mxu0 0.0
        %3640 = vmatpush2.msra.mxu0 0.0
        %3641 = vmatprep.subr.mxu0 0.0
        %3642 = vmatpush2.msra.mxu0 0.0
        %3643 = vmatprep.subr.mxu0 0.0
        %3644 = vmatpush2.msra.mxu0 0.0
        %3645 = vmatprep.subr.mxu0 0.0
        %3646 = vmatpush2.msra.mxu0 0.0
        %3647 = vmatprep.subr.mxu0 0.0
        %3648 = vmatpush2.msra.mxu0 0.0
        %3649 = vmatprep.subr.mxu0 0.0
        %3650 = vmatpush2.msra.mxu0 0.0
        %3651 = vmatprep.subr.mxu0 0.0
        %3652 = vmatpush2.msra.mxu0 0.0
        %3653 = vmatprep.subr.mxu0 0.0
        %3654 = vmatpush2.msra.mxu0 0.0
        %3655 = vmatprep.subr.mxu0 0.0
        %3656 = vmatpush2.msra.mxu0 0.0
        %3657 = vmatprep.mubr.f32.mxu0 0.0
        %v3658 = vand.u32 %v957, 4294901760
        %3659 = vmatmul.mubr.f32.gmra.mxu0 %v3658
        %v3660 = vpop.f32.mrf.mxu0
        %v3661 = vadd.f32 %v3540, %v3660
        %v3662 = vpop.f32.mrf.mxu0
        %3663 = vmatprep.mubr.f32.mxu0 0.0
        %v3664 = vand.u32 %v960, 4294901760
        %3665 = vmatmul.mubr.f32.gmra.mxu0 %v3664
        %v3666 = vpop.f32.mrf.mxu0
        %v3667 = vadd.f32 %v3550, %v3666
        %v3668 = vpop.f32.mrf.mxu0
        %3669 = vmatprep.mubr.f32.mxu0 0.0
        %v3670 = vand.u32 %v963, 4294901760
        %3671 = vmatmul.mubr.f32.gmra.mxu0 %v3670
        %v3672 = vpop.f32.mrf.mxu0
        %v3673 = vadd.f32 %v3560, %v3672
        %v3674 = vpop.f32.mrf.mxu0
        %3675 = vmatprep.mubr.f32.mxu0 0.0
        %v3676 = vand.u32 %v966, 4294901760
        %3677 = vmatmul.mubr.f32.gmra.mxu0 %v3676
        %v3678 = vpop.f32.mrf.mxu0
        %v3679 = vadd.f32 %v3570, %v3678
        %v3680 = vpop.f32.mrf.mxu0
        %3681 = vdwg.mxu0
        %3682 = vmatprep.subr.mxu0 0.0
        %3683 = vmatpush1.msra.mxu0 0.0
        %3684 = vmatprep.subr.mxu0 0.0
        %3685 = vmatpush1.msra.mxu0 0.0
        %3686 = vmatprep.subr.mxu0 0.0
        %3687 = vmatpush1.msra.mxu0 0.0
        %3688 = vmatprep.subr.mxu0 0.0
        %3689 = vmatpush1.msra.mxu0 0.0
        %3690 = vmatprep.subr.mxu0 0.0
        %3691 = vmatpush1.msra.mxu0 0.0
        %3692 = vmatprep.subr.mxu0 0.0
        %3693 = vmatpush1.msra.mxu0 0.0
        %3694 = vmatprep.subr.mxu0 0.0
        %3695 = vmatpush1.msra.mxu0 0.0
        %3696 = vmatprep.subr.mxu0 0.0
        %3697 = vmatpush1.msra.mxu0 0.0
        %3698 = vmatprep.subr.mxu0 0.0
        %3699 = vmatpush1.msra.mxu0 0.0
        %3700 = vmatprep.subr.mxu0 0.0
        %3701 = vmatpush1.msra.mxu0 0.0
        %3702 = vmatprep.subr.mxu0 0.0
        %3703 = vmatpush1.msra.mxu0 0.0
        %3704 = vmatprep.subr.mxu0 0.0
        %3705 = vmatpush1.msra.mxu0 0.0
        %3706 = vmatprep.subr.mxu0 0.0
        %v3707 = vand.u32 %v3461, 4294901760
        %v3708 = vsub.f32 %v3461, %v3707
        %3709 = vmatpush1.msra.mxu0 %v3708
        %3710 = vmatprep.subr.mxu0 0.0
        %v3711 = vand.u32 %v3455, 4294901760
        %v3712 = vsub.f32 %v3455, %v3711
        %3713 = vmatpush1.msra.mxu0 %v3712
        %3714 = vmatprep.subr.mxu0 0.0
        %v3715 = vand.u32 %v3449, 4294901760
        %v3716 = vsub.f32 %v3449, %v3715
        %3717 = vmatpush1.msra.mxu0 %v3716
        %3718 = vmatprep.subr.mxu0 0.0
        %v3719 = vand.u32 %v3443, 4294901760
        %v3720 = vsub.f32 %v3443, %v3719
        %3721 = vmatpush1.msra.mxu0 %v3720
        %3722 = vmatprep.subr.mxu0 0.0
        %3723 = vmatpush2.msra.mxu0 0.0
        %3724 = vmatprep.subr.mxu0 0.0
        %3725 = vmatpush2.msra.mxu0 0.0
        %3726 = vmatprep.subr.mxu0 0.0
        %3727 = vmatpush2.msra.mxu0 0.0
        %3728 = vmatprep.subr.mxu0 0.0
        %3729 = vmatpush2.msra.mxu0 0.0
        %3730 = vmatprep.subr.mxu0 0.0
        %3731 = vmatpush2.msra.mxu0 0.0
        %3732 = vmatprep.subr.mxu0 0.0
        %3733 = vmatpush2.msra.mxu0 0.0
        %3734 = vmatprep.subr.mxu0 0.0
        %3735 = vmatpush2.msra.mxu0 0.0
        %3736 = vmatprep.subr.mxu0 0.0
        %3737 = vmatpush2.msra.mxu0 0.0
        %3738 = vmatprep.subr.mxu0 0.0
        %3739 = vmatpush2.msra.mxu0 0.0
        %3740 = vmatprep.subr.mxu0 0.0
        %3741 = vmatpush2.msra.mxu0 0.0
        %3742 = vmatprep.subr.mxu0 0.0
        %3743 = vmatpush2.msra.mxu0 0.0
        %3744 = vmatprep.subr.mxu0 0.0
        %3745 = vmatpush2.msra.mxu0 0.0
        %3746 = vmatprep.subr.mxu0 0.0
        %3747 = vmatpush2.msra.mxu0 0.0
        %3748 = vmatprep.subr.mxu0 0.0
        %3749 = vmatpush2.msra.mxu0 0.0
        %3750 = vmatprep.subr.mxu0 0.0
        %3751 = vmatpush2.msra.mxu0 0.0
        %3752 = vmatprep.subr.mxu0 0.0
        %3753 = vmatpush2.msra.mxu0 0.0
        %3754 = vmatprep.mubr.f32.mxu0 0.0
        %v3755 = vand.u32 %v957, 4294901760
        %v3756 = vsub.f32 %v957, %v3755
        %3757 = vmatmul.mubr.f32.gmra.mxu0 %v3756
        %v3758 = vpop.f32.mrf.mxu0
        %v3759 = vadd.f32 %v3661, %v3758
        %v3760 = vpop.f32.mrf.mxu0
        %3761 = vmatprep.mubr.f32.mxu0 0.0
        %v3762 = vand.u32 %v960, 4294901760
        %v3763 = vsub.f32 %v960, %v3762
        %3764 = vmatmul.mubr.f32.gmra.mxu0 %v3763
        %v3765 = vpop.f32.mrf.mxu0
        %v3766 = vadd.f32 %v3667, %v3765
        %v3767 = vpop.f32.mrf.mxu0
        %3768 = vmatprep.mubr.f32.mxu0 0.0
        %v3769 = vand.u32 %v963, 4294901760
        %v3770 = vsub.f32 %v963, %v3769
        %3771 = vmatmul.mubr.f32.gmra.mxu0 %v3770
        %v3772 = vpop.f32.mrf.mxu0
        %v3773 = vadd.f32 %v3673, %v3772
        %v3774 = vpop.f32.mrf.mxu0
        %3775 = vmatprep.mubr.f32.mxu0 0.0
        %v3776 = vand.u32 %v966, 4294901760
        %v3777 = vsub.f32 %v966, %v3776
        %3778 = vmatmul.mubr.f32.gmra.mxu0 %v3777
        %v3779 = vpop.f32.mrf.mxu0
        %v3780 = vadd.f32 %v3679, %v3779
        %v3781 = vpop.f32.mrf.mxu0
        %3782 = vdwg.mxu0
        %3783 = vmatprep.subr.mxu0 0.0
        %3784 = vmatpush1.msra.mxu0 0.0
        %3785 = vmatprep.subr.mxu0 0.0
        %3786 = vmatpush1.msra.mxu0 0.0
        %3787 = vmatprep.subr.mxu0 0.0
        %3788 = vmatpush1.msra.mxu0 0.0
        %3789 = vmatprep.subr.mxu0 0.0
        %3790 = vmatpush1.msra.mxu0 0.0
        %3791 = vmatprep.subr.mxu0 0.0
        %3792 = vmatpush1.msra.mxu0 0.0
        %3793 = vmatprep.subr.mxu0 0.0
        %3794 = vmatpush1.msra.mxu0 0.0
        %3795 = vmatprep.subr.mxu0 0.0
        %3796 = vmatpush1.msra.mxu0 0.0
        %3797 = vmatprep.subr.mxu0 0.0
        %3798 = vmatpush1.msra.mxu0 0.0
        %3799 = vmatprep.subr.mxu0 0.0
        %3800 = vmatpush1.msra.mxu0 0.0
        %3801 = vmatprep.subr.mxu0 0.0
        %3802 = vmatpush1.msra.mxu0 0.0
        %3803 = vmatprep.subr.mxu0 0.0
        %3804 = vmatpush1.msra.mxu0 0.0
        %3805 = vmatprep.subr.mxu0 0.0
        %3806 = vmatpush1.msra.mxu0 0.0
        %3807 = vmatprep.subr.mxu0 0.0
        %v3808 = vand.u32 %v3461, 4294901760
        %3809 = vmatpush1.msra.mxu0 %v3808
        %3810 = vmatprep.subr.mxu0 0.0
        %v3811 = vand.u32 %v3455, 4294901760
        %3812 = vmatpush1.msra.mxu0 %v3811
        %3813 = vmatprep.subr.mxu0 0.0
        %v3814 = vand.u32 %v3449, 4294901760
        %3815 = vmatpush1.msra.mxu0 %v3814
        %3816 = vmatprep.subr.mxu0 0.0
        %v3817 = vand.u32 %v3443, 4294901760
        %3818 = vmatpush1.msra.mxu0 %v3817
        %3819 = vmatprep.subr.mxu0 0.0
        %3820 = vmatpush2.msra.mxu0 0.0
        %3821 = vmatprep.subr.mxu0 0.0
        %3822 = vmatpush2.msra.mxu0 0.0
        %3823 = vmatprep.subr.mxu0 0.0
        %3824 = vmatpush2.msra.mxu0 0.0
        %3825 = vmatprep.subr.mxu0 0.0
        %3826 = vmatpush2.msra.mxu0 0.0
        %3827 = vmatprep.subr.mxu0 0.0
        %3828 = vmatpush2.msra.mxu0 0.0
        %3829 = vmatprep.subr.mxu0 0.0
        %3830 = vmatpush2.msra.mxu0 0.0
        %3831 = vmatprep.subr.mxu0 0.0
        %3832 = vmatpush2.msra.mxu0 0.0
        %3833 = vmatprep.subr.mxu0 0.0
        %3834 = vmatpush2.msra.mxu0 0.0
        %3835 = vmatprep.subr.mxu0 0.0
        %3836 = vmatpush2.msra.mxu0 0.0
        %3837 = vmatprep.subr.mxu0 0.0
        %3838 = vmatpush2.msra.mxu0 0.0
        %3839 = vmatprep.subr.mxu0 0.0
        %3840 = vmatpush2.msra.mxu0 0.0
        %3841 = vmatprep.subr.mxu0 0.0
        %3842 = vmatpush2.msra.mxu0 0.0
        %3843 = vmatprep.subr.mxu0 0.0
        %3844 = vmatpush2.msra.mxu0 0.0
        %3845 = vmatprep.subr.mxu0 0.0
        %3846 = vmatpush2.msra.mxu0 0.0
        %3847 = vmatprep.subr.mxu0 0.0
        %3848 = vmatpush2.msra.mxu0 0.0
        %3849 = vmatprep.subr.mxu0 0.0
        %3850 = vmatpush2.msra.mxu0 0.0
        %3851 = vmatprep.mubr.f32.mxu0 0.0
        %v3852 = vand.u32 %v957, 4294901760
        %v3853 = vsub.f32 %v957, %v3852
        %v3854 = vand.u32 %v3853, 4294901760
        %3855 = vmatmul.mubr.f32.gmra.mxu0 %v3854
        %v3856 = vpop.f32.mrf.mxu0
        %v3857 = vadd.f32 %v3759, %v3856
        %v3858 = vpop.f32.mrf.mxu0
        %3859 = vmatprep.mubr.f32.mxu0 0.0
        %v3860 = vand.u32 %v960, 4294901760
        %v3861 = vsub.f32 %v960, %v3860
        %v3862 = vand.u32 %v3861, 4294901760
        %3863 = vmatmul.mubr.f32.gmra.mxu0 %v3862
        %v3864 = vpop.f32.mrf.mxu0
        %v3865 = vadd.f32 %v3766, %v3864
        %v3866 = vpop.f32.mrf.mxu0
        %3867 = vmatprep.mubr.f32.mxu0 0.0
        %v3868 = vand.u32 %v963, 4294901760
        %v3869 = vsub.f32 %v963, %v3868
        %v3870 = vand.u32 %v3869, 4294901760
        %3871 = vmatmul.mubr.f32.gmra.mxu0 %v3870
        %v3872 = vpop.f32.mrf.mxu0
        %v3873 = vadd.f32 %v3773, %v3872
        %v3874 = vpop.f32.mrf.mxu0
        %3875 = vmatprep.mubr.f32.mxu0 0.0
        %v3876 = vand.u32 %v966, 4294901760
        %v3877 = vsub.f32 %v966, %v3876
        %v3878 = vand.u32 %v3877, 4294901760
        %3879 = vmatmul.mubr.f32.gmra.mxu0 %v3878
        %v3880 = vpop.f32.mrf.mxu0
        %v3881 = vadd.f32 %v3780, %v3880
        %v3882 = vpop.f32.mrf.mxu0
        %3883 = vdwg.mxu0
        %3884 = vmatprep.subr.mxu0 0.0
        %3885 = vmatpush1.msra.mxu0 0.0
        %3886 = vmatprep.subr.mxu0 0.0
        %3887 = vmatpush1.msra.mxu0 0.0
        %3888 = vmatprep.subr.mxu0 0.0
        %3889 = vmatpush1.msra.mxu0 0.0
        %3890 = vmatprep.subr.mxu0 0.0
        %3891 = vmatpush1.msra.mxu0 0.0
        %3892 = vmatprep.subr.mxu0 0.0
        %3893 = vmatpush1.msra.mxu0 0.0
        %3894 = vmatprep.subr.mxu0 0.0
        %3895 = vmatpush1.msra.mxu0 0.0
        %3896 = vmatprep.subr.mxu0 0.0
        %3897 = vmatpush1.msra.mxu0 0.0
        %3898 = vmatprep.subr.mxu0 0.0
        %3899 = vmatpush1.msra.mxu0 0.0
        %3900 = vmatprep.subr.mxu0 0.0
        %3901 = vmatpush1.msra.mxu0 0.0
        %3902 = vmatprep.subr.mxu0 0.0
        %3903 = vmatpush1.msra.mxu0 0.0
        %3904 = vmatprep.subr.mxu0 0.0
        %3905 = vmatpush1.msra.mxu0 0.0
        %3906 = vmatprep.subr.mxu0 0.0
        %3907 = vmatpush1.msra.mxu0 0.0
        %3908 = vmatprep.subr.mxu0 0.0
        %v3909 = vand.u32 %v3461, 4294901760
        %v3910 = vsub.f32 %v3461, %v3909
        %v3911 = vand.u32 %v3910, 4294901760
        %3912 = vmatpush1.msra.mxu0 %v3911
        %3913 = vmatprep.subr.mxu0 0.0
        %v3914 = vand.u32 %v3455, 4294901760
        %v3915 = vsub.f32 %v3455, %v3914
        %v3916 = vand.u32 %v3915, 4294901760
        %3917 = vmatpush1.msra.mxu0 %v3916
        %3918 = vmatprep.subr.mxu0 0.0
        %v3919 = vand.u32 %v3449, 4294901760
        %v3920 = vsub.f32 %v3449, %v3919
        %v3921 = vand.u32 %v3920, 4294901760
        %3922 = vmatpush1.msra.mxu0 %v3921
        %3923 = vmatprep.subr.mxu0 0.0
        %v3924 = vand.u32 %v3443, 4294901760
        %v3925 = vsub.f32 %v3443, %v3924
        %v3926 = vand.u32 %v3925, 4294901760
        %3927 = vmatpush1.msra.mxu0 %v3926
        %3928 = vmatprep.subr.mxu0 0.0
        %3929 = vmatpush2.msra.mxu0 0.0
        %3930 = vmatprep.subr.mxu0 0.0
        %3931 = vmatpush2.msra.mxu0 0.0
        %3932 = vmatprep.subr.mxu0 0.0
        %3933 = vmatpush2.msra.mxu0 0.0
        %3934 = vmatprep.subr.mxu0 0.0
        %3935 = vmatpush2.msra.mxu0 0.0
        %3936 = vmatprep.subr.mxu0 0.0
        %3937 = vmatpush2.msra.mxu0 0.0
        %3938 = vmatprep.subr.mxu0 0.0
        %3939 = vmatpush2.msra.mxu0 0.0
        %3940 = vmatprep.subr.mxu0 0.0
        %3941 = vmatpush2.msra.mxu0 0.0
        %3942 = vmatprep.subr.mxu0 0.0
        %3943 = vmatpush2.msra.mxu0 0.0
        %3944 = vmatprep.subr.mxu0 0.0
        %3945 = vmatpush2.msra.mxu0 0.0
        %3946 = vmatprep.subr.mxu0 0.0
        %3947 = vmatpush2.msra.mxu0 0.0
        %3948 = vmatprep.subr.mxu0 0.0
        %3949 = vmatpush2.msra.mxu0 0.0
        %3950 = vmatprep.subr.mxu0 0.0
        %3951 = vmatpush2.msra.mxu0 0.0
        %3952 = vmatprep.subr.mxu0 0.0
        %3953 = vmatpush2.msra.mxu0 0.0
        %3954 = vmatprep.subr.mxu0 0.0
        %3955 = vmatpush2.msra.mxu0 0.0
        %3956 = vmatprep.subr.mxu0 0.0
        %3957 = vmatpush2.msra.mxu0 0.0
        %3958 = vmatprep.subr.mxu0 0.0
        %3959 = vmatpush2.msra.mxu0 0.0
        %3960 = vmatprep.mubr.f32.mxu0 0.0
        %v3961 = vand.u32 %v957, 4294901760
        %3962 = vmatmul.mubr.f32.gmra.mxu0 %v3961
        %v3963 = vpop.f32.mrf.mxu0
        %v3964 = vadd.f32 %v3857, %v3963
        %v3965 = vpop.f32.mrf.mxu0
        %3966 = vmatprep.mubr.f32.mxu0 0.0
        %v3967 = vand.u32 %v960, 4294901760
        %3968 = vmatmul.mubr.f32.gmra.mxu0 %v3967
        %v3969 = vpop.f32.mrf.mxu0
        %v3970 = vadd.f32 %v3865, %v3969
        %v3971 = vpop.f32.mrf.mxu0
        %3972 = vmatprep.mubr.f32.mxu0 0.0
        %v3973 = vand.u32 %v963, 4294901760
        %3974 = vmatmul.mubr.f32.gmra.mxu0 %v3973
        %v3975 = vpop.f32.mrf.mxu0
        %v3976 = vadd.f32 %v3873, %v3975
        %v3977 = vpop.f32.mrf.mxu0
        %3978 = vmatprep.mubr.f32.mxu0 0.0
        %v3979 = vand.u32 %v966, 4294901760
        %3980 = vmatmul.mubr.f32.gmra.mxu0 %v3979
        %v3981 = vpop.f32.mrf.mxu0
        %v3982 = vadd.f32 %v3881, %v3981
        %v3983 = vpop.f32.mrf.mxu0
        %3984 = vdwg.mxu0
        %3985 = vmatprep.subr.mxu0 0.0
        %3986 = vmatpush1.msra.mxu0 0.0
        %3987 = vmatprep.subr.mxu0 0.0
        %3988 = vmatpush1.msra.mxu0 0.0
        %3989 = vmatprep.subr.mxu0 0.0
        %3990 = vmatpush1.msra.mxu0 0.0
        %3991 = vmatprep.subr.mxu0 0.0
        %3992 = vmatpush1.msra.mxu0 0.0
        %3993 = vmatprep.subr.mxu0 0.0
        %3994 = vmatpush1.msra.mxu0 0.0
        %3995 = vmatprep.subr.mxu0 0.0
        %3996 = vmatpush1.msra.mxu0 0.0
        %3997 = vmatprep.subr.mxu0 0.0
        %3998 = vmatpush1.msra.mxu0 0.0
        %3999 = vmatprep.subr.mxu0 0.0
        %4000 = vmatpush1.msra.mxu0 0.0
        %4001 = vmatprep.subr.mxu0 0.0
        %4002 = vmatpush1.msra.mxu0 0.0
        %4003 = vmatprep.subr.mxu0 0.0
        %4004 = vmatpush1.msra.mxu0 0.0
        %4005 = vmatprep.subr.mxu0 0.0
        %4006 = vmatpush1.msra.mxu0 0.0
        %4007 = vmatprep.subr.mxu0 0.0
        %4008 = vmatpush1.msra.mxu0 0.0
        %4009 = vmatprep.subr.mxu0 0.0
        %v4010 = vand.u32 %v3461, 4294901760
        %4011 = vmatpush1.msra.mxu0 %v4010
        %4012 = vmatprep.subr.mxu0 0.0
        %v4013 = vand.u32 %v3455, 4294901760
        %4014 = vmatpush1.msra.mxu0 %v4013
        %4015 = vmatprep.subr.mxu0 0.0
        %v4016 = vand.u32 %v3449, 4294901760
        %4017 = vmatpush1.msra.mxu0 %v4016
        %4018 = vmatprep.subr.mxu0 0.0
        %v4019 = vand.u32 %v3443, 4294901760
        %4020 = vmatpush1.msra.mxu0 %v4019
        %4021 = vmatprep.subr.mxu0 0.0
        %4022 = vmatpush2.msra.mxu0 0.0
        %4023 = vmatprep.subr.mxu0 0.0
        %4024 = vmatpush2.msra.mxu0 0.0
        %4025 = vmatprep.subr.mxu0 0.0
        %4026 = vmatpush2.msra.mxu0 0.0
        %4027 = vmatprep.subr.mxu0 0.0
        %4028 = vmatpush2.msra.mxu0 0.0
        %4029 = vmatprep.subr.mxu0 0.0
        %4030 = vmatpush2.msra.mxu0 0.0
        %4031 = vmatprep.subr.mxu0 0.0
        %4032 = vmatpush2.msra.mxu0 0.0
        %4033 = vmatprep.subr.mxu0 0.0
        %4034 = vmatpush2.msra.mxu0 0.0
        %4035 = vmatprep.subr.mxu0 0.0
        %4036 = vmatpush2.msra.mxu0 0.0
        %4037 = vmatprep.subr.mxu0 0.0
        %4038 = vmatpush2.msra.mxu0 0.0
        %4039 = vmatprep.subr.mxu0 0.0
        %4040 = vmatpush2.msra.mxu0 0.0
        %4041 = vmatprep.subr.mxu0 0.0
        %4042 = vmatpush2.msra.mxu0 0.0
        %4043 = vmatprep.subr.mxu0 0.0
        %4044 = vmatpush2.msra.mxu0 0.0
        %4045 = vmatprep.subr.mxu0 0.0
        %4046 = vmatpush2.msra.mxu0 0.0
        %4047 = vmatprep.subr.mxu0 0.0
        %4048 = vmatpush2.msra.mxu0 0.0
        %4049 = vmatprep.subr.mxu0 0.0
        %4050 = vmatpush2.msra.mxu0 0.0
        %4051 = vmatprep.subr.mxu0 0.0
        %4052 = vmatpush2.msra.mxu0 0.0
        %4053 = vmatprep.mubr.f32.mxu0 0.0
        %v4054 = vand.u32 %v957, 4294901760
        %4055 = vmatmul.mubr.f32.gmra.mxu0 %v4054
        %v4056 = vpop.f32.mrf.mxu0
        %v4057 = vadd.f32 %v3964, %v4056
        %v4058 = vpop.f32.mrf.mxu0
        %4059 = vmatprep.mubr.f32.mxu0 0.0
        %v4060 = vand.u32 %v960, 4294901760
        %4061 = vmatmul.mubr.f32.gmra.mxu0 %v4060
        %v4062 = vpop.f32.mrf.mxu0
        %v4063 = vadd.f32 %v3970, %v4062
        %v4064 = vpop.f32.mrf.mxu0
        %4065 = vmatprep.mubr.f32.mxu0 0.0
        %v4066 = vand.u32 %v963, 4294901760
        %4067 = vmatmul.mubr.f32.gmra.mxu0 %v4066
        %v4068 = vpop.f32.mrf.mxu0
        %v4069 = vadd.f32 %v3976, %v4068
        %v4070 = vpop.f32.mrf.mxu0
        %4071 = vmatprep.mubr.f32.mxu0 0.0
        %v4072 = vand.u32 %v966, 4294901760
        %4073 = vmatmul.mubr.f32.gmra.mxu0 %v4072
        %v4074 = vpop.f32.mrf.mxu0
        %v4075 = vadd.f32 %v3982, %v4074
        %v4076 = vpop.f32.mrf.mxu0
        %4077 = vdwg.mxu0
        %v4078 = vsub.f32 %v4057, %v2822
        %v4079 = vsub.f32 %v4063, %v2823
        %v4080 = vsub.f32 %v4069, %v2824
        %v4081 = vsub.f32 %v4075, %v2825
        %v4082 = vmul.f32 %v317, %v317
        %v4083 = vmul.f32 %v318, %v318
        %v4084 = vmul.f32 %v319, %v319
        %v4085 = vmul.f32 %v320, %v320
        %v4087 = vsel %vm329, %v4082, 0
        %v4090 = vsel %vm329, %v4083, 0
        %v4093 = vsel %vm329, %v4084, 0
        %v4096 = vsel %vm329, %v4085, 0
        %4098 = vmatprep.subr.mxu0 0.0
        %4099 = vmatpush1.msra.mxu0 0.0
        %4100 = vmatprep.subr.mxu0 0.0
        %4101 = vmatpush1.msra.mxu0 0.0
        %4102 = vmatprep.subr.mxu0 0.0
        %4103 = vmatpush1.msra.mxu0 0.0
        %4104 = vmatprep.subr.mxu0 0.0
        %4105 = vmatpush1.msra.mxu0 0.0
        %4106 = vmatprep.subr.mxu0 0.0
        %4107 = vmatpush1.msra.mxu0 0.0
        %4108 = vmatprep.subr.mxu0 0.0
        %4109 = vmatpush1.msra.mxu0 0.0
        %4110 = vmatprep.subr.mxu0 0.0
        %4111 = vmatpush1.msra.mxu0 0.0
        %4112 = vmatprep.subr.mxu0 0.0
        %4113 = vmatpush1.msra.mxu0 0.0
        %4114 = vmatprep.subr.mxu0 0.0
        %4115 = vmatpush1.msra.mxu0 0.0
        %4116 = vmatprep.subr.mxu0 0.0
        %4117 = vmatpush1.msra.mxu0 0.0
        %4118 = vmatprep.subr.mxu0 0.0
        %4119 = vmatpush1.msra.mxu0 0.0
        %4120 = vmatprep.subr.mxu0 0.0
        %4121 = vmatpush1.msra.mxu0 0.0
        %4122 = vmatprep.subr.mxu0 0.0
        %v4123 = vand.u32 %v328, 4294901760
        %4124 = vmatpush1.msra.mxu0 %v4123
        %4125 = vmatprep.subr.mxu0 0.0
        %v4126 = vand.u32 %v327, 4294901760
        %4127 = vmatpush1.msra.mxu0 %v4126
        %4128 = vmatprep.subr.mxu0 0.0
        %v4129 = vand.u32 %v326, 4294901760
        %4130 = vmatpush1.msra.mxu0 %v4129
        %4131 = vmatprep.subr.mxu0 0.0
        %v4132 = vand.u32 %v325, 4294901760
        %4133 = vmatpush1.msra.mxu0 %v4132
        %4134 = vmatprep.subr.mxu0 0.0
        %4135 = vmatpush2.msra.mxu0 0.0
        %4136 = vmatprep.subr.mxu0 0.0
        %4137 = vmatpush2.msra.mxu0 0.0
        %4138 = vmatprep.subr.mxu0 0.0
        %4139 = vmatpush2.msra.mxu0 0.0
        %4140 = vmatprep.subr.mxu0 0.0
        %4141 = vmatpush2.msra.mxu0 0.0
        %4142 = vmatprep.subr.mxu0 0.0
        %4143 = vmatpush2.msra.mxu0 0.0
        %4144 = vmatprep.subr.mxu0 0.0
        %4145 = vmatpush2.msra.mxu0 0.0
        %4146 = vmatprep.subr.mxu0 0.0
        %4147 = vmatpush2.msra.mxu0 0.0
        %4148 = vmatprep.subr.mxu0 0.0
        %4149 = vmatpush2.msra.mxu0 0.0
        %4150 = vmatprep.subr.mxu0 0.0
        %4151 = vmatpush2.msra.mxu0 0.0
        %4152 = vmatprep.subr.mxu0 0.0
        %4153 = vmatpush2.msra.mxu0 0.0
        %4154 = vmatprep.subr.mxu0 0.0
        %4155 = vmatpush2.msra.mxu0 0.0
        %4156 = vmatprep.subr.mxu0 0.0
        %4157 = vmatpush2.msra.mxu0 0.0
        %4158 = vmatprep.subr.mxu0 0.0
        %4159 = vmatpush2.msra.mxu0 0.0
        %4160 = vmatprep.subr.mxu0 0.0
        %4161 = vmatpush2.msra.mxu0 0.0
        %4162 = vmatprep.subr.mxu0 0.0
        %4163 = vmatpush2.msra.mxu0 0.0
        %4164 = vmatprep.subr.mxu0 0.0
        %4165 = vmatpush2.msra.mxu0 0.0
        %4166 = vmatprep.mubr.f32.mxu0 0.0
        %v4167 = vand.u32 %v4087, 4294901760
        %v4168 = vsub.f32 %v4087, %v4167
        %v4169 = vand.u32 %v4168, 4294901760
        %v4170 = vsub.f32 %v4168, %v4169
        %v4171 = vand.u32 %v4170, 4294901760
        %4172 = vmatmul.mubr.f32.gmra.mxu0 %v4171
        %v4173 = vpop.f32.mrf.mxu0
        %v4174 = vadd.f32 0.0, %v4173
        %v4175 = vpop.f32.mrf.mxu0
        %4176 = vmatprep.mubr.f32.mxu0 0.0
        %v4177 = vand.u32 %v4090, 4294901760
        %v4178 = vsub.f32 %v4090, %v4177
        %v4179 = vand.u32 %v4178, 4294901760
        %v4180 = vsub.f32 %v4178, %v4179
        %v4181 = vand.u32 %v4180, 4294901760
        %4182 = vmatmul.mubr.f32.gmra.mxu0 %v4181
        %v4183 = vpop.f32.mrf.mxu0
        %v4184 = vadd.f32 0.0, %v4183
        %v4185 = vpop.f32.mrf.mxu0
        %4186 = vmatprep.mubr.f32.mxu0 0.0
        %v4187 = vand.u32 %v4093, 4294901760
        %v4188 = vsub.f32 %v4093, %v4187
        %v4189 = vand.u32 %v4188, 4294901760
        %v4190 = vsub.f32 %v4188, %v4189
        %v4191 = vand.u32 %v4190, 4294901760
        %4192 = vmatmul.mubr.f32.gmra.mxu0 %v4191
        %v4193 = vpop.f32.mrf.mxu0
        %v4194 = vadd.f32 0.0, %v4193
        %v4195 = vpop.f32.mrf.mxu0
        %4196 = vmatprep.mubr.f32.mxu0 0.0
        %v4197 = vand.u32 %v4096, 4294901760
        %v4198 = vsub.f32 %v4096, %v4197
        %v4199 = vand.u32 %v4198, 4294901760
        %v4200 = vsub.f32 %v4198, %v4199
        %v4201 = vand.u32 %v4200, 4294901760
        %4202 = vmatmul.mubr.f32.gmra.mxu0 %v4201
        %v4203 = vpop.f32.mrf.mxu0
        %v4204 = vadd.f32 0.0, %v4203
        %v4205 = vpop.f32.mrf.mxu0
        %4206 = vdwg.mxu0
        %4207 = vmatprep.subr.mxu0 0.0
        %4208 = vmatpush1.msra.mxu0 0.0
        %4209 = vmatprep.subr.mxu0 0.0
        %4210 = vmatpush1.msra.mxu0 0.0
        %4211 = vmatprep.subr.mxu0 0.0
        %4212 = vmatpush1.msra.mxu0 0.0
        %4213 = vmatprep.subr.mxu0 0.0
        %4214 = vmatpush1.msra.mxu0 0.0
        %4215 = vmatprep.subr.mxu0 0.0
        %4216 = vmatpush1.msra.mxu0 0.0
        %4217 = vmatprep.subr.mxu0 0.0
        %4218 = vmatpush1.msra.mxu0 0.0
        %4219 = vmatprep.subr.mxu0 0.0
        %4220 = vmatpush1.msra.mxu0 0.0
        %4221 = vmatprep.subr.mxu0 0.0
        %4222 = vmatpush1.msra.mxu0 0.0
        %4223 = vmatprep.subr.mxu0 0.0
        %4224 = vmatpush1.msra.mxu0 0.0
        %4225 = vmatprep.subr.mxu0 0.0
        %4226 = vmatpush1.msra.mxu0 0.0
        %4227 = vmatprep.subr.mxu0 0.0
        %4228 = vmatpush1.msra.mxu0 0.0
        %4229 = vmatprep.subr.mxu0 0.0
        %4230 = vmatpush1.msra.mxu0 0.0
        %4231 = vmatprep.subr.mxu0 0.0
        %v4232 = vand.u32 %v328, 4294901760
        %v4233 = vsub.f32 %v328, %v4232
        %v4234 = vand.u32 %v4233, 4294901760
        %v4235 = vsub.f32 %v4233, %v4234
        %v4236 = vand.u32 %v4235, 4294901760
        %4237 = vmatpush1.msra.mxu0 %v4236
        %4238 = vmatprep.subr.mxu0 0.0
        %v4239 = vand.u32 %v327, 4294901760
        %v4240 = vsub.f32 %v327, %v4239
        %v4241 = vand.u32 %v4240, 4294901760
        %v4242 = vsub.f32 %v4240, %v4241
        %v4243 = vand.u32 %v4242, 4294901760
        %4244 = vmatpush1.msra.mxu0 %v4243
        %4245 = vmatprep.subr.mxu0 0.0
        %v4246 = vand.u32 %v326, 4294901760
        %v4247 = vsub.f32 %v326, %v4246
        %v4248 = vand.u32 %v4247, 4294901760
        %v4249 = vsub.f32 %v4247, %v4248
        %v4250 = vand.u32 %v4249, 4294901760
        %4251 = vmatpush1.msra.mxu0 %v4250
        %4252 = vmatprep.subr.mxu0 0.0
        %v4253 = vand.u32 %v325, 4294901760
        %v4254 = vsub.f32 %v325, %v4253
        %v4255 = vand.u32 %v4254, 4294901760
        %v4256 = vsub.f32 %v4254, %v4255
        %v4257 = vand.u32 %v4256, 4294901760
        %4258 = vmatpush1.msra.mxu0 %v4257
        %4259 = vmatprep.subr.mxu0 0.0
        %4260 = vmatpush2.msra.mxu0 0.0
        %4261 = vmatprep.subr.mxu0 0.0
        %4262 = vmatpush2.msra.mxu0 0.0
        %4263 = vmatprep.subr.mxu0 0.0
        %4264 = vmatpush2.msra.mxu0 0.0
        %4265 = vmatprep.subr.mxu0 0.0
        %4266 = vmatpush2.msra.mxu0 0.0
        %4267 = vmatprep.subr.mxu0 0.0
        %4268 = vmatpush2.msra.mxu0 0.0
        %4269 = vmatprep.subr.mxu0 0.0
        %4270 = vmatpush2.msra.mxu0 0.0
        %4271 = vmatprep.subr.mxu0 0.0
        %4272 = vmatpush2.msra.mxu0 0.0
        %4273 = vmatprep.subr.mxu0 0.0
        %4274 = vmatpush2.msra.mxu0 0.0
        %4275 = vmatprep.subr.mxu0 0.0
        %4276 = vmatpush2.msra.mxu0 0.0
        %4277 = vmatprep.subr.mxu0 0.0
        %4278 = vmatpush2.msra.mxu0 0.0
        %4279 = vmatprep.subr.mxu0 0.0
        %4280 = vmatpush2.msra.mxu0 0.0
        %4281 = vmatprep.subr.mxu0 0.0
        %4282 = vmatpush2.msra.mxu0 0.0
        %4283 = vmatprep.subr.mxu0 0.0
        %4284 = vmatpush2.msra.mxu0 0.0
        %4285 = vmatprep.subr.mxu0 0.0
        %4286 = vmatpush2.msra.mxu0 0.0
        %4287 = vmatprep.subr.mxu0 0.0
        %4288 = vmatpush2.msra.mxu0 0.0
        %4289 = vmatprep.subr.mxu0 0.0
        %4290 = vmatpush2.msra.mxu0 0.0
        %4291 = vmatprep.mubr.f32.mxu0 0.0
        %v4292 = vand.u32 %v4087, 4294901760
        %4293 = vmatmul.mubr.f32.gmra.mxu0 %v4292
        %v4294 = vpop.f32.mrf.mxu0
        %v4295 = vadd.f32 %v4174, %v4294
        %v4296 = vpop.f32.mrf.mxu0
        %4297 = vmatprep.mubr.f32.mxu0 0.0
        %v4298 = vand.u32 %v4090, 4294901760
        %4299 = vmatmul.mubr.f32.gmra.mxu0 %v4298
        %v4300 = vpop.f32.mrf.mxu0
        %v4301 = vadd.f32 %v4184, %v4300
        %v4302 = vpop.f32.mrf.mxu0
        %4303 = vmatprep.mubr.f32.mxu0 0.0
        %v4304 = vand.u32 %v4093, 4294901760
        %4305 = vmatmul.mubr.f32.gmra.mxu0 %v4304
        %v4306 = vpop.f32.mrf.mxu0
        %v4307 = vadd.f32 %v4194, %v4306
        %v4308 = vpop.f32.mrf.mxu0
        %4309 = vmatprep.mubr.f32.mxu0 0.0
        %v4310 = vand.u32 %v4096, 4294901760
        %4311 = vmatmul.mubr.f32.gmra.mxu0 %v4310
        %v4312 = vpop.f32.mrf.mxu0
        %v4313 = vadd.f32 %v4204, %v4312
        %v4314 = vpop.f32.mrf.mxu0
        %4315 = vdwg.mxu0
        %4316 = vmatprep.subr.mxu0 0.0
        %4317 = vmatpush1.msra.mxu0 0.0
        %4318 = vmatprep.subr.mxu0 0.0
        %4319 = vmatpush1.msra.mxu0 0.0
        %4320 = vmatprep.subr.mxu0 0.0
        %4321 = vmatpush1.msra.mxu0 0.0
        %4322 = vmatprep.subr.mxu0 0.0
        %4323 = vmatpush1.msra.mxu0 0.0
        %4324 = vmatprep.subr.mxu0 0.0
        %4325 = vmatpush1.msra.mxu0 0.0
        %4326 = vmatprep.subr.mxu0 0.0
        %4327 = vmatpush1.msra.mxu0 0.0
        %4328 = vmatprep.subr.mxu0 0.0
        %4329 = vmatpush1.msra.mxu0 0.0
        %4330 = vmatprep.subr.mxu0 0.0
        %4331 = vmatpush1.msra.mxu0 0.0
        %4332 = vmatprep.subr.mxu0 0.0
        %4333 = vmatpush1.msra.mxu0 0.0
        %4334 = vmatprep.subr.mxu0 0.0
        %4335 = vmatpush1.msra.mxu0 0.0
        %4336 = vmatprep.subr.mxu0 0.0
        %4337 = vmatpush1.msra.mxu0 0.0
        %4338 = vmatprep.subr.mxu0 0.0
        %4339 = vmatpush1.msra.mxu0 0.0
        %4340 = vmatprep.subr.mxu0 0.0
        %v4341 = vand.u32 %v328, 4294901760
        %v4342 = vsub.f32 %v328, %v4341
        %4343 = vmatpush1.msra.mxu0 %v4342
        %4344 = vmatprep.subr.mxu0 0.0
        %v4345 = vand.u32 %v327, 4294901760
        %v4346 = vsub.f32 %v327, %v4345
        %4347 = vmatpush1.msra.mxu0 %v4346
        %4348 = vmatprep.subr.mxu0 0.0
        %v4349 = vand.u32 %v326, 4294901760
        %v4350 = vsub.f32 %v326, %v4349
        %4351 = vmatpush1.msra.mxu0 %v4350
        %4352 = vmatprep.subr.mxu0 0.0
        %v4353 = vand.u32 %v325, 4294901760
        %v4354 = vsub.f32 %v325, %v4353
        %4355 = vmatpush1.msra.mxu0 %v4354
        %4356 = vmatprep.subr.mxu0 0.0
        %4357 = vmatpush2.msra.mxu0 0.0
        %4358 = vmatprep.subr.mxu0 0.0
        %4359 = vmatpush2.msra.mxu0 0.0
        %4360 = vmatprep.subr.mxu0 0.0
        %4361 = vmatpush2.msra.mxu0 0.0
        %4362 = vmatprep.subr.mxu0 0.0
        %4363 = vmatpush2.msra.mxu0 0.0
        %4364 = vmatprep.subr.mxu0 0.0
        %4365 = vmatpush2.msra.mxu0 0.0
        %4366 = vmatprep.subr.mxu0 0.0
        %4367 = vmatpush2.msra.mxu0 0.0
        %4368 = vmatprep.subr.mxu0 0.0
        %4369 = vmatpush2.msra.mxu0 0.0
        %4370 = vmatprep.subr.mxu0 0.0
        %4371 = vmatpush2.msra.mxu0 0.0
        %4372 = vmatprep.subr.mxu0 0.0
        %4373 = vmatpush2.msra.mxu0 0.0
        %4374 = vmatprep.subr.mxu0 0.0
        %4375 = vmatpush2.msra.mxu0 0.0
        %4376 = vmatprep.subr.mxu0 0.0
        %4377 = vmatpush2.msra.mxu0 0.0
        %4378 = vmatprep.subr.mxu0 0.0
        %4379 = vmatpush2.msra.mxu0 0.0
        %4380 = vmatprep.subr.mxu0 0.0
        %4381 = vmatpush2.msra.mxu0 0.0
        %4382 = vmatprep.subr.mxu0 0.0
        %4383 = vmatpush2.msra.mxu0 0.0
        %4384 = vmatprep.subr.mxu0 0.0
        %4385 = vmatpush2.msra.mxu0 0.0
        %4386 = vmatprep.subr.mxu0 0.0
        %4387 = vmatpush2.msra.mxu0 0.0
        %4388 = vmatprep.mubr.f32.mxu0 0.0
        %v4389 = vand.u32 %v4087, 4294901760
        %v4390 = vsub.f32 %v4087, %v4389
        %4391 = vmatmul.mubr.f32.gmra.mxu0 %v4390
        %v4392 = vpop.f32.mrf.mxu0
        %v4393 = vadd.f32 %v4295, %v4392
        %v4394 = vpop.f32.mrf.mxu0
        %4395 = vmatprep.mubr.f32.mxu0 0.0
        %v4396 = vand.u32 %v4090, 4294901760
        %v4397 = vsub.f32 %v4090, %v4396
        %4398 = vmatmul.mubr.f32.gmra.mxu0 %v4397
        %v4399 = vpop.f32.mrf.mxu0
        %v4400 = vadd.f32 %v4301, %v4399
        %v4401 = vpop.f32.mrf.mxu0
        %4402 = vmatprep.mubr.f32.mxu0 0.0
        %v4403 = vand.u32 %v4093, 4294901760
        %v4404 = vsub.f32 %v4093, %v4403
        %4405 = vmatmul.mubr.f32.gmra.mxu0 %v4404
        %v4406 = vpop.f32.mrf.mxu0
        %v4407 = vadd.f32 %v4307, %v4406
        %v4408 = vpop.f32.mrf.mxu0
        %4409 = vmatprep.mubr.f32.mxu0 0.0
        %v4410 = vand.u32 %v4096, 4294901760
        %v4411 = vsub.f32 %v4096, %v4410
        %4412 = vmatmul.mubr.f32.gmra.mxu0 %v4411
        %v4413 = vpop.f32.mrf.mxu0
        %v4414 = vadd.f32 %v4313, %v4413
        %v4415 = vpop.f32.mrf.mxu0
        %4416 = vdwg.mxu0
        %4417 = vmatprep.subr.mxu0 0.0
        %4418 = vmatpush1.msra.mxu0 0.0
        %4419 = vmatprep.subr.mxu0 0.0
        %4420 = vmatpush1.msra.mxu0 0.0
        %4421 = vmatprep.subr.mxu0 0.0
        %4422 = vmatpush1.msra.mxu0 0.0
        %4423 = vmatprep.subr.mxu0 0.0
        %4424 = vmatpush1.msra.mxu0 0.0
        %4425 = vmatprep.subr.mxu0 0.0
        %4426 = vmatpush1.msra.mxu0 0.0
        %4427 = vmatprep.subr.mxu0 0.0
        %4428 = vmatpush1.msra.mxu0 0.0
        %4429 = vmatprep.subr.mxu0 0.0
        %4430 = vmatpush1.msra.mxu0 0.0
        %4431 = vmatprep.subr.mxu0 0.0
        %4432 = vmatpush1.msra.mxu0 0.0
        %4433 = vmatprep.subr.mxu0 0.0
        %4434 = vmatpush1.msra.mxu0 0.0
        %4435 = vmatprep.subr.mxu0 0.0
        %4436 = vmatpush1.msra.mxu0 0.0
        %4437 = vmatprep.subr.mxu0 0.0
        %4438 = vmatpush1.msra.mxu0 0.0
        %4439 = vmatprep.subr.mxu0 0.0
        %4440 = vmatpush1.msra.mxu0 0.0
        %4441 = vmatprep.subr.mxu0 0.0
        %v4442 = vand.u32 %v328, 4294901760
        %4443 = vmatpush1.msra.mxu0 %v4442
        %4444 = vmatprep.subr.mxu0 0.0
        %v4445 = vand.u32 %v327, 4294901760
        %4446 = vmatpush1.msra.mxu0 %v4445
        %4447 = vmatprep.subr.mxu0 0.0
        %v4448 = vand.u32 %v326, 4294901760
        %4449 = vmatpush1.msra.mxu0 %v4448
        %4450 = vmatprep.subr.mxu0 0.0
        %v4451 = vand.u32 %v325, 4294901760
        %4452 = vmatpush1.msra.mxu0 %v4451
        %4453 = vmatprep.subr.mxu0 0.0
        %4454 = vmatpush2.msra.mxu0 0.0
        %4455 = vmatprep.subr.mxu0 0.0
        %4456 = vmatpush2.msra.mxu0 0.0
        %4457 = vmatprep.subr.mxu0 0.0
        %4458 = vmatpush2.msra.mxu0 0.0
        %4459 = vmatprep.subr.mxu0 0.0
        %4460 = vmatpush2.msra.mxu0 0.0
        %4461 = vmatprep.subr.mxu0 0.0
        %4462 = vmatpush2.msra.mxu0 0.0
        %4463 = vmatprep.subr.mxu0 0.0
        %4464 = vmatpush2.msra.mxu0 0.0
        %4465 = vmatprep.subr.mxu0 0.0
        %4466 = vmatpush2.msra.mxu0 0.0
        %4467 = vmatprep.subr.mxu0 0.0
        %4468 = vmatpush2.msra.mxu0 0.0
        %4469 = vmatprep.subr.mxu0 0.0
        %4470 = vmatpush2.msra.mxu0 0.0
        %4471 = vmatprep.subr.mxu0 0.0
        %4472 = vmatpush2.msra.mxu0 0.0
        %4473 = vmatprep.subr.mxu0 0.0
        %4474 = vmatpush2.msra.mxu0 0.0
        %4475 = vmatprep.subr.mxu0 0.0
        %4476 = vmatpush2.msra.mxu0 0.0
        %4477 = vmatprep.subr.mxu0 0.0
        %4478 = vmatpush2.msra.mxu0 0.0
        %4479 = vmatprep.subr.mxu0 0.0
        %4480 = vmatpush2.msra.mxu0 0.0
        %4481 = vmatprep.subr.mxu0 0.0
        %4482 = vmatpush2.msra.mxu0 0.0
        %4483 = vmatprep.subr.mxu0 0.0
        %4484 = vmatpush2.msra.mxu0 0.0
        %4485 = vmatprep.mubr.f32.mxu0 0.0
        %v4486 = vand.u32 %v4087, 4294901760
        %v4487 = vsub.f32 %v4087, %v4486
        %v4488 = vand.u32 %v4487, 4294901760
        %4489 = vmatmul.mubr.f32.gmra.mxu0 %v4488
        %v4490 = vpop.f32.mrf.mxu0
        %v4491 = vadd.f32 %v4393, %v4490
        %v4492 = vpop.f32.mrf.mxu0
        %4493 = vmatprep.mubr.f32.mxu0 0.0
        %v4494 = vand.u32 %v4090, 4294901760
        %v4495 = vsub.f32 %v4090, %v4494
        %v4496 = vand.u32 %v4495, 4294901760
        %4497 = vmatmul.mubr.f32.gmra.mxu0 %v4496
        %v4498 = vpop.f32.mrf.mxu0
        %v4499 = vadd.f32 %v4400, %v4498
        %v4500 = vpop.f32.mrf.mxu0
        %4501 = vmatprep.mubr.f32.mxu0 0.0
        %v4502 = vand.u32 %v4093, 4294901760
        %v4503 = vsub.f32 %v4093, %v4502
        %v4504 = vand.u32 %v4503, 4294901760
        %4505 = vmatmul.mubr.f32.gmra.mxu0 %v4504
        %v4506 = vpop.f32.mrf.mxu0
        %v4507 = vadd.f32 %v4407, %v4506
        %v4508 = vpop.f32.mrf.mxu0
        %4509 = vmatprep.mubr.f32.mxu0 0.0
        %v4510 = vand.u32 %v4096, 4294901760
        %v4511 = vsub.f32 %v4096, %v4510
        %v4512 = vand.u32 %v4511, 4294901760
        %4513 = vmatmul.mubr.f32.gmra.mxu0 %v4512
        %v4514 = vpop.f32.mrf.mxu0
        %v4515 = vadd.f32 %v4414, %v4514
        %v4516 = vpop.f32.mrf.mxu0
        %4517 = vdwg.mxu0
        %4518 = vmatprep.subr.mxu0 0.0
        %4519 = vmatpush1.msra.mxu0 0.0
        %4520 = vmatprep.subr.mxu0 0.0
        %4521 = vmatpush1.msra.mxu0 0.0
        %4522 = vmatprep.subr.mxu0 0.0
        %4523 = vmatpush1.msra.mxu0 0.0
        %4524 = vmatprep.subr.mxu0 0.0
        %4525 = vmatpush1.msra.mxu0 0.0
        %4526 = vmatprep.subr.mxu0 0.0
        %4527 = vmatpush1.msra.mxu0 0.0
        %4528 = vmatprep.subr.mxu0 0.0
        %4529 = vmatpush1.msra.mxu0 0.0
        %4530 = vmatprep.subr.mxu0 0.0
        %4531 = vmatpush1.msra.mxu0 0.0
        %4532 = vmatprep.subr.mxu0 0.0
        %4533 = vmatpush1.msra.mxu0 0.0
        %4534 = vmatprep.subr.mxu0 0.0
        %4535 = vmatpush1.msra.mxu0 0.0
        %4536 = vmatprep.subr.mxu0 0.0
        %4537 = vmatpush1.msra.mxu0 0.0
        %4538 = vmatprep.subr.mxu0 0.0
        %4539 = vmatpush1.msra.mxu0 0.0
        %4540 = vmatprep.subr.mxu0 0.0
        %4541 = vmatpush1.msra.mxu0 0.0
        %4542 = vmatprep.subr.mxu0 0.0
        %v4543 = vand.u32 %v328, 4294901760
        %v4544 = vsub.f32 %v328, %v4543
        %v4545 = vand.u32 %v4544, 4294901760
        %4546 = vmatpush1.msra.mxu0 %v4545
        %4547 = vmatprep.subr.mxu0 0.0
        %v4548 = vand.u32 %v327, 4294901760
        %v4549 = vsub.f32 %v327, %v4548
        %v4550 = vand.u32 %v4549, 4294901760
        %4551 = vmatpush1.msra.mxu0 %v4550
        %4552 = vmatprep.subr.mxu0 0.0
        %v4553 = vand.u32 %v326, 4294901760
        %v4554 = vsub.f32 %v326, %v4553
        %v4555 = vand.u32 %v4554, 4294901760
        %4556 = vmatpush1.msra.mxu0 %v4555
        %4557 = vmatprep.subr.mxu0 0.0
        %v4558 = vand.u32 %v325, 4294901760
        %v4559 = vsub.f32 %v325, %v4558
        %v4560 = vand.u32 %v4559, 4294901760
        %4561 = vmatpush1.msra.mxu0 %v4560
        %4562 = vmatprep.subr.mxu0 0.0
        %4563 = vmatpush2.msra.mxu0 0.0
        %4564 = vmatprep.subr.mxu0 0.0
        %4565 = vmatpush2.msra.mxu0 0.0
        %4566 = vmatprep.subr.mxu0 0.0
        %4567 = vmatpush2.msra.mxu0 0.0
        %4568 = vmatprep.subr.mxu0 0.0
        %4569 = vmatpush2.msra.mxu0 0.0
        %4570 = vmatprep.subr.mxu0 0.0
        %4571 = vmatpush2.msra.mxu0 0.0
        %4572 = vmatprep.subr.mxu0 0.0
        %4573 = vmatpush2.msra.mxu0 0.0
        %4574 = vmatprep.subr.mxu0 0.0
        %4575 = vmatpush2.msra.mxu0 0.0
        %4576 = vmatprep.subr.mxu0 0.0
        %4577 = vmatpush2.msra.mxu0 0.0
        %4578 = vmatprep.subr.mxu0 0.0
        %4579 = vmatpush2.msra.mxu0 0.0
        %4580 = vmatprep.subr.mxu0 0.0
        %4581 = vmatpush2.msra.mxu0 0.0
        %4582 = vmatprep.subr.mxu0 0.0
        %4583 = vmatpush2.msra.mxu0 0.0
        %4584 = vmatprep.subr.mxu0 0.0
        %4585 = vmatpush2.msra.mxu0 0.0
        %4586 = vmatprep.subr.mxu0 0.0
        %4587 = vmatpush2.msra.mxu0 0.0
        %4588 = vmatprep.subr.mxu0 0.0
        %4589 = vmatpush2.msra.mxu0 0.0
        %4590 = vmatprep.subr.mxu0 0.0
        %4591 = vmatpush2.msra.mxu0 0.0
        %4592 = vmatprep.subr.mxu0 0.0
        %4593 = vmatpush2.msra.mxu0 0.0
        %4594 = vmatprep.mubr.f32.mxu0 0.0
        %v4595 = vand.u32 %v4087, 4294901760
        %4596 = vmatmul.mubr.f32.gmra.mxu0 %v4595
        %v4597 = vpop.f32.mrf.mxu0
        %v4598 = vadd.f32 %v4491, %v4597
        %v4599 = vpop.f32.mrf.mxu0
        %4600 = vmatprep.mubr.f32.mxu0 0.0
        %v4601 = vand.u32 %v4090, 4294901760
        %4602 = vmatmul.mubr.f32.gmra.mxu0 %v4601
        %v4603 = vpop.f32.mrf.mxu0
        %v4604 = vadd.f32 %v4499, %v4603
        %v4605 = vpop.f32.mrf.mxu0
        %4606 = vmatprep.mubr.f32.mxu0 0.0
        %v4607 = vand.u32 %v4093, 4294901760
        %4608 = vmatmul.mubr.f32.gmra.mxu0 %v4607
        %v4609 = vpop.f32.mrf.mxu0
        %v4610 = vadd.f32 %v4507, %v4609
        %v4611 = vpop.f32.mrf.mxu0
        %4612 = vmatprep.mubr.f32.mxu0 0.0
        %v4613 = vand.u32 %v4096, 4294901760
        %4614 = vmatmul.mubr.f32.gmra.mxu0 %v4613
        %v4615 = vpop.f32.mrf.mxu0
        %v4616 = vadd.f32 %v4515, %v4615
        %v4617 = vpop.f32.mrf.mxu0
        %4618 = vdwg.mxu0
        %4619 = vmatprep.subr.mxu0 0.0
        %4620 = vmatpush1.msra.mxu0 0.0
        %4621 = vmatprep.subr.mxu0 0.0
        %4622 = vmatpush1.msra.mxu0 0.0
        %4623 = vmatprep.subr.mxu0 0.0
        %4624 = vmatpush1.msra.mxu0 0.0
        %4625 = vmatprep.subr.mxu0 0.0
        %4626 = vmatpush1.msra.mxu0 0.0
        %4627 = vmatprep.subr.mxu0 0.0
        %4628 = vmatpush1.msra.mxu0 0.0
        %4629 = vmatprep.subr.mxu0 0.0
        %4630 = vmatpush1.msra.mxu0 0.0
        %4631 = vmatprep.subr.mxu0 0.0
        %4632 = vmatpush1.msra.mxu0 0.0
        %4633 = vmatprep.subr.mxu0 0.0
        %4634 = vmatpush1.msra.mxu0 0.0
        %4635 = vmatprep.subr.mxu0 0.0
        %4636 = vmatpush1.msra.mxu0 0.0
        %4637 = vmatprep.subr.mxu0 0.0
        %4638 = vmatpush1.msra.mxu0 0.0
        %4639 = vmatprep.subr.mxu0 0.0
        %4640 = vmatpush1.msra.mxu0 0.0
        %4641 = vmatprep.subr.mxu0 0.0
        %4642 = vmatpush1.msra.mxu0 0.0
        %4643 = vmatprep.subr.mxu0 0.0
        %v4644 = vand.u32 %v328, 4294901760
        %4645 = vmatpush1.msra.mxu0 %v4644
        %4646 = vmatprep.subr.mxu0 0.0
        %v4647 = vand.u32 %v327, 4294901760
        %4648 = vmatpush1.msra.mxu0 %v4647
        %4649 = vmatprep.subr.mxu0 0.0
        %v4650 = vand.u32 %v326, 4294901760
        %4651 = vmatpush1.msra.mxu0 %v4650
        %4652 = vmatprep.subr.mxu0 0.0
        %v4653 = vand.u32 %v325, 4294901760
        %4654 = vmatpush1.msra.mxu0 %v4653
        %4655 = vmatprep.subr.mxu0 0.0
        %4656 = vmatpush2.msra.mxu0 0.0
        %4657 = vmatprep.subr.mxu0 0.0
        %4658 = vmatpush2.msra.mxu0 0.0
        %4659 = vmatprep.subr.mxu0 0.0
        %4660 = vmatpush2.msra.mxu0 0.0
        %4661 = vmatprep.subr.mxu0 0.0
        %4662 = vmatpush2.msra.mxu0 0.0
        %4663 = vmatprep.subr.mxu0 0.0
        %4664 = vmatpush2.msra.mxu0 0.0
        %4665 = vmatprep.subr.mxu0 0.0
        %4666 = vmatpush2.msra.mxu0 0.0
        %4667 = vmatprep.subr.mxu0 0.0
        %4668 = vmatpush2.msra.mxu0 0.0
        %4669 = vmatprep.subr.mxu0 0.0
        %4670 = vmatpush2.msra.mxu0 0.0
        %4671 = vmatprep.subr.mxu0 0.0
        %4672 = vmatpush2.msra.mxu0 0.0
        %4673 = vmatprep.subr.mxu0 0.0
        %4674 = vmatpush2.msra.mxu0 0.0
        %4675 = vmatprep.subr.mxu0 0.0
        %4676 = vmatpush2.msra.mxu0 0.0
        %4677 = vmatprep.subr.mxu0 0.0
        %4678 = vmatpush2.msra.mxu0 0.0
        %4679 = vmatprep.subr.mxu0 0.0
        %4680 = vmatpush2.msra.mxu0 0.0
        %4681 = vmatprep.subr.mxu0 0.0
        %4682 = vmatpush2.msra.mxu0 0.0
        %4683 = vmatprep.subr.mxu0 0.0
        %4684 = vmatpush2.msra.mxu0 0.0
        %4685 = vmatprep.subr.mxu0 0.0
        %4686 = vmatpush2.msra.mxu0 0.0
        %4687 = vmatprep.mubr.f32.mxu0 0.0
        %v4688 = vand.u32 %v4087, 4294901760
        %4689 = vmatmul.mubr.f32.gmra.mxu0 %v4688
        %v4690 = vpop.f32.mrf.mxu0
        %v4691 = vadd.f32 %v4598, %v4690
        %v4692 = vpop.f32.mrf.mxu0
        %4693 = vmatprep.mubr.f32.mxu0 0.0
        %v4694 = vand.u32 %v4090, 4294901760
        %4695 = vmatmul.mubr.f32.gmra.mxu0 %v4694
        %v4696 = vpop.f32.mrf.mxu0
        %v4697 = vadd.f32 %v4604, %v4696
        %v4698 = vpop.f32.mrf.mxu0
        %4699 = vmatprep.mubr.f32.mxu0 0.0
        %v4700 = vand.u32 %v4093, 4294901760
        %4701 = vmatmul.mubr.f32.gmra.mxu0 %v4700
        %v4702 = vpop.f32.mrf.mxu0
        %v4703 = vadd.f32 %v4610, %v4702
        %v4704 = vpop.f32.mrf.mxu0
        %4705 = vmatprep.mubr.f32.mxu0 0.0
        %v4706 = vand.u32 %v4096, 4294901760
        %4707 = vmatmul.mubr.f32.gmra.mxu0 %v4706
        %v4708 = vpop.f32.mrf.mxu0
        %v4709 = vadd.f32 %v4616, %v4708
        %v4710 = vpop.f32.mrf.mxu0
        %4711 = vdwg.mxu0
        %4712 = vmatprep.subr.mxu0 0.0
        %4713 = vmatpush1.msra.mxu0 0.0
        %4714 = vmatprep.subr.mxu0 0.0
        %4715 = vmatpush1.msra.mxu0 0.0
        %4716 = vmatprep.subr.mxu0 0.0
        %4717 = vmatpush1.msra.mxu0 0.0
        %4718 = vmatprep.subr.mxu0 0.0
        %4719 = vmatpush1.msra.mxu0 0.0
        %4720 = vmatprep.subr.mxu0 0.0
        %4721 = vmatpush1.msra.mxu0 0.0
        %4722 = vmatprep.subr.mxu0 0.0
        %4723 = vmatpush1.msra.mxu0 0.0
        %4724 = vmatprep.subr.mxu0 0.0
        %4725 = vmatpush1.msra.mxu0 0.0
        %4726 = vmatprep.subr.mxu0 0.0
        %4727 = vmatpush1.msra.mxu0 0.0
        %4728 = vmatprep.subr.mxu0 0.0
        %4729 = vmatpush1.msra.mxu0 0.0
        %4730 = vmatprep.subr.mxu0 0.0
        %4731 = vmatpush1.msra.mxu0 0.0
        %4732 = vmatprep.subr.mxu0 0.0
        %4733 = vmatpush1.msra.mxu0 0.0
        %4734 = vmatprep.subr.mxu0 0.0
        %4735 = vmatpush1.msra.mxu0 0.0
        %4736 = vmatprep.subr.mxu0 0.0
        %v4737 = vand.u32 %v4709, 4294901760
        %4738 = vmatpush1.msra.mxu0 %v4737
        %4739 = vmatprep.subr.mxu0 0.0
        %v4740 = vand.u32 %v4703, 4294901760
        %4741 = vmatpush1.msra.mxu0 %v4740
        %4742 = vmatprep.subr.mxu0 0.0
        %v4743 = vand.u32 %v4697, 4294901760
        %4744 = vmatpush1.msra.mxu0 %v4743
        %4745 = vmatprep.subr.mxu0 0.0
        %v4746 = vand.u32 %v4691, 4294901760
        %4747 = vmatpush1.msra.mxu0 %v4746
        %4748 = vmatprep.subr.mxu0 0.0
        %4749 = vmatpush2.msra.mxu0 0.0
        %4750 = vmatprep.subr.mxu0 0.0
        %4751 = vmatpush2.msra.mxu0 0.0
        %4752 = vmatprep.subr.mxu0 0.0
        %4753 = vmatpush2.msra.mxu0 0.0
        %4754 = vmatprep.subr.mxu0 0.0
        %4755 = vmatpush2.msra.mxu0 0.0
        %4756 = vmatprep.subr.mxu0 0.0
        %4757 = vmatpush2.msra.mxu0 0.0
        %4758 = vmatprep.subr.mxu0 0.0
        %4759 = vmatpush2.msra.mxu0 0.0
        %4760 = vmatprep.subr.mxu0 0.0
        %4761 = vmatpush2.msra.mxu0 0.0
        %4762 = vmatprep.subr.mxu0 0.0
        %4763 = vmatpush2.msra.mxu0 0.0
        %4764 = vmatprep.subr.mxu0 0.0
        %4765 = vmatpush2.msra.mxu0 0.0
        %4766 = vmatprep.subr.mxu0 0.0
        %4767 = vmatpush2.msra.mxu0 0.0
        %4768 = vmatprep.subr.mxu0 0.0
        %4769 = vmatpush2.msra.mxu0 0.0
        %4770 = vmatprep.subr.mxu0 0.0
        %4771 = vmatpush2.msra.mxu0 0.0
        %4772 = vmatprep.subr.mxu0 0.0
        %4773 = vmatpush2.msra.mxu0 0.0
        %4774 = vmatprep.subr.mxu0 0.0
        %4775 = vmatpush2.msra.mxu0 0.0
        %4776 = vmatprep.subr.mxu0 0.0
        %4777 = vmatpush2.msra.mxu0 0.0
        %4778 = vmatprep.subr.mxu0 0.0
        %4779 = vmatpush2.msra.mxu0 0.0
        %4780 = vmatprep.mubr.f32.mxu0 0.0
        %v4781 = vand.u32 %v957, 4294901760
        %v4782 = vsub.f32 %v957, %v4781
        %v4783 = vand.u32 %v4782, 4294901760
        %v4784 = vsub.f32 %v4782, %v4783
        %v4785 = vand.u32 %v4784, 4294901760
        %4786 = vmatmul.mubr.f32.gmra.mxu0 %v4785
        %v4787 = vpop.f32.mrf.mxu0
        %v4788 = vadd.f32 0.0, %v4787
        %v4789 = vpop.f32.mrf.mxu0
        %4790 = vmatprep.mubr.f32.mxu0 0.0
        %v4791 = vand.u32 %v960, 4294901760
        %v4792 = vsub.f32 %v960, %v4791
        %v4793 = vand.u32 %v4792, 4294901760
        %v4794 = vsub.f32 %v4792, %v4793
        %v4795 = vand.u32 %v4794, 4294901760
        %4796 = vmatmul.mubr.f32.gmra.mxu0 %v4795
        %v4797 = vpop.f32.mrf.mxu0
        %v4798 = vadd.f32 0.0, %v4797
        %v4799 = vpop.f32.mrf.mxu0
        %4800 = vmatprep.mubr.f32.mxu0 0.0
        %v4801 = vand.u32 %v963, 4294901760
        %v4802 = vsub.f32 %v963, %v4801
        %v4803 = vand.u32 %v4802, 4294901760
        %v4804 = vsub.f32 %v4802, %v4803
        %v4805 = vand.u32 %v4804, 4294901760
        %4806 = vmatmul.mubr.f32.gmra.mxu0 %v4805
        %v4807 = vpop.f32.mrf.mxu0
        %v4808 = vadd.f32 0.0, %v4807
        %v4809 = vpop.f32.mrf.mxu0
        %4810 = vmatprep.mubr.f32.mxu0 0.0
        %v4811 = vand.u32 %v966, 4294901760
        %v4812 = vsub.f32 %v966, %v4811
        %v4813 = vand.u32 %v4812, 4294901760
        %v4814 = vsub.f32 %v4812, %v4813
        %v4815 = vand.u32 %v4814, 4294901760
        %4816 = vmatmul.mubr.f32.gmra.mxu0 %v4815
        %v4817 = vpop.f32.mrf.mxu0
        %v4818 = vadd.f32 0.0, %v4817
        %v4819 = vpop.f32.mrf.mxu0
        %4820 = vdwg.mxu0
        %4821 = vmatprep.subr.mxu0 0.0
        %4822 = vmatpush1.msra.mxu0 0.0
        %4823 = vmatprep.subr.mxu0 0.0
        %4824 = vmatpush1.msra.mxu0 0.0
        %4825 = vmatprep.subr.mxu0 0.0
        %4826 = vmatpush1.msra.mxu0 0.0
        %4827 = vmatprep.subr.mxu0 0.0
        %4828 = vmatpush1.msra.mxu0 0.0
        %4829 = vmatprep.subr.mxu0 0.0
        %4830 = vmatpush1.msra.mxu0 0.0
        %4831 = vmatprep.subr.mxu0 0.0
        %4832 = vmatpush1.msra.mxu0 0.0
        %4833 = vmatprep.subr.mxu0 0.0
        %4834 = vmatpush1.msra.mxu0 0.0
        %4835 = vmatprep.subr.mxu0 0.0
        %4836 = vmatpush1.msra.mxu0 0.0
        %4837 = vmatprep.subr.mxu0 0.0
        %4838 = vmatpush1.msra.mxu0 0.0
        %4839 = vmatprep.subr.mxu0 0.0
        %4840 = vmatpush1.msra.mxu0 0.0
        %4841 = vmatprep.subr.mxu0 0.0
        %4842 = vmatpush1.msra.mxu0 0.0
        %4843 = vmatprep.subr.mxu0 0.0
        %4844 = vmatpush1.msra.mxu0 0.0
        %4845 = vmatprep.subr.mxu0 0.0
        %v4846 = vand.u32 %v4709, 4294901760
        %v4847 = vsub.f32 %v4709, %v4846
        %v4848 = vand.u32 %v4847, 4294901760
        %v4849 = vsub.f32 %v4847, %v4848
        %v4850 = vand.u32 %v4849, 4294901760
        %4851 = vmatpush1.msra.mxu0 %v4850
        %4852 = vmatprep.subr.mxu0 0.0
        %v4853 = vand.u32 %v4703, 4294901760
        %v4854 = vsub.f32 %v4703, %v4853
        %v4855 = vand.u32 %v4854, 4294901760
        %v4856 = vsub.f32 %v4854, %v4855
        %v4857 = vand.u32 %v4856, 4294901760
        %4858 = vmatpush1.msra.mxu0 %v4857
        %4859 = vmatprep.subr.mxu0 0.0
        %v4860 = vand.u32 %v4697, 4294901760
        %v4861 = vsub.f32 %v4697, %v4860
        %v4862 = vand.u32 %v4861, 4294901760
        %v4863 = vsub.f32 %v4861, %v4862
        %v4864 = vand.u32 %v4863, 4294901760
        %4865 = vmatpush1.msra.mxu0 %v4864
        %4866 = vmatprep.subr.mxu0 0.0
        %v4867 = vand.u32 %v4691, 4294901760
        %v4868 = vsub.f32 %v4691, %v4867
        %v4869 = vand.u32 %v4868, 4294901760
        %v4870 = vsub.f32 %v4868, %v4869
        %v4871 = vand.u32 %v4870, 4294901760
        %4872 = vmatpush1.msra.mxu0 %v4871
        %4873 = vmatprep.subr.mxu0 0.0
        %4874 = vmatpush2.msra.mxu0 0.0
        %4875 = vmatprep.subr.mxu0 0.0
        %4876 = vmatpush2.msra.mxu0 0.0
        %4877 = vmatprep.subr.mxu0 0.0
        %4878 = vmatpush2.msra.mxu0 0.0
        %4879 = vmatprep.subr.mxu0 0.0
        %4880 = vmatpush2.msra.mxu0 0.0
        %4881 = vmatprep.subr.mxu0 0.0
        %4882 = vmatpush2.msra.mxu0 0.0
        %4883 = vmatprep.subr.mxu0 0.0
        %4884 = vmatpush2.msra.mxu0 0.0
        %4885 = vmatprep.subr.mxu0 0.0
        %4886 = vmatpush2.msra.mxu0 0.0
        %4887 = vmatprep.subr.mxu0 0.0
        %4888 = vmatpush2.msra.mxu0 0.0
        %4889 = vmatprep.subr.mxu0 0.0
        %4890 = vmatpush2.msra.mxu0 0.0
        %4891 = vmatprep.subr.mxu0 0.0
        %4892 = vmatpush2.msra.mxu0 0.0
        %4893 = vmatprep.subr.mxu0 0.0
        %4894 = vmatpush2.msra.mxu0 0.0
        %4895 = vmatprep.subr.mxu0 0.0
        %4896 = vmatpush2.msra.mxu0 0.0
        %4897 = vmatprep.subr.mxu0 0.0
        %4898 = vmatpush2.msra.mxu0 0.0
        %4899 = vmatprep.subr.mxu0 0.0
        %4900 = vmatpush2.msra.mxu0 0.0
        %4901 = vmatprep.subr.mxu0 0.0
        %4902 = vmatpush2.msra.mxu0 0.0
        %4903 = vmatprep.subr.mxu0 0.0
        %4904 = vmatpush2.msra.mxu0 0.0
        %4905 = vmatprep.mubr.f32.mxu0 0.0
        %v4906 = vand.u32 %v957, 4294901760
        %4907 = vmatmul.mubr.f32.gmra.mxu0 %v4906
        %v4908 = vpop.f32.mrf.mxu0
        %v4909 = vadd.f32 %v4788, %v4908
        %v4910 = vpop.f32.mrf.mxu0
        %4911 = vmatprep.mubr.f32.mxu0 0.0
        %v4912 = vand.u32 %v960, 4294901760
        %4913 = vmatmul.mubr.f32.gmra.mxu0 %v4912
        %v4914 = vpop.f32.mrf.mxu0
        %v4915 = vadd.f32 %v4798, %v4914
        %v4916 = vpop.f32.mrf.mxu0
        %4917 = vmatprep.mubr.f32.mxu0 0.0
        %v4918 = vand.u32 %v963, 4294901760
        %4919 = vmatmul.mubr.f32.gmra.mxu0 %v4918
        %v4920 = vpop.f32.mrf.mxu0
        %v4921 = vadd.f32 %v4808, %v4920
        %v4922 = vpop.f32.mrf.mxu0
        %4923 = vmatprep.mubr.f32.mxu0 0.0
        %v4924 = vand.u32 %v966, 4294901760
        %4925 = vmatmul.mubr.f32.gmra.mxu0 %v4924
        %v4926 = vpop.f32.mrf.mxu0
        %v4927 = vadd.f32 %v4818, %v4926
        %v4928 = vpop.f32.mrf.mxu0
        %4929 = vdwg.mxu0
        %4930 = vmatprep.subr.mxu0 0.0
        %4931 = vmatpush1.msra.mxu0 0.0
        %4932 = vmatprep.subr.mxu0 0.0
        %4933 = vmatpush1.msra.mxu0 0.0
        %4934 = vmatprep.subr.mxu0 0.0
        %4935 = vmatpush1.msra.mxu0 0.0
        %4936 = vmatprep.subr.mxu0 0.0
        %4937 = vmatpush1.msra.mxu0 0.0
        %4938 = vmatprep.subr.mxu0 0.0
        %4939 = vmatpush1.msra.mxu0 0.0
        %4940 = vmatprep.subr.mxu0 0.0
        %4941 = vmatpush1.msra.mxu0 0.0
        %4942 = vmatprep.subr.mxu0 0.0
        %4943 = vmatpush1.msra.mxu0 0.0
        %4944 = vmatprep.subr.mxu0 0.0
        %4945 = vmatpush1.msra.mxu0 0.0
        %4946 = vmatprep.subr.mxu0 0.0
        %4947 = vmatpush1.msra.mxu0 0.0
        %4948 = vmatprep.subr.mxu0 0.0
        %4949 = vmatpush1.msra.mxu0 0.0
        %4950 = vmatprep.subr.mxu0 0.0
        %4951 = vmatpush1.msra.mxu0 0.0
        %4952 = vmatprep.subr.mxu0 0.0
        %4953 = vmatpush1.msra.mxu0 0.0
        %4954 = vmatprep.subr.mxu0 0.0
        %v4955 = vand.u32 %v4709, 4294901760
        %v4956 = vsub.f32 %v4709, %v4955
        %4957 = vmatpush1.msra.mxu0 %v4956
        %4958 = vmatprep.subr.mxu0 0.0
        %v4959 = vand.u32 %v4703, 4294901760
        %v4960 = vsub.f32 %v4703, %v4959
        %4961 = vmatpush1.msra.mxu0 %v4960
        %4962 = vmatprep.subr.mxu0 0.0
        %v4963 = vand.u32 %v4697, 4294901760
        %v4964 = vsub.f32 %v4697, %v4963
        %4965 = vmatpush1.msra.mxu0 %v4964
        %4966 = vmatprep.subr.mxu0 0.0
        %v4967 = vand.u32 %v4691, 4294901760
        %v4968 = vsub.f32 %v4691, %v4967
        %4969 = vmatpush1.msra.mxu0 %v4968
        %4970 = vmatprep.subr.mxu0 0.0
        %4971 = vmatpush2.msra.mxu0 0.0
        %4972 = vmatprep.subr.mxu0 0.0
        %4973 = vmatpush2.msra.mxu0 0.0
        %4974 = vmatprep.subr.mxu0 0.0
        %4975 = vmatpush2.msra.mxu0 0.0
        %4976 = vmatprep.subr.mxu0 0.0
        %4977 = vmatpush2.msra.mxu0 0.0
        %4978 = vmatprep.subr.mxu0 0.0
        %4979 = vmatpush2.msra.mxu0 0.0
        %4980 = vmatprep.subr.mxu0 0.0
        %4981 = vmatpush2.msra.mxu0 0.0
        %4982 = vmatprep.subr.mxu0 0.0
        %4983 = vmatpush2.msra.mxu0 0.0
        %4984 = vmatprep.subr.mxu0 0.0
        %4985 = vmatpush2.msra.mxu0 0.0
        %4986 = vmatprep.subr.mxu0 0.0
        %4987 = vmatpush2.msra.mxu0 0.0
        %4988 = vmatprep.subr.mxu0 0.0
        %4989 = vmatpush2.msra.mxu0 0.0
        %4990 = vmatprep.subr.mxu0 0.0
        %4991 = vmatpush2.msra.mxu0 0.0
        %4992 = vmatprep.subr.mxu0 0.0
        %4993 = vmatpush2.msra.mxu0 0.0
        %4994 = vmatprep.subr.mxu0 0.0
        %4995 = vmatpush2.msra.mxu0 0.0
        %4996 = vmatprep.subr.mxu0 0.0
        %4997 = vmatpush2.msra.mxu0 0.0
        %4998 = vmatprep.subr.mxu0 0.0
        %4999 = vmatpush2.msra.mxu0 0.0
        %5000 = vmatprep.subr.mxu0 0.0
        %5001 = vmatpush2.msra.mxu0 0.0
        %5002 = vmatprep.mubr.f32.mxu0 0.0
        %v5003 = vand.u32 %v957, 4294901760
        %v5004 = vsub.f32 %v957, %v5003
        %5005 = vmatmul.mubr.f32.gmra.mxu0 %v5004
        %v5006 = vpop.f32.mrf.mxu0
        %v5007 = vadd.f32 %v4909, %v5006
        %v5008 = vpop.f32.mrf.mxu0
        %5009 = vmatprep.mubr.f32.mxu0 0.0
        %v5010 = vand.u32 %v960, 4294901760
        %v5011 = vsub.f32 %v960, %v5010
        %5012 = vmatmul.mubr.f32.gmra.mxu0 %v5011
        %v5013 = vpop.f32.mrf.mxu0
        %v5014 = vadd.f32 %v4915, %v5013
        %v5015 = vpop.f32.mrf.mxu0
        %5016 = vmatprep.mubr.f32.mxu0 0.0
        %v5017 = vand.u32 %v963, 4294901760
        %v5018 = vsub.f32 %v963, %v5017
        %5019 = vmatmul.mubr.f32.gmra.mxu0 %v5018
        %v5020 = vpop.f32.mrf.mxu0
        %v5021 = vadd.f32 %v4921, %v5020
        %v5022 = vpop.f32.mrf.mxu0
        %5023 = vmatprep.mubr.f32.mxu0 0.0
        %v5024 = vand.u32 %v966, 4294901760
        %v5025 = vsub.f32 %v966, %v5024
        %5026 = vmatmul.mubr.f32.gmra.mxu0 %v5025
        %v5027 = vpop.f32.mrf.mxu0
        %v5028 = vadd.f32 %v4927, %v5027
        %v5029 = vpop.f32.mrf.mxu0
        %5030 = vdwg.mxu0
        %5031 = vmatprep.subr.mxu0 0.0
        %5032 = vmatpush1.msra.mxu0 0.0
        %5033 = vmatprep.subr.mxu0 0.0
        %5034 = vmatpush1.msra.mxu0 0.0
        %5035 = vmatprep.subr.mxu0 0.0
        %5036 = vmatpush1.msra.mxu0 0.0
        %5037 = vmatprep.subr.mxu0 0.0
        %5038 = vmatpush1.msra.mxu0 0.0
        %5039 = vmatprep.subr.mxu0 0.0
        %5040 = vmatpush1.msra.mxu0 0.0
        %5041 = vmatprep.subr.mxu0 0.0
        %5042 = vmatpush1.msra.mxu0 0.0
        %5043 = vmatprep.subr.mxu0 0.0
        %5044 = vmatpush1.msra.mxu0 0.0
        %5045 = vmatprep.subr.mxu0 0.0
        %5046 = vmatpush1.msra.mxu0 0.0
        %5047 = vmatprep.subr.mxu0 0.0
        %5048 = vmatpush1.msra.mxu0 0.0
        %5049 = vmatprep.subr.mxu0 0.0
        %5050 = vmatpush1.msra.mxu0 0.0
        %5051 = vmatprep.subr.mxu0 0.0
        %5052 = vmatpush1.msra.mxu0 0.0
        %5053 = vmatprep.subr.mxu0 0.0
        %5054 = vmatpush1.msra.mxu0 0.0
        %5055 = vmatprep.subr.mxu0 0.0
        %v5056 = vand.u32 %v4709, 4294901760
        %5057 = vmatpush1.msra.mxu0 %v5056
        %5058 = vmatprep.subr.mxu0 0.0
        %v5059 = vand.u32 %v4703, 4294901760
        %5060 = vmatpush1.msra.mxu0 %v5059
        %5061 = vmatprep.subr.mxu0 0.0
        %v5062 = vand.u32 %v4697, 4294901760
        %5063 = vmatpush1.msra.mxu0 %v5062
        %5064 = vmatprep.subr.mxu0 0.0
        %v5065 = vand.u32 %v4691, 4294901760
        %5066 = vmatpush1.msra.mxu0 %v5065
        %5067 = vmatprep.subr.mxu0 0.0
        %5068 = vmatpush2.msra.mxu0 0.0
        %5069 = vmatprep.subr.mxu0 0.0
        %5070 = vmatpush2.msra.mxu0 0.0
        %5071 = vmatprep.subr.mxu0 0.0
        %5072 = vmatpush2.msra.mxu0 0.0
        %5073 = vmatprep.subr.mxu0 0.0
        %5074 = vmatpush2.msra.mxu0 0.0
        %5075 = vmatprep.subr.mxu0 0.0
        %5076 = vmatpush2.msra.mxu0 0.0
        %5077 = vmatprep.subr.mxu0 0.0
        %5078 = vmatpush2.msra.mxu0 0.0
        %5079 = vmatprep.subr.mxu0 0.0
        %5080 = vmatpush2.msra.mxu0 0.0
        %5081 = vmatprep.subr.mxu0 0.0
        %5082 = vmatpush2.msra.mxu0 0.0
        %5083 = vmatprep.subr.mxu0 0.0
        %5084 = vmatpush2.msra.mxu0 0.0
        %5085 = vmatprep.subr.mxu0 0.0
        %5086 = vmatpush2.msra.mxu0 0.0
        %5087 = vmatprep.subr.mxu0 0.0
        %5088 = vmatpush2.msra.mxu0 0.0
        %5089 = vmatprep.subr.mxu0 0.0
        %5090 = vmatpush2.msra.mxu0 0.0
        %5091 = vmatprep.subr.mxu0 0.0
        %5092 = vmatpush2.msra.mxu0 0.0
        %5093 = vmatprep.subr.mxu0 0.0
        %5094 = vmatpush2.msra.mxu0 0.0
        %5095 = vmatprep.subr.mxu0 0.0
        %5096 = vmatpush2.msra.mxu0 0.0
        %5097 = vmatprep.subr.mxu0 0.0
        %5098 = vmatpush2.msra.mxu0 0.0
        %5099 = vmatprep.mubr.f32.mxu0 0.0
        %v5100 = vand.u32 %v957, 4294901760
        %v5101 = vsub.f32 %v957, %v5100
        %v5102 = vand.u32 %v5101, 4294901760
        %5103 = vmatmul.mubr.f32.gmra.mxu0 %v5102
        %v5104 = vpop.f32.mrf.mxu0
        %v5105 = vadd.f32 %v5007, %v5104
        %v5106 = vpop.f32.mrf.mxu0
        %5107 = vmatprep.mubr.f32.mxu0 0.0
        %v5108 = vand.u32 %v960, 4294901760
        %v5109 = vsub.f32 %v960, %v5108
        %v5110 = vand.u32 %v5109, 4294901760
        %5111 = vmatmul.mubr.f32.gmra.mxu0 %v5110
        %v5112 = vpop.f32.mrf.mxu0
        %v5113 = vadd.f32 %v5014, %v5112
        %v5114 = vpop.f32.mrf.mxu0
        %5115 = vmatprep.mubr.f32.mxu0 0.0
        %v5116 = vand.u32 %v963, 4294901760
        %v5117 = vsub.f32 %v963, %v5116
        %v5118 = vand.u32 %v5117, 4294901760
        %5119 = vmatmul.mubr.f32.gmra.mxu0 %v5118
        %v5120 = vpop.f32.mrf.mxu0
        %v5121 = vadd.f32 %v5021, %v5120
        %v5122 = vpop.f32.mrf.mxu0
        %5123 = vmatprep.mubr.f32.mxu0 0.0
        %v5124 = vand.u32 %v966, 4294901760
        %v5125 = vsub.f32 %v966, %v5124
        %v5126 = vand.u32 %v5125, 4294901760
        %5127 = vmatmul.mubr.f32.gmra.mxu0 %v5126
        %v5128 = vpop.f32.mrf.mxu0
        %v5129 = vadd.f32 %v5028, %v5128
        %v5130 = vpop.f32.mrf.mxu0
        %5131 = vdwg.mxu0
        %5132 = vmatprep.subr.mxu0 0.0
        %5133 = vmatpush1.msra.mxu0 0.0
        %5134 = vmatprep.subr.mxu0 0.0
        %5135 = vmatpush1.msra.mxu0 0.0
        %5136 = vmatprep.subr.mxu0 0.0
        %5137 = vmatpush1.msra.mxu0 0.0
        %5138 = vmatprep.subr.mxu0 0.0
        %5139 = vmatpush1.msra.mxu0 0.0
        %5140 = vmatprep.subr.mxu0 0.0
        %5141 = vmatpush1.msra.mxu0 0.0
        %5142 = vmatprep.subr.mxu0 0.0
        %5143 = vmatpush1.msra.mxu0 0.0
        %5144 = vmatprep.subr.mxu0 0.0
        %5145 = vmatpush1.msra.mxu0 0.0
        %5146 = vmatprep.subr.mxu0 0.0
        %5147 = vmatpush1.msra.mxu0 0.0
        %5148 = vmatprep.subr.mxu0 0.0
        %5149 = vmatpush1.msra.mxu0 0.0
        %5150 = vmatprep.subr.mxu0 0.0
        %5151 = vmatpush1.msra.mxu0 0.0
        %5152 = vmatprep.subr.mxu0 0.0
        %5153 = vmatpush1.msra.mxu0 0.0
        %5154 = vmatprep.subr.mxu0 0.0
        %5155 = vmatpush1.msra.mxu0 0.0
        %5156 = vmatprep.subr.mxu0 0.0
        %v5157 = vand.u32 %v4709, 4294901760
        %v5158 = vsub.f32 %v4709, %v5157
        %v5159 = vand.u32 %v5158, 4294901760
        %5160 = vmatpush1.msra.mxu0 %v5159
        %5161 = vmatprep.subr.mxu0 0.0
        %v5162 = vand.u32 %v4703, 4294901760
        %v5163 = vsub.f32 %v4703, %v5162
        %v5164 = vand.u32 %v5163, 4294901760
        %5165 = vmatpush1.msra.mxu0 %v5164
        %5166 = vmatprep.subr.mxu0 0.0
        %v5167 = vand.u32 %v4697, 4294901760
        %v5168 = vsub.f32 %v4697, %v5167
        %v5169 = vand.u32 %v5168, 4294901760
        %5170 = vmatpush1.msra.mxu0 %v5169
        %5171 = vmatprep.subr.mxu0 0.0
        %v5172 = vand.u32 %v4691, 4294901760
        %v5173 = vsub.f32 %v4691, %v5172
        %v5174 = vand.u32 %v5173, 4294901760
        %5175 = vmatpush1.msra.mxu0 %v5174
        %5176 = vmatprep.subr.mxu0 0.0
        %5177 = vmatpush2.msra.mxu0 0.0
        %5178 = vmatprep.subr.mxu0 0.0
        %5179 = vmatpush2.msra.mxu0 0.0
        %5180 = vmatprep.subr.mxu0 0.0
        %5181 = vmatpush2.msra.mxu0 0.0
        %5182 = vmatprep.subr.mxu0 0.0
        %5183 = vmatpush2.msra.mxu0 0.0
        %5184 = vmatprep.subr.mxu0 0.0
        %5185 = vmatpush2.msra.mxu0 0.0
        %5186 = vmatprep.subr.mxu0 0.0
        %5187 = vmatpush2.msra.mxu0 0.0
        %5188 = vmatprep.subr.mxu0 0.0
        %5189 = vmatpush2.msra.mxu0 0.0
        %5190 = vmatprep.subr.mxu0 0.0
        %5191 = vmatpush2.msra.mxu0 0.0
        %5192 = vmatprep.subr.mxu0 0.0
        %5193 = vmatpush2.msra.mxu0 0.0
        %5194 = vmatprep.subr.mxu0 0.0
        %5195 = vmatpush2.msra.mxu0 0.0
        %5196 = vmatprep.subr.mxu0 0.0
        %5197 = vmatpush2.msra.mxu0 0.0
        %5198 = vmatprep.subr.mxu0 0.0
        %5199 = vmatpush2.msra.mxu0 0.0
        %5200 = vmatprep.subr.mxu0 0.0
        %5201 = vmatpush2.msra.mxu0 0.0
        %5202 = vmatprep.subr.mxu0 0.0
        %5203 = vmatpush2.msra.mxu0 0.0
        %5204 = vmatprep.subr.mxu0 0.0
        %5205 = vmatpush2.msra.mxu0 0.0
        %5206 = vmatprep.subr.mxu0 0.0
        %5207 = vmatpush2.msra.mxu0 0.0
        %5208 = vmatprep.mubr.f32.mxu0 0.0
        %v5209 = vand.u32 %v957, 4294901760
        %5210 = vmatmul.mubr.f32.gmra.mxu0 %v5209
        %v5211 = vpop.f32.mrf.mxu0
        %v5212 = vadd.f32 %v5105, %v5211
        %v5213 = vpop.f32.mrf.mxu0
        %5214 = vmatprep.mubr.f32.mxu0 0.0
        %v5215 = vand.u32 %v960, 4294901760
        %5216 = vmatmul.mubr.f32.gmra.mxu0 %v5215
        %v5217 = vpop.f32.mrf.mxu0
        %v5218 = vadd.f32 %v5113, %v5217
        %v5219 = vpop.f32.mrf.mxu0
        %5220 = vmatprep.mubr.f32.mxu0 0.0
        %v5221 = vand.u32 %v963, 4294901760
        %5222 = vmatmul.mubr.f32.gmra.mxu0 %v5221
        %v5223 = vpop.f32.mrf.mxu0
        %v5224 = vadd.f32 %v5121, %v5223
        %v5225 = vpop.f32.mrf.mxu0
        %5226 = vmatprep.mubr.f32.mxu0 0.0
        %v5227 = vand.u32 %v966, 4294901760
        %5228 = vmatmul.mubr.f32.gmra.mxu0 %v5227
        %v5229 = vpop.f32.mrf.mxu0
        %v5230 = vadd.f32 %v5129, %v5229
        %v5231 = vpop.f32.mrf.mxu0
        %5232 = vdwg.mxu0
        %5233 = vmatprep.subr.mxu0 0.0
        %5234 = vmatpush1.msra.mxu0 0.0
        %5235 = vmatprep.subr.mxu0 0.0
        %5236 = vmatpush1.msra.mxu0 0.0
        %5237 = vmatprep.subr.mxu0 0.0
        %5238 = vmatpush1.msra.mxu0 0.0
        %5239 = vmatprep.subr.mxu0 0.0
        %5240 = vmatpush1.msra.mxu0 0.0
        %5241 = vmatprep.subr.mxu0 0.0
        %5242 = vmatpush1.msra.mxu0 0.0
        %5243 = vmatprep.subr.mxu0 0.0
        %5244 = vmatpush1.msra.mxu0 0.0
        %5245 = vmatprep.subr.mxu0 0.0
        %5246 = vmatpush1.msra.mxu0 0.0
        %5247 = vmatprep.subr.mxu0 0.0
        %5248 = vmatpush1.msra.mxu0 0.0
        %5249 = vmatprep.subr.mxu0 0.0
        %5250 = vmatpush1.msra.mxu0 0.0
        %5251 = vmatprep.subr.mxu0 0.0
        %5252 = vmatpush1.msra.mxu0 0.0
        %5253 = vmatprep.subr.mxu0 0.0
        %5254 = vmatpush1.msra.mxu0 0.0
        %5255 = vmatprep.subr.mxu0 0.0
        %5256 = vmatpush1.msra.mxu0 0.0
        %5257 = vmatprep.subr.mxu0 0.0
        %v5258 = vand.u32 %v4709, 4294901760
        %5259 = vmatpush1.msra.mxu0 %v5258
        %5260 = vmatprep.subr.mxu0 0.0
        %v5261 = vand.u32 %v4703, 4294901760
        %5262 = vmatpush1.msra.mxu0 %v5261
        %5263 = vmatprep.subr.mxu0 0.0
        %v5264 = vand.u32 %v4697, 4294901760
        %5265 = vmatpush1.msra.mxu0 %v5264
        %5266 = vmatprep.subr.mxu0 0.0
        %v5267 = vand.u32 %v4691, 4294901760
        %5268 = vmatpush1.msra.mxu0 %v5267
        %5269 = vmatprep.subr.mxu0 0.0
        %5270 = vmatpush2.msra.mxu0 0.0
        %5271 = vmatprep.subr.mxu0 0.0
        %5272 = vmatpush2.msra.mxu0 0.0
        %5273 = vmatprep.subr.mxu0 0.0
        %5274 = vmatpush2.msra.mxu0 0.0
        %5275 = vmatprep.subr.mxu0 0.0
        %5276 = vmatpush2.msra.mxu0 0.0
        %5277 = vmatprep.subr.mxu0 0.0
        %5278 = vmatpush2.msra.mxu0 0.0
        %5279 = vmatprep.subr.mxu0 0.0
        %5280 = vmatpush2.msra.mxu0 0.0
        %5281 = vmatprep.subr.mxu0 0.0
        %5282 = vmatpush2.msra.mxu0 0.0
        %5283 = vmatprep.subr.mxu0 0.0
        %5284 = vmatpush2.msra.mxu0 0.0
        %5285 = vmatprep.subr.mxu0 0.0
        %5286 = vmatpush2.msra.mxu0 0.0
        %5287 = vmatprep.subr.mxu0 0.0
        %5288 = vmatpush2.msra.mxu0 0.0
        %5289 = vmatprep.subr.mxu0 0.0
        %5290 = vmatpush2.msra.mxu0 0.0
        %5291 = vmatprep.subr.mxu0 0.0
        %5292 = vmatpush2.msra.mxu0 0.0
        %5293 = vmatprep.subr.mxu0 0.0
        %5294 = vmatpush2.msra.mxu0 0.0
        %5295 = vmatprep.subr.mxu0 0.0
        %5296 = vmatpush2.msra.mxu0 0.0
        %5297 = vmatprep.subr.mxu0 0.0
        %5298 = vmatpush2.msra.mxu0 0.0
        %5299 = vmatprep.subr.mxu0 0.0
        %5300 = vmatpush2.msra.mxu0 0.0
        %5301 = vmatprep.mubr.f32.mxu0 0.0
        %v5302 = vand.u32 %v957, 4294901760
        %5303 = vmatmul.mubr.f32.gmra.mxu0 %v5302
        %v5304 = vpop.f32.mrf.mxu0
        %v5305 = vadd.f32 %v5212, %v5304
        %v5306 = vpop.f32.mrf.mxu0
        %5307 = vmatprep.mubr.f32.mxu0 0.0
        %v5308 = vand.u32 %v960, 4294901760
        %5309 = vmatmul.mubr.f32.gmra.mxu0 %v5308
        %v5310 = vpop.f32.mrf.mxu0
        %v5311 = vadd.f32 %v5218, %v5310
        %v5312 = vpop.f32.mrf.mxu0
        %5313 = vmatprep.mubr.f32.mxu0 0.0
        %v5314 = vand.u32 %v963, 4294901760
        %5315 = vmatmul.mubr.f32.gmra.mxu0 %v5314
        %v5316 = vpop.f32.mrf.mxu0
        %v5317 = vadd.f32 %v5224, %v5316
        %v5318 = vpop.f32.mrf.mxu0
        %5319 = vmatprep.mubr.f32.mxu0 0.0
        %v5320 = vand.u32 %v966, 4294901760
        %5321 = vmatmul.mubr.f32.gmra.mxu0 %v5320
        %v5322 = vpop.f32.mrf.mxu0
        %v5323 = vadd.f32 %v5230, %v5322
        %v5324 = vpop.f32.mrf.mxu0
        %5325 = vdwg.mxu0
        %v5326 = vsub.f32 %v5305, %v2826
        %v5327 = vsub.f32 %v5311, %v2827
        %v5328 = vsub.f32 %v5317, %v2828
        %v5329 = vsub.f32 %v5323, %v2829
        %v5330 = vmul.f32 %v313, %v317
        %v5331 = vmul.f32 %v314, %v318
        %v5332 = vmul.f32 %v315, %v319
        %v5333 = vmul.f32 %v316, %v320
        %v5335 = vsel %vm329, %v5330, 0
        %v5338 = vsel %vm329, %v5331, 0
        %v5341 = vsel %vm329, %v5332, 0
        %v5344 = vsel %vm329, %v5333, 0
        %5346 = vmatprep.subr.mxu0 0.0
        %5347 = vmatpush1.msra.mxu0 0.0
        %5348 = vmatprep.subr.mxu0 0.0
        %5349 = vmatpush1.msra.mxu0 0.0
        %5350 = vmatprep.subr.mxu0 0.0
        %5351 = vmatpush1.msra.mxu0 0.0
        %5352 = vmatprep.subr.mxu0 0.0
        %5353 = vmatpush1.msra.mxu0 0.0
        %5354 = vmatprep.subr.mxu0 0.0
        %5355 = vmatpush1.msra.mxu0 0.0
        %5356 = vmatprep.subr.mxu0 0.0
        %5357 = vmatpush1.msra.mxu0 0.0
        %5358 = vmatprep.subr.mxu0 0.0
        %5359 = vmatpush1.msra.mxu0 0.0
        %5360 = vmatprep.subr.mxu0 0.0
        %5361 = vmatpush1.msra.mxu0 0.0
        %5362 = vmatprep.subr.mxu0 0.0
        %5363 = vmatpush1.msra.mxu0 0.0
        %5364 = vmatprep.subr.mxu0 0.0
        %5365 = vmatpush1.msra.mxu0 0.0
        %5366 = vmatprep.subr.mxu0 0.0
        %5367 = vmatpush1.msra.mxu0 0.0
        %5368 = vmatprep.subr.mxu0 0.0
        %5369 = vmatpush1.msra.mxu0 0.0
        %5370 = vmatprep.subr.mxu0 0.0
        %v5371 = vand.u32 %v328, 4294901760
        %5372 = vmatpush1.msra.mxu0 %v5371
        %5373 = vmatprep.subr.mxu0 0.0
        %v5374 = vand.u32 %v327, 4294901760
        %5375 = vmatpush1.msra.mxu0 %v5374
        %5376 = vmatprep.subr.mxu0 0.0
        %v5377 = vand.u32 %v326, 4294901760
        %5378 = vmatpush1.msra.mxu0 %v5377
        %5379 = vmatprep.subr.mxu0 0.0
        %v5380 = vand.u32 %v325, 4294901760
        %5381 = vmatpush1.msra.mxu0 %v5380
        %5382 = vmatprep.subr.mxu0 0.0
        %5383 = vmatpush2.msra.mxu0 0.0
        %5384 = vmatprep.subr.mxu0 0.0
        %5385 = vmatpush2.msra.mxu0 0.0
        %5386 = vmatprep.subr.mxu0 0.0
        %5387 = vmatpush2.msra.mxu0 0.0
        %5388 = vmatprep.subr.mxu0 0.0
        %5389 = vmatpush2.msra.mxu0 0.0
        %5390 = vmatprep.subr.mxu0 0.0
        %5391 = vmatpush2.msra.mxu0 0.0
        %5392 = vmatprep.subr.mxu0 0.0
        %5393 = vmatpush2.msra.mxu0 0.0
        %5394 = vmatprep.subr.mxu0 0.0
        %5395 = vmatpush2.msra.mxu0 0.0
        %5396 = vmatprep.subr.mxu0 0.0
        %5397 = vmatpush2.msra.mxu0 0.0
        %5398 = vmatprep.subr.mxu0 0.0
        %5399 = vmatpush2.msra.mxu0 0.0
        %5400 = vmatprep.subr.mxu0 0.0
        %5401 = vmatpush2.msra.mxu0 0.0
        %5402 = vmatprep.subr.mxu0 0.0
        %5403 = vmatpush2.msra.mxu0 0.0
        %5404 = vmatprep.subr.mxu0 0.0
        %5405 = vmatpush2.msra.mxu0 0.0
        %5406 = vmatprep.subr.mxu0 0.0
        %5407 = vmatpush2.msra.mxu0 0.0
        %5408 = vmatprep.subr.mxu0 0.0
        %5409 = vmatpush2.msra.mxu0 0.0
        %5410 = vmatprep.subr.mxu0 0.0
        %5411 = vmatpush2.msra.mxu0 0.0
        %5412 = vmatprep.subr.mxu0 0.0
        %5413 = vmatpush2.msra.mxu0 0.0
        %5414 = vmatprep.mubr.f32.mxu0 0.0
        %v5415 = vand.u32 %v5335, 4294901760
        %v5416 = vsub.f32 %v5335, %v5415
        %v5417 = vand.u32 %v5416, 4294901760
        %v5418 = vsub.f32 %v5416, %v5417
        %v5419 = vand.u32 %v5418, 4294901760
        %5420 = vmatmul.mubr.f32.gmra.mxu0 %v5419
        %v5421 = vpop.f32.mrf.mxu0
        %v5422 = vadd.f32 0.0, %v5421
        %v5423 = vpop.f32.mrf.mxu0
        %5424 = vmatprep.mubr.f32.mxu0 0.0
        %v5425 = vand.u32 %v5338, 4294901760
        %v5426 = vsub.f32 %v5338, %v5425
        %v5427 = vand.u32 %v5426, 4294901760
        %v5428 = vsub.f32 %v5426, %v5427
        %v5429 = vand.u32 %v5428, 4294901760
        %5430 = vmatmul.mubr.f32.gmra.mxu0 %v5429
        %v5431 = vpop.f32.mrf.mxu0
        %v5432 = vadd.f32 0.0, %v5431
        %v5433 = vpop.f32.mrf.mxu0
        %5434 = vmatprep.mubr.f32.mxu0 0.0
        %v5435 = vand.u32 %v5341, 4294901760
        %v5436 = vsub.f32 %v5341, %v5435
        %v5437 = vand.u32 %v5436, 4294901760
        %v5438 = vsub.f32 %v5436, %v5437
        %v5439 = vand.u32 %v5438, 4294901760
        %5440 = vmatmul.mubr.f32.gmra.mxu0 %v5439
        %v5441 = vpop.f32.mrf.mxu0
        %v5442 = vadd.f32 0.0, %v5441
        %v5443 = vpop.f32.mrf.mxu0
        %5444 = vmatprep.mubr.f32.mxu0 0.0
        %v5445 = vand.u32 %v5344, 4294901760
        %v5446 = vsub.f32 %v5344, %v5445
        %v5447 = vand.u32 %v5446, 4294901760
        %v5448 = vsub.f32 %v5446, %v5447
        %v5449 = vand.u32 %v5448, 4294901760
        %5450 = vmatmul.mubr.f32.gmra.mxu0 %v5449
        %v5451 = vpop.f32.mrf.mxu0
        %v5452 = vadd.f32 0.0, %v5451
        %v5453 = vpop.f32.mrf.mxu0
        %5454 = vdwg.mxu0
        %5455 = vmatprep.subr.mxu0 0.0
        %5456 = vmatpush1.msra.mxu0 0.0
        %5457 = vmatprep.subr.mxu0 0.0
        %5458 = vmatpush1.msra.mxu0 0.0
        %5459 = vmatprep.subr.mxu0 0.0
        %5460 = vmatpush1.msra.mxu0 0.0
        %5461 = vmatprep.subr.mxu0 0.0
        %5462 = vmatpush1.msra.mxu0 0.0
        %5463 = vmatprep.subr.mxu0 0.0
        %5464 = vmatpush1.msra.mxu0 0.0
        %5465 = vmatprep.subr.mxu0 0.0
        %5466 = vmatpush1.msra.mxu0 0.0
        %5467 = vmatprep.subr.mxu0 0.0
        %5468 = vmatpush1.msra.mxu0 0.0
        %5469 = vmatprep.subr.mxu0 0.0
        %5470 = vmatpush1.msra.mxu0 0.0
        %5471 = vmatprep.subr.mxu0 0.0
        %5472 = vmatpush1.msra.mxu0 0.0
        %5473 = vmatprep.subr.mxu0 0.0
        %5474 = vmatpush1.msra.mxu0 0.0
        %5475 = vmatprep.subr.mxu0 0.0
        %5476 = vmatpush1.msra.mxu0 0.0
        %5477 = vmatprep.subr.mxu0 0.0
        %5478 = vmatpush1.msra.mxu0 0.0
        %5479 = vmatprep.subr.mxu0 0.0
        %v5480 = vand.u32 %v328, 4294901760
        %v5481 = vsub.f32 %v328, %v5480
        %v5482 = vand.u32 %v5481, 4294901760
        %v5483 = vsub.f32 %v5481, %v5482
        %v5484 = vand.u32 %v5483, 4294901760
        %5485 = vmatpush1.msra.mxu0 %v5484
        %5486 = vmatprep.subr.mxu0 0.0
        %v5487 = vand.u32 %v327, 4294901760
        %v5488 = vsub.f32 %v327, %v5487
        %v5489 = vand.u32 %v5488, 4294901760
        %v5490 = vsub.f32 %v5488, %v5489
        %v5491 = vand.u32 %v5490, 4294901760
        %5492 = vmatpush1.msra.mxu0 %v5491
        %5493 = vmatprep.subr.mxu0 0.0
        %v5494 = vand.u32 %v326, 4294901760
        %v5495 = vsub.f32 %v326, %v5494
        %v5496 = vand.u32 %v5495, 4294901760
        %v5497 = vsub.f32 %v5495, %v5496
        %v5498 = vand.u32 %v5497, 4294901760
        %5499 = vmatpush1.msra.mxu0 %v5498
        %5500 = vmatprep.subr.mxu0 0.0
        %v5501 = vand.u32 %v325, 4294901760
        %v5502 = vsub.f32 %v325, %v5501
        %v5503 = vand.u32 %v5502, 4294901760
        %v5504 = vsub.f32 %v5502, %v5503
        %v5505 = vand.u32 %v5504, 4294901760
        %5506 = vmatpush1.msra.mxu0 %v5505
        %5507 = vmatprep.subr.mxu0 0.0
        %5508 = vmatpush2.msra.mxu0 0.0
        %5509 = vmatprep.subr.mxu0 0.0
        %5510 = vmatpush2.msra.mxu0 0.0
        %5511 = vmatprep.subr.mxu0 0.0
        %5512 = vmatpush2.msra.mxu0 0.0
        %5513 = vmatprep.subr.mxu0 0.0
        %5514 = vmatpush2.msra.mxu0 0.0
        %5515 = vmatprep.subr.mxu0 0.0
        %5516 = vmatpush2.msra.mxu0 0.0
        %5517 = vmatprep.subr.mxu0 0.0
        %5518 = vmatpush2.msra.mxu0 0.0
        %5519 = vmatprep.subr.mxu0 0.0
        %5520 = vmatpush2.msra.mxu0 0.0
        %5521 = vmatprep.subr.mxu0 0.0
        %5522 = vmatpush2.msra.mxu0 0.0
        %5523 = vmatprep.subr.mxu0 0.0
        %5524 = vmatpush2.msra.mxu0 0.0
        %5525 = vmatprep.subr.mxu0 0.0
        %5526 = vmatpush2.msra.mxu0 0.0
        %5527 = vmatprep.subr.mxu0 0.0
        %5528 = vmatpush2.msra.mxu0 0.0
        %5529 = vmatprep.subr.mxu0 0.0
        %5530 = vmatpush2.msra.mxu0 0.0
        %5531 = vmatprep.subr.mxu0 0.0
        %5532 = vmatpush2.msra.mxu0 0.0
        %5533 = vmatprep.subr.mxu0 0.0
        %5534 = vmatpush2.msra.mxu0 0.0
        %5535 = vmatprep.subr.mxu0 0.0
        %5536 = vmatpush2.msra.mxu0 0.0
        %5537 = vmatprep.subr.mxu0 0.0
        %5538 = vmatpush2.msra.mxu0 0.0
        %5539 = vmatprep.mubr.f32.mxu0 0.0
        %v5540 = vand.u32 %v5335, 4294901760
        %5541 = vmatmul.mubr.f32.gmra.mxu0 %v5540
        %v5542 = vpop.f32.mrf.mxu0
        %v5543 = vadd.f32 %v5422, %v5542
        %v5544 = vpop.f32.mrf.mxu0
        %5545 = vmatprep.mubr.f32.mxu0 0.0
        %v5546 = vand.u32 %v5338, 4294901760
        %5547 = vmatmul.mubr.f32.gmra.mxu0 %v5546
        %v5548 = vpop.f32.mrf.mxu0
        %v5549 = vadd.f32 %v5432, %v5548
        %v5550 = vpop.f32.mrf.mxu0
        %5551 = vmatprep.mubr.f32.mxu0 0.0
        %v5552 = vand.u32 %v5341, 4294901760
        %5553 = vmatmul.mubr.f32.gmra.mxu0 %v5552
        %v5554 = vpop.f32.mrf.mxu0
        %v5555 = vadd.f32 %v5442, %v5554
        %v5556 = vpop.f32.mrf.mxu0
        %5557 = vmatprep.mubr.f32.mxu0 0.0
        %v5558 = vand.u32 %v5344, 4294901760
        %5559 = vmatmul.mubr.f32.gmra.mxu0 %v5558
        %v5560 = vpop.f32.mrf.mxu0
        %v5561 = vadd.f32 %v5452, %v5560
        %v5562 = vpop.f32.mrf.mxu0
        %5563 = vdwg.mxu0
        %5564 = vmatprep.subr.mxu0 0.0
        %5565 = vmatpush1.msra.mxu0 0.0
        %5566 = vmatprep.subr.mxu0 0.0
        %5567 = vmatpush1.msra.mxu0 0.0
        %5568 = vmatprep.subr.mxu0 0.0
        %5569 = vmatpush1.msra.mxu0 0.0
        %5570 = vmatprep.subr.mxu0 0.0
        %5571 = vmatpush1.msra.mxu0 0.0
        %5572 = vmatprep.subr.mxu0 0.0
        %5573 = vmatpush1.msra.mxu0 0.0
        %5574 = vmatprep.subr.mxu0 0.0
        %5575 = vmatpush1.msra.mxu0 0.0
        %5576 = vmatprep.subr.mxu0 0.0
        %5577 = vmatpush1.msra.mxu0 0.0
        %5578 = vmatprep.subr.mxu0 0.0
        %5579 = vmatpush1.msra.mxu0 0.0
        %5580 = vmatprep.subr.mxu0 0.0
        %5581 = vmatpush1.msra.mxu0 0.0
        %5582 = vmatprep.subr.mxu0 0.0
        %5583 = vmatpush1.msra.mxu0 0.0
        %5584 = vmatprep.subr.mxu0 0.0
        %5585 = vmatpush1.msra.mxu0 0.0
        %5586 = vmatprep.subr.mxu0 0.0
        %5587 = vmatpush1.msra.mxu0 0.0
        %5588 = vmatprep.subr.mxu0 0.0
        %v5589 = vand.u32 %v328, 4294901760
        %v5590 = vsub.f32 %v328, %v5589
        %5591 = vmatpush1.msra.mxu0 %v5590
        %5592 = vmatprep.subr.mxu0 0.0
        %v5593 = vand.u32 %v327, 4294901760
        %v5594 = vsub.f32 %v327, %v5593
        %5595 = vmatpush1.msra.mxu0 %v5594
        %5596 = vmatprep.subr.mxu0 0.0
        %v5597 = vand.u32 %v326, 4294901760
        %v5598 = vsub.f32 %v326, %v5597
        %5599 = vmatpush1.msra.mxu0 %v5598
        %5600 = vmatprep.subr.mxu0 0.0
        %v5601 = vand.u32 %v325, 4294901760
        %v5602 = vsub.f32 %v325, %v5601
        %5603 = vmatpush1.msra.mxu0 %v5602
        %5604 = vmatprep.subr.mxu0 0.0
        %5605 = vmatpush2.msra.mxu0 0.0
        %5606 = vmatprep.subr.mxu0 0.0
        %5607 = vmatpush2.msra.mxu0 0.0
        %5608 = vmatprep.subr.mxu0 0.0
        %5609 = vmatpush2.msra.mxu0 0.0
        %5610 = vmatprep.subr.mxu0 0.0
        %5611 = vmatpush2.msra.mxu0 0.0
        %5612 = vmatprep.subr.mxu0 0.0
        %5613 = vmatpush2.msra.mxu0 0.0
        %5614 = vmatprep.subr.mxu0 0.0
        %5615 = vmatpush2.msra.mxu0 0.0
        %5616 = vmatprep.subr.mxu0 0.0
        %5617 = vmatpush2.msra.mxu0 0.0
        %5618 = vmatprep.subr.mxu0 0.0
        %5619 = vmatpush2.msra.mxu0 0.0
        %5620 = vmatprep.subr.mxu0 0.0
        %5621 = vmatpush2.msra.mxu0 0.0
        %5622 = vmatprep.subr.mxu0 0.0
        %5623 = vmatpush2.msra.mxu0 0.0
        %5624 = vmatprep.subr.mxu0 0.0
        %5625 = vmatpush2.msra.mxu0 0.0
        %5626 = vmatprep.subr.mxu0 0.0
        %5627 = vmatpush2.msra.mxu0 0.0
        %5628 = vmatprep.subr.mxu0 0.0
        %5629 = vmatpush2.msra.mxu0 0.0
        %5630 = vmatprep.subr.mxu0 0.0
        %5631 = vmatpush2.msra.mxu0 0.0
        %5632 = vmatprep.subr.mxu0 0.0
        %5633 = vmatpush2.msra.mxu0 0.0
        %5634 = vmatprep.subr.mxu0 0.0
        %5635 = vmatpush2.msra.mxu0 0.0
        %5636 = vmatprep.mubr.f32.mxu0 0.0
        %v5637 = vand.u32 %v5335, 4294901760
        %v5638 = vsub.f32 %v5335, %v5637
        %5639 = vmatmul.mubr.f32.gmra.mxu0 %v5638
        %v5640 = vpop.f32.mrf.mxu0
        %v5641 = vadd.f32 %v5543, %v5640
        %v5642 = vpop.f32.mrf.mxu0
        %5643 = vmatprep.mubr.f32.mxu0 0.0
        %v5644 = vand.u32 %v5338, 4294901760
        %v5645 = vsub.f32 %v5338, %v5644
        %5646 = vmatmul.mubr.f32.gmra.mxu0 %v5645
        %v5647 = vpop.f32.mrf.mxu0
        %v5648 = vadd.f32 %v5549, %v5647
        %v5649 = vpop.f32.mrf.mxu0
        %5650 = vmatprep.mubr.f32.mxu0 0.0
        %v5651 = vand.u32 %v5341, 4294901760
        %v5652 = vsub.f32 %v5341, %v5651
        %5653 = vmatmul.mubr.f32.gmra.mxu0 %v5652
        %v5654 = vpop.f32.mrf.mxu0
        %v5655 = vadd.f32 %v5555, %v5654
        %v5656 = vpop.f32.mrf.mxu0
        %5657 = vmatprep.mubr.f32.mxu0 0.0
        %v5658 = vand.u32 %v5344, 4294901760
        %v5659 = vsub.f32 %v5344, %v5658
        %5660 = vmatmul.mubr.f32.gmra.mxu0 %v5659
        %v5661 = vpop.f32.mrf.mxu0
        %v5662 = vadd.f32 %v5561, %v5661
        %v5663 = vpop.f32.mrf.mxu0
        %5664 = vdwg.mxu0
        %5665 = vmatprep.subr.mxu0 0.0
        %5666 = vmatpush1.msra.mxu0 0.0
        %5667 = vmatprep.subr.mxu0 0.0
        %5668 = vmatpush1.msra.mxu0 0.0
        %5669 = vmatprep.subr.mxu0 0.0
        %5670 = vmatpush1.msra.mxu0 0.0
        %5671 = vmatprep.subr.mxu0 0.0
        %5672 = vmatpush1.msra.mxu0 0.0
        %5673 = vmatprep.subr.mxu0 0.0
        %5674 = vmatpush1.msra.mxu0 0.0
        %5675 = vmatprep.subr.mxu0 0.0
        %5676 = vmatpush1.msra.mxu0 0.0
        %5677 = vmatprep.subr.mxu0 0.0
        %5678 = vmatpush1.msra.mxu0 0.0
        %5679 = vmatprep.subr.mxu0 0.0
        %5680 = vmatpush1.msra.mxu0 0.0
        %5681 = vmatprep.subr.mxu0 0.0
        %5682 = vmatpush1.msra.mxu0 0.0
        %5683 = vmatprep.subr.mxu0 0.0
        %5684 = vmatpush1.msra.mxu0 0.0
        %5685 = vmatprep.subr.mxu0 0.0
        %5686 = vmatpush1.msra.mxu0 0.0
        %5687 = vmatprep.subr.mxu0 0.0
        %5688 = vmatpush1.msra.mxu0 0.0
        %5689 = vmatprep.subr.mxu0 0.0
        %v5690 = vand.u32 %v328, 4294901760
        %5691 = vmatpush1.msra.mxu0 %v5690
        %5692 = vmatprep.subr.mxu0 0.0
        %v5693 = vand.u32 %v327, 4294901760
        %5694 = vmatpush1.msra.mxu0 %v5693
        %5695 = vmatprep.subr.mxu0 0.0
        %v5696 = vand.u32 %v326, 4294901760
        %5697 = vmatpush1.msra.mxu0 %v5696
        %5698 = vmatprep.subr.mxu0 0.0
        %v5699 = vand.u32 %v325, 4294901760
        %5700 = vmatpush1.msra.mxu0 %v5699
        %5701 = vmatprep.subr.mxu0 0.0
        %5702 = vmatpush2.msra.mxu0 0.0
        %5703 = vmatprep.subr.mxu0 0.0
        %5704 = vmatpush2.msra.mxu0 0.0
        %5705 = vmatprep.subr.mxu0 0.0
        %5706 = vmatpush2.msra.mxu0 0.0
        %5707 = vmatprep.subr.mxu0 0.0
        %5708 = vmatpush2.msra.mxu0 0.0
        %5709 = vmatprep.subr.mxu0 0.0
        %5710 = vmatpush2.msra.mxu0 0.0
        %5711 = vmatprep.subr.mxu0 0.0
        %5712 = vmatpush2.msra.mxu0 0.0
        %5713 = vmatprep.subr.mxu0 0.0
        %5714 = vmatpush2.msra.mxu0 0.0
        %5715 = vmatprep.subr.mxu0 0.0
        %5716 = vmatpush2.msra.mxu0 0.0
        %5717 = vmatprep.subr.mxu0 0.0
        %5718 = vmatpush2.msra.mxu0 0.0
        %5719 = vmatprep.subr.mxu0 0.0
        %5720 = vmatpush2.msra.mxu0 0.0
        %5721 = vmatprep.subr.mxu0 0.0
        %5722 = vmatpush2.msra.mxu0 0.0
        %5723 = vmatprep.subr.mxu0 0.0
        %5724 = vmatpush2.msra.mxu0 0.0
        %5725 = vmatprep.subr.mxu0 0.0
        %5726 = vmatpush2.msra.mxu0 0.0
        %5727 = vmatprep.subr.mxu0 0.0
        %5728 = vmatpush2.msra.mxu0 0.0
        %5729 = vmatprep.subr.mxu0 0.0
        %5730 = vmatpush2.msra.mxu0 0.0
        %5731 = vmatprep.subr.mxu0 0.0
        %5732 = vmatpush2.msra.mxu0 0.0
        %5733 = vmatprep.mubr.f32.mxu0 0.0
        %v5734 = vand.u32 %v5335, 4294901760
        %v5735 = vsub.f32 %v5335, %v5734
        %v5736 = vand.u32 %v5735, 4294901760
        %5737 = vmatmul.mubr.f32.gmra.mxu0 %v5736
        %v5738 = vpop.f32.mrf.mxu0
        %v5739 = vadd.f32 %v5641, %v5738
        %v5740 = vpop.f32.mrf.mxu0
        %5741 = vmatprep.mubr.f32.mxu0 0.0
        %v5742 = vand.u32 %v5338, 4294901760
        %v5743 = vsub.f32 %v5338, %v5742
        %v5744 = vand.u32 %v5743, 4294901760
        %5745 = vmatmul.mubr.f32.gmra.mxu0 %v5744
        %v5746 = vpop.f32.mrf.mxu0
        %v5747 = vadd.f32 %v5648, %v5746
        %v5748 = vpop.f32.mrf.mxu0
        %5749 = vmatprep.mubr.f32.mxu0 0.0
        %v5750 = vand.u32 %v5341, 4294901760
        %v5751 = vsub.f32 %v5341, %v5750
        %v5752 = vand.u32 %v5751, 4294901760
        %5753 = vmatmul.mubr.f32.gmra.mxu0 %v5752
        %v5754 = vpop.f32.mrf.mxu0
        %v5755 = vadd.f32 %v5655, %v5754
        %v5756 = vpop.f32.mrf.mxu0
        %5757 = vmatprep.mubr.f32.mxu0 0.0
        %v5758 = vand.u32 %v5344, 4294901760
        %v5759 = vsub.f32 %v5344, %v5758
        %v5760 = vand.u32 %v5759, 4294901760
        %5761 = vmatmul.mubr.f32.gmra.mxu0 %v5760
        %v5762 = vpop.f32.mrf.mxu0
        %v5763 = vadd.f32 %v5662, %v5762
        %v5764 = vpop.f32.mrf.mxu0
        %5765 = vdwg.mxu0
        %5766 = vmatprep.subr.mxu0 0.0
        %5767 = vmatpush1.msra.mxu0 0.0
        %5768 = vmatprep.subr.mxu0 0.0
        %5769 = vmatpush1.msra.mxu0 0.0
        %5770 = vmatprep.subr.mxu0 0.0
        %5771 = vmatpush1.msra.mxu0 0.0
        %5772 = vmatprep.subr.mxu0 0.0
        %5773 = vmatpush1.msra.mxu0 0.0
        %5774 = vmatprep.subr.mxu0 0.0
        %5775 = vmatpush1.msra.mxu0 0.0
        %5776 = vmatprep.subr.mxu0 0.0
        %5777 = vmatpush1.msra.mxu0 0.0
        %5778 = vmatprep.subr.mxu0 0.0
        %5779 = vmatpush1.msra.mxu0 0.0
        %5780 = vmatprep.subr.mxu0 0.0
        %5781 = vmatpush1.msra.mxu0 0.0
        %5782 = vmatprep.subr.mxu0 0.0
        %5783 = vmatpush1.msra.mxu0 0.0
        %5784 = vmatprep.subr.mxu0 0.0
        %5785 = vmatpush1.msra.mxu0 0.0
        %5786 = vmatprep.subr.mxu0 0.0
        %5787 = vmatpush1.msra.mxu0 0.0
        %5788 = vmatprep.subr.mxu0 0.0
        %5789 = vmatpush1.msra.mxu0 0.0
        %5790 = vmatprep.subr.mxu0 0.0
        %v5791 = vand.u32 %v328, 4294901760
        %v5792 = vsub.f32 %v328, %v5791
        %v5793 = vand.u32 %v5792, 4294901760
        %5794 = vmatpush1.msra.mxu0 %v5793
        %5795 = vmatprep.subr.mxu0 0.0
        %v5796 = vand.u32 %v327, 4294901760
        %v5797 = vsub.f32 %v327, %v5796
        %v5798 = vand.u32 %v5797, 4294901760
        %5799 = vmatpush1.msra.mxu0 %v5798
        %5800 = vmatprep.subr.mxu0 0.0
        %v5801 = vand.u32 %v326, 4294901760
        %v5802 = vsub.f32 %v326, %v5801
        %v5803 = vand.u32 %v5802, 4294901760
        %5804 = vmatpush1.msra.mxu0 %v5803
        %5805 = vmatprep.subr.mxu0 0.0
        %v5806 = vand.u32 %v325, 4294901760
        %v5807 = vsub.f32 %v325, %v5806
        %v5808 = vand.u32 %v5807, 4294901760
        %5809 = vmatpush1.msra.mxu0 %v5808
        %5810 = vmatprep.subr.mxu0 0.0
        %5811 = vmatpush2.msra.mxu0 0.0
        %5812 = vmatprep.subr.mxu0 0.0
        %5813 = vmatpush2.msra.mxu0 0.0
        %5814 = vmatprep.subr.mxu0 0.0
        %5815 = vmatpush2.msra.mxu0 0.0
        %5816 = vmatprep.subr.mxu0 0.0
        %5817 = vmatpush2.msra.mxu0 0.0
        %5818 = vmatprep.subr.mxu0 0.0
        %5819 = vmatpush2.msra.mxu0 0.0
        %5820 = vmatprep.subr.mxu0 0.0
        %5821 = vmatpush2.msra.mxu0 0.0
        %5822 = vmatprep.subr.mxu0 0.0
        %5823 = vmatpush2.msra.mxu0 0.0
        %5824 = vmatprep.subr.mxu0 0.0
        %5825 = vmatpush2.msra.mxu0 0.0
        %5826 = vmatprep.subr.mxu0 0.0
        %5827 = vmatpush2.msra.mxu0 0.0
        %5828 = vmatprep.subr.mxu0 0.0
        %5829 = vmatpush2.msra.mxu0 0.0
        %5830 = vmatprep.subr.mxu0 0.0
        %5831 = vmatpush2.msra.mxu0 0.0
        %5832 = vmatprep.subr.mxu0 0.0
        %5833 = vmatpush2.msra.mxu0 0.0
        %5834 = vmatprep.subr.mxu0 0.0
        %5835 = vmatpush2.msra.mxu0 0.0
        %5836 = vmatprep.subr.mxu0 0.0
        %5837 = vmatpush2.msra.mxu0 0.0
        %5838 = vmatprep.subr.mxu0 0.0
        %5839 = vmatpush2.msra.mxu0 0.0
        %5840 = vmatprep.subr.mxu0 0.0
        %5841 = vmatpush2.msra.mxu0 0.0
        %5842 = vmatprep.mubr.f32.mxu0 0.0
        %v5843 = vand.u32 %v5335, 4294901760
        %5844 = vmatmul.mubr.f32.gmra.mxu0 %v5843
        %v5845 = vpop.f32.mrf.mxu0
        %v5846 = vadd.f32 %v5739, %v5845
        %v5847 = vpop.f32.mrf.mxu0
        %5848 = vmatprep.mubr.f32.mxu0 0.0
        %v5849 = vand.u32 %v5338, 4294901760
        %5850 = vmatmul.mubr.f32.gmra.mxu0 %v5849
        %v5851 = vpop.f32.mrf.mxu0
        %v5852 = vadd.f32 %v5747, %v5851
        %v5853 = vpop.f32.mrf.mxu0
        %5854 = vmatprep.mubr.f32.mxu0 0.0
        %v5855 = vand.u32 %v5341, 4294901760
        %5856 = vmatmul.mubr.f32.gmra.mxu0 %v5855
        %v5857 = vpop.f32.mrf.mxu0
        %v5858 = vadd.f32 %v5755, %v5857
        %v5859 = vpop.f32.mrf.mxu0
        %5860 = vmatprep.mubr.f32.mxu0 0.0
        %v5861 = vand.u32 %v5344, 4294901760
        %5862 = vmatmul.mubr.f32.gmra.mxu0 %v5861
        %v5863 = vpop.f32.mrf.mxu0
        %v5864 = vadd.f32 %v5763, %v5863
        %v5865 = vpop.f32.mrf.mxu0
        %5866 = vdwg.mxu0
        %5867 = vmatprep.subr.mxu0 0.0
        %5868 = vmatpush1.msra.mxu0 0.0
        %5869 = vmatprep.subr.mxu0 0.0
        %5870 = vmatpush1.msra.mxu0 0.0
        %5871 = vmatprep.subr.mxu0 0.0
        %5872 = vmatpush1.msra.mxu0 0.0
        %5873 = vmatprep.subr.mxu0 0.0
        %5874 = vmatpush1.msra.mxu0 0.0
        %5875 = vmatprep.subr.mxu0 0.0
        %5876 = vmatpush1.msra.mxu0 0.0
        %5877 = vmatprep.subr.mxu0 0.0
        %5878 = vmatpush1.msra.mxu0 0.0
        %5879 = vmatprep.subr.mxu0 0.0
        %5880 = vmatpush1.msra.mxu0 0.0
        %5881 = vmatprep.subr.mxu0 0.0
        %5882 = vmatpush1.msra.mxu0 0.0
        %5883 = vmatprep.subr.mxu0 0.0
        %5884 = vmatpush1.msra.mxu0 0.0
        %5885 = vmatprep.subr.mxu0 0.0
        %5886 = vmatpush1.msra.mxu0 0.0
        %5887 = vmatprep.subr.mxu0 0.0
        %5888 = vmatpush1.msra.mxu0 0.0
        %5889 = vmatprep.subr.mxu0 0.0
        %5890 = vmatpush1.msra.mxu0 0.0
        %5891 = vmatprep.subr.mxu0 0.0
        %v5892 = vand.u32 %v328, 4294901760
        %5893 = vmatpush1.msra.mxu0 %v5892
        %5894 = vmatprep.subr.mxu0 0.0
        %v5895 = vand.u32 %v327, 4294901760
        %5896 = vmatpush1.msra.mxu0 %v5895
        %5897 = vmatprep.subr.mxu0 0.0
        %v5898 = vand.u32 %v326, 4294901760
        %5899 = vmatpush1.msra.mxu0 %v5898
        %5900 = vmatprep.subr.mxu0 0.0
        %v5901 = vand.u32 %v325, 4294901760
        %5902 = vmatpush1.msra.mxu0 %v5901
        %5903 = vmatprep.subr.mxu0 0.0
        %5904 = vmatpush2.msra.mxu0 0.0
        %5905 = vmatprep.subr.mxu0 0.0
        %5906 = vmatpush2.msra.mxu0 0.0
        %5907 = vmatprep.subr.mxu0 0.0
        %5908 = vmatpush2.msra.mxu0 0.0
        %5909 = vmatprep.subr.mxu0 0.0
        %5910 = vmatpush2.msra.mxu0 0.0
        %5911 = vmatprep.subr.mxu0 0.0
        %5912 = vmatpush2.msra.mxu0 0.0
        %5913 = vmatprep.subr.mxu0 0.0
        %5914 = vmatpush2.msra.mxu0 0.0
        %5915 = vmatprep.subr.mxu0 0.0
        %5916 = vmatpush2.msra.mxu0 0.0
        %5917 = vmatprep.subr.mxu0 0.0
        %5918 = vmatpush2.msra.mxu0 0.0
        %5919 = vmatprep.subr.mxu0 0.0
        %5920 = vmatpush2.msra.mxu0 0.0
        %5921 = vmatprep.subr.mxu0 0.0
        %5922 = vmatpush2.msra.mxu0 0.0
        %5923 = vmatprep.subr.mxu0 0.0
        %5924 = vmatpush2.msra.mxu0 0.0
        %5925 = vmatprep.subr.mxu0 0.0
        %5926 = vmatpush2.msra.mxu0 0.0
        %5927 = vmatprep.subr.mxu0 0.0
        %5928 = vmatpush2.msra.mxu0 0.0
        %5929 = vmatprep.subr.mxu0 0.0
        %5930 = vmatpush2.msra.mxu0 0.0
        %5931 = vmatprep.subr.mxu0 0.0
        %5932 = vmatpush2.msra.mxu0 0.0
        %5933 = vmatprep.subr.mxu0 0.0
        %5934 = vmatpush2.msra.mxu0 0.0
        %5935 = vmatprep.mubr.f32.mxu0 0.0
        %v5936 = vand.u32 %v5335, 4294901760
        %5937 = vmatmul.mubr.f32.gmra.mxu0 %v5936
        %v5938 = vpop.f32.mrf.mxu0
        %v5939 = vadd.f32 %v5846, %v5938
        %v5940 = vpop.f32.mrf.mxu0
        %5941 = vmatprep.mubr.f32.mxu0 0.0
        %v5942 = vand.u32 %v5338, 4294901760
        %5943 = vmatmul.mubr.f32.gmra.mxu0 %v5942
        %v5944 = vpop.f32.mrf.mxu0
        %v5945 = vadd.f32 %v5852, %v5944
        %v5946 = vpop.f32.mrf.mxu0
        %5947 = vmatprep.mubr.f32.mxu0 0.0
        %v5948 = vand.u32 %v5341, 4294901760
        %5949 = vmatmul.mubr.f32.gmra.mxu0 %v5948
        %v5950 = vpop.f32.mrf.mxu0
        %v5951 = vadd.f32 %v5858, %v5950
        %v5952 = vpop.f32.mrf.mxu0
        %5953 = vmatprep.mubr.f32.mxu0 0.0
        %v5954 = vand.u32 %v5344, 4294901760
        %5955 = vmatmul.mubr.f32.gmra.mxu0 %v5954
        %v5956 = vpop.f32.mrf.mxu0
        %v5957 = vadd.f32 %v5864, %v5956
        %v5958 = vpop.f32.mrf.mxu0
        %5959 = vdwg.mxu0
        %5960 = vmatprep.subr.mxu0 0.0
        %5961 = vmatpush1.msra.mxu0 0.0
        %5962 = vmatprep.subr.mxu0 0.0
        %5963 = vmatpush1.msra.mxu0 0.0
        %5964 = vmatprep.subr.mxu0 0.0
        %5965 = vmatpush1.msra.mxu0 0.0
        %5966 = vmatprep.subr.mxu0 0.0
        %5967 = vmatpush1.msra.mxu0 0.0
        %5968 = vmatprep.subr.mxu0 0.0
        %5969 = vmatpush1.msra.mxu0 0.0
        %5970 = vmatprep.subr.mxu0 0.0
        %5971 = vmatpush1.msra.mxu0 0.0
        %5972 = vmatprep.subr.mxu0 0.0
        %5973 = vmatpush1.msra.mxu0 0.0
        %5974 = vmatprep.subr.mxu0 0.0
        %5975 = vmatpush1.msra.mxu0 0.0
        %5976 = vmatprep.subr.mxu0 0.0
        %5977 = vmatpush1.msra.mxu0 0.0
        %5978 = vmatprep.subr.mxu0 0.0
        %5979 = vmatpush1.msra.mxu0 0.0
        %5980 = vmatprep.subr.mxu0 0.0
        %5981 = vmatpush1.msra.mxu0 0.0
        %5982 = vmatprep.subr.mxu0 0.0
        %5983 = vmatpush1.msra.mxu0 0.0
        %5984 = vmatprep.subr.mxu0 0.0
        %v5985 = vand.u32 %v5957, 4294901760
        %5986 = vmatpush1.msra.mxu0 %v5985
        %5987 = vmatprep.subr.mxu0 0.0
        %v5988 = vand.u32 %v5951, 4294901760
        %5989 = vmatpush1.msra.mxu0 %v5988
        %5990 = vmatprep.subr.mxu0 0.0
        %v5991 = vand.u32 %v5945, 4294901760
        %5992 = vmatpush1.msra.mxu0 %v5991
        %5993 = vmatprep.subr.mxu0 0.0
        %v5994 = vand.u32 %v5939, 4294901760
        %5995 = vmatpush1.msra.mxu0 %v5994
        %5996 = vmatprep.subr.mxu0 0.0
        %5997 = vmatpush2.msra.mxu0 0.0
        %5998 = vmatprep.subr.mxu0 0.0
        %5999 = vmatpush2.msra.mxu0 0.0
        %6000 = vmatprep.subr.mxu0 0.0
        %6001 = vmatpush2.msra.mxu0 0.0
        %6002 = vmatprep.subr.mxu0 0.0
        %6003 = vmatpush2.msra.mxu0 0.0
        %6004 = vmatprep.subr.mxu0 0.0
        %6005 = vmatpush2.msra.mxu0 0.0
        %6006 = vmatprep.subr.mxu0 0.0
        %6007 = vmatpush2.msra.mxu0 0.0
        %6008 = vmatprep.subr.mxu0 0.0
        %6009 = vmatpush2.msra.mxu0 0.0
        %6010 = vmatprep.subr.mxu0 0.0
        %6011 = vmatpush2.msra.mxu0 0.0
        %6012 = vmatprep.subr.mxu0 0.0
        %6013 = vmatpush2.msra.mxu0 0.0
        %6014 = vmatprep.subr.mxu0 0.0
        %6015 = vmatpush2.msra.mxu0 0.0
        %6016 = vmatprep.subr.mxu0 0.0
        %6017 = vmatpush2.msra.mxu0 0.0
        %6018 = vmatprep.subr.mxu0 0.0
        %6019 = vmatpush2.msra.mxu0 0.0
        %6020 = vmatprep.subr.mxu0 0.0
        %6021 = vmatpush2.msra.mxu0 0.0
        %6022 = vmatprep.subr.mxu0 0.0
        %6023 = vmatpush2.msra.mxu0 0.0
        %6024 = vmatprep.subr.mxu0 0.0
        %6025 = vmatpush2.msra.mxu0 0.0
        %6026 = vmatprep.subr.mxu0 0.0
        %6027 = vmatpush2.msra.mxu0 0.0
        %6028 = vmatprep.mubr.f32.mxu0 0.0
        %v6029 = vand.u32 %v957, 4294901760
        %v6030 = vsub.f32 %v957, %v6029
        %v6031 = vand.u32 %v6030, 4294901760
        %v6032 = vsub.f32 %v6030, %v6031
        %v6033 = vand.u32 %v6032, 4294901760
        %6034 = vmatmul.mubr.f32.gmra.mxu0 %v6033
        %v6035 = vpop.f32.mrf.mxu0
        %v6036 = vadd.f32 0.0, %v6035
        %v6037 = vpop.f32.mrf.mxu0
        %6038 = vmatprep.mubr.f32.mxu0 0.0
        %v6039 = vand.u32 %v960, 4294901760
        %v6040 = vsub.f32 %v960, %v6039
        %v6041 = vand.u32 %v6040, 4294901760
        %v6042 = vsub.f32 %v6040, %v6041
        %v6043 = vand.u32 %v6042, 4294901760
        %6044 = vmatmul.mubr.f32.gmra.mxu0 %v6043
        %v6045 = vpop.f32.mrf.mxu0
        %v6046 = vadd.f32 0.0, %v6045
        %v6047 = vpop.f32.mrf.mxu0
        %6048 = vmatprep.mubr.f32.mxu0 0.0
        %v6049 = vand.u32 %v963, 4294901760
        %v6050 = vsub.f32 %v963, %v6049
        %v6051 = vand.u32 %v6050, 4294901760
        %v6052 = vsub.f32 %v6050, %v6051
        %v6053 = vand.u32 %v6052, 4294901760
        %6054 = vmatmul.mubr.f32.gmra.mxu0 %v6053
        %v6055 = vpop.f32.mrf.mxu0
        %v6056 = vadd.f32 0.0, %v6055
        %v6057 = vpop.f32.mrf.mxu0
        %6058 = vmatprep.mubr.f32.mxu0 0.0
        %v6059 = vand.u32 %v966, 4294901760
        %v6060 = vsub.f32 %v966, %v6059
        %v6061 = vand.u32 %v6060, 4294901760
        %v6062 = vsub.f32 %v6060, %v6061
        %v6063 = vand.u32 %v6062, 4294901760
        %6064 = vmatmul.mubr.f32.gmra.mxu0 %v6063
        %v6065 = vpop.f32.mrf.mxu0
        %v6066 = vadd.f32 0.0, %v6065
        %v6067 = vpop.f32.mrf.mxu0
        %6068 = vdwg.mxu0
        %6069 = vmatprep.subr.mxu0 0.0
        %6070 = vmatpush1.msra.mxu0 0.0
        %6071 = vmatprep.subr.mxu0 0.0
        %6072 = vmatpush1.msra.mxu0 0.0
        %6073 = vmatprep.subr.mxu0 0.0
        %6074 = vmatpush1.msra.mxu0 0.0
        %6075 = vmatprep.subr.mxu0 0.0
        %6076 = vmatpush1.msra.mxu0 0.0
        %6077 = vmatprep.subr.mxu0 0.0
        %6078 = vmatpush1.msra.mxu0 0.0
        %6079 = vmatprep.subr.mxu0 0.0
        %6080 = vmatpush1.msra.mxu0 0.0
        %6081 = vmatprep.subr.mxu0 0.0
        %6082 = vmatpush1.msra.mxu0 0.0
        %6083 = vmatprep.subr.mxu0 0.0
        %6084 = vmatpush1.msra.mxu0 0.0
        %6085 = vmatprep.subr.mxu0 0.0
        %6086 = vmatpush1.msra.mxu0 0.0
        %6087 = vmatprep.subr.mxu0 0.0
        %6088 = vmatpush1.msra.mxu0 0.0
        %6089 = vmatprep.subr.mxu0 0.0
        %6090 = vmatpush1.msra.mxu0 0.0
        %6091 = vmatprep.subr.mxu0 0.0
        %6092 = vmatpush1.msra.mxu0 0.0
        %6093 = vmatprep.subr.mxu0 0.0
        %v6094 = vand.u32 %v5957, 4294901760
        %v6095 = vsub.f32 %v5957, %v6094
        %v6096 = vand.u32 %v6095, 4294901760
        %v6097 = vsub.f32 %v6095, %v6096
        %v6098 = vand.u32 %v6097, 4294901760
        %6099 = vmatpush1.msra.mxu0 %v6098
        %6100 = vmatprep.subr.mxu0 0.0
        %v6101 = vand.u32 %v5951, 4294901760
        %v6102 = vsub.f32 %v5951, %v6101
        %v6103 = vand.u32 %v6102, 4294901760
        %v6104 = vsub.f32 %v6102, %v6103
        %v6105 = vand.u32 %v6104, 4294901760
        %6106 = vmatpush1.msra.mxu0 %v6105
        %6107 = vmatprep.subr.mxu0 0.0
        %v6108 = vand.u32 %v5945, 4294901760
        %v6109 = vsub.f32 %v5945, %v6108
        %v6110 = vand.u32 %v6109, 4294901760
        %v6111 = vsub.f32 %v6109, %v6110
        %v6112 = vand.u32 %v6111, 4294901760
        %6113 = vmatpush1.msra.mxu0 %v6112
        %6114 = vmatprep.subr.mxu0 0.0
        %v6115 = vand.u32 %v5939, 4294901760
        %v6116 = vsub.f32 %v5939, %v6115
        %v6117 = vand.u32 %v6116, 4294901760
        %v6118 = vsub.f32 %v6116, %v6117
        %v6119 = vand.u32 %v6118, 4294901760
        %6120 = vmatpush1.msra.mxu0 %v6119
        %6121 = vmatprep.subr.mxu0 0.0
        %6122 = vmatpush2.msra.mxu0 0.0
        %6123 = vmatprep.subr.mxu0 0.0
        %6124 = vmatpush2.msra.mxu0 0.0
        %6125 = vmatprep.subr.mxu0 0.0
        %6126 = vmatpush2.msra.mxu0 0.0
        %6127 = vmatprep.subr.mxu0 0.0
        %6128 = vmatpush2.msra.mxu0 0.0
        %6129 = vmatprep.subr.mxu0 0.0
        %6130 = vmatpush2.msra.mxu0 0.0
        %6131 = vmatprep.subr.mxu0 0.0
        %6132 = vmatpush2.msra.mxu0 0.0
        %6133 = vmatprep.subr.mxu0 0.0
        %6134 = vmatpush2.msra.mxu0 0.0
        %6135 = vmatprep.subr.mxu0 0.0
        %6136 = vmatpush2.msra.mxu0 0.0
        %6137 = vmatprep.subr.mxu0 0.0
        %6138 = vmatpush2.msra.mxu0 0.0
        %6139 = vmatprep.subr.mxu0 0.0
        %6140 = vmatpush2.msra.mxu0 0.0
        %6141 = vmatprep.subr.mxu0 0.0
        %6142 = vmatpush2.msra.mxu0 0.0
        %6143 = vmatprep.subr.mxu0 0.0
        %6144 = vmatpush2.msra.mxu0 0.0
        %6145 = vmatprep.subr.mxu0 0.0
        %6146 = vmatpush2.msra.mxu0 0.0
        %6147 = vmatprep.subr.mxu0 0.0
        %6148 = vmatpush2.msra.mxu0 0.0
        %6149 = vmatprep.subr.mxu0 0.0
        %6150 = vmatpush2.msra.mxu0 0.0
        %6151 = vmatprep.subr.mxu0 0.0
        %6152 = vmatpush2.msra.mxu0 0.0
        %6153 = vmatprep.mubr.f32.mxu0 0.0
        %v6154 = vand.u32 %v957, 4294901760
        %6155 = vmatmul.mubr.f32.gmra.mxu0 %v6154
        %v6156 = vpop.f32.mrf.mxu0
        %v6157 = vadd.f32 %v6036, %v6156
        %v6158 = vpop.f32.mrf.mxu0
        %6159 = vmatprep.mubr.f32.mxu0 0.0
        %v6160 = vand.u32 %v960, 4294901760
        %6161 = vmatmul.mubr.f32.gmra.mxu0 %v6160
        %v6162 = vpop.f32.mrf.mxu0
        %v6163 = vadd.f32 %v6046, %v6162
        %v6164 = vpop.f32.mrf.mxu0
        %6165 = vmatprep.mubr.f32.mxu0 0.0
        %v6166 = vand.u32 %v963, 4294901760
        %6167 = vmatmul.mubr.f32.gmra.mxu0 %v6166
        %v6168 = vpop.f32.mrf.mxu0
        %v6169 = vadd.f32 %v6056, %v6168
        %v6170 = vpop.f32.mrf.mxu0
        %6171 = vmatprep.mubr.f32.mxu0 0.0
        %v6172 = vand.u32 %v966, 4294901760
        %6173 = vmatmul.mubr.f32.gmra.mxu0 %v6172
        %v6174 = vpop.f32.mrf.mxu0
        %v6175 = vadd.f32 %v6066, %v6174
        %v6176 = vpop.f32.mrf.mxu0
        %6177 = vdwg.mxu0
        %6178 = vmatprep.subr.mxu0 0.0
        %6179 = vmatpush1.msra.mxu0 0.0
        %6180 = vmatprep.subr.mxu0 0.0
        %6181 = vmatpush1.msra.mxu0 0.0
        %6182 = vmatprep.subr.mxu0 0.0
        %6183 = vmatpush1.msra.mxu0 0.0
        %6184 = vmatprep.subr.mxu0 0.0
        %6185 = vmatpush1.msra.mxu0 0.0
        %6186 = vmatprep.subr.mxu0 0.0
        %6187 = vmatpush1.msra.mxu0 0.0
        %6188 = vmatprep.subr.mxu0 0.0
        %6189 = vmatpush1.msra.mxu0 0.0
        %6190 = vmatprep.subr.mxu0 0.0
        %6191 = vmatpush1.msra.mxu0 0.0
        %6192 = vmatprep.subr.mxu0 0.0
        %6193 = vmatpush1.msra.mxu0 0.0
        %6194 = vmatprep.subr.mxu0 0.0
        %6195 = vmatpush1.msra.mxu0 0.0
        %6196 = vmatprep.subr.mxu0 0.0
        %6197 = vmatpush1.msra.mxu0 0.0
        %6198 = vmatprep.subr.mxu0 0.0
        %6199 = vmatpush1.msra.mxu0 0.0
        %6200 = vmatprep.subr.mxu0 0.0
        %6201 = vmatpush1.msra.mxu0 0.0
        %6202 = vmatprep.subr.mxu0 0.0
        %v6203 = vand.u32 %v5957, 4294901760
        %v6204 = vsub.f32 %v5957, %v6203
        %6205 = vmatpush1.msra.mxu0 %v6204
        %6206 = vmatprep.subr.mxu0 0.0
        %v6207 = vand.u32 %v5951, 4294901760
        %v6208 = vsub.f32 %v5951, %v6207
        %6209 = vmatpush1.msra.mxu0 %v6208
        %6210 = vmatprep.subr.mxu0 0.0
        %v6211 = vand.u32 %v5945, 4294901760
        %v6212 = vsub.f32 %v5945, %v6211
        %6213 = vmatpush1.msra.mxu0 %v6212
        %6214 = vmatprep.subr.mxu0 0.0
        %v6215 = vand.u32 %v5939, 4294901760
        %v6216 = vsub.f32 %v5939, %v6215
        %6217 = vmatpush1.msra.mxu0 %v6216
        %6218 = vmatprep.subr.mxu0 0.0
        %6219 = vmatpush2.msra.mxu0 0.0
        %6220 = vmatprep.subr.mxu0 0.0
        %6221 = vmatpush2.msra.mxu0 0.0
        %6222 = vmatprep.subr.mxu0 0.0
        %6223 = vmatpush2.msra.mxu0 0.0
        %6224 = vmatprep.subr.mxu0 0.0
        %6225 = vmatpush2.msra.mxu0 0.0
        %6226 = vmatprep.subr.mxu0 0.0
        %6227 = vmatpush2.msra.mxu0 0.0
        %6228 = vmatprep.subr.mxu0 0.0
        %6229 = vmatpush2.msra.mxu0 0.0
        %6230 = vmatprep.subr.mxu0 0.0
        %6231 = vmatpush2.msra.mxu0 0.0
        %6232 = vmatprep.subr.mxu0 0.0
        %6233 = vmatpush2.msra.mxu0 0.0
        %6234 = vmatprep.subr.mxu0 0.0
        %6235 = vmatpush2.msra.mxu0 0.0
        %6236 = vmatprep.subr.mxu0 0.0
        %6237 = vmatpush2.msra.mxu0 0.0
        %6238 = vmatprep.subr.mxu0 0.0
        %6239 = vmatpush2.msra.mxu0 0.0
        %6240 = vmatprep.subr.mxu0 0.0
        %6241 = vmatpush2.msra.mxu0 0.0
        %6242 = vmatprep.subr.mxu0 0.0
        %6243 = vmatpush2.msra.mxu0 0.0
        %6244 = vmatprep.subr.mxu0 0.0
        %6245 = vmatpush2.msra.mxu0 0.0
        %6246 = vmatprep.subr.mxu0 0.0
        %6247 = vmatpush2.msra.mxu0 0.0
        %6248 = vmatprep.subr.mxu0 0.0
        %6249 = vmatpush2.msra.mxu0 0.0
        %6250 = vmatprep.mubr.f32.mxu0 0.0
        %v6251 = vand.u32 %v957, 4294901760
        %v6252 = vsub.f32 %v957, %v6251
        %6253 = vmatmul.mubr.f32.gmra.mxu0 %v6252
        %v6254 = vpop.f32.mrf.mxu0
        %v6255 = vadd.f32 %v6157, %v6254
        %v6256 = vpop.f32.mrf.mxu0
        %6257 = vmatprep.mubr.f32.mxu0 0.0
        %v6258 = vand.u32 %v960, 4294901760
        %v6259 = vsub.f32 %v960, %v6258
        %6260 = vmatmul.mubr.f32.gmra.mxu0 %v6259
        %v6261 = vpop.f32.mrf.mxu0
        %v6262 = vadd.f32 %v6163, %v6261
        %v6263 = vpop.f32.mrf.mxu0
        %6264 = vmatprep.mubr.f32.mxu0 0.0
        %v6265 = vand.u32 %v963, 4294901760
        %v6266 = vsub.f32 %v963, %v6265
        %6267 = vmatmul.mubr.f32.gmra.mxu0 %v6266
        %v6268 = vpop.f32.mrf.mxu0
        %v6269 = vadd.f32 %v6169, %v6268
        %v6270 = vpop.f32.mrf.mxu0
        %6271 = vmatprep.mubr.f32.mxu0 0.0
        %v6272 = vand.u32 %v966, 4294901760
        %v6273 = vsub.f32 %v966, %v6272
        %6274 = vmatmul.mubr.f32.gmra.mxu0 %v6273
        %v6275 = vpop.f32.mrf.mxu0
        %v6276 = vadd.f32 %v6175, %v6275
        %v6277 = vpop.f32.mrf.mxu0
        %6278 = vdwg.mxu0
        %6279 = vmatprep.subr.mxu0 0.0
        %6280 = vmatpush1.msra.mxu0 0.0
        %6281 = vmatprep.subr.mxu0 0.0
        %6282 = vmatpush1.msra.mxu0 0.0
        %6283 = vmatprep.subr.mxu0 0.0
        %6284 = vmatpush1.msra.mxu0 0.0
        %6285 = vmatprep.subr.mxu0 0.0
        %6286 = vmatpush1.msra.mxu0 0.0
        %6287 = vmatprep.subr.mxu0 0.0
        %6288 = vmatpush1.msra.mxu0 0.0
        %6289 = vmatprep.subr.mxu0 0.0
        %6290 = vmatpush1.msra.mxu0 0.0
        %6291 = vmatprep.subr.mxu0 0.0
        %6292 = vmatpush1.msra.mxu0 0.0
        %6293 = vmatprep.subr.mxu0 0.0
        %6294 = vmatpush1.msra.mxu0 0.0
        %6295 = vmatprep.subr.mxu0 0.0
        %6296 = vmatpush1.msra.mxu0 0.0
        %6297 = vmatprep.subr.mxu0 0.0
        %6298 = vmatpush1.msra.mxu0 0.0
        %6299 = vmatprep.subr.mxu0 0.0
        %6300 = vmatpush1.msra.mxu0 0.0
        %6301 = vmatprep.subr.mxu0 0.0
        %6302 = vmatpush1.msra.mxu0 0.0
        %6303 = vmatprep.subr.mxu0 0.0
        %v6304 = vand.u32 %v5957, 4294901760
        %6305 = vmatpush1.msra.mxu0 %v6304
        %6306 = vmatprep.subr.mxu0 0.0
        %v6307 = vand.u32 %v5951, 4294901760
        %6308 = vmatpush1.msra.mxu0 %v6307
        %6309 = vmatprep.subr.mxu0 0.0
        %v6310 = vand.u32 %v5945, 4294901760
        %6311 = vmatpush1.msra.mxu0 %v6310
        %6312 = vmatprep.subr.mxu0 0.0
        %v6313 = vand.u32 %v5939, 4294901760
        %6314 = vmatpush1.msra.mxu0 %v6313
        %6315 = vmatprep.subr.mxu0 0.0
        %6316 = vmatpush2.msra.mxu0 0.0
        %6317 = vmatprep.subr.mxu0 0.0
        %6318 = vmatpush2.msra.mxu0 0.0
        %6319 = vmatprep.subr.mxu0 0.0
        %6320 = vmatpush2.msra.mxu0 0.0
        %6321 = vmatprep.subr.mxu0 0.0
        %6322 = vmatpush2.msra.mxu0 0.0
        %6323 = vmatprep.subr.mxu0 0.0
        %6324 = vmatpush2.msra.mxu0 0.0
        %6325 = vmatprep.subr.mxu0 0.0
        %6326 = vmatpush2.msra.mxu0 0.0
        %6327 = vmatprep.subr.mxu0 0.0
        %6328 = vmatpush2.msra.mxu0 0.0
        %6329 = vmatprep.subr.mxu0 0.0
        %6330 = vmatpush2.msra.mxu0 0.0
        %6331 = vmatprep.subr.mxu0 0.0
        %6332 = vmatpush2.msra.mxu0 0.0
        %6333 = vmatprep.subr.mxu0 0.0
        %6334 = vmatpush2.msra.mxu0 0.0
        %6335 = vmatprep.subr.mxu0 0.0
        %6336 = vmatpush2.msra.mxu0 0.0
        %6337 = vmatprep.subr.mxu0 0.0
        %6338 = vmatpush2.msra.mxu0 0.0
        %6339 = vmatprep.subr.mxu0 0.0
        %6340 = vmatpush2.msra.mxu0 0.0
        %6341 = vmatprep.subr.mxu0 0.0
        %6342 = vmatpush2.msra.mxu0 0.0
        %6343 = vmatprep.subr.mxu0 0.0
        %6344 = vmatpush2.msra.mxu0 0.0
        %6345 = vmatprep.subr.mxu0 0.0
        %6346 = vmatpush2.msra.mxu0 0.0
        %6347 = vmatprep.mubr.f32.mxu0 0.0
        %v6348 = vand.u32 %v957, 4294901760
        %v6349 = vsub.f32 %v957, %v6348
        %v6350 = vand.u32 %v6349, 4294901760
        %6351 = vmatmul.mubr.f32.gmra.mxu0 %v6350
        %v6352 = vpop.f32.mrf.mxu0
        %v6353 = vadd.f32 %v6255, %v6352
        %v6354 = vpop.f32.mrf.mxu0
        %6355 = vmatprep.mubr.f32.mxu0 0.0
        %v6356 = vand.u32 %v960, 4294901760
        %v6357 = vsub.f32 %v960, %v6356
        %v6358 = vand.u32 %v6357, 4294901760
        %6359 = vmatmul.mubr.f32.gmra.mxu0 %v6358
        %v6360 = vpop.f32.mrf.mxu0
        %v6361 = vadd.f32 %v6262, %v6360
        %v6362 = vpop.f32.mrf.mxu0
        %6363 = vmatprep.mubr.f32.mxu0 0.0
        %v6364 = vand.u32 %v963, 4294901760
        %v6365 = vsub.f32 %v963, %v6364
        %v6366 = vand.u32 %v6365, 4294901760
        %6367 = vmatmul.mubr.f32.gmra.mxu0 %v6366
        %v6368 = vpop.f32.mrf.mxu0
        %v6369 = vadd.f32 %v6269, %v6368
        %v6370 = vpop.f32.mrf.mxu0
        %6371 = vmatprep.mubr.f32.mxu0 0.0
        %v6372 = vand.u32 %v966, 4294901760
        %v6373 = vsub.f32 %v966, %v6372
        %v6374 = vand.u32 %v6373, 4294901760
        %6375 = vmatmul.mubr.f32.gmra.mxu0 %v6374
        %v6376 = vpop.f32.mrf.mxu0
        %v6377 = vadd.f32 %v6276, %v6376
        %v6378 = vpop.f32.mrf.mxu0
        %6379 = vdwg.mxu0
        %6380 = vmatprep.subr.mxu0 0.0
        %6381 = vmatpush1.msra.mxu0 0.0
        %6382 = vmatprep.subr.mxu0 0.0
        %6383 = vmatpush1.msra.mxu0 0.0
        %6384 = vmatprep.subr.mxu0 0.0
        %6385 = vmatpush1.msra.mxu0 0.0
        %6386 = vmatprep.subr.mxu0 0.0
        %6387 = vmatpush1.msra.mxu0 0.0
        %6388 = vmatprep.subr.mxu0 0.0
        %6389 = vmatpush1.msra.mxu0 0.0
        %6390 = vmatprep.subr.mxu0 0.0
        %6391 = vmatpush1.msra.mxu0 0.0
        %6392 = vmatprep.subr.mxu0 0.0
        %6393 = vmatpush1.msra.mxu0 0.0
        %6394 = vmatprep.subr.mxu0 0.0
        %6395 = vmatpush1.msra.mxu0 0.0
        %6396 = vmatprep.subr.mxu0 0.0
        %6397 = vmatpush1.msra.mxu0 0.0
        %6398 = vmatprep.subr.mxu0 0.0
        %6399 = vmatpush1.msra.mxu0 0.0
        %6400 = vmatprep.subr.mxu0 0.0
        %6401 = vmatpush1.msra.mxu0 0.0
        %6402 = vmatprep.subr.mxu0 0.0
        %6403 = vmatpush1.msra.mxu0 0.0
        %6404 = vmatprep.subr.mxu0 0.0
        %v6405 = vand.u32 %v5957, 4294901760
        %v6406 = vsub.f32 %v5957, %v6405
        %v6407 = vand.u32 %v6406, 4294901760
        %6408 = vmatpush1.msra.mxu0 %v6407
        %6409 = vmatprep.subr.mxu0 0.0
        %v6410 = vand.u32 %v5951, 4294901760
        %v6411 = vsub.f32 %v5951, %v6410
        %v6412 = vand.u32 %v6411, 4294901760
        %6413 = vmatpush1.msra.mxu0 %v6412
        %6414 = vmatprep.subr.mxu0 0.0
        %v6415 = vand.u32 %v5945, 4294901760
        %v6416 = vsub.f32 %v5945, %v6415
        %v6417 = vand.u32 %v6416, 4294901760
        %6418 = vmatpush1.msra.mxu0 %v6417
        %6419 = vmatprep.subr.mxu0 0.0
        %v6420 = vand.u32 %v5939, 4294901760
        %v6421 = vsub.f32 %v5939, %v6420
        %v6422 = vand.u32 %v6421, 4294901760
        %6423 = vmatpush1.msra.mxu0 %v6422
        %6424 = vmatprep.subr.mxu0 0.0
        %6425 = vmatpush2.msra.mxu0 0.0
        %6426 = vmatprep.subr.mxu0 0.0
        %6427 = vmatpush2.msra.mxu0 0.0
        %6428 = vmatprep.subr.mxu0 0.0
        %6429 = vmatpush2.msra.mxu0 0.0
        %6430 = vmatprep.subr.mxu0 0.0
        %6431 = vmatpush2.msra.mxu0 0.0
        %6432 = vmatprep.subr.mxu0 0.0
        %6433 = vmatpush2.msra.mxu0 0.0
        %6434 = vmatprep.subr.mxu0 0.0
        %6435 = vmatpush2.msra.mxu0 0.0
        %6436 = vmatprep.subr.mxu0 0.0
        %6437 = vmatpush2.msra.mxu0 0.0
        %6438 = vmatprep.subr.mxu0 0.0
        %6439 = vmatpush2.msra.mxu0 0.0
        %6440 = vmatprep.subr.mxu0 0.0
        %6441 = vmatpush2.msra.mxu0 0.0
        %6442 = vmatprep.subr.mxu0 0.0
        %6443 = vmatpush2.msra.mxu0 0.0
        %6444 = vmatprep.subr.mxu0 0.0
        %6445 = vmatpush2.msra.mxu0 0.0
        %6446 = vmatprep.subr.mxu0 0.0
        %6447 = vmatpush2.msra.mxu0 0.0
        %6448 = vmatprep.subr.mxu0 0.0
        %6449 = vmatpush2.msra.mxu0 0.0
        %6450 = vmatprep.subr.mxu0 0.0
        %6451 = vmatpush2.msra.mxu0 0.0
        %6452 = vmatprep.subr.mxu0 0.0
        %6453 = vmatpush2.msra.mxu0 0.0
        %6454 = vmatprep.subr.mxu0 0.0
        %6455 = vmatpush2.msra.mxu0 0.0
        %6456 = vmatprep.mubr.f32.mxu0 0.0
        %v6457 = vand.u32 %v957, 4294901760
        %6458 = vmatmul.mubr.f32.gmra.mxu0 %v6457
        %v6459 = vpop.f32.mrf.mxu0
        %v6460 = vadd.f32 %v6353, %v6459
        %v6461 = vpop.f32.mrf.mxu0
        %6462 = vmatprep.mubr.f32.mxu0 0.0
        %v6463 = vand.u32 %v960, 4294901760
        %6464 = vmatmul.mubr.f32.gmra.mxu0 %v6463
        %v6465 = vpop.f32.mrf.mxu0
        %v6466 = vadd.f32 %v6361, %v6465
        %v6467 = vpop.f32.mrf.mxu0
        %6468 = vmatprep.mubr.f32.mxu0 0.0
        %v6469 = vand.u32 %v963, 4294901760
        %6470 = vmatmul.mubr.f32.gmra.mxu0 %v6469
        %v6471 = vpop.f32.mrf.mxu0
        %v6472 = vadd.f32 %v6369, %v6471
        %v6473 = vpop.f32.mrf.mxu0
        %6474 = vmatprep.mubr.f32.mxu0 0.0
        %v6475 = vand.u32 %v966, 4294901760
        %6476 = vmatmul.mubr.f32.gmra.mxu0 %v6475
        %v6477 = vpop.f32.mrf.mxu0
        %v6478 = vadd.f32 %v6377, %v6477
        %v6479 = vpop.f32.mrf.mxu0
        %6480 = vdwg.mxu0
        %6481 = vmatprep.subr.mxu0 0.0
        %6482 = vmatpush1.msra.mxu0 0.0
        %6483 = vmatprep.subr.mxu0 0.0
        %6484 = vmatpush1.msra.mxu0 0.0
        %6485 = vmatprep.subr.mxu0 0.0
        %6486 = vmatpush1.msra.mxu0 0.0
        %6487 = vmatprep.subr.mxu0 0.0
        %6488 = vmatpush1.msra.mxu0 0.0
        %6489 = vmatprep.subr.mxu0 0.0
        %6490 = vmatpush1.msra.mxu0 0.0
        %6491 = vmatprep.subr.mxu0 0.0
        %6492 = vmatpush1.msra.mxu0 0.0
        %6493 = vmatprep.subr.mxu0 0.0
        %6494 = vmatpush1.msra.mxu0 0.0
        %6495 = vmatprep.subr.mxu0 0.0
        %6496 = vmatpush1.msra.mxu0 0.0
        %6497 = vmatprep.subr.mxu0 0.0
        %6498 = vmatpush1.msra.mxu0 0.0
        %6499 = vmatprep.subr.mxu0 0.0
        %6500 = vmatpush1.msra.mxu0 0.0
        %6501 = vmatprep.subr.mxu0 0.0
        %6502 = vmatpush1.msra.mxu0 0.0
        %6503 = vmatprep.subr.mxu0 0.0
        %6504 = vmatpush1.msra.mxu0 0.0
        %6505 = vmatprep.subr.mxu0 0.0
        %v6506 = vand.u32 %v5957, 4294901760
        %6507 = vmatpush1.msra.mxu0 %v6506
        %6508 = vmatprep.subr.mxu0 0.0
        %v6509 = vand.u32 %v5951, 4294901760
        %6510 = vmatpush1.msra.mxu0 %v6509
        %6511 = vmatprep.subr.mxu0 0.0
        %v6512 = vand.u32 %v5945, 4294901760
        %6513 = vmatpush1.msra.mxu0 %v6512
        %6514 = vmatprep.subr.mxu0 0.0
        %v6515 = vand.u32 %v5939, 4294901760
        %6516 = vmatpush1.msra.mxu0 %v6515
        %6517 = vmatprep.subr.mxu0 0.0
        %6518 = vmatpush2.msra.mxu0 0.0
        %6519 = vmatprep.subr.mxu0 0.0
        %6520 = vmatpush2.msra.mxu0 0.0
        %6521 = vmatprep.subr.mxu0 0.0
        %6522 = vmatpush2.msra.mxu0 0.0
        %6523 = vmatprep.subr.mxu0 0.0
        %6524 = vmatpush2.msra.mxu0 0.0
        %6525 = vmatprep.subr.mxu0 0.0
        %6526 = vmatpush2.msra.mxu0 0.0
        %6527 = vmatprep.subr.mxu0 0.0
        %6528 = vmatpush2.msra.mxu0 0.0
        %6529 = vmatprep.subr.mxu0 0.0
        %6530 = vmatpush2.msra.mxu0 0.0
        %6531 = vmatprep.subr.mxu0 0.0
        %6532 = vmatpush2.msra.mxu0 0.0
        %6533 = vmatprep.subr.mxu0 0.0
        %6534 = vmatpush2.msra.mxu0 0.0
        %6535 = vmatprep.subr.mxu0 0.0
        %6536 = vmatpush2.msra.mxu0 0.0
        %6537 = vmatprep.subr.mxu0 0.0
        %6538 = vmatpush2.msra.mxu0 0.0
        %6539 = vmatprep.subr.mxu0 0.0
        %6540 = vmatpush2.msra.mxu0 0.0
        %6541 = vmatprep.subr.mxu0 0.0
        %6542 = vmatpush2.msra.mxu0 0.0
        %6543 = vmatprep.subr.mxu0 0.0
        %6544 = vmatpush2.msra.mxu0 0.0
        %6545 = vmatprep.subr.mxu0 0.0
        %6546 = vmatpush2.msra.mxu0 0.0
        %6547 = vmatprep.subr.mxu0 0.0
        %6548 = vmatpush2.msra.mxu0 0.0
        %6549 = vmatprep.mubr.f32.mxu0 0.0
        %v6550 = vand.u32 %v957, 4294901760
        %6551 = vmatmul.mubr.f32.gmra.mxu0 %v6550
        %v6552 = vpop.f32.mrf.mxu0
        %v6553 = vadd.f32 %v6460, %v6552
        %v6554 = vpop.f32.mrf.mxu0
        %6555 = vmatprep.mubr.f32.mxu0 0.0
        %v6556 = vand.u32 %v960, 4294901760
        %6557 = vmatmul.mubr.f32.gmra.mxu0 %v6556
        %v6558 = vpop.f32.mrf.mxu0
        %v6559 = vadd.f32 %v6466, %v6558
        %v6560 = vpop.f32.mrf.mxu0
        %6561 = vmatprep.mubr.f32.mxu0 0.0
        %v6562 = vand.u32 %v963, 4294901760
        %6563 = vmatmul.mubr.f32.gmra.mxu0 %v6562
        %v6564 = vpop.f32.mrf.mxu0
        %v6565 = vadd.f32 %v6472, %v6564
        %v6566 = vpop.f32.mrf.mxu0
        %6567 = vmatprep.mubr.f32.mxu0 0.0
        %v6568 = vand.u32 %v966, 4294901760
        %6569 = vmatmul.mubr.f32.gmra.mxu0 %v6568
        %v6570 = vpop.f32.mrf.mxu0
        %v6571 = vadd.f32 %v6478, %v6570
        %v6572 = vpop.f32.mrf.mxu0
        %6573 = vdwg.mxu0
        %v6574 = vsub.f32 %v6553, %v2830
        %v6575 = vsub.f32 %v6559, %v2831
        %v6576 = vsub.f32 %v6565, %v2832
        %v6577 = vsub.f32 %v6571, %v2833
        %v6578 = vmul.f32 %v2830, 2.0
        %v6579 = vmul.f32 %v2831, 2.0
        %v6580 = vmul.f32 %v2832, 2.0
        %v6581 = vmul.f32 %v2833, 2.0
        %v6582 = vadd.f32 %v6578, 0.0001
        %v6583 = vadd.f32 %v6579, 0.0001
        %v6584 = vadd.f32 %v6580, 0.0001
        %v6585 = vadd.f32 %v6581, 0.0001
        %v6586 = vmul.f32 %v6574, 2.0
        %v6587 = vmul.f32 %v6575, 2.0
        %v6588 = vmul.f32 %v6576, 2.0
        %v6589 = vmul.f32 %v6577, 2.0
        %v6590 = vadd.f32 %v6586, 0.0009
        %v6591 = vadd.f32 %v6587, 0.0009
        %v6592 = vadd.f32 %v6588, 0.0009
        %v6593 = vadd.f32 %v6589, 0.0009
        %v6594 = vmul.f32 %v6582, %v6590
        %v6595 = vmul.f32 %v6583, %v6591
        %v6596 = vmul.f32 %v6584, %v6592
        %v6597 = vmul.f32 %v6585, %v6593
        %v6598 = vadd.f32 %v2822, %v2826
        %v6599 = vadd.f32 %v2823, %v2827
        %v6600 = vadd.f32 %v2824, %v2828
        %v6601 = vadd.f32 %v2825, %v2829
        %v6602 = vadd.f32 %v6598, 0.0001
        %v6603 = vadd.f32 %v6599, 0.0001
        %v6604 = vadd.f32 %v6600, 0.0001
        %v6605 = vadd.f32 %v6601, 0.0001
        %v6606 = vadd.f32 %v4078, %v5326
        %v6607 = vadd.f32 %v4079, %v5327
        %v6608 = vadd.f32 %v4080, %v5328
        %v6609 = vadd.f32 %v4081, %v5329
        %v6610 = vadd.f32 %v6606, 0.0009
        %v6611 = vadd.f32 %v6607, 0.0009
        %v6612 = vadd.f32 %v6608, 0.0009
        %v6613 = vadd.f32 %v6609, 0.0009
        %v6614 = vmul.f32 %v6602, %v6610
        %v6615 = vmul.f32 %v6603, %v6611
        %v6616 = vmul.f32 %v6604, %v6612
        %v6617 = vmul.f32 %v6605, %v6613
        %v6618 = vrcp.pop %v6614
        %v6619 = vmul.f32 %v6594, %v6618
        %v6620 = vrcp.pop %v6615
        %v6621 = vmul.f32 %v6595, %v6620
        %v6622 = vrcp.pop %v6616
        %v6623 = vmul.f32 %v6596, %v6622
        %v6624 = vrcp.pop %v6617
        %v6625 = vmul.f32 %v6597, %v6624
        %v6626 = vsel %vm329, %v6619, 0.0
        %v6627 = vsel %vm329, %v6621, 0.0
        %v6628 = vadd.f32 %v6626, %v6627
        %v6629 = vsel %vm329, %v6623, 0.0
        %v6630 = vadd.f32 %v6628, %v6629
        %v6631 = vsel %vm329, %v6625, 0.0
        %v6632 = vadd.f32 %v6630, %v6631
        %6633 = vadd.xlane.f32.xlu0 %v6632
        %v6634 = vpop.xlane.xlu0 %6633
        %v6635 = vrot.slane %v6634, 4
        %v6636 = vadd.f32 %v6634, %v6635
        %v6637 = vrot.slane %v6636, 2
        %v6638 = vadd.f32 %v6636, %v6637
        %v6639 = vrot.slane %v6638, 1
        %v6640 = vadd.f32 %v6638, %v6639
        %s6641 = vtos %v6640
        %v6642 = vstv %s6641
        %v6643 = vadd.f32 %v6642, 0.0
        %vm6644 = vcmask 0
        %6645 = vst.msk [vmem:[%s312] sm:$0x1] %vm6644, %v6643
        %p6646 = scmp.lt.s32.totalorder %s26, 1
        %s6647 = scalar_select %p6646, %s26, 1
        %p6648 = scmp.lt.s32.totalorder %s27, 2
        %s6649 = scalar_select %p6648, %s27, 2
        %s6650 = smul.addr %s6647, 3
        %s6651 = sadd.s32 %s6649, %s6650
        %s6652 = scalar_lea.vmem %s4, %s6651
        // Predicated region
        $region53: #{tpu_custom_call.1} parent=35 // pred_check
          %p6653 = pneg %p152
        $region54: #{tpu_custom_call.1} parent=35 // pred_check_branch
          %6655 = sbr.rel (%p6653) target = $region56
        $region55: #{tpu_custom_call.1} parent=35 // pred_region
          _
        $region56: #{tpu_custom_call.1} parent=35 // pred_fallthru
          _
      $region36: #{tpu_custom_call.1} parent=5 // pred_fallthru
        _
      %p6656 = scmp.le.s32.totalorder 2, %s17
      // Predicated region
      $region57: #{tpu_custom_call.1} parent=5 // pred_check
        %p6657 = pneg %p6656
      $region58: #{tpu_custom_call.1} parent=5 // pred_check_branch
        %6659 = sbr.rel (%p6657) target = $region60
      $region59: #{tpu_custom_call.1} parent=5 // pred_region
        %s6660 = ssub.s32 %s17, 2
        // Predicated region
        $region61: #{tpu_custom_call.1} parent=59 // pred_check
          %p6661 = pneg %p158
        $region62: #{tpu_custom_call.1} parent=59 // pred_check_branch
          %6663 = sbr.rel (%p6661) target = $region64
        $region63: #{tpu_custom_call.1} parent=59 // pred_region
          %p6664 = scmp.lt.s32.totalorder %s28, 1
          %s6665 = scalar_select %p6664, %s28, 1
          %p6666 = scmp.lt.s32.totalorder %s29, 2
          %s6667 = scalar_select %p6666, %s29, 2
          %s6668 = smul.addr %s6665, 3
          %s6669 = sadd.s32 %s6667, %s6668
          %s6670 = scalar_lea.vmem %s4, %s6669
        $region64: #{tpu_custom_call.1} parent=59 // pred_fallthru
          _
      $region60: #{tpu_custom_call.1} parent=5 // pred_fallthru
        _
    $region6: #{tpu_custom_call.1} parent=1 // loop_footer
      %s21 = sadd.s32 1, %s17
    $region7: #{tpu_custom_call.1} parent=1 // loop_footer_branch
      %16 = sbr.rel target = $region3
    $region8: #{tpu_custom_call.1} parent=1 // loop_exit
      _
    %6671 = vsyncpa [#allocation3], 1
    %s6672 = scalar_lea.sflag [#allocation3], 1
    %6673 = vsyncpa %s6672, 1
    %6674 = vsyncpa [#allocation5], 1
    %s6675 = scalar_lea.sflag [#allocation5], 1
    %6676 = vsyncpa %s6675, 1
    %6677 = vsyncpa [#allocation8], 1

</llo_original>
